<compile_context>
chip_gen: v7x
topology: tpu7x:2x2x1
jax: 0.10.0
libtpu: 0.0.40
codegen_flags: <defaults>
</compile_context>

<pallas_src>
import functools

import numpy as np
import jax
import jax.numpy as jnp
from jax.experimental import pallas as pl
from jax.experimental.pallas import tpu as pltpu

F32 = jnp.float32
_HIGHEST = jax.lax.Precision.HIGHEST


def _gated_esn_kernel(leaky_rate, tc, hidden_dim,
                      up_ref, w_t_ref, w_pv_ref, wzh_t_ref, bz_ref,
                      out_ref, hres_ref, h_ref):
    """One grid step == `tc` time steps of the coupled recurrences for one
    batch block.  Grid = (batch_blocks, time_blocks); time is sequential."""
    H = hidden_dim

    # Reset carried state at the first TIME block of every batch block.
    @pl.when(pl.program_id(1) == 0)
    def _():
        hres_ref[...] = jnp.zeros_like(hres_ref)
        h_ref[...] = jnp.zeros_like(h_ref)

    hres = hres_ref[...]          # (bb, R)   reservoir state
    h = h_ref[...]                # (bb, H)   gated hidden state
    w_t = w_t_ref[...]            # (R, R)    W^T
    w_pv = w_pv_ref[...]          # (R, 2H)   [V^T | V^T @ wzp^T]
    wzh_t = wzh_t_ref[...]        # (H, H)    wzh^T
    bb = h.shape[0]

    # Hoisted bias broadcast: JAX does not CSE broadcast_in_dim, so doing it
    # inside the unrolled loop would re-materialize it tc times.
    bzb = jnp.broadcast_to(bz_ref[...], (bb, H))          # (bb, H)

    one_minus_a = 1.0 - leaky_rate

    # Statically unrolled loop over the tc timesteps of this block.
    for i in range(tc):
        # wzh-part of the gate: depends only on the PREVIOUS hidden state, so
        # it is issued first and overlaps the reservoir matmul + tanh below
        # (off the per-step serial dependency chain).
        hg = jnp.dot(h, wzh_t, preferred_element_type=F32,
                     precision=_HIGHEST)                               # (bb, H)

        # --- LiESN reservoir update (input projection already folded in) ----
        pre = up_ref[:, i, :] + jnp.dot(hres, w_t,
                                        preferred_element_type=F32,
                                        precision=_HIGHEST)            # (bb, R)
        hres = one_minus_a * hres + leaky_rate * jnp.tanh(pre)

        # --- PCA projection + wzp gate term in ONE matmul --------------------
        pg = jnp.dot(hres, w_pv, preferred_element_type=F32,
                     precision=_HIGHEST)                               # (bb, 2H)
        p = pg[:, :H]
        z = jax.nn.sigmoid(pg[:, H:] + hg + bzb)
        h = (1.0 - z) * h + z * p

        out_ref[:, i, :] = h

    hres_ref[...] = hres
    h_ref[...] = h


def _pick_time_block(T, max_tc=64):
    """Return (tc, T_pad): tc is a multiple of 8 (or equals the full padded
    time length) so the time-blocked BlockSpecs respect the (8,128) rule."""
    # Prefer a multiple-of-8 divisor of T itself (no padding).
    for cand in range(min(T, max_tc) // 8 * 8, 0, -8):
        if T % cand == 0:
            return cand, T
    if T <= max_tc:
        return T, T            # single full-time block (block dim == full dim)
    # Pad time up to a multiple of 8 and use the largest multiple-of-8 block.
    T_pad = -(-T // 8) * 8
    for cand in range(max_tc, 0, -8):
        if T_pad % cand == 0:
            return cand, T_pad
    return 8, T_pad


def _guess_num_tensorcores():
    """v7x exposes 2 TensorCores per chip; v5e/v6e have 1.  Batch-parallel grid
    sharding only pays off when there is more than one core."""
    try:
        kind = jax.devices()[0].device_kind.lower()
    except Exception:
        return 1
    return 2 if ("v7" in kind or "7x" in kind) else 1


def gated_esn_forward(u, w_in, w, w_bias, v, wzp, wzh, bz, leaky_rate,
                      max_time_block=64, batch_blocks=None):
    """u: (B, T, D_in) float32 -> hidden_states (B, T, H) float32."""
    B, T, D_in = u.shape
    R = w.shape[0]
    P, H = wzp.shape
    assert P == H, "GatedESN's own math requires pca_dim == hidden_dim"

    u = u.astype(F32)

    # Hoisted, state-independent input projection as one big parallel matmul:
    #   u_proj[b, t] = W_in @ u[b, t] + w_bias
    # NOTE(v5e): for long sequences / large R this stream could be cast to
    # bf16 to halve HBM traffic; kept f32 here for numerics at small shapes.
    u_proj = (jnp.dot(u.reshape(B * T, D_in),
                      jnp.transpose(w_in).astype(F32),
                      preferred_element_type=F32, precision=_HIGHEST)
              + w_bias.astype(F32)[None, :]).reshape(B, T, R)

    # Pre-transposed / pre-composed weights so only TWO matmuls sit on the
    # per-step serial chain: W^T for the reservoir, and [V^T | V^T @ wzp^T]
    # which yields both p[t] and the wzp gate term from the fresh reservoir
    # state.  The wzh^T matmul only reads the previous hidden state.
    w_t = jnp.transpose(w).astype(F32)                               # (R, R)
    v_t = jnp.transpose(v).astype(F32)                               # (R, P)
    vwz = jnp.dot(v_t, jnp.transpose(wzp).astype(F32),
                  preferred_element_type=F32, precision=_HIGHEST)    # (R, H)
    w_pv = jnp.concatenate([v_t, vwz], axis=1)                       # (R, 2H)
    wzh_t = jnp.transpose(wzh).astype(F32)                           # (H, H)
    bz2 = jnp.reshape(bz, (1, H)).astype(F32)                        # (1, H)

    # 8-aligned time blocking (pad + slice back if T has no such divisor).
    tc, T_pad = _pick_time_block(T, max_time_block)
    if T_pad != T:
        u_proj = jnp.pad(u_proj, ((0, 0), (0, T_pad - T), (0, 0)))

    # Batch-parallel grid axis: one batch block per TensorCore on v7x, a single
    # block elsewhere (extra grid iterations buy nothing on a one-core chip).
    if batch_blocks is None:
        nc = _guess_num_tensorcores()
        batch_blocks = nc if (nc > 1 and B % nc == 0) else 1
    assert B % batch_blocks == 0
    bb = B // batch_blocks

    kernel = functools.partial(_gated_esn_kernel, float(leaky_rate), tc, H)

    # NOTE(scaling): for R >~ 1k, cast w_t/w_pv to bf16, add
    # pipeline_mode=pl.Buffered(1) on the constant-weight BlockSpecs and set
    # vmem_limit_bytes in CompilerParams (v5e's 16 MiB scoped default and
    # v7x's 64 MiB VMEM bind first).  Negligible at R = 32.
    out = pl.pallas_call(
        kernel,
        out_shape=jax.ShapeDtypeStruct((B, T_pad, H), F32),
        grid_spec=pltpu.PrefetchScalarGridSpec(
            num_scalar_prefetch=0,
            grid=(batch_blocks, T_pad // tc),
            in_specs=[
                pl.BlockSpec((bb, tc, R), lambda b, t: (b, t, 0)),   # u_proj
                pl.BlockSpec((R, R), lambda b, t: (0, 0)),           # W^T
                pl.BlockSpec((R, 2 * H), lambda b, t: (0, 0)),       # [V^T|Vwz]
                pl.BlockSpec((H, H), lambda b, t: (0, 0)),           # wzh^T
                pl.BlockSpec((1, H), lambda b, t: (0, 0)),           # bz
            ],
            out_specs=pl.BlockSpec((bb, tc, H), lambda b, t: (b, t, 0)),
            scratch_shapes=[
                pltpu.VMEM((bb, R), F32),   # reservoir state carry
                pltpu.VMEM((bb, H), F32),   # gated hidden state carry
            ],
        ),
        compiler_params=pltpu.CompilerParams(
            # batch blocks are independent (megacore-shardable); the time
            # recurrence is strictly sequential.
            dimension_semantics=("parallel", "arbitrary")),
    )(u_proj, w_t, w_pv, wzh_t, bz2)

    if T_pad != T:
        out = out[:, :T, :]
    return out


def reference_forward(u, w_in, w, w_bias, v, wzp, wzh, bz, leaky_rate):
    """Pure numpy re-implementation of the PyTorch loop (per batch, per step)."""
    u, w_in, w, w_bias = map(np.asarray, (u, w_in, w, w_bias))
    v, wzp, wzh, bz = map(np.asarray, (v, wzp, wzh, bz))
    B, T, _ = u.shape
    R = w.shape[0]
    H = bz.shape[0]
    out = np.zeros((B, T, H), np.float32)
    for b in range(B):
        hres = np.zeros(R, np.float32)
        h = np.zeros(H, np.float32)
        for t in range(T):
            pre = w_in @ u[b, t] + w @ hres + w_bias
            hres = (1.0 - leaky_rate) * hres + leaky_rate * np.tanh(pre)
            pt = v @ hres
            z = 1.0 / (1.0 + np.exp(-(wzp @ pt + wzh @ h + bz)))
            h = (1.0 - z) * h + z * pt
            out[b, t] = h
    return out


if __name__ == "__main__":
    # Small shapes consistent with the module's forward.
    batch, time_len = 2, 8
    input_dim = 4
    reservoir_dim = 32
    pca_dim = hidden_dim = 16
    leaky_rate = 0.75
    spectral_radius = 0.9
    input_scaling = 1.0
    bias_scaling = 0.1

    key = jax.random.PRNGKey(0)
    k_u, k_win, k_w, k_b, k_v, k_wzp, k_wzh, k_bz = jax.random.split(key, 8)

    # Input signal u: (batch, time, input_dim)
    u = jax.random.normal(k_u, (batch, time_len, input_dim), dtype=F32)

    # W_in: entries drawn from input_set {+1, -1}, scaled by input_scaling.
    w_in = (2.0 * jax.random.bernoulli(k_win, 0.5, (reservoir_dim, input_dim)).astype(F32)
            - 1.0) * input_scaling

    # W: uniform, rescaled to the target spectral radius (host-side glue).
    w0 = jax.random.uniform(k_w, (reservoir_dim, reservoir_dim), dtype=F32,
                            minval=-0.5, maxval=0.5)
    rho = float(np.max(np.abs(np.linalg.eigvals(np.asarray(w0, np.float64)))))
    w = (w0 * (spectral_radius / rho)).astype(F32)

    # w_bias: uniform scaled by bias_scaling.
    w_bias = jax.random.uniform(k_b, (reservoir_dim,), dtype=F32) * bias_scaling

    # Synthetic "finalized PCA" projection matrix V: (pca_dim, reservoir_dim).
    v = jax.random.normal(k_v, (pca_dim, reservoir_dim), dtype=F32) / np.sqrt(reservoir_dim)

    # Gate parameters, torch.rand semantics (uniform [0, 1)).
    wzp = jax.random.uniform(k_wzp, (pca_dim, hidden_dim), dtype=F32)
    wzh = jax.random.uniform(k_wzh, (pca_dim, hidden_dim), dtype=F32)
    bz = jax.random.uniform(k_bz, (hidden_dim,), dtype=F32)

    hidden_states = gated_esn_forward(u, w_in, w, w_bias, v, wzp, wzh, bz, leaky_rate)
    hidden_states = jax.block_until_ready(hidden_states)

    ref = reference_forward(u, w_in, w, w_bias, v, wzp, wzh, bz, leaky_rate)
    # All matmuls (kernel + wrapper) run at f32 precision now, so the tolerance
    # vs. the exact numpy loop is tight.
    np.testing.assert_allclose(np.asarray(hidden_states), ref, rtol=1e-3, atol=1e-3)

    assert hidden_states.shape == (batch, time_len, hidden_dim)
    print("KERNEL_OK")
</pallas_src>

<mosaic_0001>
module attributes {stable_mosaic.version = 11 : i64} {
  func.func @_gated_esn_kernel(%arg0: i32, %arg1: i32, %arg2: memref<2x8x32xf32, #tpu.memory_space<vmem>>, %arg3: memref<32x32xf32, #tpu.memory_space<vmem>>, %arg4: memref<32x32xf32, #tpu.memory_space<vmem>>, %arg5: memref<16x16xf32, #tpu.memory_space<vmem>>, %arg6: memref<1x16xf32, #tpu.memory_space<vmem>>, %arg7: memref<2x8x16xf32, #tpu.memory_space<vmem>>, %arg8: memref<2x32xf32, #tpu.memory_space<vmem>>, %arg9: memref<2x16xf32, #tpu.memory_space<vmem>>) attributes {dimension_semantics = [#tpu.dimension_semantics<parallel>, #tpu.dimension_semantics<arbitrary>], iteration_bounds = array<i64: 1, 1>, scalar_prefetch = 0 : i64, scratch_operands = 2 : i64, tpu.core_type = #tpu.core_type<tc>, window_params = [{transform_indices = @transform_0, window_bounds = array<i64: 2, 8, 32>}, {pipeline_mode = #tpu.pipeline_mode<synchronous>, transform_indices = @transform_1, window_bounds = array<i64: 32, 32>}, {pipeline_mode = #tpu.pipeline_mode<synchronous>, transform_indices = @transform_2, window_bounds = array<i64: 32, 32>}, {pipeline_mode = #tpu.pipeline_mode<synchronous>, transform_indices = @transform_3, window_bounds = array<i64: 16, 16>}, {pipeline_mode = #tpu.pipeline_mode<synchronous>, transform_indices = @transform_4, window_bounds = array<i64: 1, 16>}, {transform_indices = @transform_5, window_bounds = array<i64: 2, 8, 16>}]} {
    %c0_i32 = arith.constant 0 : i32
    %0 = arith.cmpi eq, %arg1, %c0_i32 : i32
    %1 = arith.extui %0 : i1 to i32
    %c0_i32_0 = arith.constant 0 : i32
    %2 = arith.cmpi ne, %1, %c0_i32_0 : i32
    scf.if %2 {
      %cst_112 = arith.constant 0.000000e+00 : f32
      %245 = vector.broadcast %cst_112 : f32 to vector<2x32xf32>
      %c0_113 = arith.constant 0 : index
      %c0_114 = arith.constant 0 : index
      %246 = vector.load %arg8[%c0_113, %c0_114] : memref<2x32xf32, #tpu.memory_space<vmem>>, vector<2x32xf32>
      tpu.vector_store %arg8[%c0_113, %c0_114], %245 {strides = array<i32>} : memref<2x32xf32, #tpu.memory_space<vmem>>, vector<2x32xf32>,
      %cst_115 = arith.constant 0.000000e+00 : f32
      %247 = vector.broadcast %cst_115 : f32 to vector<2x16xf32>
      %c0_116 = arith.constant 0 : index
      %c0_117 = arith.constant 0 : index
      %248 = vector.load %arg9[%c0_116, %c0_117] : memref<2x16xf32, #tpu.memory_space<vmem>>, vector<2x16xf32>
      tpu.vector_store %arg9[%c0_116, %c0_117], %247 {strides = array<i32>} : memref<2x16xf32, #tpu.memory_space<vmem>>, vector<2x16xf32>,
    } else {
    }
    %c0 = arith.constant 0 : index
    %c0_1 = arith.constant 0 : index
    %3 = vector.load %arg8[%c0, %c0_1] : memref<2x32xf32, #tpu.memory_space<vmem>>, vector<2x32xf32>
    %c0_2 = arith.constant 0 : index
    %c0_3 = arith.constant 0 : index
    %4 = vector.load %arg9[%c0_2, %c0_3] : memref<2x16xf32, #tpu.memory_space<vmem>>, vector<2x16xf32>
    %c0_4 = arith.constant 0 : index
    %c0_5 = arith.constant 0 : index
    %5 = vector.load %arg3[%c0_4, %c0_5] : memref<32x32xf32, #tpu.memory_space<vmem>>, vector<32x32xf32>
    %c0_6 = arith.constant 0 : index
    %c0_7 = arith.constant 0 : index
    %6 = vector.load %arg4[%c0_6, %c0_7] : memref<32x32xf32, #tpu.memory_space<vmem>>, vector<32x32xf32>
    %c0_8 = arith.constant 0 : index
    %c0_9 = arith.constant 0 : index
    %7 = vector.load %arg5[%c0_8, %c0_9] : memref<16x16xf32, #tpu.memory_space<vmem>>, vector<16x16xf32>
    %c0_10 = arith.constant 0 : index
    %c0_11 = arith.constant 0 : index
    %8 = vector.load %arg6[%c0_10, %c0_11] : memref<1x16xf32, #tpu.memory_space<vmem>>, vector<1x16xf32>
    %9 = vector.shape_cast %8 : vector<1x16xf32> to vector<1x16xf32>
    %10 = vector.broadcast %9 : vector<1x16xf32> to vector<2x16xf32>
    %cst = arith.constant dense<0.000000e+00> : vector<2x16xf32>
    %11 = tpu.matmul %4, %7, %cst {dimension_numbers = #tpu.dot_dimension_numbers<[1], [0], [0], [1], [0, 0, 1, 1], [], []>, precision = #tpu.contract_precision<fp32>} : vector<2x16xf32>, vector<16x16xf32>, vector<2x16xf32> -> vector<2x16xf32>
    %c0_12 = arith.constant 0 : index
    %c0_13 = arith.constant 0 : index
    %c0_14 = arith.constant 0 : index
    %12 = vector.load %arg2[%c0_12, %c0_13, %c0_14] : memref<2x8x32xf32, #tpu.memory_space<vmem>>, vector<2x1x32xf32>
    %13 = vector.shape_cast %12 : vector<2x1x32xf32> to vector<2x32xf32>
    %cst_15 = arith.constant dense<0.000000e+00> : vector<2x32xf32>
    %14 = tpu.matmul %3, %5, %cst_15 {dimension_numbers = #tpu.dot_dimension_numbers<[1], [0], [0], [1], [0, 0, 1, 1], [], []>, precision = #tpu.contract_precision<fp32>} : vector<2x32xf32>, vector<32x32xf32>, vector<2x32xf32> -> vector<2x32xf32>
    %15 = arith.addf %13, %14 : vector<2x32xf32>
    %cst_16 = arith.constant 2.500000e-01 : f32
    %16 = vector.broadcast %cst_16 : f32 to vector<2x32xf32>
    %17 = arith.mulf %16, %3 : vector<2x32xf32>
    %18 = math.tanh %15 : vector<2x32xf32>
    %cst_17 = arith.constant 7.500000e-01 : f32
    %19 = vector.broadcast %cst_17 : f32 to vector<2x32xf32>
    %20 = arith.mulf %19, %18 : vector<2x32xf32>
    %21 = arith.addf %17, %20 : vector<2x32xf32>
    %cst_18 = arith.constant dense<0.000000e+00> : vector<2x32xf32>
    %22 = tpu.matmul %21, %6, %cst_18 {dimension_numbers = #tpu.dot_dimension_numbers<[1], [0], [0], [1], [0, 0, 1, 1], [], []>, precision = #tpu.contract_precision<fp32>} : vector<2x32xf32>, vector<32x32xf32>, vector<2x32xf32> -> vector<2x32xf32>
    %23 = vector.extract_strided_slice %22 {offsets = [0, 0], sizes = [2, 16], strides = [1, 1]} : vector<2x32xf32> to vector<2x16xf32>
    %24 = vector.extract_strided_slice %22 {offsets = [0, 16], sizes = [2, 16], strides = [1, 1]} : vector<2x32xf32> to vector<2x16xf32>
    %25 = arith.addf %24, %11 : vector<2x16xf32>
    %26 = arith.addf %25, %10 : vector<2x16xf32>
    %27 = arith.negf %26 : vector<2x16xf32>
    %28 = math.exp %27 : vector<2x16xf32>
    %cst_19 = arith.constant 1.000000e+00 : f32
    %29 = vector.broadcast %cst_19 : f32 to vector<2x16xf32>
    %30 = arith.addf %29, %28 : vector<2x16xf32>
    %31 = arith.divf %29, %30 : vector<2x16xf32>
    %cst_20 = arith.constant 1.000000e+00 : f32
    %32 = vector.broadcast %cst_20 : f32 to vector<2x16xf32>
    %33 = arith.subf %32, %31 : vector<2x16xf32>
    %34 = arith.mulf %33, %4 : vector<2x16xf32>
    %35 = arith.mulf %31, %23 : vector<2x16xf32>
    %36 = arith.addf %34, %35 : vector<2x16xf32>
    %c0_21 = arith.constant 0 : index
    %c0_22 = arith.constant 0 : index
    %c0_23 = arith.constant 0 : index
    %37 = vector.load %arg7[%c0_21, %c0_22, %c0_23] : memref<2x8x16xf32, #tpu.memory_space<vmem>>, vector<2x1x16xf32>
    %38 = vector.shape_cast %37 : vector<2x1x16xf32> to vector<2x16xf32>
    %39 = vector.shape_cast %36 : vector<2x16xf32> to vector<2x1x16xf32>
    tpu.vector_store %arg7[%c0_21, %c0_22, %c0_23], %39 {strides = array<i32>} : memref<2x8x16xf32, #tpu.memory_space<vmem>>, vector<2x1x16xf32>,
    %cst_24 = arith.constant dense<0.000000e+00> : vector<2x16xf32>
    %40 = tpu.matmul %36, %7, %cst_24 {dimension_numbers = #tpu.dot_dimension_numbers<[1], [0], [0], [1], [0, 0, 1, 1], [], []>, precision = #tpu.contract_precision<fp32>} : vector<2x16xf32>, vector<16x16xf32>, vector<2x16xf32> -> vector<2x16xf32>
    %c0_25 = arith.constant 0 : index
    %c1 = arith.constant 1 : index
    %c0_26 = arith.constant 0 : index
    %41 = vector.load %arg2[%c0_25, %c1, %c0_26] : memref<2x8x32xf32, #tpu.memory_space<vmem>>, vector<2x1x32xf32>
    %42 = vector.shape_cast %41 : vector<2x1x32xf32> to vector<2x32xf32>
    %cst_27 = arith.constant dense<0.000000e+00> : vector<2x32xf32>
    %43 = tpu.matmul %21, %5, %cst_27 {dimension_numbers = #tpu.dot_dimension_numbers<[1], [0], [0], [1], [0, 0, 1, 1], [], []>, precision = #tpu.contract_precision<fp32>} : vector<2x32xf32>, vector<32x32xf32>, vector<2x32xf32> -> vector<2x32xf32>
    %44 = arith.addf %42, %43 : vector<2x32xf32>
    %cst_28 = arith.constant 2.500000e-01 : f32
    %45 = vector.broadcast %cst_28 : f32 to vector<2x32xf32>
    %46 = arith.mulf %45, %21 : vector<2x32xf32>
    %47 = math.tanh %44 : vector<2x32xf32>
    %cst_29 = arith.constant 7.500000e-01 : f32
    %48 = vector.broadcast %cst_29 : f32 to vector<2x32xf32>
    %49 = arith.mulf %48, %47 : vector<2x32xf32>
    %50 = arith.addf %46, %49 : vector<2x32xf32>
    %cst_30 = arith.constant dense<0.000000e+00> : vector<2x32xf32>
    %51 = tpu.matmul %50, %6, %cst_30 {dimension_numbers = #tpu.dot_dimension_numbers<[1], [0], [0], [1], [0, 0, 1, 1], [], []>, precision = #tpu.contract_precision<fp32>} : vector<2x32xf32>, vector<32x32xf32>, vector<2x32xf32> -> vector<2x32xf32>
    %52 = vector.extract_strided_slice %51 {offsets = [0, 0], sizes = [2, 16], strides = [1, 1]} : vector<2x32xf32> to vector<2x16xf32>
    %53 = vector.extract_strided_slice %51 {offsets = [0, 16], sizes = [2, 16], strides = [1, 1]} : vector<2x32xf32> to vector<2x16xf32>
    %54 = arith.addf %53, %40 : vector<2x16xf32>
    %55 = arith.addf %54, %10 : vector<2x16xf32>
    %56 = arith.negf %55 : vector<2x16xf32>
    %57 = math.exp %56 : vector<2x16xf32>
    %cst_31 = arith.constant 1.000000e+00 : f32
    %58 = vector.broadcast %cst_31 : f32 to vector<2x16xf32>
    %59 = arith.addf %58, %57 : vector<2x16xf32>
    %60 = arith.divf %58, %59 : vector<2x16xf32>
    %cst_32 = arith.constant 1.000000e+00 : f32
    %61 = vector.broadcast %cst_32 : f32 to vector<2x16xf32>
    %62 = arith.subf %61, %60 : vector<2x16xf32>
    %63 = arith.mulf %62, %36 : vector<2x16xf32>
    %64 = arith.mulf %60, %52 : vector<2x16xf32>
    %65 = arith.addf %63, %64 : vector<2x16xf32>
    %c0_33 = arith.constant 0 : index
    %c1_34 = arith.constant 1 : index
    %c0_35 = arith.constant 0 : index
    %66 = vector.load %arg7[%c0_33, %c1_34, %c0_35] : memref<2x8x16xf32, #tpu.memory_space<vmem>>, vector<2x1x16xf32>
    %67 = vector.shape_cast %66 : vector<2x1x16xf32> to vector<2x16xf32>
    %68 = vector.shape_cast %65 : vector<2x16xf32> to vector<2x1x16xf32>
    tpu.vector_store %arg7[%c0_33, %c1_34, %c0_35], %68 {strides = array<i32>} : memref<2x8x16xf32, #tpu.memory_space<vmem>>, vector<2x1x16xf32>,
    %cst_36 = arith.constant dense<0.000000e+00> : vector<2x16xf32>
    %69 = tpu.matmul %65, %7, %cst_36 {dimension_numbers = #tpu.dot_dimension_numbers<[1], [0], [0], [1], [0, 0, 1, 1], [], []>, precision = #tpu.contract_precision<fp32>} : vector<2x16xf32>, vector<16x16xf32>, vector<2x16xf32> -> vector<2x16xf32>
    %c0_37 = arith.constant 0 : index
    %c2 = arith.constant 2 : index
    %c0_38 = arith.constant 0 : index
    %70 = vector.load %arg2[%c0_37, %c2, %c0_38] : memref<2x8x32xf32, #tpu.memory_space<vmem>>, vector<2x1x32xf32>
    %71 = vector.shape_cast %70 : vector<2x1x32xf32> to vector<2x32xf32>
    %cst_39 = arith.constant dense<0.000000e+00> : vector<2x32xf32>
    %72 = tpu.matmul %50, %5, %cst_39 {dimension_numbers = #tpu.dot_dimension_numbers<[1], [0], [0], [1], [0, 0, 1, 1], [], []>, precision = #tpu.contract_precision<fp32>} : vector<2x32xf32>, vector<32x32xf32>, vector<2x32xf32> -> vector<2x32xf32>
    %73 = arith.addf %71, %72 : vector<2x32xf32>
    %cst_40 = arith.constant 2.500000e-01 : f32
    %74 = vector.broadcast %cst_40 : f32 to vector<2x32xf32>
    %75 = arith.mulf %74, %50 : vector<2x32xf32>
    %76 = math.tanh %73 : vector<2x32xf32>
    %cst_41 = arith.constant 7.500000e-01 : f32
    %77 = vector.broadcast %cst_41 : f32 to vector<2x32xf32>
    %78 = arith.mulf %77, %76 : vector<2x32xf32>
    %79 = arith.addf %75, %78 : vector<2x32xf32>
    %cst_42 = arith.constant dense<0.000000e+00> : vector<2x32xf32>
    %80 = tpu.matmul %79, %6, %cst_42 {dimension_numbers = #tpu.dot_dimension_numbers<[1], [0], [0], [1], [0, 0, 1, 1], [], []>, precision = #tpu.contract_precision<fp32>} : vector<2x32xf32>, vector<32x32xf32>, vector<2x32xf32> -> vector<2x32xf32>
    %81 = vector.extract_strided_slice %80 {offsets = [0, 0], sizes = [2, 16], strides = [1, 1]} : vector<2x32xf32> to vector<2x16xf32>
    %82 = vector.extract_strided_slice %80 {offsets = [0, 16], sizes = [2, 16], strides = [1, 1]} : vector<2x32xf32> to vector<2x16xf32>
    %83 = arith.addf %82, %69 : vector<2x16xf32>
    %84 = arith.addf %83, %10 : vector<2x16xf32>
    %85 = arith.negf %84 : vector<2x16xf32>
    %86 = math.exp %85 : vector<2x16xf32>
    %cst_43 = arith.constant 1.000000e+00 : f32
    %87 = vector.broadcast %cst_43 : f32 to vector<2x16xf32>
    %88 = arith.addf %87, %86 : vector<2x16xf32>
    %89 = arith.divf %87, %88 : vector<2x16xf32>
    %cst_44 = arith.constant 1.000000e+00 : f32
    %90 = vector.broadcast %cst_44 : f32 to vector<2x16xf32>
    %91 = arith.subf %90, %89 : vector<2x16xf32>
    %92 = arith.mulf %91, %65 : vector<2x16xf32>
    %93 = arith.mulf %89, %81 : vector<2x16xf32>
    %94 = arith.addf %92, %93 : vector<2x16xf32>
    %c0_45 = arith.constant 0 : index
    %c2_46 = arith.constant 2 : index
    %c0_47 = arith.constant 0 : index
    %95 = vector.load %arg7[%c0_45, %c2_46, %c0_47] : memref<2x8x16xf32, #tpu.memory_space<vmem>>, vector<2x1x16xf32>
    %96 = vector.shape_cast %95 : vector<2x1x16xf32> to vector<2x16xf32>
    %97 = vector.shape_cast %94 : vector<2x16xf32> to vector<2x1x16xf32>
    tpu.vector_store %arg7[%c0_45, %c2_46, %c0_47], %97 {strides = array<i32>} : memref<2x8x16xf32, #tpu.memory_space<vmem>>, vector<2x1x16xf32>,
    %cst_48 = arith.constant dense<0.000000e+00> : vector<2x16xf32>
    %98 = tpu.matmul %94, %7, %cst_48 {dimension_numbers = #tpu.dot_dimension_numbers<[1], [0], [0], [1], [0, 0, 1, 1], [], []>, precision = #tpu.contract_precision<fp32>} : vector<2x16xf32>, vector<16x16xf32>, vector<2x16xf32> -> vector<2x16xf32>
    %c0_49 = arith.constant 0 : index
    %c3 = arith.constant 3 : index
    %c0_50 = arith.constant 0 : index
    %99 = vector.load %arg2[%c0_49, %c3, %c0_50] : memref<2x8x32xf32, #tpu.memory_space<vmem>>, vector<2x1x32xf32>
    %100 = vector.shape_cast %99 : vector<2x1x32xf32> to vector<2x32xf32>
    %cst_51 = arith.constant dense<0.000000e+00> : vector<2x32xf32>
    %101 = tpu.matmul %79, %5, %cst_51 {dimension_numbers = #tpu.dot_dimension_numbers<[1], [0], [0], [1], [0, 0, 1, 1], [], []>, precision = #tpu.contract_precision<fp32>} : vector<2x32xf32>, vector<32x32xf32>, vector<2x32xf32> -> vector<2x32xf32>
    %102 = arith.addf %100, %101 : vector<2x32xf32>
    %cst_52 = arith.constant 2.500000e-01 : f32
    %103 = vector.broadcast %cst_52 : f32 to vector<2x32xf32>
    %104 = arith.mulf %103, %79 : vector<2x32xf32>
    %105 = math.tanh %102 : vector<2x32xf32>
    %cst_53 = arith.constant 7.500000e-01 : f32
    %106 = vector.broadcast %cst_53 : f32 to vector<2x32xf32>
    %107 = arith.mulf %106, %105 : vector<2x32xf32>
    %108 = arith.addf %104, %107 : vector<2x32xf32>
    %cst_54 = arith.constant dense<0.000000e+00> : vector<2x32xf32>
    %109 = tpu.matmul %108, %6, %cst_54 {dimension_numbers = #tpu.dot_dimension_numbers<[1], [0], [0], [1], [0, 0, 1, 1], [], []>, precision = #tpu.contract_precision<fp32>} : vector<2x32xf32>, vector<32x32xf32>, vector<2x32xf32> -> vector<2x32xf32>
    %110 = vector.extract_strided_slice %109 {offsets = [0, 0], sizes = [2, 16], strides = [1, 1]} : vector<2x32xf32> to vector<2x16xf32>
    %111 = vector.extract_strided_slice %109 {offsets = [0, 16], sizes = [2, 16], strides = [1, 1]} : vector<2x32xf32> to vector<2x16xf32>
    %112 = arith.addf %111, %98 : vector<2x16xf32>
    %113 = arith.addf %112, %10 : vector<2x16xf32>
    %114 = arith.negf %113 : vector<2x16xf32>
    %115 = math.exp %114 : vector<2x16xf32>
    %cst_55 = arith.constant 1.000000e+00 : f32
    %116 = vector.broadcast %cst_55 : f32 to vector<2x16xf32>
    %117 = arith.addf %116, %115 : vector<2x16xf32>
    %118 = arith.divf %116, %117 : vector<2x16xf32>
    %cst_56 = arith.constant 1.000000e+00 : f32
    %119 = vector.broadcast %cst_56 : f32 to vector<2x16xf32>
    %120 = arith.subf %119, %118 : vector<2x16xf32>
    %121 = arith.mulf %120, %94 : vector<2x16xf32>
    %122 = arith.mulf %118, %110 : vector<2x16xf32>
    %123 = arith.addf %121, %122 : vector<2x16xf32>
    %c0_57 = arith.constant 0 : index
    %c3_58 = arith.constant 3 : index
    %c0_59 = arith.constant 0 : index
    %124 = vector.load %arg7[%c0_57, %c3_58, %c0_59] : memref<2x8x16xf32, #tpu.memory_space<vmem>>, vector<2x1x16xf32>
    %125 = vector.shape_cast %124 : vector<2x1x16xf32> to vector<2x16xf32>
    %126 = vector.shape_cast %123 : vector<2x16xf32> to vector<2x1x16xf32>
    tpu.vector_store %arg7[%c0_57, %c3_58, %c0_59], %126 {strides = array<i32>} : memref<2x8x16xf32, #tpu.memory_space<vmem>>, vector<2x1x16xf32>,
    %cst_60 = arith.constant dense<0.000000e+00> : vector<2x16xf32>
    %127 = tpu.matmul %123, %7, %cst_60 {dimension_numbers = #tpu.dot_dimension_numbers<[1], [0], [0], [1], [0, 0, 1, 1], [], []>, precision = #tpu.contract_precision<fp32>} : vector<2x16xf32>, vector<16x16xf32>, vector<2x16xf32> -> vector<2x16xf32>
    %c0_61 = arith.constant 0 : index
    %c4 = arith.constant 4 : index
    %c0_62 = arith.constant 0 : index
    %128 = vector.load %arg2[%c0_61, %c4, %c0_62] : memref<2x8x32xf32, #tpu.memory_space<vmem>>, vector<2x1x32xf32>
    %129 = vector.shape_cast %128 : vector<2x1x32xf32> to vector<2x32xf32>
    %cst_63 = arith.constant dense<0.000000e+00> : vector<2x32xf32>
    %130 = tpu.matmul %108, %5, %cst_63 {dimension_numbers = #tpu.dot_dimension_numbers<[1], [0], [0], [1], [0, 0, 1, 1], [], []>, precision = #tpu.contract_precision<fp32>} : vector<2x32xf32>, vector<32x32xf32>, vector<2x32xf32> -> vector<2x32xf32>
    %131 = arith.addf %129, %130 : vector<2x32xf32>
    %cst_64 = arith.constant 2.500000e-01 : f32
    %132 = vector.broadcast %cst_64 : f32 to vector<2x32xf32>
    %133 = arith.mulf %132, %108 : vector<2x32xf32>
    %134 = math.tanh %131 : vector<2x32xf32>
    %cst_65 = arith.constant 7.500000e-01 : f32
    %135 = vector.broadcast %cst_65 : f32 to vector<2x32xf32>
    %136 = arith.mulf %135, %134 : vector<2x32xf32>
    %137 = arith.addf %133, %136 : vector<2x32xf32>
    %cst_66 = arith.constant dense<0.000000e+00> : vector<2x32xf32>
    %138 = tpu.matmul %137, %6, %cst_66 {dimension_numbers = #tpu.dot_dimension_numbers<[1], [0], [0], [1], [0, 0, 1, 1], [], []>, precision = #tpu.contract_precision<fp32>} : vector<2x32xf32>, vector<32x32xf32>, vector<2x32xf32> -> vector<2x32xf32>
    %139 = vector.extract_strided_slice %138 {offsets = [0, 0], sizes = [2, 16], strides = [1, 1]} : vector<2x32xf32> to vector<2x16xf32>
    %140 = vector.extract_strided_slice %138 {offsets = [0, 16], sizes = [2, 16], strides = [1, 1]} : vector<2x32xf32> to vector<2x16xf32>
    %141 = arith.addf %140, %127 : vector<2x16xf32>
    %142 = arith.addf %141, %10 : vector<2x16xf32>
    %143 = arith.negf %142 : vector<2x16xf32>
    %144 = math.exp %143 : vector<2x16xf32>
    %cst_67 = arith.constant 1.000000e+00 : f32
    %145 = vector.broadcast %cst_67 : f32 to vector<2x16xf32>
    %146 = arith.addf %145, %144 : vector<2x16xf32>
    %147 = arith.divf %145, %146 : vector<2x16xf32>
    %cst_68 = arith.constant 1.000000e+00 : f32
    %148 = vector.broadcast %cst_68 : f32 to vector<2x16xf32>
    %149 = arith.subf %148, %147 : vector<2x16xf32>
    %150 = arith.mulf %149, %123 : vector<2x16xf32>
    %151 = arith.mulf %147, %139 : vector<2x16xf32>
    %152 = arith.addf %150, %151 : vector<2x16xf32>
    %c0_69 = arith.constant 0 : index
    %c4_70 = arith.constant 4 : index
    %c0_71 = arith.constant 0 : index
    %153 = vector.load %arg7[%c0_69, %c4_70, %c0_71] : memref<2x8x16xf32, #tpu.memory_space<vmem>>, vector<2x1x16xf32>
    %154 = vector.shape_cast %153 : vector<2x1x16xf32> to vector<2x16xf32>
    %155 = vector.shape_cast %152 : vector<2x16xf32> to vector<2x1x16xf32>
    tpu.vector_store %arg7[%c0_69, %c4_70, %c0_71], %155 {strides = array<i32>} : memref<2x8x16xf32, #tpu.memory_space<vmem>>, vector<2x1x16xf32>,
    %cst_72 = arith.constant dense<0.000000e+00> : vector<2x16xf32>
    %156 = tpu.matmul %152, %7, %cst_72 {dimension_numbers = #tpu.dot_dimension_numbers<[1], [0], [0], [1], [0, 0, 1, 1], [], []>, precision = #tpu.contract_precision<fp32>} : vector<2x16xf32>, vector<16x16xf32>, vector<2x16xf32> -> vector<2x16xf32>
    %c0_73 = arith.constant 0 : index
    %c5 = arith.constant 5 : index
    %c0_74 = arith.constant 0 : index
    %157 = vector.load %arg2[%c0_73, %c5, %c0_74] : memref<2x8x32xf32, #tpu.memory_space<vmem>>, vector<2x1x32xf32>
    %158 = vector.shape_cast %157 : vector<2x1x32xf32> to vector<2x32xf32>
    %cst_75 = arith.constant dense<0.000000e+00> : vector<2x32xf32>
    %159 = tpu.matmul %137, %5, %cst_75 {dimension_numbers = #tpu.dot_dimension_numbers<[1], [0], [0], [1], [0, 0, 1, 1], [], []>, precision = #tpu.contract_precision<fp32>} : vector<2x32xf32>, vector<32x32xf32>, vector<2x32xf32> -> vector<2x32xf32>
    %160 = arith.addf %158, %159 : vector<2x32xf32>
    %cst_76 = arith.constant 2.500000e-01 : f32
    %161 = vector.broadcast %cst_76 : f32 to vector<2x32xf32>
    %162 = arith.mulf %161, %137 : vector<2x32xf32>
    %163 = math.tanh %160 : vector<2x32xf32>
    %cst_77 = arith.constant 7.500000e-01 : f32
    %164 = vector.broadcast %cst_77 : f32 to vector<2x32xf32>
    %165 = arith.mulf %164, %163 : vector<2x32xf32>
    %166 = arith.addf %162, %165 : vector<2x32xf32>
    %cst_78 = arith.constant dense<0.000000e+00> : vector<2x32xf32>
    %167 = tpu.matmul %166, %6, %cst_78 {dimension_numbers = #tpu.dot_dimension_numbers<[1], [0], [0], [1], [0, 0, 1, 1], [], []>, precision = #tpu.contract_precision<fp32>} : vector<2x32xf32>, vector<32x32xf32>, vector<2x32xf32> -> vector<2x32xf32>
    %168 = vector.extract_strided_slice %167 {offsets = [0, 0], sizes = [2, 16], strides = [1, 1]} : vector<2x32xf32> to vector<2x16xf32>
    %169 = vector.extract_strided_slice %167 {offsets = [0, 16], sizes = [2, 16], strides = [1, 1]} : vector<2x32xf32> to vector<2x16xf32>
    %170 = arith.addf %169, %156 : vector<2x16xf32>
    %171 = arith.addf %170, %10 : vector<2x16xf32>
    %172 = arith.negf %171 : vector<2x16xf32>
    %173 = math.exp %172 : vector<2x16xf32>
    %cst_79 = arith.constant 1.000000e+00 : f32
    %174 = vector.broadcast %cst_79 : f32 to vector<2x16xf32>
    %175 = arith.addf %174, %173 : vector<2x16xf32>
    %176 = arith.divf %174, %175 : vector<2x16xf32>
    %cst_80 = arith.constant 1.000000e+00 : f32
    %177 = vector.broadcast %cst_80 : f32 to vector<2x16xf32>
    %178 = arith.subf %177, %176 : vector<2x16xf32>
    %179 = arith.mulf %178, %152 : vector<2x16xf32>
    %180 = arith.mulf %176, %168 : vector<2x16xf32>
    %181 = arith.addf %179, %180 : vector<2x16xf32>
    %c0_81 = arith.constant 0 : index
    %c5_82 = arith.constant 5 : index
    %c0_83 = arith.constant 0 : index
    %182 = vector.load %arg7[%c0_81, %c5_82, %c0_83] : memref<2x8x16xf32, #tpu.memory_space<vmem>>, vector<2x1x16xf32>
    %183 = vector.shape_cast %182 : vector<2x1x16xf32> to vector<2x16xf32>
    %184 = vector.shape_cast %181 : vector<2x16xf32> to vector<2x1x16xf32>
    tpu.vector_store %arg7[%c0_81, %c5_82, %c0_83], %184 {strides = array<i32>} : memref<2x8x16xf32, #tpu.memory_space<vmem>>, vector<2x1x16xf32>,
    %cst_84 = arith.constant dense<0.000000e+00> : vector<2x16xf32>
    %185 = tpu.matmul %181, %7, %cst_84 {dimension_numbers = #tpu.dot_dimension_numbers<[1], [0], [0], [1], [0, 0, 1, 1], [], []>, precision = #tpu.contract_precision<fp32>} : vector<2x16xf32>, vector<16x16xf32>, vector<2x16xf32> -> vector<2x16xf32>
    %c0_85 = arith.constant 0 : index
    %c6 = arith.constant 6 : index
    %c0_86 = arith.constant 0 : index
    %186 = vector.load %arg2[%c0_85, %c6, %c0_86] : memref<2x8x32xf32, #tpu.memory_space<vmem>>, vector<2x1x32xf32>
    %187 = vector.shape_cast %186 : vector<2x1x32xf32> to vector<2x32xf32>
    %cst_87 = arith.constant dense<0.000000e+00> : vector<2x32xf32>
    %188 = tpu.matmul %166, %5, %cst_87 {dimension_numbers = #tpu.dot_dimension_numbers<[1], [0], [0], [1], [0, 0, 1, 1], [], []>, precision = #tpu.contract_precision<fp32>} : vector<2x32xf32>, vector<32x32xf32>, vector<2x32xf32> -> vector<2x32xf32>
    %189 = arith.addf %187, %188 : vector<2x32xf32>
    %cst_88 = arith.constant 2.500000e-01 : f32
    %190 = vector.broadcast %cst_88 : f32 to vector<2x32xf32>
    %191 = arith.mulf %190, %166 : vector<2x32xf32>
    %192 = math.tanh %189 : vector<2x32xf32>
    %cst_89 = arith.constant 7.500000e-01 : f32
    %193 = vector.broadcast %cst_89 : f32 to vector<2x32xf32>
    %194 = arith.mulf %193, %192 : vector<2x32xf32>
    %195 = arith.addf %191, %194 : vector<2x32xf32>
    %cst_90 = arith.constant dense<0.000000e+00> : vector<2x32xf32>
    %196 = tpu.matmul %195, %6, %cst_90 {dimension_numbers = #tpu.dot_dimension_numbers<[1], [0], [0], [1], [0, 0, 1, 1], [], []>, precision = #tpu.contract_precision<fp32>} : vector<2x32xf32>, vector<32x32xf32>, vector<2x32xf32> -> vector<2x32xf32>
    %197 = vector.extract_strided_slice %196 {offsets = [0, 0], sizes = [2, 16], strides = [1, 1]} : vector<2x32xf32> to vector<2x16xf32>
    %198 = vector.extract_strided_slice %196 {offsets = [0, 16], sizes = [2, 16], strides = [1, 1]} : vector<2x32xf32> to vector<2x16xf32>
    %199 = arith.addf %198, %185 : vector<2x16xf32>
    %200 = arith.addf %199, %10 : vector<2x16xf32>
    %201 = arith.negf %200 : vector<2x16xf32>
    %202 = math.exp %201 : vector<2x16xf32>
    %cst_91 = arith.constant 1.000000e+00 : f32
    %203 = vector.broadcast %cst_91 : f32 to vector<2x16xf32>
    %204 = arith.addf %203, %202 : vector<2x16xf32>
    %205 = arith.divf %203, %204 : vector<2x16xf32>
    %cst_92 = arith.constant 1.000000e+00 : f32
    %206 = vector.broadcast %cst_92 : f32 to vector<2x16xf32>
    %207 = arith.subf %206, %205 : vector<2x16xf32>
    %208 = arith.mulf %207, %181 : vector<2x16xf32>
    %209 = arith.mulf %205, %197 : vector<2x16xf32>
    %210 = arith.addf %208, %209 : vector<2x16xf32>
    %c0_93 = arith.constant 0 : index
    %c6_94 = arith.constant 6 : index
    %c0_95 = arith.constant 0 : index
    %211 = vector.load %arg7[%c0_93, %c6_94, %c0_95] : memref<2x8x16xf32, #tpu.memory_space<vmem>>, vector<2x1x16xf32>
    %212 = vector.shape_cast %211 : vector<2x1x16xf32> to vector<2x16xf32>
    %213 = vector.shape_cast %210 : vector<2x16xf32> to vector<2x1x16xf32>
    tpu.vector_store %arg7[%c0_93, %c6_94, %c0_95], %213 {strides = array<i32>} : memref<2x8x16xf32, #tpu.memory_space<vmem>>, vector<2x1x16xf32>,
    %cst_96 = arith.constant dense<0.000000e+00> : vector<2x16xf32>
    %214 = tpu.matmul %210, %7, %cst_96 {dimension_numbers = #tpu.dot_dimension_numbers<[1], [0], [0], [1], [0, 0, 1, 1], [], []>, precision = #tpu.contract_precision<fp32>} : vector<2x16xf32>, vector<16x16xf32>, vector<2x16xf32> -> vector<2x16xf32>
    %c0_97 = arith.constant 0 : index
    %c7 = arith.constant 7 : index
    %c0_98 = arith.constant 0 : index
    %215 = vector.load %arg2[%c0_97, %c7, %c0_98] : memref<2x8x32xf32, #tpu.memory_space<vmem>>, vector<2x1x32xf32>
    %216 = vector.shape_cast %215 : vector<2x1x32xf32> to vector<2x32xf32>
    %cst_99 = arith.constant dense<0.000000e+00> : vector<2x32xf32>
    %217 = tpu.matmul %195, %5, %cst_99 {dimension_numbers = #tpu.dot_dimension_numbers<[1], [0], [0], [1], [0, 0, 1, 1], [], []>, precision = #tpu.contract_precision<fp32>} : vector<2x32xf32>, vector<32x32xf32>, vector<2x32xf32> -> vector<2x32xf32>
    %218 = arith.addf %216, %217 : vector<2x32xf32>
    %cst_100 = arith.constant 2.500000e-01 : f32
    %219 = vector.broadcast %cst_100 : f32 to vector<2x32xf32>
    %220 = arith.mulf %219, %195 : vector<2x32xf32>
    %221 = math.tanh %218 : vector<2x32xf32>
    %cst_101 = arith.constant 7.500000e-01 : f32
    %222 = vector.broadcast %cst_101 : f32 to vector<2x32xf32>
    %223 = arith.mulf %222, %221 : vector<2x32xf32>
    %224 = arith.addf %220, %223 : vector<2x32xf32>
    %cst_102 = arith.constant dense<0.000000e+00> : vector<2x32xf32>
    %225 = tpu.matmul %224, %6, %cst_102 {dimension_numbers = #tpu.dot_dimension_numbers<[1], [0], [0], [1], [0, 0, 1, 1], [], []>, precision = #tpu.contract_precision<fp32>} : vector<2x32xf32>, vector<32x32xf32>, vector<2x32xf32> -> vector<2x32xf32>
    %226 = vector.extract_strided_slice %225 {offsets = [0, 0], sizes = [2, 16], strides = [1, 1]} : vector<2x32xf32> to vector<2x16xf32>
    %227 = vector.extract_strided_slice %225 {offsets = [0, 16], sizes = [2, 16], strides = [1, 1]} : vector<2x32xf32> to vector<2x16xf32>
    %228 = arith.addf %227, %214 : vector<2x16xf32>
    %229 = arith.addf %228, %10 : vector<2x16xf32>
    %230 = arith.negf %229 : vector<2x16xf32>
    %231 = math.exp %230 : vector<2x16xf32>
    %cst_103 = arith.constant 1.000000e+00 : f32
    %232 = vector.broadcast %cst_103 : f32 to vector<2x16xf32>
    %233 = arith.addf %232, %231 : vector<2x16xf32>
    %234 = arith.divf %232, %233 : vector<2x16xf32>
    %cst_104 = arith.constant 1.000000e+00 : f32
    %235 = vector.broadcast %cst_104 : f32 to vector<2x16xf32>
    %236 = arith.subf %235, %234 : vector<2x16xf32>
    %237 = arith.mulf %236, %210 : vector<2x16xf32>
    %238 = arith.mulf %234, %226 : vector<2x16xf32>
    %239 = arith.addf %237, %238 : vector<2x16xf32>
    %c0_105 = arith.constant 0 : index
    %c7_106 = arith.constant 7 : index
    %c0_107 = arith.constant 0 : index
    %240 = vector.load %arg7[%c0_105, %c7_106, %c0_107] : memref<2x8x16xf32, #tpu.memory_space<vmem>>, vector<2x1x16xf32>
    %241 = vector.shape_cast %240 : vector<2x1x16xf32> to vector<2x16xf32>
    %242 = vector.shape_cast %239 : vector<2x16xf32> to vector<2x1x16xf32>
    tpu.vector_store %arg7[%c0_105, %c7_106, %c0_107], %242 {strides = array<i32>} : memref<2x8x16xf32, #tpu.memory_space<vmem>>, vector<2x1x16xf32>,
    %c0_108 = arith.constant 0 : index
    %c0_109 = arith.constant 0 : index
    %243 = vector.load %arg8[%c0_108, %c0_109] : memref<2x32xf32, #tpu.memory_space<vmem>>, vector<2x32xf32>
    tpu.vector_store %arg8[%c0_108, %c0_109], %224 {strides = array<i32>} : memref<2x32xf32, #tpu.memory_space<vmem>>, vector<2x32xf32>,
    %c0_110 = arith.constant 0 : index
    %c0_111 = arith.constant 0 : index
    %244 = vector.load %arg9[%c0_110, %c0_111] : memref<2x16xf32, #tpu.memory_space<vmem>>, vector<2x16xf32>
    tpu.vector_store %arg9[%c0_110, %c0_111], %239 {strides = array<i32>} : memref<2x16xf32, #tpu.memory_space<vmem>>, vector<2x16xf32>,
    return
  }
  func.func @transform_0(%arg0: i32, %arg1: i32) -> (i32, i32, i32) {
    %c0_i32 = arith.constant 0 : i32
    %c0_i32_0 = arith.constant 0 : i32
    return %arg0, %arg1, %c0_i32 : i32, i32, i32
  }
  func.func @transform_1(%arg0: i32, %arg1: i32) -> (i32, i32) {
    %c0_i32 = arith.constant 0 : i32
    %c0_i32_0 = arith.constant 0 : i32
    %c0_i32_1 = arith.constant 0 : i32
    return %c0_i32, %c0_i32_0 : i32, i32
  }
  func.func @transform_2(%arg0: i32, %arg1: i32) -> (i32, i32) {
    %c0_i32 = arith.constant 0 : i32
    %c0_i32_0 = arith.constant 0 : i32
    %c0_i32_1 = arith.constant 0 : i32
    return %c0_i32, %c0_i32_0 : i32, i32
  }
  func.func @transform_3(%arg0: i32, %arg1: i32) -> (i32, i32) {
    %c0_i32 = arith.constant 0 : i32
    %c0_i32_0 = arith.constant 0 : i32
    %c0_i32_1 = arith.constant 0 : i32
    return %c0_i32, %c0_i32_0 : i32, i32
  }
  func.func @transform_4(%arg0: i32, %arg1: i32) -> (i32, i32) {
    %c0_i32 = arith.constant 0 : i32
    %c0_i32_0 = arith.constant 0 : i32
    %c0_i32_1 = arith.constant 0 : i32
    return %c0_i32, %c0_i32_0 : i32, i32
  }
  func.func @transform_5(%arg0: i32, %arg1: i32) -> (i32, i32, i32) {
    %c0_i32 = arith.constant 0 : i32
    %c0_i32_0 = arith.constant 0 : i32
    return %arg0, %arg1, %c0_i32 : i32, i32, i32
  }
}

</mosaic_0001>

<llo_original>
// kernel: tpu_custom_call.1
$region0: #{tpu_custom_call.1}
  #allocation0 [shape = 'u32[]', space=smem, size = 0x4, offset = 0x4, fixed_abs, tag = 'smem constant byte address 0x4 - core index']
  #allocation1 [shape = 'u32[144,128]{1,0:T(1,128)}', space=vmem, size = 0x12000, scoped, tag = 'internal scratch']
  #allocation2 [shape = 'f32[2,32]{1,0:T(2,128)}', space=vmem, size = 0x400, scoped, tag = 'scratch operand']
  #allocation3 [shape = 'f32[2,16]{1,0:T(2,128)}', space=vmem, size = 0x400, scoped, tag = 'scratch operand']
  %s0 = inlined_call_operand.hbm [shape: f32[2,8,32], index: 0, kind: input, shape index: {}]
  %s1 = inlined_call_operand.hbm [shape: f32[32,32], index: 1, kind: input, shape index: {}]
  %s2 = inlined_call_operand.hbm [shape: f32[32,32], index: 2, kind: input, shape index: {}]
  %s3 = inlined_call_operand.hbm [shape: f32[16,16], index: 3, kind: input, shape index: {}]
  %s4 = inlined_call_operand.vmem [shape: f32[1,16], index: 4, kind: input, shape index: {}]
  %s5 = inlined_call_operand.hbm [shape: f32[2,8,16], index: 5, kind: output, shape index: {}]
  %s6 = sld [smem:[#allocation0]]
  $region50: #{tpu_custom_call.1} parent=0
    _
  %s8 = ssub.s32 1, %s6
  %s9 = scalar_select 0, %s8, %s6
  $region1: #{tpu_custom_call.1} parent=0
    #allocation4 [shape = 'u8[8192]{0}', space=vmem, size = 0x2000, scoped, tag = 'input window, operand 0, single buffered']
    #allocation5 [shape = 's32[1]{0}', space=sflag, size = 0x4, scoped, tag = 'scoped memory for tpu_custom_call.1']
    #allocation6 [shape = 's32[1]{0}', space=sflag, size = 0x4, scoped, tag = 'scoped memory for tpu_custom_call.1']
    #allocation7 [shape = 'u8[16384]{0}', space=vmem, size = 0x4000, scoped, tag = 'input window, operand 1, single buffered']
    #allocation8 [shape = 's32[1]{0}', space=sflag, size = 0x4, scoped, tag = 'scoped memory for tpu_custom_call.1']
    #allocation9 [shape = 'u8[16384]{0}', space=vmem, size = 0x4000, scoped, tag = 'input window, operand 2, single buffered']
    #allocation10 [shape = 'u8[8192]{0}', space=vmem, size = 0x2000, scoped, tag = 'input window, operand 3, single buffered']
    #allocation11 [shape = 's32[1]{0}', space=sflag, size = 0x4, scoped, tag = 'scoped memory for tpu_custom_call.1']
    #allocation12 [shape = 'u8[8192]{0}', space=vmem, size = 0x2000, scoped, tag = 'output window, operand 0, single buffered']
    %10 = vsyncpa [#allocation5], 0
    %11 = vsyncpa [#allocation8], 0
    %12 = vsyncpa [#allocation11], 0
    %13 = vsyncpa [#allocation6], 0
    // Predicated region
    $region2: #{tpu_custom_call.1} parent=1 // pred_check
      _
    $region3: #{tpu_custom_call.1} parent=1 // pred_check_branch
      %15 = sbr.rel (0) target = $region5
    $region4: #{tpu_custom_call.1} parent=1 // pred_region
      %s17 = ssub.s32 256, 256
      %18 = vsyncadd [#allocation5], %s17
      %s19 = sshll.u32 [#allocation4], 4
      %s20 = int_to_ptr.vmem [resolvable:$true] %s19
      %25 = dma.hbm_to_vmem [thread:$0]  %s0, 256, %s20, [#allocation5], 128, 128, 8
    $region5: #{tpu_custom_call.1} parent=1 // pred_fallthru
      _
    // Predicated region
    $region6: #{tpu_custom_call.1} parent=1 // pred_check
      _
    $region7: #{tpu_custom_call.1} parent=1 // pred_check_branch
      %27 = sbr.rel (0) target = $region9
    $region8: #{tpu_custom_call.1} parent=1 // pred_region
      %s29 = ssub.s32 512, 512
      %30 = vsyncadd [#allocation8], %s29
      %s31 = sshll.u32 [#allocation7], 4
      %s32 = int_to_ptr.vmem [resolvable:$true] %s31
      %37 = dma.hbm_to_vmem [thread:$0]  %s1, 512, %s32, [#allocation8], 128, 128, 8
    $region9: #{tpu_custom_call.1} parent=1 // pred_fallthru
      _
    // Predicated region
    $region10: #{tpu_custom_call.1} parent=1 // pred_check
      _
    $region11: #{tpu_custom_call.1} parent=1 // pred_check_branch
      %39 = sbr.rel (0) target = $region13
    $region12: #{tpu_custom_call.1} parent=1 // pred_region
      %s41 = ssub.s32 512, 512
      %42 = vsyncadd [#allocation8], %s41
      %s43 = sshll.u32 [#allocation9], 4
      %s44 = int_to_ptr.vmem [resolvable:$true] %s43
      %49 = dma.hbm_to_vmem [thread:$0]  %s2, 512, %s44, [#allocation8], 128, 128, 8
    $region13: #{tpu_custom_call.1} parent=1 // pred_fallthru
      _
    // Predicated region
    $region14: #{tpu_custom_call.1} parent=1 // pred_check
      _
    $region15: #{tpu_custom_call.1} parent=1 // pred_check_branch
      %51 = sbr.rel (0) target = $region17
    $region16: #{tpu_custom_call.1} parent=1 // pred_region
      %s53 = ssub.s32 256, 256
      %54 = vsyncadd [#allocation11], %s53
      %s55 = sshll.u32 [#allocation10], 4
      %s56 = int_to_ptr.vmem [resolvable:$true] %s55
      %61 = dma.hbm_to_vmem [thread:$0]  %s3, 256, %s56, [#allocation11], 128, 128, 8
    $region17: #{tpu_custom_call.1} parent=1 // pred_fallthru
      _
    // Predicated region
    $region18: #{tpu_custom_call.1} parent=1 // pred_check
      _
    $region19: #{tpu_custom_call.1} parent=1 // pred_check_branch
      %63 = sbr.rel (0) target = $region21
    $region20: #{tpu_custom_call.1} parent=1 // pred_region
      _
    $region21: #{tpu_custom_call.1} parent=1 // pred_fallthru
      _
    // Predicated region
    $region22: #{tpu_custom_call.1} parent=1 // pred_check
      _
    $region23: #{tpu_custom_call.1} parent=1 // pred_check_branch
      %65 = sbr.rel (0) target = $region25
    $region24: #{tpu_custom_call.1} parent=1 // pred_region
      %66 = dma.done [#allocation5], 256
    $region25: #{tpu_custom_call.1} parent=1 // pred_fallthru
      _
    // Predicated region
    $region26: #{tpu_custom_call.1} parent=1 // pred_check
      _
    $region27: #{tpu_custom_call.1} parent=1 // pred_check_branch
      %68 = sbr.rel (0) target = $region29
    $region28: #{tpu_custom_call.1} parent=1 // pred_region
      %69 = dma.done [#allocation8], 512
    $region29: #{tpu_custom_call.1} parent=1 // pred_fallthru
      _
    // Predicated region
    $region30: #{tpu_custom_call.1} parent=1 // pred_check
      _
    $region31: #{tpu_custom_call.1} parent=1 // pred_check_branch
      %71 = sbr.rel (0) target = $region33
    $region32: #{tpu_custom_call.1} parent=1 // pred_region
      %72 = dma.done [#allocation8], 512
    $region33: #{tpu_custom_call.1} parent=1 // pred_fallthru
      _
    // Predicated region
    $region34: #{tpu_custom_call.1} parent=1 // pred_check
      _
    $region35: #{tpu_custom_call.1} parent=1 // pred_check_branch
      %74 = sbr.rel (0) target = $region37
    $region36: #{tpu_custom_call.1} parent=1 // pred_region
      %75 = dma.done [#allocation11], 256
    $region37: #{tpu_custom_call.1} parent=1 // pred_fallthru
      _
    %p76 = scmp.eq.s32.totalorder 0, 0
    // Predicated region
    $region38: #{tpu_custom_call.1} parent=1 // pred_check
      %p77 = pneg %p76
    $region39: #{tpu_custom_call.1} parent=1 // pred_check_branch
      %79 = sbr.rel (%p77) target = $region41
    $region40: #{tpu_custom_call.1} parent=1 // pred_region
      %vm80 = vcmask 254976
      %81 = vst.msk [vmem:[#allocation2] sm:$0x3] %vm80, 0.0
      %vm82 = vcmask 123904
      %83 = vst.msk [vmem:[#allocation3] sm:$0x3] %vm82, 0.0
    $region41: #{tpu_custom_call.1} parent=1 // pred_fallthru
      _
    %v84 = vld [vmem:[#allocation2] sm:$0x3]
    %v85 = vld [vmem:[#allocation3] sm:$0x3]
    %v86 = vld [vmem:[#allocation7] sm:$0xff]
    %v87 = vld [vmem:[#allocation7 + $0x8] sm:$0xff]
    %v88 = vld [vmem:[#allocation7 + $0x10] sm:$0xff]
    %v89 = vld [vmem:[#allocation7 + $0x18] sm:$0xff]
    %v90 = vld [vmem:[#allocation9] sm:$0xff]
    %v91 = vld [vmem:[#allocation9 + $0x8] sm:$0xff]
    %v92 = vld [vmem:[#allocation9 + $0x10] sm:$0xff]
    %v93 = vld [vmem:[#allocation9 + $0x18] sm:$0xff]
    %v94 = vld [vmem:[#allocation10] sm:$0xff]
    %v95 = vld [vmem:[#allocation10 + $0x8] sm:$0xff]
    %v96 = vld [vmem:[%s4] sm:$0x1]
    %v98 = vlaneseq
    %v99 = vshrl.u32 %v98, 7
    %v100 = vsub.s32 0, %v99
    %v101 = vrot.slane %v96, %v100
    %vm102 = vcmask 130048
    %v104 = vsel %vm102, %v85, 0
    %106 = vmatprep.subr.mxu0 0.0
    %v107 = vand.u32 %v94, 4294901760
    %108 = vmatpush1.msra.mxu0 %v107
    %109 = vmatprep.subr.mxu0 0.0
    %v110 = vand.u32 %v95, 4294901760
    %111 = vmatpush1.msra.mxu0 %v110
    %112 = vmatprep.subr.mxu0 0.0
    %113 = vmatpush1.msra.mxu0 0.0
    %114 = vmatprep.subr.mxu0 0.0
    %115 = vmatpush1.msra.mxu0 0.0
    %116 = vmatprep.subr.mxu0 0.0
    %117 = vmatpush1.msra.mxu0 0.0
    %118 = vmatprep.subr.mxu0 0.0
    %119 = vmatpush1.msra.mxu0 0.0
    %120 = vmatprep.subr.mxu0 0.0
    %121 = vmatpush1.msra.mxu0 0.0
    %122 = vmatprep.subr.mxu0 0.0
    %123 = vmatpush1.msra.mxu0 0.0
    %124 = vmatprep.subr.mxu0 0.0
    %125 = vmatpush1.msra.mxu0 0.0
    %126 = vmatprep.subr.mxu0 0.0
    %127 = vmatpush1.msra.mxu0 0.0
    %128 = vmatprep.subr.mxu0 0.0
    %129 = vmatpush1.msra.mxu0 0.0
    %130 = vmatprep.subr.mxu0 0.0
    %131 = vmatpush1.msra.mxu0 0.0
    %132 = vmatprep.subr.mxu0 0.0
    %133 = vmatpush1.msra.mxu0 0.0
    %134 = vmatprep.subr.mxu0 0.0
    %135 = vmatpush1.msra.mxu0 0.0
    %136 = vmatprep.subr.mxu0 0.0
    %137 = vmatpush1.msra.mxu0 0.0
    %138 = vmatprep.subr.mxu0 0.0
    %139 = vmatpush1.msra.mxu0 0.0
    %140 = vmatprep.subr.mxu0 0.0
    %141 = vmatpush1.msra.mxu0 0.0
    %142 = vmatprep.subr.mxu0 0.0
    %143 = vmatpush1.msra.mxu0 0.0
    %144 = vmatprep.subr.mxu0 0.0
    %145 = vmatpush1.msra.mxu0 0.0
    %146 = vmatprep.subr.mxu0 0.0
    %147 = vmatpush1.msra.mxu0 0.0
    %148 = vmatprep.subr.mxu0 0.0
    %149 = vmatpush1.msra.mxu0 0.0
    %150 = vmatprep.subr.mxu0 0.0
    %151 = vmatpush1.msra.mxu0 0.0
    %152 = vmatprep.subr.mxu0 0.0
    %153 = vmatpush1.msra.mxu0 0.0
    %154 = vmatprep.subr.mxu0 0.0
    %155 = vmatpush1.msra.mxu0 0.0
    %156 = vmatprep.subr.mxu0 0.0
    %157 = vmatpush1.msra.mxu0 0.0
    %158 = vmatprep.subr.mxu0 0.0
    %159 = vmatpush1.msra.mxu0 0.0
    %160 = vmatprep.subr.mxu0 0.0
    %161 = vmatpush1.msra.mxu0 0.0
    %162 = vmatprep.subr.mxu0 0.0
    %163 = vmatpush1.msra.mxu0 0.0
    %164 = vmatprep.subr.mxu0 0.0
    %165 = vmatpush1.msra.mxu0 0.0
    %166 = vmatprep.subr.mxu0 0.0
    %167 = vmatpush1.msra.mxu0 0.0
    %168 = vmatprep.subr.mxu0 0.0
    %169 = vmatpush1.msra.mxu0 0.0
    %170 = vmatprep.subr.mxu0 0.0
    %171 = vmatpush1.msra.mxu0 0.0
    %172 = vmatprep.mubr.f32.mxu0 0.0
    %v173 = vand.u32 %v104, 4294901760
    %v174 = vsub.f32 %v104, %v173
    %v175 = vand.u32 %v174, 4294901760
    %v176 = vsub.f32 %v174, %v175
    %v177 = vand.u32 %v176, 4294901760
    %178 = vmatmul.mubr.f32.gmra.mrb[0].mxu0 %v177
    %v179 = vpop.f32.mrb[0].mxu0
    %v180 = vadd.f32 0.0, %v179
    %v181 = vpop.f32.mrb[0].mxu0
    %182 = vdwg.mxu0
    %183 = vmatprep.subr.mxu0 0.0
    %v184 = vand.u32 %v94, 4294901760
    %v185 = vsub.f32 %v94, %v184
    %v186 = vand.u32 %v185, 4294901760
    %v187 = vsub.f32 %v185, %v186
    %v188 = vand.u32 %v187, 4294901760
    %189 = vmatpush1.msra.mxu0 %v188
    %190 = vmatprep.subr.mxu0 0.0
    %v191 = vand.u32 %v95, 4294901760
    %v192 = vsub.f32 %v95, %v191
    %v193 = vand.u32 %v192, 4294901760
    %v194 = vsub.f32 %v192, %v193
    %v195 = vand.u32 %v194, 4294901760
    %196 = vmatpush1.msra.mxu0 %v195
    %197 = vmatprep.subr.mxu0 0.0
    %198 = vmatpush1.msra.mxu0 0.0
    %199 = vmatprep.subr.mxu0 0.0
    %200 = vmatpush1.msra.mxu0 0.0
    %201 = vmatprep.subr.mxu0 0.0
    %202 = vmatpush1.msra.mxu0 0.0
    %203 = vmatprep.subr.mxu0 0.0
    %204 = vmatpush1.msra.mxu0 0.0
    %205 = vmatprep.subr.mxu0 0.0
    %206 = vmatpush1.msra.mxu0 0.0
    %207 = vmatprep.subr.mxu0 0.0
    %208 = vmatpush1.msra.mxu0 0.0
    %209 = vmatprep.subr.mxu0 0.0
    %210 = vmatpush1.msra.mxu0 0.0
    %211 = vmatprep.subr.mxu0 0.0
    %212 = vmatpush1.msra.mxu0 0.0
    %213 = vmatprep.subr.mxu0 0.0
    %214 = vmatpush1.msra.mxu0 0.0
    %215 = vmatprep.subr.mxu0 0.0
    %216 = vmatpush1.msra.mxu0 0.0
    %217 = vmatprep.subr.mxu0 0.0
    %218 = vmatpush1.msra.mxu0 0.0
    %219 = vmatprep.subr.mxu0 0.0
    %220 = vmatpush1.msra.mxu0 0.0
    %221 = vmatprep.subr.mxu0 0.0
    %222 = vmatpush1.msra.mxu0 0.0
    %223 = vmatprep.subr.mxu0 0.0
    %224 = vmatpush1.msra.mxu0 0.0
    %225 = vmatprep.subr.mxu0 0.0
    %226 = vmatpush1.msra.mxu0 0.0
    %227 = vmatprep.subr.mxu0 0.0
    %228 = vmatpush1.msra.mxu0 0.0
    %229 = vmatprep.subr.mxu0 0.0
    %230 = vmatpush1.msra.mxu0 0.0
    %231 = vmatprep.subr.mxu0 0.0
    %232 = vmatpush1.msra.mxu0 0.0
    %233 = vmatprep.subr.mxu0 0.0
    %234 = vmatpush1.msra.mxu0 0.0
    %235 = vmatprep.subr.mxu0 0.0
    %236 = vmatpush1.msra.mxu0 0.0
    %237 = vmatprep.subr.mxu0 0.0
    %238 = vmatpush1.msra.mxu0 0.0
    %239 = vmatprep.subr.mxu0 0.0
    %240 = vmatpush1.msra.mxu0 0.0
    %241 = vmatprep.subr.mxu0 0.0
    %242 = vmatpush1.msra.mxu0 0.0
    %243 = vmatprep.subr.mxu0 0.0
    %244 = vmatpush1.msra.mxu0 0.0
    %245 = vmatprep.subr.mxu0 0.0
    %246 = vmatpush1.msra.mxu0 0.0
    %247 = vmatprep.subr.mxu0 0.0
    %248 = vmatpush1.msra.mxu0 0.0
    %249 = vmatprep.subr.mxu0 0.0
    %250 = vmatpush1.msra.mxu0 0.0
    %251 = vmatprep.subr.mxu0 0.0
    %252 = vmatpush1.msra.mxu0 0.0
    %253 = vmatprep.subr.mxu0 0.0
    %254 = vmatpush1.msra.mxu0 0.0
    %255 = vmatprep.subr.mxu0 0.0
    %256 = vmatpush1.msra.mxu0 0.0
    %257 = vmatprep.mubr.f32.mxu0 0.0
    %v258 = vand.u32 %v104, 4294901760
    %259 = vmatmul.mubr.f32.gmra.mrb[0].mxu0 %v258
    %v260 = vpop.f32.mrb[0].mxu0
    %v261 = vadd.f32 %v180, %v260
    %v262 = vpop.f32.mrb[0].mxu0
    %263 = vdwg.mxu0
    %264 = vmatprep.subr.mxu0 0.0
    %v265 = vand.u32 %v94, 4294901760
    %v266 = vsub.f32 %v94, %v265
    %267 = vmatpush1.msra.mxu0 %v266
    %268 = vmatprep.subr.mxu0 0.0
    %v269 = vand.u32 %v95, 4294901760
    %v270 = vsub.f32 %v95, %v269
    %271 = vmatpush1.msra.mxu0 %v270
    %272 = vmatprep.subr.mxu0 0.0
    %273 = vmatpush1.msra.mxu0 0.0
    %274 = vmatprep.subr.mxu0 0.0
    %275 = vmatpush1.msra.mxu0 0.0
    %276 = vmatprep.subr.mxu0 0.0
    %277 = vmatpush1.msra.mxu0 0.0
    %278 = vmatprep.subr.mxu0 0.0
    %279 = vmatpush1.msra.mxu0 0.0
    %280 = vmatprep.subr.mxu0 0.0
    %281 = vmatpush1.msra.mxu0 0.0
    %282 = vmatprep.subr.mxu0 0.0
    %283 = vmatpush1.msra.mxu0 0.0
    %284 = vmatprep.subr.mxu0 0.0
    %285 = vmatpush1.msra.mxu0 0.0
    %286 = vmatprep.subr.mxu0 0.0
    %287 = vmatpush1.msra.mxu0 0.0
    %288 = vmatprep.subr.mxu0 0.0
    %289 = vmatpush1.msra.mxu0 0.0
    %290 = vmatprep.subr.mxu0 0.0
    %291 = vmatpush1.msra.mxu0 0.0
    %292 = vmatprep.subr.mxu0 0.0
    %293 = vmatpush1.msra.mxu0 0.0
    %294 = vmatprep.subr.mxu0 0.0
    %295 = vmatpush1.msra.mxu0 0.0
    %296 = vmatprep.subr.mxu0 0.0
    %297 = vmatpush1.msra.mxu0 0.0
    %298 = vmatprep.subr.mxu0 0.0
    %299 = vmatpush1.msra.mxu0 0.0
    %300 = vmatprep.subr.mxu0 0.0
    %301 = vmatpush1.msra.mxu0 0.0
    %302 = vmatprep.subr.mxu0 0.0
    %303 = vmatpush1.msra.mxu0 0.0
    %304 = vmatprep.subr.mxu0 0.0
    %305 = vmatpush1.msra.mxu0 0.0
    %306 = vmatprep.subr.mxu0 0.0
    %307 = vmatpush1.msra.mxu0 0.0
    %308 = vmatprep.subr.mxu0 0.0
    %309 = vmatpush1.msra.mxu0 0.0
    %310 = vmatprep.subr.mxu0 0.0
    %311 = vmatpush1.msra.mxu0 0.0
    %312 = vmatprep.subr.mxu0 0.0
    %313 = vmatpush1.msra.mxu0 0.0
    %314 = vmatprep.subr.mxu0 0.0
    %315 = vmatpush1.msra.mxu0 0.0
    %316 = vmatprep.subr.mxu0 0.0
    %317 = vmatpush1.msra.mxu0 0.0
    %318 = vmatprep.subr.mxu0 0.0
    %319 = vmatpush1.msra.mxu0 0.0
    %320 = vmatprep.subr.mxu0 0.0
    %321 = vmatpush1.msra.mxu0 0.0
    %322 = vmatprep.subr.mxu0 0.0
    %323 = vmatpush1.msra.mxu0 0.0
    %324 = vmatprep.subr.mxu0 0.0
    %325 = vmatpush1.msra.mxu0 0.0
    %326 = vmatprep.subr.mxu0 0.0
    %327 = vmatpush1.msra.mxu0 0.0
    %328 = vmatprep.subr.mxu0 0.0
    %329 = vmatpush1.msra.mxu0 0.0
    %330 = vmatprep.subr.mxu0 0.0
    %331 = vmatpush1.msra.mxu0 0.0
    %332 = vmatprep.mubr.f32.mxu0 0.0
    %v333 = vand.u32 %v104, 4294901760
    %v334 = vsub.f32 %v104, %v333
    %335 = vmatmul.mubr.f32.gmra.mrb[0].mxu0 %v334
    %v336 = vpop.f32.mrb[0].mxu0
    %v337 = vadd.f32 %v261, %v336
    %v338 = vpop.f32.mrb[0].mxu0
    %339 = vdwg.mxu0
    %340 = vmatprep.subr.mxu0 0.0
    %v341 = vand.u32 %v94, 4294901760
    %342 = vmatpush1.msra.mxu0 %v341
    %343 = vmatprep.subr.mxu0 0.0
    %v344 = vand.u32 %v95, 4294901760
    %345 = vmatpush1.msra.mxu0 %v344
    %346 = vmatprep.subr.mxu0 0.0
    %347 = vmatpush1.msra.mxu0 0.0
    %348 = vmatprep.subr.mxu0 0.0
    %349 = vmatpush1.msra.mxu0 0.0
    %350 = vmatprep.subr.mxu0 0.0
    %351 = vmatpush1.msra.mxu0 0.0
    %352 = vmatprep.subr.mxu0 0.0
    %353 = vmatpush1.msra.mxu0 0.0
    %354 = vmatprep.subr.mxu0 0.0
    %355 = vmatpush1.msra.mxu0 0.0
    %356 = vmatprep.subr.mxu0 0.0
    %357 = vmatpush1.msra.mxu0 0.0
    %358 = vmatprep.subr.mxu0 0.0
    %359 = vmatpush1.msra.mxu0 0.0
    %360 = vmatprep.subr.mxu0 0.0
    %361 = vmatpush1.msra.mxu0 0.0
    %362 = vmatprep.subr.mxu0 0.0
    %363 = vmatpush1.msra.mxu0 0.0
    %364 = vmatprep.subr.mxu0 0.0
    %365 = vmatpush1.msra.mxu0 0.0
    %366 = vmatprep.subr.mxu0 0.0
    %367 = vmatpush1.msra.mxu0 0.0
    %368 = vmatprep.subr.mxu0 0.0
    %369 = vmatpush1.msra.mxu0 0.0
    %370 = vmatprep.subr.mxu0 0.0
    %371 = vmatpush1.msra.mxu0 0.0
    %372 = vmatprep.subr.mxu0 0.0
    %373 = vmatpush1.msra.mxu0 0.0
    %374 = vmatprep.subr.mxu0 0.0
    %375 = vmatpush1.msra.mxu0 0.0
    %376 = vmatprep.subr.mxu0 0.0
    %377 = vmatpush1.msra.mxu0 0.0
    %378 = vmatprep.subr.mxu0 0.0
    %379 = vmatpush1.msra.mxu0 0.0
    %380 = vmatprep.subr.mxu0 0.0
    %381 = vmatpush1.msra.mxu0 0.0
    %382 = vmatprep.subr.mxu0 0.0
    %383 = vmatpush1.msra.mxu0 0.0
    %384 = vmatprep.subr.mxu0 0.0
    %385 = vmatpush1.msra.mxu0 0.0
    %386 = vmatprep.subr.mxu0 0.0
    %387 = vmatpush1.msra.mxu0 0.0
    %388 = vmatprep.subr.mxu0 0.0
    %389 = vmatpush1.msra.mxu0 0.0
    %390 = vmatprep.subr.mxu0 0.0
    %391 = vmatpush1.msra.mxu0 0.0
    %392 = vmatprep.subr.mxu0 0.0
    %393 = vmatpush1.msra.mxu0 0.0
    %394 = vmatprep.subr.mxu0 0.0
    %395 = vmatpush1.msra.mxu0 0.0
    %396 = vmatprep.subr.mxu0 0.0
    %397 = vmatpush1.msra.mxu0 0.0
    %398 = vmatprep.subr.mxu0 0.0
    %399 = vmatpush1.msra.mxu0 0.0
    %400 = vmatprep.subr.mxu0 0.0
    %401 = vmatpush1.msra.mxu0 0.0
    %402 = vmatprep.subr.mxu0 0.0
    %403 = vmatpush1.msra.mxu0 0.0
    %404 = vmatprep.subr.mxu0 0.0
    %405 = vmatpush1.msra.mxu0 0.0
    %406 = vmatprep.mubr.f32.mxu0 0.0
    %v407 = vand.u32 %v104, 4294901760
    %v408 = vsub.f32 %v104, %v407
    %v409 = vand.u32 %v408, 4294901760
    %410 = vmatmul.mubr.f32.gmra.mrb[0].mxu0 %v409
    %v411 = vpop.f32.mrb[0].mxu0
    %v412 = vadd.f32 %v337, %v411
    %v413 = vpop.f32.mrb[0].mxu0
    %414 = vdwg.mxu0
    %415 = vmatprep.subr.mxu0 0.0
    %v416 = vand.u32 %v94, 4294901760
    %v417 = vsub.f32 %v94, %v416
    %v418 = vand.u32 %v417, 4294901760
    %419 = vmatpush1.msra.mxu0 %v418
    %420 = vmatprep.subr.mxu0 0.0
    %v421 = vand.u32 %v95, 4294901760
    %v422 = vsub.f32 %v95, %v421
    %v423 = vand.u32 %v422, 4294901760
    %424 = vmatpush1.msra.mxu0 %v423
    %425 = vmatprep.subr.mxu0 0.0
    %426 = vmatpush1.msra.mxu0 0.0
    %427 = vmatprep.subr.mxu0 0.0
    %428 = vmatpush1.msra.mxu0 0.0
    %429 = vmatprep.subr.mxu0 0.0
    %430 = vmatpush1.msra.mxu0 0.0
    %431 = vmatprep.subr.mxu0 0.0
    %432 = vmatpush1.msra.mxu0 0.0
    %433 = vmatprep.subr.mxu0 0.0
    %434 = vmatpush1.msra.mxu0 0.0
    %435 = vmatprep.subr.mxu0 0.0
    %436 = vmatpush1.msra.mxu0 0.0
    %437 = vmatprep.subr.mxu0 0.0
    %438 = vmatpush1.msra.mxu0 0.0
    %439 = vmatprep.subr.mxu0 0.0
    %440 = vmatpush1.msra.mxu0 0.0
    %441 = vmatprep.subr.mxu0 0.0
    %442 = vmatpush1.msra.mxu0 0.0
    %443 = vmatprep.subr.mxu0 0.0
    %444 = vmatpush1.msra.mxu0 0.0
    %445 = vmatprep.subr.mxu0 0.0
    %446 = vmatpush1.msra.mxu0 0.0
    %447 = vmatprep.subr.mxu0 0.0
    %448 = vmatpush1.msra.mxu0 0.0
    %449 = vmatprep.subr.mxu0 0.0
    %450 = vmatpush1.msra.mxu0 0.0
    %451 = vmatprep.subr.mxu0 0.0
    %452 = vmatpush1.msra.mxu0 0.0
    %453 = vmatprep.subr.mxu0 0.0
    %454 = vmatpush1.msra.mxu0 0.0
    %455 = vmatprep.subr.mxu0 0.0
    %456 = vmatpush1.msra.mxu0 0.0
    %457 = vmatprep.subr.mxu0 0.0
    %458 = vmatpush1.msra.mxu0 0.0
    %459 = vmatprep.subr.mxu0 0.0
    %460 = vmatpush1.msra.mxu0 0.0
    %461 = vmatprep.subr.mxu0 0.0
    %462 = vmatpush1.msra.mxu0 0.0
    %463 = vmatprep.subr.mxu0 0.0
    %464 = vmatpush1.msra.mxu0 0.0
    %465 = vmatprep.subr.mxu0 0.0
    %466 = vmatpush1.msra.mxu0 0.0
    %467 = vmatprep.subr.mxu0 0.0
    %468 = vmatpush1.msra.mxu0 0.0
    %469 = vmatprep.subr.mxu0 0.0
    %470 = vmatpush1.msra.mxu0 0.0
    %471 = vmatprep.subr.mxu0 0.0
    %472 = vmatpush1.msra.mxu0 0.0
    %473 = vmatprep.subr.mxu0 0.0
    %474 = vmatpush1.msra.mxu0 0.0
    %475 = vmatprep.subr.mxu0 0.0
    %476 = vmatpush1.msra.mxu0 0.0
    %477 = vmatprep.subr.mxu0 0.0
    %478 = vmatpush1.msra.mxu0 0.0
    %479 = vmatprep.subr.mxu0 0.0
    %480 = vmatpush1.msra.mxu0 0.0
    %481 = vmatprep.subr.mxu0 0.0
    %482 = vmatpush1.msra.mxu0 0.0
    %483 = vmatprep.subr.mxu0 0.0
    %484 = vmatpush1.msra.mxu0 0.0
    %485 = vmatprep.mubr.f32.mxu0 0.0
    %v486 = vand.u32 %v104, 4294901760
    %487 = vmatmul.mubr.f32.gmra.mrb[0].mxu0 %v486
    %v488 = vpop.f32.mrb[0].mxu0
    %v489 = vadd.f32 %v412, %v488
    %v490 = vpop.f32.mrb[0].mxu0
    %491 = vdwg.mxu0
    %492 = vmatprep.subr.mxu0 0.0
    %v493 = vand.u32 %v94, 4294901760
    %494 = vmatpush1.msra.mxu0 %v493
    %495 = vmatprep.subr.mxu0 0.0
    %v496 = vand.u32 %v95, 4294901760
    %497 = vmatpush1.msra.mxu0 %v496
    %498 = vmatprep.subr.mxu0 0.0
    %499 = vmatpush1.msra.mxu0 0.0
    %500 = vmatprep.subr.mxu0 0.0
    %501 = vmatpush1.msra.mxu0 0.0
    %502 = vmatprep.subr.mxu0 0.0
    %503 = vmatpush1.msra.mxu0 0.0
    %504 = vmatprep.subr.mxu0 0.0
    %505 = vmatpush1.msra.mxu0 0.0
    %506 = vmatprep.subr.mxu0 0.0
    %507 = vmatpush1.msra.mxu0 0.0
    %508 = vmatprep.subr.mxu0 0.0
    %509 = vmatpush1.msra.mxu0 0.0
    %510 = vmatprep.subr.mxu0 0.0
    %511 = vmatpush1.msra.mxu0 0.0
    %512 = vmatprep.subr.mxu0 0.0
    %513 = vmatpush1.msra.mxu0 0.0
    %514 = vmatprep.subr.mxu0 0.0
    %515 = vmatpush1.msra.mxu0 0.0
    %516 = vmatprep.subr.mxu0 0.0
    %517 = vmatpush1.msra.mxu0 0.0
    %518 = vmatprep.subr.mxu0 0.0
    %519 = vmatpush1.msra.mxu0 0.0
    %520 = vmatprep.subr.mxu0 0.0
    %521 = vmatpush1.msra.mxu0 0.0
    %522 = vmatprep.subr.mxu0 0.0
    %523 = vmatpush1.msra.mxu0 0.0
    %524 = vmatprep.subr.mxu0 0.0
    %525 = vmatpush1.msra.mxu0 0.0
    %526 = vmatprep.subr.mxu0 0.0
    %527 = vmatpush1.msra.mxu0 0.0
    %528 = vmatprep.subr.mxu0 0.0
    %529 = vmatpush1.msra.mxu0 0.0
    %530 = vmatprep.subr.mxu0 0.0
    %531 = vmatpush1.msra.mxu0 0.0
    %532 = vmatprep.subr.mxu0 0.0
    %533 = vmatpush1.msra.mxu0 0.0
    %534 = vmatprep.subr.mxu0 0.0
    %535 = vmatpush1.msra.mxu0 0.0
    %536 = vmatprep.subr.mxu0 0.0
    %537 = vmatpush1.msra.mxu0 0.0
    %538 = vmatprep.subr.mxu0 0.0
    %539 = vmatpush1.msra.mxu0 0.0
    %540 = vmatprep.subr.mxu0 0.0
    %541 = vmatpush1.msra.mxu0 0.0
    %542 = vmatprep.subr.mxu0 0.0
    %543 = vmatpush1.msra.mxu0 0.0
    %544 = vmatprep.subr.mxu0 0.0
    %545 = vmatpush1.msra.mxu0 0.0
    %546 = vmatprep.subr.mxu0 0.0
    %547 = vmatpush1.msra.mxu0 0.0
    %548 = vmatprep.subr.mxu0 0.0
    %549 = vmatpush1.msra.mxu0 0.0
    %550 = vmatprep.subr.mxu0 0.0
    %551 = vmatpush1.msra.mxu0 0.0
    %552 = vmatprep.subr.mxu0 0.0
    %553 = vmatpush1.msra.mxu0 0.0
    %554 = vmatprep.subr.mxu0 0.0
    %555 = vmatpush1.msra.mxu0 0.0
    %556 = vmatprep.subr.mxu0 0.0
    %557 = vmatpush1.msra.mxu0 0.0
    %558 = vmatprep.mubr.f32.mxu0 0.0
    %v559 = vand.u32 %v104, 4294901760
    %560 = vmatmul.mubr.f32.gmra.mrb[0].mxu0 %v559
    %v561 = vpop.f32.mrb[0].mxu0
    %v562 = vadd.f32 %v489, %v561
    %v563 = vpop.f32.mrb[0].mxu0
    %564 = vdwg.mxu0
    %v565 = vld [vmem:[#allocation4] sm:$0x1]
    %v566 = vld [vmem:[#allocation4 + $0x8] sm:$0x1]
    %vm567 = vcmask 261120
    %v569 = vsel %vm567, %v84, 0
    %571 = vmatprep.subr.mxu0 0.0
    %v572 = vand.u32 %v86, 4294901760
    %573 = vmatpush1.msra.mxu0 %v572
    %574 = vmatprep.subr.mxu0 0.0
    %v575 = vand.u32 %v87, 4294901760
    %576 = vmatpush1.msra.mxu0 %v575
    %577 = vmatprep.subr.mxu0 0.0
    %v578 = vand.u32 %v88, 4294901760
    %579 = vmatpush1.msra.mxu0 %v578
    %580 = vmatprep.subr.mxu0 0.0
    %v581 = vand.u32 %v89, 4294901760
    %582 = vmatpush1.msra.mxu0 %v581
    %583 = vmatprep.subr.mxu0 0.0
    %584 = vmatpush1.msra.mxu0 0.0
    %585 = vmatprep.subr.mxu0 0.0
    %586 = vmatpush1.msra.mxu0 0.0
    %587 = vmatprep.subr.mxu0 0.0
    %588 = vmatpush1.msra.mxu0 0.0
    %589 = vmatprep.subr.mxu0 0.0
    %590 = vmatpush1.msra.mxu0 0.0
    %591 = vmatprep.subr.mxu0 0.0
    %592 = vmatpush1.msra.mxu0 0.0
    %593 = vmatprep.subr.mxu0 0.0
    %594 = vmatpush1.msra.mxu0 0.0
    %595 = vmatprep.subr.mxu0 0.0
    %596 = vmatpush1.msra.mxu0 0.0
    %597 = vmatprep.subr.mxu0 0.0
    %598 = vmatpush1.msra.mxu0 0.0
    %599 = vmatprep.subr.mxu0 0.0
    %600 = vmatpush1.msra.mxu0 0.0
    %601 = vmatprep.subr.mxu0 0.0
    %602 = vmatpush1.msra.mxu0 0.0
    %603 = vmatprep.subr.mxu0 0.0
    %604 = vmatpush1.msra.mxu0 0.0
    %605 = vmatprep.subr.mxu0 0.0
    %606 = vmatpush1.msra.mxu0 0.0
    %607 = vmatprep.subr.mxu0 0.0
    %608 = vmatpush1.msra.mxu0 0.0
    %609 = vmatprep.subr.mxu0 0.0
    %610 = vmatpush1.msra.mxu0 0.0
    %611 = vmatprep.subr.mxu0 0.0
    %612 = vmatpush1.msra.mxu0 0.0
    %613 = vmatprep.subr.mxu0 0.0
    %614 = vmatpush1.msra.mxu0 0.0
    %615 = vmatprep.subr.mxu0 0.0
    %616 = vmatpush1.msra.mxu0 0.0
    %617 = vmatprep.subr.mxu0 0.0
    %618 = vmatpush1.msra.mxu0 0.0
    %619 = vmatprep.subr.mxu0 0.0
    %620 = vmatpush1.msra.mxu0 0.0
    %621 = vmatprep.subr.mxu0 0.0
    %622 = vmatpush1.msra.mxu0 0.0
    %623 = vmatprep.subr.mxu0 0.0
    %624 = vmatpush1.msra.mxu0 0.0
    %625 = vmatprep.subr.mxu0 0.0
    %626 = vmatpush1.msra.mxu0 0.0
    %627 = vmatprep.subr.mxu0 0.0
    %628 = vmatpush1.msra.mxu0 0.0
    %629 = vmatprep.subr.mxu0 0.0
    %630 = vmatpush1.msra.mxu0 0.0
    %631 = vmatprep.subr.mxu0 0.0
    %632 = vmatpush1.msra.mxu0 0.0
    %633 = vmatprep.subr.mxu0 0.0
    %634 = vmatpush1.msra.mxu0 0.0
    %635 = vmatprep.subr.mxu0 0.0
    %636 = vmatpush1.msra.mxu0 0.0
    %637 = vmatprep.subr.mxu0 0.0
    %638 = vmatpush1.msra.mxu0 0.0
    %639 = vmatprep.mubr.f32.mxu0 0.0
    %v640 = vand.u32 %v569, 4294901760
    %v641 = vsub.f32 %v569, %v640
    %v642 = vand.u32 %v641, 4294901760
    %v643 = vsub.f32 %v641, %v642
    %v644 = vand.u32 %v643, 4294901760
    %645 = vmatmul.mubr.f32.gmra.mrb[0].mxu0 %v644
    %v646 = vpop.f32.mrb[0].mxu0
    %v647 = vadd.f32 0.0, %v646
    %v648 = vpop.f32.mrb[0].mxu0
    %649 = vdwg.mxu0
    %650 = vmatprep.subr.mxu0 0.0
    %v651 = vand.u32 %v86, 4294901760
    %v652 = vsub.f32 %v86, %v651
    %v653 = vand.u32 %v652, 4294901760
    %v654 = vsub.f32 %v652, %v653
    %v655 = vand.u32 %v654, 4294901760
    %656 = vmatpush1.msra.mxu0 %v655
    %657 = vmatprep.subr.mxu0 0.0
    %v658 = vand.u32 %v87, 4294901760
    %v659 = vsub.f32 %v87, %v658
    %v660 = vand.u32 %v659, 4294901760
    %v661 = vsub.f32 %v659, %v660
    %v662 = vand.u32 %v661, 4294901760
    %663 = vmatpush1.msra.mxu0 %v662
    %664 = vmatprep.subr.mxu0 0.0
    %v665 = vand.u32 %v88, 4294901760
    %v666 = vsub.f32 %v88, %v665
    %v667 = vand.u32 %v666, 4294901760
    %v668 = vsub.f32 %v666, %v667
    %v669 = vand.u32 %v668, 4294901760
    %670 = vmatpush1.msra.mxu0 %v669
    %671 = vmatprep.subr.mxu0 0.0
    %v672 = vand.u32 %v89, 4294901760
    %v673 = vsub.f32 %v89, %v672
    %v674 = vand.u32 %v673, 4294901760
    %v675 = vsub.f32 %v673, %v674
    %v676 = vand.u32 %v675, 4294901760
    %677 = vmatpush1.msra.mxu0 %v676
    %678 = vmatprep.subr.mxu0 0.0
    %679 = vmatpush1.msra.mxu0 0.0
    %680 = vmatprep.subr.mxu0 0.0
    %681 = vmatpush1.msra.mxu0 0.0
    %682 = vmatprep.subr.mxu0 0.0
    %683 = vmatpush1.msra.mxu0 0.0
    %684 = vmatprep.subr.mxu0 0.0
    %685 = vmatpush1.msra.mxu0 0.0
    %686 = vmatprep.subr.mxu0 0.0
    %687 = vmatpush1.msra.mxu0 0.0
    %688 = vmatprep.subr.mxu0 0.0
    %689 = vmatpush1.msra.mxu0 0.0
    %690 = vmatprep.subr.mxu0 0.0
    %691 = vmatpush1.msra.mxu0 0.0
    %692 = vmatprep.subr.mxu0 0.0
    %693 = vmatpush1.msra.mxu0 0.0
    %694 = vmatprep.subr.mxu0 0.0
    %695 = vmatpush1.msra.mxu0 0.0
    %696 = vmatprep.subr.mxu0 0.0
    %697 = vmatpush1.msra.mxu0 0.0
    %698 = vmatprep.subr.mxu0 0.0
    %699 = vmatpush1.msra.mxu0 0.0
    %700 = vmatprep.subr.mxu0 0.0
    %701 = vmatpush1.msra.mxu0 0.0
    %702 = vmatprep.subr.mxu0 0.0
    %703 = vmatpush1.msra.mxu0 0.0
    %704 = vmatprep.subr.mxu0 0.0
    %705 = vmatpush1.msra.mxu0 0.0
    %706 = vmatprep.subr.mxu0 0.0
    %707 = vmatpush1.msra.mxu0 0.0
    %708 = vmatprep.subr.mxu0 0.0
    %709 = vmatpush1.msra.mxu0 0.0
    %710 = vmatprep.subr.mxu0 0.0
    %711 = vmatpush1.msra.mxu0 0.0
    %712 = vmatprep.subr.mxu0 0.0
    %713 = vmatpush1.msra.mxu0 0.0
    %714 = vmatprep.subr.mxu0 0.0
    %715 = vmatpush1.msra.mxu0 0.0
    %716 = vmatprep.subr.mxu0 0.0
    %717 = vmatpush1.msra.mxu0 0.0
    %718 = vmatprep.subr.mxu0 0.0
    %719 = vmatpush1.msra.mxu0 0.0
    %720 = vmatprep.subr.mxu0 0.0
    %721 = vmatpush1.msra.mxu0 0.0
    %722 = vmatprep.subr.mxu0 0.0
    %723 = vmatpush1.msra.mxu0 0.0
    %724 = vmatprep.subr.mxu0 0.0
    %725 = vmatpush1.msra.mxu0 0.0
    %726 = vmatprep.subr.mxu0 0.0
    %727 = vmatpush1.msra.mxu0 0.0
    %728 = vmatprep.subr.mxu0 0.0
    %729 = vmatpush1.msra.mxu0 0.0
    %730 = vmatprep.subr.mxu0 0.0
    %731 = vmatpush1.msra.mxu0 0.0
    %732 = vmatprep.subr.mxu0 0.0
    %733 = vmatpush1.msra.mxu0 0.0
    %734 = vmatprep.mubr.f32.mxu0 0.0
    %v735 = vand.u32 %v569, 4294901760
    %736 = vmatmul.mubr.f32.gmra.mrb[0].mxu0 %v735
    %v737 = vpop.f32.mrb[0].mxu0
    %v738 = vadd.f32 %v647, %v737
    %v739 = vpop.f32.mrb[0].mxu0
    %740 = vdwg.mxu0
    %741 = vmatprep.subr.mxu0 0.0
    %v742 = vand.u32 %v86, 4294901760
    %v743 = vsub.f32 %v86, %v742
    %744 = vmatpush1.msra.mxu0 %v743
    %745 = vmatprep.subr.mxu0 0.0
    %v746 = vand.u32 %v87, 4294901760
    %v747 = vsub.f32 %v87, %v746
    %748 = vmatpush1.msra.mxu0 %v747
    %749 = vmatprep.subr.mxu0 0.0
    %v750 = vand.u32 %v88, 4294901760
    %v751 = vsub.f32 %v88, %v750
    %752 = vmatpush1.msra.mxu0 %v751
    %753 = vmatprep.subr.mxu0 0.0
    %v754 = vand.u32 %v89, 4294901760
    %v755 = vsub.f32 %v89, %v754
    %756 = vmatpush1.msra.mxu0 %v755
    %757 = vmatprep.subr.mxu0 0.0
    %758 = vmatpush1.msra.mxu0 0.0
    %759 = vmatprep.subr.mxu0 0.0
    %760 = vmatpush1.msra.mxu0 0.0
    %761 = vmatprep.subr.mxu0 0.0
    %762 = vmatpush1.msra.mxu0 0.0
    %763 = vmatprep.subr.mxu0 0.0
    %764 = vmatpush1.msra.mxu0 0.0
    %765 = vmatprep.subr.mxu0 0.0
    %766 = vmatpush1.msra.mxu0 0.0
    %767 = vmatprep.subr.mxu0 0.0
    %768 = vmatpush1.msra.mxu0 0.0
    %769 = vmatprep.subr.mxu0 0.0
    %770 = vmatpush1.msra.mxu0 0.0
    %771 = vmatprep.subr.mxu0 0.0
    %772 = vmatpush1.msra.mxu0 0.0
    %773 = vmatprep.subr.mxu0 0.0
    %774 = vmatpush1.msra.mxu0 0.0
    %775 = vmatprep.subr.mxu0 0.0
    %776 = vmatpush1.msra.mxu0 0.0
    %777 = vmatprep.subr.mxu0 0.0
    %778 = vmatpush1.msra.mxu0 0.0
    %779 = vmatprep.subr.mxu0 0.0
    %780 = vmatpush1.msra.mxu0 0.0
    %781 = vmatprep.subr.mxu0 0.0
    %782 = vmatpush1.msra.mxu0 0.0
    %783 = vmatprep.subr.mxu0 0.0
    %784 = vmatpush1.msra.mxu0 0.0
    %785 = vmatprep.subr.mxu0 0.0
    %786 = vmatpush1.msra.mxu0 0.0
    %787 = vmatprep.subr.mxu0 0.0
    %788 = vmatpush1.msra.mxu0 0.0
    %789 = vmatprep.subr.mxu0 0.0
    %790 = vmatpush1.msra.mxu0 0.0
    %791 = vmatprep.subr.mxu0 0.0
    %792 = vmatpush1.msra.mxu0 0.0
    %793 = vmatprep.subr.mxu0 0.0
    %794 = vmatpush1.msra.mxu0 0.0
    %795 = vmatprep.subr.mxu0 0.0
    %796 = vmatpush1.msra.mxu0 0.0
    %797 = vmatprep.subr.mxu0 0.0
    %798 = vmatpush1.msra.mxu0 0.0
    %799 = vmatprep.subr.mxu0 0.0
    %800 = vmatpush1.msra.mxu0 0.0
    %801 = vmatprep.subr.mxu0 0.0
    %802 = vmatpush1.msra.mxu0 0.0
    %803 = vmatprep.subr.mxu0 0.0
    %804 = vmatpush1.msra.mxu0 0.0
    %805 = vmatprep.subr.mxu0 0.0
    %806 = vmatpush1.msra.mxu0 0.0
    %807 = vmatprep.subr.mxu0 0.0
    %808 = vmatpush1.msra.mxu0 0.0
    %809 = vmatprep.subr.mxu0 0.0
    %810 = vmatpush1.msra.mxu0 0.0
    %811 = vmatprep.subr.mxu0 0.0
    %812 = vmatpush1.msra.mxu0 0.0
    %813 = vmatprep.mubr.f32.mxu0 0.0
    %v814 = vand.u32 %v569, 4294901760
    %v815 = vsub.f32 %v569, %v814
    %816 = vmatmul.mubr.f32.gmra.mrb[0].mxu0 %v815
    %v817 = vpop.f32.mrb[0].mxu0
    %v818 = vadd.f32 %v738, %v817
    %v819 = vpop.f32.mrb[0].mxu0
    %820 = vdwg.mxu0
    %821 = vmatprep.subr.mxu0 0.0
    %v822 = vand.u32 %v86, 4294901760
    %823 = vmatpush1.msra.mxu0 %v822
    %824 = vmatprep.subr.mxu0 0.0
    %v825 = vand.u32 %v87, 4294901760
    %826 = vmatpush1.msra.mxu0 %v825
    %827 = vmatprep.subr.mxu0 0.0
    %v828 = vand.u32 %v88, 4294901760
    %829 = vmatpush1.msra.mxu0 %v828
    %830 = vmatprep.subr.mxu0 0.0
    %v831 = vand.u32 %v89, 4294901760
    %832 = vmatpush1.msra.mxu0 %v831
    %833 = vmatprep.subr.mxu0 0.0
    %834 = vmatpush1.msra.mxu0 0.0
    %835 = vmatprep.subr.mxu0 0.0
    %836 = vmatpush1.msra.mxu0 0.0
    %837 = vmatprep.subr.mxu0 0.0
    %838 = vmatpush1.msra.mxu0 0.0
    %839 = vmatprep.subr.mxu0 0.0
    %840 = vmatpush1.msra.mxu0 0.0
    %841 = vmatprep.subr.mxu0 0.0
    %842 = vmatpush1.msra.mxu0 0.0
    %843 = vmatprep.subr.mxu0 0.0
    %844 = vmatpush1.msra.mxu0 0.0
    %845 = vmatprep.subr.mxu0 0.0
    %846 = vmatpush1.msra.mxu0 0.0
    %847 = vmatprep.subr.mxu0 0.0
    %848 = vmatpush1.msra.mxu0 0.0
    %849 = vmatprep.subr.mxu0 0.0
    %850 = vmatpush1.msra.mxu0 0.0
    %851 = vmatprep.subr.mxu0 0.0
    %852 = vmatpush1.msra.mxu0 0.0
    %853 = vmatprep.subr.mxu0 0.0
    %854 = vmatpush1.msra.mxu0 0.0
    %855 = vmatprep.subr.mxu0 0.0
    %856 = vmatpush1.msra.mxu0 0.0
    %857 = vmatprep.subr.mxu0 0.0
    %858 = vmatpush1.msra.mxu0 0.0
    %859 = vmatprep.subr.mxu0 0.0
    %860 = vmatpush1.msra.mxu0 0.0
    %861 = vmatprep.subr.mxu0 0.0
    %862 = vmatpush1.msra.mxu0 0.0
    %863 = vmatprep.subr.mxu0 0.0
    %864 = vmatpush1.msra.mxu0 0.0
    %865 = vmatprep.subr.mxu0 0.0
    %866 = vmatpush1.msra.mxu0 0.0
    %867 = vmatprep.subr.mxu0 0.0
    %868 = vmatpush1.msra.mxu0 0.0
    %869 = vmatprep.subr.mxu0 0.0
    %870 = vmatpush1.msra.mxu0 0.0
    %871 = vmatprep.subr.mxu0 0.0
    %872 = vmatpush1.msra.mxu0 0.0
    %873 = vmatprep.subr.mxu0 0.0
    %874 = vmatpush1.msra.mxu0 0.0
    %875 = vmatprep.subr.mxu0 0.0
    %876 = vmatpush1.msra.mxu0 0.0
    %877 = vmatprep.subr.mxu0 0.0
    %878 = vmatpush1.msra.mxu0 0.0
    %879 = vmatprep.subr.mxu0 0.0
    %880 = vmatpush1.msra.mxu0 0.0
    %881 = vmatprep.subr.mxu0 0.0
    %882 = vmatpush1.msra.mxu0 0.0
    %883 = vmatprep.subr.mxu0 0.0
    %884 = vmatpush1.msra.mxu0 0.0
    %885 = vmatprep.subr.mxu0 0.0
    %886 = vmatpush1.msra.mxu0 0.0
    %887 = vmatprep.subr.mxu0 0.0
    %888 = vmatpush1.msra.mxu0 0.0
    %889 = vmatprep.mubr.f32.mxu0 0.0
    %v890 = vand.u32 %v569, 4294901760
    %v891 = vsub.f32 %v569, %v890
    %v892 = vand.u32 %v891, 4294901760
    %893 = vmatmul.mubr.f32.gmra.mrb[0].mxu0 %v892
    %v894 = vpop.f32.mrb[0].mxu0
    %v895 = vadd.f32 %v818, %v894
    %v896 = vpop.f32.mrb[0].mxu0
    %897 = vdwg.mxu0
    %898 = vmatprep.subr.mxu0 0.0
    %v899 = vand.u32 %v86, 4294901760
    %v900 = vsub.f32 %v86, %v899
    %v901 = vand.u32 %v900, 4294901760
    %902 = vmatpush1.msra.mxu0 %v901
    %903 = vmatprep.subr.mxu0 0.0
    %v904 = vand.u32 %v87, 4294901760
    %v905 = vsub.f32 %v87, %v904
    %v906 = vand.u32 %v905, 4294901760
    %907 = vmatpush1.msra.mxu0 %v906
    %908 = vmatprep.subr.mxu0 0.0
    %v909 = vand.u32 %v88, 4294901760
    %v910 = vsub.f32 %v88, %v909
    %v911 = vand.u32 %v910, 4294901760
    %912 = vmatpush1.msra.mxu0 %v911
    %913 = vmatprep.subr.mxu0 0.0
    %v914 = vand.u32 %v89, 4294901760
    %v915 = vsub.f32 %v89, %v914
    %v916 = vand.u32 %v915, 4294901760
    %917 = vmatpush1.msra.mxu0 %v916
    %918 = vmatprep.subr.mxu0 0.0
    %919 = vmatpush1.msra.mxu0 0.0
    %920 = vmatprep.subr.mxu0 0.0
    %921 = vmatpush1.msra.mxu0 0.0
    %922 = vmatprep.subr.mxu0 0.0
    %923 = vmatpush1.msra.mxu0 0.0
    %924 = vmatprep.subr.mxu0 0.0
    %925 = vmatpush1.msra.mxu0 0.0
    %926 = vmatprep.subr.mxu0 0.0
    %927 = vmatpush1.msra.mxu0 0.0
    %928 = vmatprep.subr.mxu0 0.0
    %929 = vmatpush1.msra.mxu0 0.0
    %930 = vmatprep.subr.mxu0 0.0
    %931 = vmatpush1.msra.mxu0 0.0
    %932 = vmatprep.subr.mxu0 0.0
    %933 = vmatpush1.msra.mxu0 0.0
    %934 = vmatprep.subr.mxu0 0.0
    %935 = vmatpush1.msra.mxu0 0.0
    %936 = vmatprep.subr.mxu0 0.0
    %937 = vmatpush1.msra.mxu0 0.0
    %938 = vmatprep.subr.mxu0 0.0
    %939 = vmatpush1.msra.mxu0 0.0
    %940 = vmatprep.subr.mxu0 0.0
    %941 = vmatpush1.msra.mxu0 0.0
    %942 = vmatprep.subr.mxu0 0.0
    %943 = vmatpush1.msra.mxu0 0.0
    %944 = vmatprep.subr.mxu0 0.0
    %945 = vmatpush1.msra.mxu0 0.0
    %946 = vmatprep.subr.mxu0 0.0
    %947 = vmatpush1.msra.mxu0 0.0
    %948 = vmatprep.subr.mxu0 0.0
    %949 = vmatpush1.msra.mxu0 0.0
    %950 = vmatprep.subr.mxu0 0.0
    %951 = vmatpush1.msra.mxu0 0.0
    %952 = vmatprep.subr.mxu0 0.0
    %953 = vmatpush1.msra.mxu0 0.0
    %954 = vmatprep.subr.mxu0 0.0
    %955 = vmatpush1.msra.mxu0 0.0
    %956 = vmatprep.subr.mxu0 0.0
    %957 = vmatpush1.msra.mxu0 0.0
    %958 = vmatprep.subr.mxu0 0.0
    %959 = vmatpush1.msra.mxu0 0.0
    %960 = vmatprep.subr.mxu0 0.0
    %961 = vmatpush1.msra.mxu0 0.0
    %962 = vmatprep.subr.mxu0 0.0
    %963 = vmatpush1.msra.mxu0 0.0
    %964 = vmatprep.subr.mxu0 0.0
    %965 = vmatpush1.msra.mxu0 0.0
    %966 = vmatprep.subr.mxu0 0.0
    %967 = vmatpush1.msra.mxu0 0.0
    %968 = vmatprep.subr.mxu0 0.0
    %969 = vmatpush1.msra.mxu0 0.0
    %970 = vmatprep.subr.mxu0 0.0
    %971 = vmatpush1.msra.mxu0 0.0
    %972 = vmatprep.subr.mxu0 0.0
    %973 = vmatpush1.msra.mxu0 0.0
    %974 = vmatprep.mubr.f32.mxu0 0.0
    %v975 = vand.u32 %v569, 4294901760
    %976 = vmatmul.mubr.f32.gmra.mrb[0].mxu0 %v975
    %v977 = vpop.f32.mrb[0].mxu0
    %v978 = vadd.f32 %v895, %v977
    %v979 = vpop.f32.mrb[0].mxu0
    %980 = vdwg.mxu0
    %981 = vmatprep.subr.mxu0 0.0
    %v982 = vand.u32 %v86, 4294901760
    %983 = vmatpush1.msra.mxu0 %v982
    %984 = vmatprep.subr.mxu0 0.0
    %v985 = vand.u32 %v87, 4294901760
    %986 = vmatpush1.msra.mxu0 %v985
    %987 = vmatprep.subr.mxu0 0.0
    %v988 = vand.u32 %v88, 4294901760
    %989 = vmatpush1.msra.mxu0 %v988
    %990 = vmatprep.subr.mxu0 0.0
    %v991 = vand.u32 %v89, 4294901760
    %992 = vmatpush1.msra.mxu0 %v991
    %993 = vmatprep.subr.mxu0 0.0
    %994 = vmatpush1.msra.mxu0 0.0
    %995 = vmatprep.subr.mxu0 0.0
    %996 = vmatpush1.msra.mxu0 0.0
    %997 = vmatprep.subr.mxu0 0.0
    %998 = vmatpush1.msra.mxu0 0.0
    %999 = vmatprep.subr.mxu0 0.0
    %1000 = vmatpush1.msra.mxu0 0.0
    %1001 = vmatprep.subr.mxu0 0.0
    %1002 = vmatpush1.msra.mxu0 0.0
    %1003 = vmatprep.subr.mxu0 0.0
    %1004 = vmatpush1.msra.mxu0 0.0
    %1005 = vmatprep.subr.mxu0 0.0
    %1006 = vmatpush1.msra.mxu0 0.0
    %1007 = vmatprep.subr.mxu0 0.0
    %1008 = vmatpush1.msra.mxu0 0.0
    %1009 = vmatprep.subr.mxu0 0.0
    %1010 = vmatpush1.msra.mxu0 0.0
    %1011 = vmatprep.subr.mxu0 0.0
    %1012 = vmatpush1.msra.mxu0 0.0
    %1013 = vmatprep.subr.mxu0 0.0
    %1014 = vmatpush1.msra.mxu0 0.0
    %1015 = vmatprep.subr.mxu0 0.0
    %1016 = vmatpush1.msra.mxu0 0.0
    %1017 = vmatprep.subr.mxu0 0.0
    %1018 = vmatpush1.msra.mxu0 0.0
    %1019 = vmatprep.subr.mxu0 0.0
    %1020 = vmatpush1.msra.mxu0 0.0
    %1021 = vmatprep.subr.mxu0 0.0
    %1022 = vmatpush1.msra.mxu0 0.0
    %1023 = vmatprep.subr.mxu0 0.0
    %1024 = vmatpush1.msra.mxu0 0.0
    %1025 = vmatprep.subr.mxu0 0.0
    %1026 = vmatpush1.msra.mxu0 0.0
    %1027 = vmatprep.subr.mxu0 0.0
    %1028 = vmatpush1.msra.mxu0 0.0
    %1029 = vmatprep.subr.mxu0 0.0
    %1030 = vmatpush1.msra.mxu0 0.0
    %1031 = vmatprep.subr.mxu0 0.0
    %1032 = vmatpush1.msra.mxu0 0.0
    %1033 = vmatprep.subr.mxu0 0.0
    %1034 = vmatpush1.msra.mxu0 0.0
    %1035 = vmatprep.subr.mxu0 0.0
    %1036 = vmatpush1.msra.mxu0 0.0
    %1037 = vmatprep.subr.mxu0 0.0
    %1038 = vmatpush1.msra.mxu0 0.0
    %1039 = vmatprep.subr.mxu0 0.0
    %1040 = vmatpush1.msra.mxu0 0.0
    %1041 = vmatprep.subr.mxu0 0.0
    %1042 = vmatpush1.msra.mxu0 0.0
    %1043 = vmatprep.subr.mxu0 0.0
    %1044 = vmatpush1.msra.mxu0 0.0
    %1045 = vmatprep.subr.mxu0 0.0
    %1046 = vmatpush1.msra.mxu0 0.0
    %1047 = vmatprep.subr.mxu0 0.0
    %1048 = vmatpush1.msra.mxu0 0.0
    %1049 = vmatprep.mubr.f32.mxu0 0.0
    %v1050 = vand.u32 %v569, 4294901760
    %1051 = vmatmul.mubr.f32.gmra.mrb[0].mxu0 %v1050
    %v1052 = vpop.f32.mrb[0].mxu0
    %v1053 = vadd.f32 %v978, %v1052
    %v1054 = vpop.f32.mrb[0].mxu0
    %1055 = vdwg.mxu0
    %v1057 = vrot.slane %v1053, 1
    %v1060 = vadd.f32 %v565, %v1053
    %v1061 = vadd.f32 %v566, %v1057
    %v1062 = vmul.f32 %v84, 0.25
    %v1063 = vtanh.pop %v1060
    %v1064 = vtanh.pop %v1061
    %v1065 = vmul.f32 %v1063, 0.75
    %v1066 = vmul.f32 %v1064, 0.75
    %v1069 = vrot.slane %v1066, 7
    %vm1070 = vcmask 1041409
    %v1071 = vsel %vm1070, %v1069, %v1065
    %v1073 = vadd.f32 %v1062, %v1071
    %v1075 = vsel %vm567, %v1073, 0
    %1077 = vmatprep.subr.mxu0 0.0
    %v1078 = vand.u32 %v90, 4294901760
    %1079 = vmatpush1.msra.mxu0 %v1078
    %1080 = vmatprep.subr.mxu0 0.0
    %v1081 = vand.u32 %v91, 4294901760
    %1082 = vmatpush1.msra.mxu0 %v1081
    %1083 = vmatprep.subr.mxu0 0.0
    %v1084 = vand.u32 %v92, 4294901760
    %1085 = vmatpush1.msra.mxu0 %v1084
    %1086 = vmatprep.subr.mxu0 0.0
    %v1087 = vand.u32 %v93, 4294901760
    %1088 = vmatpush1.msra.mxu0 %v1087
    %1089 = vmatprep.subr.mxu0 0.0
    %1090 = vmatpush1.msra.mxu0 0.0
    %1091 = vmatprep.subr.mxu0 0.0
    %1092 = vmatpush1.msra.mxu0 0.0
    %1093 = vmatprep.subr.mxu0 0.0
    %1094 = vmatpush1.msra.mxu0 0.0
    %1095 = vmatprep.subr.mxu0 0.0
    %1096 = vmatpush1.msra.mxu0 0.0
    %1097 = vmatprep.subr.mxu0 0.0
    %1098 = vmatpush1.msra.mxu0 0.0
    %1099 = vmatprep.subr.mxu0 0.0
    %1100 = vmatpush1.msra.mxu0 0.0
    %1101 = vmatprep.subr.mxu0 0.0
    %1102 = vmatpush1.msra.mxu0 0.0
    %1103 = vmatprep.subr.mxu0 0.0
    %1104 = vmatpush1.msra.mxu0 0.0
    %1105 = vmatprep.subr.mxu0 0.0
    %1106 = vmatpush1.msra.mxu0 0.0
    %1107 = vmatprep.subr.mxu0 0.0
    %1108 = vmatpush1.msra.mxu0 0.0
    %1109 = vmatprep.subr.mxu0 0.0
    %1110 = vmatpush1.msra.mxu0 0.0
    %1111 = vmatprep.subr.mxu0 0.0
    %1112 = vmatpush1.msra.mxu0 0.0
    %1113 = vmatprep.subr.mxu0 0.0
    %1114 = vmatpush1.msra.mxu0 0.0
    %1115 = vmatprep.subr.mxu0 0.0
    %1116 = vmatpush1.msra.mxu0 0.0
    %1117 = vmatprep.subr.mxu0 0.0
    %1118 = vmatpush1.msra.mxu0 0.0
    %1119 = vmatprep.subr.mxu0 0.0
    %1120 = vmatpush1.msra.mxu0 0.0
    %1121 = vmatprep.subr.mxu0 0.0
    %1122 = vmatpush1.msra.mxu0 0.0
    %1123 = vmatprep.subr.mxu0 0.0
    %1124 = vmatpush1.msra.mxu0 0.0
    %1125 = vmatprep.subr.mxu0 0.0
    %1126 = vmatpush1.msra.mxu0 0.0
    %1127 = vmatprep.subr.mxu0 0.0
    %1128 = vmatpush1.msra.mxu0 0.0
    %1129 = vmatprep.subr.mxu0 0.0
    %1130 = vmatpush1.msra.mxu0 0.0
    %1131 = vmatprep.subr.mxu0 0.0
    %1132 = vmatpush1.msra.mxu0 0.0
    %1133 = vmatprep.subr.mxu0 0.0
    %1134 = vmatpush1.msra.mxu0 0.0
    %1135 = vmatprep.subr.mxu0 0.0
    %1136 = vmatpush1.msra.mxu0 0.0
    %1137 = vmatprep.subr.mxu0 0.0
    %1138 = vmatpush1.msra.mxu0 0.0
    %1139 = vmatprep.subr.mxu0 0.0
    %1140 = vmatpush1.msra.mxu0 0.0
    %1141 = vmatprep.subr.mxu0 0.0
    %1142 = vmatpush1.msra.mxu0 0.0
    %1143 = vmatprep.subr.mxu0 0.0
    %1144 = vmatpush1.msra.mxu0 0.0
    %1145 = vmatprep.mubr.f32.mxu0 0.0
    %v1146 = vand.u32 %v1075, 4294901760
    %v1147 = vsub.f32 %v1075, %v1146
    %v1148 = vand.u32 %v1147, 4294901760
    %v1149 = vsub.f32 %v1147, %v1148
    %v1150 = vand.u32 %v1149, 4294901760
    %1151 = vmatmul.mubr.f32.gmra.mrb[0].mxu0 %v1150
    %v1152 = vpop.f32.mrb[0].mxu0
    %v1153 = vadd.f32 0.0, %v1152
    %v1154 = vpop.f32.mrb[0].mxu0
    %1155 = vdwg.mxu0
    %1156 = vmatprep.subr.mxu0 0.0
    %v1157 = vand.u32 %v90, 4294901760
    %v1158 = vsub.f32 %v90, %v1157
    %v1159 = vand.u32 %v1158, 4294901760
    %v1160 = vsub.f32 %v1158, %v1159
    %v1161 = vand.u32 %v1160, 4294901760
    %1162 = vmatpush1.msra.mxu0 %v1161
    %1163 = vmatprep.subr.mxu0 0.0
    %v1164 = vand.u32 %v91, 4294901760
    %v1165 = vsub.f32 %v91, %v1164
    %v1166 = vand.u32 %v1165, 4294901760
    %v1167 = vsub.f32 %v1165, %v1166
    %v1168 = vand.u32 %v1167, 4294901760
    %1169 = vmatpush1.msra.mxu0 %v1168
    %1170 = vmatprep.subr.mxu0 0.0
    %v1171 = vand.u32 %v92, 4294901760
    %v1172 = vsub.f32 %v92, %v1171
    %v1173 = vand.u32 %v1172, 4294901760
    %v1174 = vsub.f32 %v1172, %v1173
    %v1175 = vand.u32 %v1174, 4294901760
    %1176 = vmatpush1.msra.mxu0 %v1175
    %1177 = vmatprep.subr.mxu0 0.0
    %v1178 = vand.u32 %v93, 4294901760
    %v1179 = vsub.f32 %v93, %v1178
    %v1180 = vand.u32 %v1179, 4294901760
    %v1181 = vsub.f32 %v1179, %v1180
    %v1182 = vand.u32 %v1181, 4294901760
    %1183 = vmatpush1.msra.mxu0 %v1182
    %1184 = vmatprep.subr.mxu0 0.0
    %1185 = vmatpush1.msra.mxu0 0.0
    %1186 = vmatprep.subr.mxu0 0.0
    %1187 = vmatpush1.msra.mxu0 0.0
    %1188 = vmatprep.subr.mxu0 0.0
    %1189 = vmatpush1.msra.mxu0 0.0
    %1190 = vmatprep.subr.mxu0 0.0
    %1191 = vmatpush1.msra.mxu0 0.0
    %1192 = vmatprep.subr.mxu0 0.0
    %1193 = vmatpush1.msra.mxu0 0.0
    %1194 = vmatprep.subr.mxu0 0.0
    %1195 = vmatpush1.msra.mxu0 0.0
    %1196 = vmatprep.subr.mxu0 0.0
    %1197 = vmatpush1.msra.mxu0 0.0
    %1198 = vmatprep.subr.mxu0 0.0
    %1199 = vmatpush1.msra.mxu0 0.0
    %1200 = vmatprep.subr.mxu0 0.0
    %1201 = vmatpush1.msra.mxu0 0.0
    %1202 = vmatprep.subr.mxu0 0.0
    %1203 = vmatpush1.msra.mxu0 0.0
    %1204 = vmatprep.subr.mxu0 0.0
    %1205 = vmatpush1.msra.mxu0 0.0
    %1206 = vmatprep.subr.mxu0 0.0
    %1207 = vmatpush1.msra.mxu0 0.0
    %1208 = vmatprep.subr.mxu0 0.0
    %1209 = vmatpush1.msra.mxu0 0.0
    %1210 = vmatprep.subr.mxu0 0.0
    %1211 = vmatpush1.msra.mxu0 0.0
    %1212 = vmatprep.subr.mxu0 0.0
    %1213 = vmatpush1.msra.mxu0 0.0
    %1214 = vmatprep.subr.mxu0 0.0
    %1215 = vmatpush1.msra.mxu0 0.0
    %1216 = vmatprep.subr.mxu0 0.0
    %1217 = vmatpush1.msra.mxu0 0.0
    %1218 = vmatprep.subr.mxu0 0.0
    %1219 = vmatpush1.msra.mxu0 0.0
    %1220 = vmatprep.subr.mxu0 0.0
    %1221 = vmatpush1.msra.mxu0 0.0
    %1222 = vmatprep.subr.mxu0 0.0
    %1223 = vmatpush1.msra.mxu0 0.0
    %1224 = vmatprep.subr.mxu0 0.0
    %1225 = vmatpush1.msra.mxu0 0.0
    %1226 = vmatprep.subr.mxu0 0.0
    %1227 = vmatpush1.msra.mxu0 0.0
    %1228 = vmatprep.subr.mxu0 0.0
    %1229 = vmatpush1.msra.mxu0 0.0
    %1230 = vmatprep.subr.mxu0 0.0
    %1231 = vmatpush1.msra.mxu0 0.0
    %1232 = vmatprep.subr.mxu0 0.0
    %1233 = vmatpush1.msra.mxu0 0.0
    %1234 = vmatprep.subr.mxu0 0.0
    %1235 = vmatpush1.msra.mxu0 0.0
    %1236 = vmatprep.subr.mxu0 0.0
    %1237 = vmatpush1.msra.mxu0 0.0
    %1238 = vmatprep.subr.mxu0 0.0
    %1239 = vmatpush1.msra.mxu0 0.0
    %1240 = vmatprep.mubr.f32.mxu0 0.0
    %v1241 = vand.u32 %v1075, 4294901760
    %1242 = vmatmul.mubr.f32.gmra.mrb[0].mxu0 %v1241
    %v1243 = vpop.f32.mrb[0].mxu0
    %v1244 = vadd.f32 %v1153, %v1243
    %v1245 = vpop.f32.mrb[0].mxu0
    %1246 = vdwg.mxu0
    %1247 = vmatprep.subr.mxu0 0.0
    %v1248 = vand.u32 %v90, 4294901760
    %v1249 = vsub.f32 %v90, %v1248
    %1250 = vmatpush1.msra.mxu0 %v1249
    %1251 = vmatprep.subr.mxu0 0.0
    %v1252 = vand.u32 %v91, 4294901760
    %v1253 = vsub.f32 %v91, %v1252
    %1254 = vmatpush1.msra.mxu0 %v1253
    %1255 = vmatprep.subr.mxu0 0.0
    %v1256 = vand.u32 %v92, 4294901760
    %v1257 = vsub.f32 %v92, %v1256
    %1258 = vmatpush1.msra.mxu0 %v1257
    %1259 = vmatprep.subr.mxu0 0.0
    %v1260 = vand.u32 %v93, 4294901760
    %v1261 = vsub.f32 %v93, %v1260
    %1262 = vmatpush1.msra.mxu0 %v1261
    %1263 = vmatprep.subr.mxu0 0.0
    %1264 = vmatpush1.msra.mxu0 0.0
    %1265 = vmatprep.subr.mxu0 0.0
    %1266 = vmatpush1.msra.mxu0 0.0
    %1267 = vmatprep.subr.mxu0 0.0
    %1268 = vmatpush1.msra.mxu0 0.0
    %1269 = vmatprep.subr.mxu0 0.0
    %1270 = vmatpush1.msra.mxu0 0.0
    %1271 = vmatprep.subr.mxu0 0.0
    %1272 = vmatpush1.msra.mxu0 0.0
    %1273 = vmatprep.subr.mxu0 0.0
    %1274 = vmatpush1.msra.mxu0 0.0
    %1275 = vmatprep.subr.mxu0 0.0
    %1276 = vmatpush1.msra.mxu0 0.0
    %1277 = vmatprep.subr.mxu0 0.0
    %1278 = vmatpush1.msra.mxu0 0.0
    %1279 = vmatprep.subr.mxu0 0.0
    %1280 = vmatpush1.msra.mxu0 0.0
    %1281 = vmatprep.subr.mxu0 0.0
    %1282 = vmatpush1.msra.mxu0 0.0
    %1283 = vmatprep.subr.mxu0 0.0
    %1284 = vmatpush1.msra.mxu0 0.0
    %1285 = vmatprep.subr.mxu0 0.0
    %1286 = vmatpush1.msra.mxu0 0.0
    %1287 = vmatprep.subr.mxu0 0.0
    %1288 = vmatpush1.msra.mxu0 0.0
    %1289 = vmatprep.subr.mxu0 0.0
    %1290 = vmatpush1.msra.mxu0 0.0
    %1291 = vmatprep.subr.mxu0 0.0
    %1292 = vmatpush1.msra.mxu0 0.0
    %1293 = vmatprep.subr.mxu0 0.0
    %1294 = vmatpush1.msra.mxu0 0.0
    %1295 = vmatprep.subr.mxu0 0.0
    %1296 = vmatpush1.msra.mxu0 0.0
    %1297 = vmatprep.subr.mxu0 0.0
    %1298 = vmatpush1.msra.mxu0 0.0
    %1299 = vmatprep.subr.mxu0 0.0
    %1300 = vmatpush1.msra.mxu0 0.0
    %1301 = vmatprep.subr.mxu0 0.0
    %1302 = vmatpush1.msra.mxu0 0.0
    %1303 = vmatprep.subr.mxu0 0.0
    %1304 = vmatpush1.msra.mxu0 0.0
    %1305 = vmatprep.subr.mxu0 0.0
    %1306 = vmatpush1.msra.mxu0 0.0
    %1307 = vmatprep.subr.mxu0 0.0
    %1308 = vmatpush1.msra.mxu0 0.0
    %1309 = vmatprep.subr.mxu0 0.0
    %1310 = vmatpush1.msra.mxu0 0.0
    %1311 = vmatprep.subr.mxu0 0.0
    %1312 = vmatpush1.msra.mxu0 0.0
    %1313 = vmatprep.subr.mxu0 0.0
    %1314 = vmatpush1.msra.mxu0 0.0
    %1315 = vmatprep.subr.mxu0 0.0
    %1316 = vmatpush1.msra.mxu0 0.0
    %1317 = vmatprep.subr.mxu0 0.0
    %1318 = vmatpush1.msra.mxu0 0.0
    %1319 = vmatprep.mubr.f32.mxu0 0.0
    %v1320 = vand.u32 %v1075, 4294901760
    %v1321 = vsub.f32 %v1075, %v1320
    %1322 = vmatmul.mubr.f32.gmra.mrb[0].mxu0 %v1321
    %v1323 = vpop.f32.mrb[0].mxu0
    %v1324 = vadd.f32 %v1244, %v1323
    %v1325 = vpop.f32.mrb[0].mxu0
    %1326 = vdwg.mxu0
    %1327 = vmatprep.subr.mxu0 0.0
    %v1328 = vand.u32 %v90, 4294901760
    %1329 = vmatpush1.msra.mxu0 %v1328
    %1330 = vmatprep.subr.mxu0 0.0
    %v1331 = vand.u32 %v91, 4294901760
    %1332 = vmatpush1.msra.mxu0 %v1331
    %1333 = vmatprep.subr.mxu0 0.0
    %v1334 = vand.u32 %v92, 4294901760
    %1335 = vmatpush1.msra.mxu0 %v1334
    %1336 = vmatprep.subr.mxu0 0.0
    %v1337 = vand.u32 %v93, 4294901760
    %1338 = vmatpush1.msra.mxu0 %v1337
    %1339 = vmatprep.subr.mxu0 0.0
    %1340 = vmatpush1.msra.mxu0 0.0
    %1341 = vmatprep.subr.mxu0 0.0
    %1342 = vmatpush1.msra.mxu0 0.0
    %1343 = vmatprep.subr.mxu0 0.0
    %1344 = vmatpush1.msra.mxu0 0.0
    %1345 = vmatprep.subr.mxu0 0.0
    %1346 = vmatpush1.msra.mxu0 0.0
    %1347 = vmatprep.subr.mxu0 0.0
    %1348 = vmatpush1.msra.mxu0 0.0
    %1349 = vmatprep.subr.mxu0 0.0
    %1350 = vmatpush1.msra.mxu0 0.0
    %1351 = vmatprep.subr.mxu0 0.0
    %1352 = vmatpush1.msra.mxu0 0.0
    %1353 = vmatprep.subr.mxu0 0.0
    %1354 = vmatpush1.msra.mxu0 0.0
    %1355 = vmatprep.subr.mxu0 0.0
    %1356 = vmatpush1.msra.mxu0 0.0
    %1357 = vmatprep.subr.mxu0 0.0
    %1358 = vmatpush1.msra.mxu0 0.0
    %1359 = vmatprep.subr.mxu0 0.0
    %1360 = vmatpush1.msra.mxu0 0.0
    %1361 = vmatprep.subr.mxu0 0.0
    %1362 = vmatpush1.msra.mxu0 0.0
    %1363 = vmatprep.subr.mxu0 0.0
    %1364 = vmatpush1.msra.mxu0 0.0
    %1365 = vmatprep.subr.mxu0 0.0
    %1366 = vmatpush1.msra.mxu0 0.0
    %1367 = vmatprep.subr.mxu0 0.0
    %1368 = vmatpush1.msra.mxu0 0.0
    %1369 = vmatprep.subr.mxu0 0.0
    %1370 = vmatpush1.msra.mxu0 0.0
    %1371 = vmatprep.subr.mxu0 0.0
    %1372 = vmatpush1.msra.mxu0 0.0
    %1373 = vmatprep.subr.mxu0 0.0
    %1374 = vmatpush1.msra.mxu0 0.0
    %1375 = vmatprep.subr.mxu0 0.0
    %1376 = vmatpush1.msra.mxu0 0.0
    %1377 = vmatprep.subr.mxu0 0.0
    %1378 = vmatpush1.msra.mxu0 0.0
    %1379 = vmatprep.subr.mxu0 0.0
    %1380 = vmatpush1.msra.mxu0 0.0
    %1381 = vmatprep.subr.mxu0 0.0
    %1382 = vmatpush1.msra.mxu0 0.0
    %1383 = vmatprep.subr.mxu0 0.0
    %1384 = vmatpush1.msra.mxu0 0.0
    %1385 = vmatprep.subr.mxu0 0.0
    %1386 = vmatpush1.msra.mxu0 0.0
    %1387 = vmatprep.subr.mxu0 0.0
    %1388 = vmatpush1.msra.mxu0 0.0
    %1389 = vmatprep.subr.mxu0 0.0
    %1390 = vmatpush1.msra.mxu0 0.0
    %1391 = vmatprep.subr.mxu0 0.0
    %1392 = vmatpush1.msra.mxu0 0.0
    %1393 = vmatprep.subr.mxu0 0.0
    %1394 = vmatpush1.msra.mxu0 0.0
    %1395 = vmatprep.mubr.f32.mxu0 0.0
    %v1396 = vand.u32 %v1075, 4294901760
    %v1397 = vsub.f32 %v1075, %v1396
    %v1398 = vand.u32 %v1397, 4294901760
    %1399 = vmatmul.mubr.f32.gmra.mrb[0].mxu0 %v1398
    %v1400 = vpop.f32.mrb[0].mxu0
    %v1401 = vadd.f32 %v1324, %v1400
    %v1402 = vpop.f32.mrb[0].mxu0
    %1403 = vdwg.mxu0
    %1404 = vmatprep.subr.mxu0 0.0
    %v1405 = vand.u32 %v90, 4294901760
    %v1406 = vsub.f32 %v90, %v1405
    %v1407 = vand.u32 %v1406, 4294901760
    %1408 = vmatpush1.msra.mxu0 %v1407
    %1409 = vmatprep.subr.mxu0 0.0
    %v1410 = vand.u32 %v91, 4294901760
    %v1411 = vsub.f32 %v91, %v1410
    %v1412 = vand.u32 %v1411, 4294901760
    %1413 = vmatpush1.msra.mxu0 %v1412
    %1414 = vmatprep.subr.mxu0 0.0
    %v1415 = vand.u32 %v92, 4294901760
    %v1416 = vsub.f32 %v92, %v1415
    %v1417 = vand.u32 %v1416, 4294901760
    %1418 = vmatpush1.msra.mxu0 %v1417
    %1419 = vmatprep.subr.mxu0 0.0
    %v1420 = vand.u32 %v93, 4294901760
    %v1421 = vsub.f32 %v93, %v1420
    %v1422 = vand.u32 %v1421, 4294901760
    %1423 = vmatpush1.msra.mxu0 %v1422
    %1424 = vmatprep.subr.mxu0 0.0
    %1425 = vmatpush1.msra.mxu0 0.0
    %1426 = vmatprep.subr.mxu0 0.0
    %1427 = vmatpush1.msra.mxu0 0.0
    %1428 = vmatprep.subr.mxu0 0.0
    %1429 = vmatpush1.msra.mxu0 0.0
    %1430 = vmatprep.subr.mxu0 0.0
    %1431 = vmatpush1.msra.mxu0 0.0
    %1432 = vmatprep.subr.mxu0 0.0
    %1433 = vmatpush1.msra.mxu0 0.0
    %1434 = vmatprep.subr.mxu0 0.0
    %1435 = vmatpush1.msra.mxu0 0.0
    %1436 = vmatprep.subr.mxu0 0.0
    %1437 = vmatpush1.msra.mxu0 0.0
    %1438 = vmatprep.subr.mxu0 0.0
    %1439 = vmatpush1.msra.mxu0 0.0
    %1440 = vmatprep.subr.mxu0 0.0
    %1441 = vmatpush1.msra.mxu0 0.0
    %1442 = vmatprep.subr.mxu0 0.0
    %1443 = vmatpush1.msra.mxu0 0.0
    %1444 = vmatprep.subr.mxu0 0.0
    %1445 = vmatpush1.msra.mxu0 0.0
    %1446 = vmatprep.subr.mxu0 0.0
    %1447 = vmatpush1.msra.mxu0 0.0
    %1448 = vmatprep.subr.mxu0 0.0
    %1449 = vmatpush1.msra.mxu0 0.0
    %1450 = vmatprep.subr.mxu0 0.0
    %1451 = vmatpush1.msra.mxu0 0.0
    %1452 = vmatprep.subr.mxu0 0.0
    %1453 = vmatpush1.msra.mxu0 0.0
    %1454 = vmatprep.subr.mxu0 0.0
    %1455 = vmatpush1.msra.mxu0 0.0
    %1456 = vmatprep.subr.mxu0 0.0
    %1457 = vmatpush1.msra.mxu0 0.0
    %1458 = vmatprep.subr.mxu0 0.0
    %1459 = vmatpush1.msra.mxu0 0.0
    %1460 = vmatprep.subr.mxu0 0.0
    %1461 = vmatpush1.msra.mxu0 0.0
    %1462 = vmatprep.subr.mxu0 0.0
    %1463 = vmatpush1.msra.mxu0 0.0
    %1464 = vmatprep.subr.mxu0 0.0
    %1465 = vmatpush1.msra.mxu0 0.0
    %1466 = vmatprep.subr.mxu0 0.0
    %1467 = vmatpush1.msra.mxu0 0.0
    %1468 = vmatprep.subr.mxu0 0.0
    %1469 = vmatpush1.msra.mxu0 0.0
    %1470 = vmatprep.subr.mxu0 0.0
    %1471 = vmatpush1.msra.mxu0 0.0
    %1472 = vmatprep.subr.mxu0 0.0
    %1473 = vmatpush1.msra.mxu0 0.0
    %1474 = vmatprep.subr.mxu0 0.0
    %1475 = vmatpush1.msra.mxu0 0.0
    %1476 = vmatprep.subr.mxu0 0.0
    %1477 = vmatpush1.msra.mxu0 0.0
    %1478 = vmatprep.subr.mxu0 0.0
    %1479 = vmatpush1.msra.mxu0 0.0
    %1480 = vmatprep.mubr.f32.mxu0 0.0
    %v1481 = vand.u32 %v1075, 4294901760
    %1482 = vmatmul.mubr.f32.gmra.mrb[0].mxu0 %v1481
    %v1483 = vpop.f32.mrb[0].mxu0
    %v1484 = vadd.f32 %v1401, %v1483
    %v1485 = vpop.f32.mrb[0].mxu0
    %1486 = vdwg.mxu0
    %1487 = vmatprep.subr.mxu0 0.0
    %v1488 = vand.u32 %v90, 4294901760
    %1489 = vmatpush1.msra.mxu0 %v1488
    %1490 = vmatprep.subr.mxu0 0.0
    %v1491 = vand.u32 %v91, 4294901760
    %1492 = vmatpush1.msra.mxu0 %v1491
    %1493 = vmatprep.subr.mxu0 0.0
    %v1494 = vand.u32 %v92, 4294901760
    %1495 = vmatpush1.msra.mxu0 %v1494
    %1496 = vmatprep.subr.mxu0 0.0
    %v1497 = vand.u32 %v93, 4294901760
    %1498 = vmatpush1.msra.mxu0 %v1497
    %1499 = vmatprep.subr.mxu0 0.0
    %1500 = vmatpush1.msra.mxu0 0.0
    %1501 = vmatprep.subr.mxu0 0.0
    %1502 = vmatpush1.msra.mxu0 0.0
    %1503 = vmatprep.subr.mxu0 0.0
    %1504 = vmatpush1.msra.mxu0 0.0
    %1505 = vmatprep.subr.mxu0 0.0
    %1506 = vmatpush1.msra.mxu0 0.0
    %1507 = vmatprep.subr.mxu0 0.0
    %1508 = vmatpush1.msra.mxu0 0.0
    %1509 = vmatprep.subr.mxu0 0.0
    %1510 = vmatpush1.msra.mxu0 0.0
    %1511 = vmatprep.subr.mxu0 0.0
    %1512 = vmatpush1.msra.mxu0 0.0
    %1513 = vmatprep.subr.mxu0 0.0
    %1514 = vmatpush1.msra.mxu0 0.0
    %1515 = vmatprep.subr.mxu0 0.0
    %1516 = vmatpush1.msra.mxu0 0.0
    %1517 = vmatprep.subr.mxu0 0.0
    %1518 = vmatpush1.msra.mxu0 0.0
    %1519 = vmatprep.subr.mxu0 0.0
    %1520 = vmatpush1.msra.mxu0 0.0
    %1521 = vmatprep.subr.mxu0 0.0
    %1522 = vmatpush1.msra.mxu0 0.0
    %1523 = vmatprep.subr.mxu0 0.0
    %1524 = vmatpush1.msra.mxu0 0.0
    %1525 = vmatprep.subr.mxu0 0.0
    %1526 = vmatpush1.msra.mxu0 0.0
    %1527 = vmatprep.subr.mxu0 0.0
    %1528 = vmatpush1.msra.mxu0 0.0
    %1529 = vmatprep.subr.mxu0 0.0
    %1530 = vmatpush1.msra.mxu0 0.0
    %1531 = vmatprep.subr.mxu0 0.0
    %1532 = vmatpush1.msra.mxu0 0.0
    %1533 = vmatprep.subr.mxu0 0.0
    %1534 = vmatpush1.msra.mxu0 0.0
    %1535 = vmatprep.subr.mxu0 0.0
    %1536 = vmatpush1.msra.mxu0 0.0
    %1537 = vmatprep.subr.mxu0 0.0
    %1538 = vmatpush1.msra.mxu0 0.0
    %1539 = vmatprep.subr.mxu0 0.0
    %1540 = vmatpush1.msra.mxu0 0.0
    %1541 = vmatprep.subr.mxu0 0.0
    %1542 = vmatpush1.msra.mxu0 0.0
    %1543 = vmatprep.subr.mxu0 0.0
    %1544 = vmatpush1.msra.mxu0 0.0
    %1545 = vmatprep.subr.mxu0 0.0
    %1546 = vmatpush1.msra.mxu0 0.0
    %1547 = vmatprep.subr.mxu0 0.0
    %1548 = vmatpush1.msra.mxu0 0.0
    %1549 = vmatprep.subr.mxu0 0.0
    %1550 = vmatpush1.msra.mxu0 0.0
    %1551 = vmatprep.subr.mxu0 0.0
    %1552 = vmatpush1.msra.mxu0 0.0
    %1553 = vmatprep.subr.mxu0 0.0
    %1554 = vmatpush1.msra.mxu0 0.0
    %1555 = vmatprep.mubr.f32.mxu0 0.0
    %v1556 = vand.u32 %v1075, 4294901760
    %1557 = vmatmul.mubr.f32.gmra.mrb[0].mxu0 %v1556
    %v1558 = vpop.f32.mrb[0].mxu0
    %v1559 = vadd.f32 %v1484, %v1558
    %v1560 = vpop.f32.mrb[0].mxu0
    %1561 = vdwg.mxu0
    %1563 = vrot.lane.b32.xlu0 %v562, 16
    %v1564 = vpop.permute.xlu0 %1563
    %v1566 = vadd.f32 %v1559, %v1564
    %1567 = vrot.lane.b32.xlu0 %v101, 16
    %v1568 = vpop.permute.xlu0 %1567
    %v1570 = vadd.f32 %v1566, %v1568
    %v1571 = vxor.u32 %v1570, 2147483648
    %v1572 = vmul.f32 %v1571, 1.442695
    %v1573 = vpow.pop %v1572
    %v1574 = vadd.f32 %v1573, 1.0
    %v1575 = vrcp.pop %v1574
    %v1576 = vmul.f32 1.0, %v1575
    %v1577 = vsub.f32 1.0, %v1576
    %1578 = vrot.lane.b32.xlu0 %v85, 16
    %v1579 = vpop.permute.xlu0 %1578
    %v1581 = vmul.f32 %v1577, %v1579
    %1583 = vrot.lane.b32.xlu0 %v1559, 16
    %v1584 = vpop.permute.xlu0 %1583
    %v1586 = vmul.f32 %v1576, %v1584
    %v1587 = vadd.f32 %v1581, %v1586
    %v1590 = vunpack.c.l.s4 1966171168
    %v1591 = vunpack.c.0.s8 %v1590
    %v1592 = vlaneseq
    %v1593 = vshrl.u32 %v1592, 7
    %v1594 = vsub.s32 %v1591, %v1593
    %v1595 = vrot.slane %v1587, %v1594
    %v1596 = vcombine.high %v1595, %v1595
    %v1598 = vunpack.c.l.s4 1966171168
    %v1599 = vunpack.c.0.s8 %v1598
    %v1600 = vlaneseq
    %v1601 = vshrl.u32 %v1600, 7
    %v1602 = vsub.s32 %v1599, %v1601
    %v1603 = vrot.slane %v1595, %v1602
    %v1605 = vunpack.c.l.s4 1966171168
    %v1606 = vunpack.c.0.s8 %v1605
    %v1607 = vlaneseq
    %v1608 = vshrl.u32 %v1607, 7
    %v1609 = vsub.s32 %v1606, %v1608
    %v1610 = vrot.slane %v1596, %v1609
    %v1611 = vlaneseq
    %v1612 = vshrl.u32 %v1611, 7
    %v1613 = vsub.s32 0, %v1612
    %v1614 = vrot.slane %v1603, %v1613
    %v1615 = vlaneseq
    %v1616 = vshrl.u32 %v1615, 7
    %v1617 = vsub.s32 0, %v1616
    %v1618 = vrot.slane %v1610, %v1617
    %1619 = vrot.lane.b32.xlu0 %v1614, 112
    %v1620 = vpop.permute.xlu0 %1619
    %1621 = vrot.lane.b32.xlu0 %v1618, 112
    %v1622 = vpop.permute.xlu0 %1621
    %vm1625 = vcmask 122880
    %1626 = vst.msk [vmem:[#allocation12] sm:$0x1] %vm1625, %v1620
    %1627 = vst.msk [vmem:[#allocation12 + $0x8] sm:$0x1] %vm1625, %v1622
    %1628 = vrot.lane.b32.xlu0 %v1587, 112
    %v1629 = vpop.permute.xlu0 %1628
    %v1630 = vsel %vm102, %v1629, 0
    %1632 = vmatprep.subr.mxu0 0.0
    %v1633 = vand.u32 %v94, 4294901760
    %1634 = vmatpush1.msra.mxu0 %v1633
    %1635 = vmatprep.subr.mxu0 0.0
    %v1636 = vand.u32 %v95, 4294901760
    %1637 = vmatpush1.msra.mxu0 %v1636
    %1638 = vmatprep.subr.mxu0 0.0
    %1639 = vmatpush1.msra.mxu0 0.0
    %1640 = vmatprep.subr.mxu0 0.0
    %1641 = vmatpush1.msra.mxu0 0.0
    %1642 = vmatprep.subr.mxu0 0.0
    %1643 = vmatpush1.msra.mxu0 0.0
    %1644 = vmatprep.subr.mxu0 0.0
    %1645 = vmatpush1.msra.mxu0 0.0
    %1646 = vmatprep.subr.mxu0 0.0
    %1647 = vmatpush1.msra.mxu0 0.0
    %1648 = vmatprep.subr.mxu0 0.0
    %1649 = vmatpush1.msra.mxu0 0.0
    %1650 = vmatprep.subr.mxu0 0.0
    %1651 = vmatpush1.msra.mxu0 0.0
    %1652 = vmatprep.subr.mxu0 0.0
    %1653 = vmatpush1.msra.mxu0 0.0
    %1654 = vmatprep.subr.mxu0 0.0
    %1655 = vmatpush1.msra.mxu0 0.0
    %1656 = vmatprep.subr.mxu0 0.0
    %1657 = vmatpush1.msra.mxu0 0.0
    %1658 = vmatprep.subr.mxu0 0.0
    %1659 = vmatpush1.msra.mxu0 0.0
    %1660 = vmatprep.subr.mxu0 0.0
    %1661 = vmatpush1.msra.mxu0 0.0
    %1662 = vmatprep.subr.mxu0 0.0
    %1663 = vmatpush1.msra.mxu0 0.0
    %1664 = vmatprep.subr.mxu0 0.0
    %1665 = vmatpush1.msra.mxu0 0.0
    %1666 = vmatprep.subr.mxu0 0.0
    %1667 = vmatpush1.msra.mxu0 0.0
    %1668 = vmatprep.subr.mxu0 0.0
    %1669 = vmatpush1.msra.mxu0 0.0
    %1670 = vmatprep.subr.mxu0 0.0
    %1671 = vmatpush1.msra.mxu0 0.0
    %1672 = vmatprep.subr.mxu0 0.0
    %1673 = vmatpush1.msra.mxu0 0.0
    %1674 = vmatprep.subr.mxu0 0.0
    %1675 = vmatpush1.msra.mxu0 0.0
    %1676 = vmatprep.subr.mxu0 0.0
    %1677 = vmatpush1.msra.mxu0 0.0
    %1678 = vmatprep.subr.mxu0 0.0
    %1679 = vmatpush1.msra.mxu0 0.0
    %1680 = vmatprep.subr.mxu0 0.0
    %1681 = vmatpush1.msra.mxu0 0.0
    %1682 = vmatprep.subr.mxu0 0.0
    %1683 = vmatpush1.msra.mxu0 0.0
    %1684 = vmatprep.subr.mxu0 0.0
    %1685 = vmatpush1.msra.mxu0 0.0
    %1686 = vmatprep.subr.mxu0 0.0
    %1687 = vmatpush1.msra.mxu0 0.0
    %1688 = vmatprep.subr.mxu0 0.0
    %1689 = vmatpush1.msra.mxu0 0.0
    %1690 = vmatprep.subr.mxu0 0.0
    %1691 = vmatpush1.msra.mxu0 0.0
    %1692 = vmatprep.subr.mxu0 0.0
    %1693 = vmatpush1.msra.mxu0 0.0
    %1694 = vmatprep.subr.mxu0 0.0
    %1695 = vmatpush1.msra.mxu0 0.0
    %1696 = vmatprep.subr.mxu0 0.0
    %1697 = vmatpush1.msra.mxu0 0.0
    %1698 = vmatprep.mubr.f32.mxu0 0.0
    %v1699 = vand.u32 %v1630, 4294901760
    %v1700 = vsub.f32 %v1630, %v1699
    %v1701 = vand.u32 %v1700, 4294901760
    %v1702 = vsub.f32 %v1700, %v1701
    %v1703 = vand.u32 %v1702, 4294901760
    %1704 = vmatmul.mubr.f32.gmra.mrb[0].mxu0 %v1703
    %v1705 = vpop.f32.mrb[0].mxu0
    %v1706 = vadd.f32 0.0, %v1705
    %v1707 = vpop.f32.mrb[0].mxu0
    %1708 = vdwg.mxu0
    %1709 = vmatprep.subr.mxu0 0.0
    %v1710 = vand.u32 %v94, 4294901760
    %v1711 = vsub.f32 %v94, %v1710
    %v1712 = vand.u32 %v1711, 4294901760
    %v1713 = vsub.f32 %v1711, %v1712
    %v1714 = vand.u32 %v1713, 4294901760
    %1715 = vmatpush1.msra.mxu0 %v1714
    %1716 = vmatprep.subr.mxu0 0.0
    %v1717 = vand.u32 %v95, 4294901760
    %v1718 = vsub.f32 %v95, %v1717
    %v1719 = vand.u32 %v1718, 4294901760
    %v1720 = vsub.f32 %v1718, %v1719
    %v1721 = vand.u32 %v1720, 4294901760
    %1722 = vmatpush1.msra.mxu0 %v1721
    %1723 = vmatprep.subr.mxu0 0.0
    %1724 = vmatpush1.msra.mxu0 0.0
    %1725 = vmatprep.subr.mxu0 0.0
    %1726 = vmatpush1.msra.mxu0 0.0
    %1727 = vmatprep.subr.mxu0 0.0
    %1728 = vmatpush1.msra.mxu0 0.0
    %1729 = vmatprep.subr.mxu0 0.0
    %1730 = vmatpush1.msra.mxu0 0.0
    %1731 = vmatprep.subr.mxu0 0.0
    %1732 = vmatpush1.msra.mxu0 0.0
    %1733 = vmatprep.subr.mxu0 0.0
    %1734 = vmatpush1.msra.mxu0 0.0
    %1735 = vmatprep.subr.mxu0 0.0
    %1736 = vmatpush1.msra.mxu0 0.0
    %1737 = vmatprep.subr.mxu0 0.0
    %1738 = vmatpush1.msra.mxu0 0.0
    %1739 = vmatprep.subr.mxu0 0.0
    %1740 = vmatpush1.msra.mxu0 0.0
    %1741 = vmatprep.subr.mxu0 0.0
    %1742 = vmatpush1.msra.mxu0 0.0
    %1743 = vmatprep.subr.mxu0 0.0
    %1744 = vmatpush1.msra.mxu0 0.0
    %1745 = vmatprep.subr.mxu0 0.0
    %1746 = vmatpush1.msra.mxu0 0.0
    %1747 = vmatprep.subr.mxu0 0.0
    %1748 = vmatpush1.msra.mxu0 0.0
    %1749 = vmatprep.subr.mxu0 0.0
    %1750 = vmatpush1.msra.mxu0 0.0
    %1751 = vmatprep.subr.mxu0 0.0
    %1752 = vmatpush1.msra.mxu0 0.0
    %1753 = vmatprep.subr.mxu0 0.0
    %1754 = vmatpush1.msra.mxu0 0.0
    %1755 = vmatprep.subr.mxu0 0.0
    %1756 = vmatpush1.msra.mxu0 0.0
    %1757 = vmatprep.subr.mxu0 0.0
    %1758 = vmatpush1.msra.mxu0 0.0
    %1759 = vmatprep.subr.mxu0 0.0
    %1760 = vmatpush1.msra.mxu0 0.0
    %1761 = vmatprep.subr.mxu0 0.0
    %1762 = vmatpush1.msra.mxu0 0.0
    %1763 = vmatprep.subr.mxu0 0.0
    %1764 = vmatpush1.msra.mxu0 0.0
    %1765 = vmatprep.subr.mxu0 0.0
    %1766 = vmatpush1.msra.mxu0 0.0
    %1767 = vmatprep.subr.mxu0 0.0
    %1768 = vmatpush1.msra.mxu0 0.0
    %1769 = vmatprep.subr.mxu0 0.0
    %1770 = vmatpush1.msra.mxu0 0.0
    %1771 = vmatprep.subr.mxu0 0.0
    %1772 = vmatpush1.msra.mxu0 0.0
    %1773 = vmatprep.subr.mxu0 0.0
    %1774 = vmatpush1.msra.mxu0 0.0
    %1775 = vmatprep.subr.mxu0 0.0
    %1776 = vmatpush1.msra.mxu0 0.0
    %1777 = vmatprep.subr.mxu0 0.0
    %1778 = vmatpush1.msra.mxu0 0.0
    %1779 = vmatprep.subr.mxu0 0.0
    %1780 = vmatpush1.msra.mxu0 0.0
    %1781 = vmatprep.subr.mxu0 0.0
    %1782 = vmatpush1.msra.mxu0 0.0
    %1783 = vmatprep.mubr.f32.mxu0 0.0
    %v1784 = vand.u32 %v1630, 4294901760
    %1785 = vmatmul.mubr.f32.gmra.mrb[0].mxu0 %v1784
    %v1786 = vpop.f32.mrb[0].mxu0
    %v1787 = vadd.f32 %v1706, %v1786
    %v1788 = vpop.f32.mrb[0].mxu0
    %1789 = vdwg.mxu0
    %1790 = vmatprep.subr.mxu0 0.0
    %v1791 = vand.u32 %v94, 4294901760
    %v1792 = vsub.f32 %v94, %v1791
    %1793 = vmatpush1.msra.mxu0 %v1792
    %1794 = vmatprep.subr.mxu0 0.0
    %v1795 = vand.u32 %v95, 4294901760
    %v1796 = vsub.f32 %v95, %v1795
    %1797 = vmatpush1.msra.mxu0 %v1796
    %1798 = vmatprep.subr.mxu0 0.0
    %1799 = vmatpush1.msra.mxu0 0.0
    %1800 = vmatprep.subr.mxu0 0.0
    %1801 = vmatpush1.msra.mxu0 0.0
    %1802 = vmatprep.subr.mxu0 0.0
    %1803 = vmatpush1.msra.mxu0 0.0
    %1804 = vmatprep.subr.mxu0 0.0
    %1805 = vmatpush1.msra.mxu0 0.0
    %1806 = vmatprep.subr.mxu0 0.0
    %1807 = vmatpush1.msra.mxu0 0.0
    %1808 = vmatprep.subr.mxu0 0.0
    %1809 = vmatpush1.msra.mxu0 0.0
    %1810 = vmatprep.subr.mxu0 0.0
    %1811 = vmatpush1.msra.mxu0 0.0
    %1812 = vmatprep.subr.mxu0 0.0
    %1813 = vmatpush1.msra.mxu0 0.0
    %1814 = vmatprep.subr.mxu0 0.0
    %1815 = vmatpush1.msra.mxu0 0.0
    %1816 = vmatprep.subr.mxu0 0.0
    %1817 = vmatpush1.msra.mxu0 0.0
    %1818 = vmatprep.subr.mxu0 0.0
    %1819 = vmatpush1.msra.mxu0 0.0
    %1820 = vmatprep.subr.mxu0 0.0
    %1821 = vmatpush1.msra.mxu0 0.0
    %1822 = vmatprep.subr.mxu0 0.0
    %1823 = vmatpush1.msra.mxu0 0.0
    %1824 = vmatprep.subr.mxu0 0.0
    %1825 = vmatpush1.msra.mxu0 0.0
    %1826 = vmatprep.subr.mxu0 0.0
    %1827 = vmatpush1.msra.mxu0 0.0
    %1828 = vmatprep.subr.mxu0 0.0
    %1829 = vmatpush1.msra.mxu0 0.0
    %1830 = vmatprep.subr.mxu0 0.0
    %1831 = vmatpush1.msra.mxu0 0.0
    %1832 = vmatprep.subr.mxu0 0.0
    %1833 = vmatpush1.msra.mxu0 0.0
    %1834 = vmatprep.subr.mxu0 0.0
    %1835 = vmatpush1.msra.mxu0 0.0
    %1836 = vmatprep.subr.mxu0 0.0
    %1837 = vmatpush1.msra.mxu0 0.0
    %1838 = vmatprep.subr.mxu0 0.0
    %1839 = vmatpush1.msra.mxu0 0.0
    %1840 = vmatprep.subr.mxu0 0.0
    %1841 = vmatpush1.msra.mxu0 0.0
    %1842 = vmatprep.subr.mxu0 0.0
    %1843 = vmatpush1.msra.mxu0 0.0
    %1844 = vmatprep.subr.mxu0 0.0
    %1845 = vmatpush1.msra.mxu0 0.0
    %1846 = vmatprep.subr.mxu0 0.0
    %1847 = vmatpush1.msra.mxu0 0.0
    %1848 = vmatprep.subr.mxu0 0.0
    %1849 = vmatpush1.msra.mxu0 0.0
    %1850 = vmatprep.subr.mxu0 0.0
    %1851 = vmatpush1.msra.mxu0 0.0
    %1852 = vmatprep.subr.mxu0 0.0
    %1853 = vmatpush1.msra.mxu0 0.0
    %1854 = vmatprep.subr.mxu0 0.0
    %1855 = vmatpush1.msra.mxu0 0.0
    %1856 = vmatprep.subr.mxu0 0.0
    %1857 = vmatpush1.msra.mxu0 0.0
    %1858 = vmatprep.mubr.f32.mxu0 0.0
    %v1859 = vand.u32 %v1630, 4294901760
    %v1860 = vsub.f32 %v1630, %v1859
    %1861 = vmatmul.mubr.f32.gmra.mrb[0].mxu0 %v1860
    %v1862 = vpop.f32.mrb[0].mxu0
    %v1863 = vadd.f32 %v1787, %v1862
    %v1864 = vpop.f32.mrb[0].mxu0
    %1865 = vdwg.mxu0
    %1866 = vmatprep.subr.mxu0 0.0
    %v1867 = vand.u32 %v94, 4294901760
    %1868 = vmatpush1.msra.mxu0 %v1867
    %1869 = vmatprep.subr.mxu0 0.0
    %v1870 = vand.u32 %v95, 4294901760
    %1871 = vmatpush1.msra.mxu0 %v1870
    %1872 = vmatprep.subr.mxu0 0.0
    %1873 = vmatpush1.msra.mxu0 0.0
    %1874 = vmatprep.subr.mxu0 0.0
    %1875 = vmatpush1.msra.mxu0 0.0
    %1876 = vmatprep.subr.mxu0 0.0
    %1877 = vmatpush1.msra.mxu0 0.0
    %1878 = vmatprep.subr.mxu0 0.0
    %1879 = vmatpush1.msra.mxu0 0.0
    %1880 = vmatprep.subr.mxu0 0.0
    %1881 = vmatpush1.msra.mxu0 0.0
    %1882 = vmatprep.subr.mxu0 0.0
    %1883 = vmatpush1.msra.mxu0 0.0
    %1884 = vmatprep.subr.mxu0 0.0
    %1885 = vmatpush1.msra.mxu0 0.0
    %1886 = vmatprep.subr.mxu0 0.0
    %1887 = vmatpush1.msra.mxu0 0.0
    %1888 = vmatprep.subr.mxu0 0.0
    %1889 = vmatpush1.msra.mxu0 0.0
    %1890 = vmatprep.subr.mxu0 0.0
    %1891 = vmatpush1.msra.mxu0 0.0
    %1892 = vmatprep.subr.mxu0 0.0
    %1893 = vmatpush1.msra.mxu0 0.0
    %1894 = vmatprep.subr.mxu0 0.0
    %1895 = vmatpush1.msra.mxu0 0.0
    %1896 = vmatprep.subr.mxu0 0.0
    %1897 = vmatpush1.msra.mxu0 0.0
    %1898 = vmatprep.subr.mxu0 0.0
    %1899 = vmatpush1.msra.mxu0 0.0
    %1900 = vmatprep.subr.mxu0 0.0
    %1901 = vmatpush1.msra.mxu0 0.0
    %1902 = vmatprep.subr.mxu0 0.0
    %1903 = vmatpush1.msra.mxu0 0.0
    %1904 = vmatprep.subr.mxu0 0.0
    %1905 = vmatpush1.msra.mxu0 0.0
    %1906 = vmatprep.subr.mxu0 0.0
    %1907 = vmatpush1.msra.mxu0 0.0
    %1908 = vmatprep.subr.mxu0 0.0
    %1909 = vmatpush1.msra.mxu0 0.0
    %1910 = vmatprep.subr.mxu0 0.0
    %1911 = vmatpush1.msra.mxu0 0.0
    %1912 = vmatprep.subr.mxu0 0.0
    %1913 = vmatpush1.msra.mxu0 0.0
    %1914 = vmatprep.subr.mxu0 0.0
    %1915 = vmatpush1.msra.mxu0 0.0
    %1916 = vmatprep.subr.mxu0 0.0
    %1917 = vmatpush1.msra.mxu0 0.0
    %1918 = vmatprep.subr.mxu0 0.0
    %1919 = vmatpush1.msra.mxu0 0.0
    %1920 = vmatprep.subr.mxu0 0.0
    %1921 = vmatpush1.msra.mxu0 0.0
    %1922 = vmatprep.subr.mxu0 0.0
    %1923 = vmatpush1.msra.mxu0 0.0
    %1924 = vmatprep.subr.mxu0 0.0
    %1925 = vmatpush1.msra.mxu0 0.0
    %1926 = vmatprep.subr.mxu0 0.0
    %1927 = vmatpush1.msra.mxu0 0.0
    %1928 = vmatprep.subr.mxu0 0.0
    %1929 = vmatpush1.msra.mxu0 0.0
    %1930 = vmatprep.subr.mxu0 0.0
    %1931 = vmatpush1.msra.mxu0 0.0
    %1932 = vmatprep.mubr.f32.mxu0 0.0
    %v1933 = vand.u32 %v1630, 4294901760
    %v1934 = vsub.f32 %v1630, %v1933
    %v1935 = vand.u32 %v1934, 4294901760
    %1936 = vmatmul.mubr.f32.gmra.mrb[0].mxu0 %v1935
    %v1937 = vpop.f32.mrb[0].mxu0
    %v1938 = vadd.f32 %v1863, %v1937
    %v1939 = vpop.f32.mrb[0].mxu0
    %1940 = vdwg.mxu0
    %1941 = vmatprep.subr.mxu0 0.0
    %v1942 = vand.u32 %v94, 4294901760
    %v1943 = vsub.f32 %v94, %v1942
    %v1944 = vand.u32 %v1943, 4294901760
    %1945 = vmatpush1.msra.mxu0 %v1944
    %1946 = vmatprep.subr.mxu0 0.0
    %v1947 = vand.u32 %v95, 4294901760
    %v1948 = vsub.f32 %v95, %v1947
    %v1949 = vand.u32 %v1948, 4294901760
    %1950 = vmatpush1.msra.mxu0 %v1949
    %1951 = vmatprep.subr.mxu0 0.0
    %1952 = vmatpush1.msra.mxu0 0.0
    %1953 = vmatprep.subr.mxu0 0.0
    %1954 = vmatpush1.msra.mxu0 0.0
    %1955 = vmatprep.subr.mxu0 0.0
    %1956 = vmatpush1.msra.mxu0 0.0
    %1957 = vmatprep.subr.mxu0 0.0
    %1958 = vmatpush1.msra.mxu0 0.0
    %1959 = vmatprep.subr.mxu0 0.0
    %1960 = vmatpush1.msra.mxu0 0.0
    %1961 = vmatprep.subr.mxu0 0.0
    %1962 = vmatpush1.msra.mxu0 0.0
    %1963 = vmatprep.subr.mxu0 0.0
    %1964 = vmatpush1.msra.mxu0 0.0
    %1965 = vmatprep.subr.mxu0 0.0
    %1966 = vmatpush1.msra.mxu0 0.0
    %1967 = vmatprep.subr.mxu0 0.0
    %1968 = vmatpush1.msra.mxu0 0.0
    %1969 = vmatprep.subr.mxu0 0.0
    %1970 = vmatpush1.msra.mxu0 0.0
    %1971 = vmatprep.subr.mxu0 0.0
    %1972 = vmatpush1.msra.mxu0 0.0
    %1973 = vmatprep.subr.mxu0 0.0
    %1974 = vmatpush1.msra.mxu0 0.0
    %1975 = vmatprep.subr.mxu0 0.0
    %1976 = vmatpush1.msra.mxu0 0.0
    %1977 = vmatprep.subr.mxu0 0.0
    %1978 = vmatpush1.msra.mxu0 0.0
    %1979 = vmatprep.subr.mxu0 0.0
    %1980 = vmatpush1.msra.mxu0 0.0
    %1981 = vmatprep.subr.mxu0 0.0
    %1982 = vmatpush1.msra.mxu0 0.0
    %1983 = vmatprep.subr.mxu0 0.0
    %1984 = vmatpush1.msra.mxu0 0.0
    %1985 = vmatprep.subr.mxu0 0.0
    %1986 = vmatpush1.msra.mxu0 0.0
    %1987 = vmatprep.subr.mxu0 0.0
    %1988 = vmatpush1.msra.mxu0 0.0
    %1989 = vmatprep.subr.mxu0 0.0
    %1990 = vmatpush1.msra.mxu0 0.0
    %1991 = vmatprep.subr.mxu0 0.0
    %1992 = vmatpush1.msra.mxu0 0.0
    %1993 = vmatprep.subr.mxu0 0.0
    %1994 = vmatpush1.msra.mxu0 0.0
    %1995 = vmatprep.subr.mxu0 0.0
    %1996 = vmatpush1.msra.mxu0 0.0
    %1997 = vmatprep.subr.mxu0 0.0
    %1998 = vmatpush1.msra.mxu0 0.0
    %1999 = vmatprep.subr.mxu0 0.0
    %2000 = vmatpush1.msra.mxu0 0.0
    %2001 = vmatprep.subr.mxu0 0.0
    %2002 = vmatpush1.msra.mxu0 0.0
    %2003 = vmatprep.subr.mxu0 0.0
    %2004 = vmatpush1.msra.mxu0 0.0
    %2005 = vmatprep.subr.mxu0 0.0
    %2006 = vmatpush1.msra.mxu0 0.0
    %2007 = vmatprep.subr.mxu0 0.0
    %2008 = vmatpush1.msra.mxu0 0.0
    %2009 = vmatprep.subr.mxu0 0.0
    %2010 = vmatpush1.msra.mxu0 0.0
    %2011 = vmatprep.mubr.f32.mxu0 0.0
    %v2012 = vand.u32 %v1630, 4294901760
    %2013 = vmatmul.mubr.f32.gmra.mrb[0].mxu0 %v2012
    %v2014 = vpop.f32.mrb[0].mxu0
    %v2015 = vadd.f32 %v1938, %v2014
    %v2016 = vpop.f32.mrb[0].mxu0
    %2017 = vdwg.mxu0
    %2018 = vmatprep.subr.mxu0 0.0
    %v2019 = vand.u32 %v94, 4294901760
    %2020 = vmatpush1.msra.mxu0 %v2019
    %2021 = vmatprep.subr.mxu0 0.0
    %v2022 = vand.u32 %v95, 4294901760
    %2023 = vmatpush1.msra.mxu0 %v2022
    %2024 = vmatprep.subr.mxu0 0.0
    %2025 = vmatpush1.msra.mxu0 0.0
    %2026 = vmatprep.subr.mxu0 0.0
    %2027 = vmatpush1.msra.mxu0 0.0
    %2028 = vmatprep.subr.mxu0 0.0
    %2029 = vmatpush1.msra.mxu0 0.0
    %2030 = vmatprep.subr.mxu0 0.0
    %2031 = vmatpush1.msra.mxu0 0.0
    %2032 = vmatprep.subr.mxu0 0.0
    %2033 = vmatpush1.msra.mxu0 0.0
    %2034 = vmatprep.subr.mxu0 0.0
    %2035 = vmatpush1.msra.mxu0 0.0
    %2036 = vmatprep.subr.mxu0 0.0
    %2037 = vmatpush1.msra.mxu0 0.0
    %2038 = vmatprep.subr.mxu0 0.0
    %2039 = vmatpush1.msra.mxu0 0.0
    %2040 = vmatprep.subr.mxu0 0.0
    %2041 = vmatpush1.msra.mxu0 0.0
    %2042 = vmatprep.subr.mxu0 0.0
    %2043 = vmatpush1.msra.mxu0 0.0
    %2044 = vmatprep.subr.mxu0 0.0
    %2045 = vmatpush1.msra.mxu0 0.0
    %2046 = vmatprep.subr.mxu0 0.0
    %2047 = vmatpush1.msra.mxu0 0.0
    %2048 = vmatprep.subr.mxu0 0.0
    %2049 = vmatpush1.msra.mxu0 0.0
    %2050 = vmatprep.subr.mxu0 0.0
    %2051 = vmatpush1.msra.mxu0 0.0
    %2052 = vmatprep.subr.mxu0 0.0
    %2053 = vmatpush1.msra.mxu0 0.0
    %2054 = vmatprep.subr.mxu0 0.0
    %2055 = vmatpush1.msra.mxu0 0.0
    %2056 = vmatprep.subr.mxu0 0.0
    %2057 = vmatpush1.msra.mxu0 0.0
    %2058 = vmatprep.subr.mxu0 0.0
    %2059 = vmatpush1.msra.mxu0 0.0
    %2060 = vmatprep.subr.mxu0 0.0
    %2061 = vmatpush1.msra.mxu0 0.0
    %2062 = vmatprep.subr.mxu0 0.0
    %2063 = vmatpush1.msra.mxu0 0.0
    %2064 = vmatprep.subr.mxu0 0.0
    %2065 = vmatpush1.msra.mxu0 0.0
    %2066 = vmatprep.subr.mxu0 0.0
    %2067 = vmatpush1.msra.mxu0 0.0
    %2068 = vmatprep.subr.mxu0 0.0
    %2069 = vmatpush1.msra.mxu0 0.0
    %2070 = vmatprep.subr.mxu0 0.0
    %2071 = vmatpush1.msra.mxu0 0.0
    %2072 = vmatprep.subr.mxu0 0.0
    %2073 = vmatpush1.msra.mxu0 0.0
    %2074 = vmatprep.subr.mxu0 0.0
    %2075 = vmatpush1.msra.mxu0 0.0
    %2076 = vmatprep.subr.mxu0 0.0
    %2077 = vmatpush1.msra.mxu0 0.0
    %2078 = vmatprep.subr.mxu0 0.0
    %2079 = vmatpush1.msra.mxu0 0.0
    %2080 = vmatprep.subr.mxu0 0.0
    %2081 = vmatpush1.msra.mxu0 0.0
    %2082 = vmatprep.subr.mxu0 0.0
    %2083 = vmatpush1.msra.mxu0 0.0
    %2084 = vmatprep.mubr.f32.mxu0 0.0
    %v2085 = vand.u32 %v1630, 4294901760
    %2086 = vmatmul.mubr.f32.gmra.mrb[0].mxu0 %v2085
    %v2087 = vpop.f32.mrb[0].mxu0
    %v2088 = vadd.f32 %v2015, %v2087
    %v2089 = vpop.f32.mrb[0].mxu0
    %2090 = vdwg.mxu0
    %v2091 = vld [vmem:[#allocation4 + $0x1] sm:$0x1]
    %v2092 = vld [vmem:[#allocation4 + $0x9] sm:$0x1]
    %2093 = vmatprep.subr.mxu0 0.0
    %v2094 = vand.u32 %v86, 4294901760
    %2095 = vmatpush1.msra.mxu0 %v2094
    %2096 = vmatprep.subr.mxu0 0.0
    %v2097 = vand.u32 %v87, 4294901760
    %2098 = vmatpush1.msra.mxu0 %v2097
    %2099 = vmatprep.subr.mxu0 0.0
    %v2100 = vand.u32 %v88, 4294901760
    %2101 = vmatpush1.msra.mxu0 %v2100
    %2102 = vmatprep.subr.mxu0 0.0
    %v2103 = vand.u32 %v89, 4294901760
    %2104 = vmatpush1.msra.mxu0 %v2103
    %2105 = vmatprep.subr.mxu0 0.0
    %2106 = vmatpush1.msra.mxu0 0.0
    %2107 = vmatprep.subr.mxu0 0.0
    %2108 = vmatpush1.msra.mxu0 0.0
    %2109 = vmatprep.subr.mxu0 0.0
    %2110 = vmatpush1.msra.mxu0 0.0
    %2111 = vmatprep.subr.mxu0 0.0
    %2112 = vmatpush1.msra.mxu0 0.0
    %2113 = vmatprep.subr.mxu0 0.0
    %2114 = vmatpush1.msra.mxu0 0.0
    %2115 = vmatprep.subr.mxu0 0.0
    %2116 = vmatpush1.msra.mxu0 0.0
    %2117 = vmatprep.subr.mxu0 0.0
    %2118 = vmatpush1.msra.mxu0 0.0
    %2119 = vmatprep.subr.mxu0 0.0
    %2120 = vmatpush1.msra.mxu0 0.0
    %2121 = vmatprep.subr.mxu0 0.0
    %2122 = vmatpush1.msra.mxu0 0.0
    %2123 = vmatprep.subr.mxu0 0.0
    %2124 = vmatpush1.msra.mxu0 0.0
    %2125 = vmatprep.subr.mxu0 0.0
    %2126 = vmatpush1.msra.mxu0 0.0
    %2127 = vmatprep.subr.mxu0 0.0
    %2128 = vmatpush1.msra.mxu0 0.0
    %2129 = vmatprep.subr.mxu0 0.0
    %2130 = vmatpush1.msra.mxu0 0.0
    %2131 = vmatprep.subr.mxu0 0.0
    %2132 = vmatpush1.msra.mxu0 0.0
    %2133 = vmatprep.subr.mxu0 0.0
    %2134 = vmatpush1.msra.mxu0 0.0
    %2135 = vmatprep.subr.mxu0 0.0
    %2136 = vmatpush1.msra.mxu0 0.0
    %2137 = vmatprep.subr.mxu0 0.0
    %2138 = vmatpush1.msra.mxu0 0.0
    %2139 = vmatprep.subr.mxu0 0.0
    %2140 = vmatpush1.msra.mxu0 0.0
    %2141 = vmatprep.subr.mxu0 0.0
    %2142 = vmatpush1.msra.mxu0 0.0
    %2143 = vmatprep.subr.mxu0 0.0
    %2144 = vmatpush1.msra.mxu0 0.0
    %2145 = vmatprep.subr.mxu0 0.0
    %2146 = vmatpush1.msra.mxu0 0.0
    %2147 = vmatprep.subr.mxu0 0.0
    %2148 = vmatpush1.msra.mxu0 0.0
    %2149 = vmatprep.subr.mxu0 0.0
    %2150 = vmatpush1.msra.mxu0 0.0
    %2151 = vmatprep.subr.mxu0 0.0
    %2152 = vmatpush1.msra.mxu0 0.0
    %2153 = vmatprep.subr.mxu0 0.0
    %2154 = vmatpush1.msra.mxu0 0.0
    %2155 = vmatprep.subr.mxu0 0.0
    %2156 = vmatpush1.msra.mxu0 0.0
    %2157 = vmatprep.subr.mxu0 0.0
    %2158 = vmatpush1.msra.mxu0 0.0
    %2159 = vmatprep.subr.mxu0 0.0
    %2160 = vmatpush1.msra.mxu0 0.0
    %2161 = vmatprep.mubr.f32.mxu0 0.0
    %v2162 = vand.u32 %v1075, 4294901760
    %v2163 = vsub.f32 %v1075, %v2162
    %v2164 = vand.u32 %v2163, 4294901760
    %v2165 = vsub.f32 %v2163, %v2164
    %v2166 = vand.u32 %v2165, 4294901760
    %2167 = vmatmul.mubr.f32.gmra.mrb[0].mxu0 %v2166
    %v2168 = vpop.f32.mrb[0].mxu0
    %v2169 = vadd.f32 0.0, %v2168
    %v2170 = vpop.f32.mrb[0].mxu0
    %2171 = vdwg.mxu0
    %2172 = vmatprep.subr.mxu0 0.0
    %v2173 = vand.u32 %v86, 4294901760
    %v2174 = vsub.f32 %v86, %v2173
    %v2175 = vand.u32 %v2174, 4294901760
    %v2176 = vsub.f32 %v2174, %v2175
    %v2177 = vand.u32 %v2176, 4294901760
    %2178 = vmatpush1.msra.mxu0 %v2177
    %2179 = vmatprep.subr.mxu0 0.0
    %v2180 = vand.u32 %v87, 4294901760
    %v2181 = vsub.f32 %v87, %v2180
    %v2182 = vand.u32 %v2181, 4294901760
    %v2183 = vsub.f32 %v2181, %v2182
    %v2184 = vand.u32 %v2183, 4294901760
    %2185 = vmatpush1.msra.mxu0 %v2184
    %2186 = vmatprep.subr.mxu0 0.0
    %v2187 = vand.u32 %v88, 4294901760
    %v2188 = vsub.f32 %v88, %v2187
    %v2189 = vand.u32 %v2188, 4294901760
    %v2190 = vsub.f32 %v2188, %v2189
    %v2191 = vand.u32 %v2190, 4294901760
    %2192 = vmatpush1.msra.mxu0 %v2191
    %2193 = vmatprep.subr.mxu0 0.0
    %v2194 = vand.u32 %v89, 4294901760
    %v2195 = vsub.f32 %v89, %v2194
    %v2196 = vand.u32 %v2195, 4294901760
    %v2197 = vsub.f32 %v2195, %v2196
    %v2198 = vand.u32 %v2197, 4294901760
    %2199 = vmatpush1.msra.mxu0 %v2198
    %2200 = vmatprep.subr.mxu0 0.0
    %2201 = vmatpush1.msra.mxu0 0.0
    %2202 = vmatprep.subr.mxu0 0.0
    %2203 = vmatpush1.msra.mxu0 0.0
    %2204 = vmatprep.subr.mxu0 0.0
    %2205 = vmatpush1.msra.mxu0 0.0
    %2206 = vmatprep.subr.mxu0 0.0
    %2207 = vmatpush1.msra.mxu0 0.0
    %2208 = vmatprep.subr.mxu0 0.0
    %2209 = vmatpush1.msra.mxu0 0.0
    %2210 = vmatprep.subr.mxu0 0.0
    %2211 = vmatpush1.msra.mxu0 0.0
    %2212 = vmatprep.subr.mxu0 0.0
    %2213 = vmatpush1.msra.mxu0 0.0
    %2214 = vmatprep.subr.mxu0 0.0
    %2215 = vmatpush1.msra.mxu0 0.0
    %2216 = vmatprep.subr.mxu0 0.0
    %2217 = vmatpush1.msra.mxu0 0.0
    %2218 = vmatprep.subr.mxu0 0.0
    %2219 = vmatpush1.msra.mxu0 0.0
    %2220 = vmatprep.subr.mxu0 0.0
    %2221 = vmatpush1.msra.mxu0 0.0
    %2222 = vmatprep.subr.mxu0 0.0
    %2223 = vmatpush1.msra.mxu0 0.0
    %2224 = vmatprep.subr.mxu0 0.0
    %2225 = vmatpush1.msra.mxu0 0.0
    %2226 = vmatprep.subr.mxu0 0.0
    %2227 = vmatpush1.msra.mxu0 0.0
    %2228 = vmatprep.subr.mxu0 0.0
    %2229 = vmatpush1.msra.mxu0 0.0
    %2230 = vmatprep.subr.mxu0 0.0
    %2231 = vmatpush1.msra.mxu0 0.0
    %2232 = vmatprep.subr.mxu0 0.0
    %2233 = vmatpush1.msra.mxu0 0.0
    %2234 = vmatprep.subr.mxu0 0.0
    %2235 = vmatpush1.msra.mxu0 0.0
    %2236 = vmatprep.subr.mxu0 0.0
    %2237 = vmatpush1.msra.mxu0 0.0
    %2238 = vmatprep.subr.mxu0 0.0
    %2239 = vmatpush1.msra.mxu0 0.0
    %2240 = vmatprep.subr.mxu0 0.0
    %2241 = vmatpush1.msra.mxu0 0.0
    %2242 = vmatprep.subr.mxu0 0.0
    %2243 = vmatpush1.msra.mxu0 0.0
    %2244 = vmatprep.subr.mxu0 0.0
    %2245 = vmatpush1.msra.mxu0 0.0
    %2246 = vmatprep.subr.mxu0 0.0
    %2247 = vmatpush1.msra.mxu0 0.0
    %2248 = vmatprep.subr.mxu0 0.0
    %2249 = vmatpush1.msra.mxu0 0.0
    %2250 = vmatprep.subr.mxu0 0.0
    %2251 = vmatpush1.msra.mxu0 0.0
    %2252 = vmatprep.subr.mxu0 0.0
    %2253 = vmatpush1.msra.mxu0 0.0
    %2254 = vmatprep.subr.mxu0 0.0
    %2255 = vmatpush1.msra.mxu0 0.0
    %2256 = vmatprep.mubr.f32.mxu0 0.0
    %v2257 = vand.u32 %v1075, 4294901760
    %2258 = vmatmul.mubr.f32.gmra.mrb[0].mxu0 %v2257
    %v2259 = vpop.f32.mrb[0].mxu0
    %v2260 = vadd.f32 %v2169, %v2259
    %v2261 = vpop.f32.mrb[0].mxu0
    %2262 = vdwg.mxu0
    %2263 = vmatprep.subr.mxu0 0.0
    %v2264 = vand.u32 %v86, 4294901760
    %v2265 = vsub.f32 %v86, %v2264
    %2266 = vmatpush1.msra.mxu0 %v2265
    %2267 = vmatprep.subr.mxu0 0.0
    %v2268 = vand.u32 %v87, 4294901760
    %v2269 = vsub.f32 %v87, %v2268
    %2270 = vmatpush1.msra.mxu0 %v2269
    %2271 = vmatprep.subr.mxu0 0.0
    %v2272 = vand.u32 %v88, 4294901760
    %v2273 = vsub.f32 %v88, %v2272
    %2274 = vmatpush1.msra.mxu0 %v2273
    %2275 = vmatprep.subr.mxu0 0.0
    %v2276 = vand.u32 %v89, 4294901760
    %v2277 = vsub.f32 %v89, %v2276
    %2278 = vmatpush1.msra.mxu0 %v2277
    %2279 = vmatprep.subr.mxu0 0.0
    %2280 = vmatpush1.msra.mxu0 0.0
    %2281 = vmatprep.subr.mxu0 0.0
    %2282 = vmatpush1.msra.mxu0 0.0
    %2283 = vmatprep.subr.mxu0 0.0
    %2284 = vmatpush1.msra.mxu0 0.0
    %2285 = vmatprep.subr.mxu0 0.0
    %2286 = vmatpush1.msra.mxu0 0.0
    %2287 = vmatprep.subr.mxu0 0.0
    %2288 = vmatpush1.msra.mxu0 0.0
    %2289 = vmatprep.subr.mxu0 0.0
    %2290 = vmatpush1.msra.mxu0 0.0
    %2291 = vmatprep.subr.mxu0 0.0
    %2292 = vmatpush1.msra.mxu0 0.0
    %2293 = vmatprep.subr.mxu0 0.0
    %2294 = vmatpush1.msra.mxu0 0.0
    %2295 = vmatprep.subr.mxu0 0.0
    %2296 = vmatpush1.msra.mxu0 0.0
    %2297 = vmatprep.subr.mxu0 0.0
    %2298 = vmatpush1.msra.mxu0 0.0
    %2299 = vmatprep.subr.mxu0 0.0
    %2300 = vmatpush1.msra.mxu0 0.0
    %2301 = vmatprep.subr.mxu0 0.0
    %2302 = vmatpush1.msra.mxu0 0.0
    %2303 = vmatprep.subr.mxu0 0.0
    %2304 = vmatpush1.msra.mxu0 0.0
    %2305 = vmatprep.subr.mxu0 0.0
    %2306 = vmatpush1.msra.mxu0 0.0
    %2307 = vmatprep.subr.mxu0 0.0
    %2308 = vmatpush1.msra.mxu0 0.0
    %2309 = vmatprep.subr.mxu0 0.0
    %2310 = vmatpush1.msra.mxu0 0.0
    %2311 = vmatprep.subr.mxu0 0.0
    %2312 = vmatpush1.msra.mxu0 0.0
    %2313 = vmatprep.subr.mxu0 0.0
    %2314 = vmatpush1.msra.mxu0 0.0
    %2315 = vmatprep.subr.mxu0 0.0
    %2316 = vmatpush1.msra.mxu0 0.0
    %2317 = vmatprep.subr.mxu0 0.0
    %2318 = vmatpush1.msra.mxu0 0.0
    %2319 = vmatprep.subr.mxu0 0.0
    %2320 = vmatpush1.msra.mxu0 0.0
    %2321 = vmatprep.subr.mxu0 0.0
    %2322 = vmatpush1.msra.mxu0 0.0
    %2323 = vmatprep.subr.mxu0 0.0
    %2324 = vmatpush1.msra.mxu0 0.0
    %2325 = vmatprep.subr.mxu0 0.0
    %2326 = vmatpush1.msra.mxu0 0.0
    %2327 = vmatprep.subr.mxu0 0.0
    %2328 = vmatpush1.msra.mxu0 0.0
    %2329 = vmatprep.subr.mxu0 0.0
    %2330 = vmatpush1.msra.mxu0 0.0
    %2331 = vmatprep.subr.mxu0 0.0
    %2332 = vmatpush1.msra.mxu0 0.0
    %2333 = vmatprep.subr.mxu0 0.0
    %2334 = vmatpush1.msra.mxu0 0.0
    %2335 = vmatprep.mubr.f32.mxu0 0.0
    %v2336 = vand.u32 %v1075, 4294901760
    %v2337 = vsub.f32 %v1075, %v2336
    %2338 = vmatmul.mubr.f32.gmra.mrb[0].mxu0 %v2337
    %v2339 = vpop.f32.mrb[0].mxu0
    %v2340 = vadd.f32 %v2260, %v2339
    %v2341 = vpop.f32.mrb[0].mxu0
    %2342 = vdwg.mxu0
    %2343 = vmatprep.subr.mxu0 0.0
    %v2344 = vand.u32 %v86, 4294901760
    %2345 = vmatpush1.msra.mxu0 %v2344
    %2346 = vmatprep.subr.mxu0 0.0
    %v2347 = vand.u32 %v87, 4294901760
    %2348 = vmatpush1.msra.mxu0 %v2347
    %2349 = vmatprep.subr.mxu0 0.0
    %v2350 = vand.u32 %v88, 4294901760
    %2351 = vmatpush1.msra.mxu0 %v2350
    %2352 = vmatprep.subr.mxu0 0.0
    %v2353 = vand.u32 %v89, 4294901760
    %2354 = vmatpush1.msra.mxu0 %v2353
    %2355 = vmatprep.subr.mxu0 0.0
    %2356 = vmatpush1.msra.mxu0 0.0
    %2357 = vmatprep.subr.mxu0 0.0
    %2358 = vmatpush1.msra.mxu0 0.0
    %2359 = vmatprep.subr.mxu0 0.0
    %2360 = vmatpush1.msra.mxu0 0.0
    %2361 = vmatprep.subr.mxu0 0.0
    %2362 = vmatpush1.msra.mxu0 0.0
    %2363 = vmatprep.subr.mxu0 0.0
    %2364 = vmatpush1.msra.mxu0 0.0
    %2365 = vmatprep.subr.mxu0 0.0
    %2366 = vmatpush1.msra.mxu0 0.0
    %2367 = vmatprep.subr.mxu0 0.0
    %2368 = vmatpush1.msra.mxu0 0.0
    %2369 = vmatprep.subr.mxu0 0.0
    %2370 = vmatpush1.msra.mxu0 0.0
    %2371 = vmatprep.subr.mxu0 0.0
    %2372 = vmatpush1.msra.mxu0 0.0
    %2373 = vmatprep.subr.mxu0 0.0
    %2374 = vmatpush1.msra.mxu0 0.0
    %2375 = vmatprep.subr.mxu0 0.0
    %2376 = vmatpush1.msra.mxu0 0.0
    %2377 = vmatprep.subr.mxu0 0.0
    %2378 = vmatpush1.msra.mxu0 0.0
    %2379 = vmatprep.subr.mxu0 0.0
    %2380 = vmatpush1.msra.mxu0 0.0
    %2381 = vmatprep.subr.mxu0 0.0
    %2382 = vmatpush1.msra.mxu0 0.0
    %2383 = vmatprep.subr.mxu0 0.0
    %2384 = vmatpush1.msra.mxu0 0.0
    %2385 = vmatprep.subr.mxu0 0.0
    %2386 = vmatpush1.msra.mxu0 0.0
    %2387 = vmatprep.subr.mxu0 0.0
    %2388 = vmatpush1.msra.mxu0 0.0
    %2389 = vmatprep.subr.mxu0 0.0
    %2390 = vmatpush1.msra.mxu0 0.0
    %2391 = vmatprep.subr.mxu0 0.0
    %2392 = vmatpush1.msra.mxu0 0.0
    %2393 = vmatprep.subr.mxu0 0.0
    %2394 = vmatpush1.msra.mxu0 0.0
    %2395 = vmatprep.subr.mxu0 0.0
    %2396 = vmatpush1.msra.mxu0 0.0
    %2397 = vmatprep.subr.mxu0 0.0
    %2398 = vmatpush1.msra.mxu0 0.0
    %2399 = vmatprep.subr.mxu0 0.0
    %2400 = vmatpush1.msra.mxu0 0.0
    %2401 = vmatprep.subr.mxu0 0.0
    %2402 = vmatpush1.msra.mxu0 0.0
    %2403 = vmatprep.subr.mxu0 0.0
    %2404 = vmatpush1.msra.mxu0 0.0
    %2405 = vmatprep.subr.mxu0 0.0
    %2406 = vmatpush1.msra.mxu0 0.0
    %2407 = vmatprep.subr.mxu0 0.0
    %2408 = vmatpush1.msra.mxu0 0.0
    %2409 = vmatprep.subr.mxu0 0.0
    %2410 = vmatpush1.msra.mxu0 0.0
    %2411 = vmatprep.mubr.f32.mxu0 0.0
    %v2412 = vand.u32 %v1075, 4294901760
    %v2413 = vsub.f32 %v1075, %v2412
    %v2414 = vand.u32 %v2413, 4294901760
    %2415 = vmatmul.mubr.f32.gmra.mrb[0].mxu0 %v2414
    %v2416 = vpop.f32.mrb[0].mxu0
    %v2417 = vadd.f32 %v2340, %v2416
    %v2418 = vpop.f32.mrb[0].mxu0
    %2419 = vdwg.mxu0
    %2420 = vmatprep.subr.mxu0 0.0
    %v2421 = vand.u32 %v86, 4294901760
    %v2422 = vsub.f32 %v86, %v2421
    %v2423 = vand.u32 %v2422, 4294901760
    %2424 = vmatpush1.msra.mxu0 %v2423
    %2425 = vmatprep.subr.mxu0 0.0
    %v2426 = vand.u32 %v87, 4294901760
    %v2427 = vsub.f32 %v87, %v2426
    %v2428 = vand.u32 %v2427, 4294901760
    %2429 = vmatpush1.msra.mxu0 %v2428
    %2430 = vmatprep.subr.mxu0 0.0
    %v2431 = vand.u32 %v88, 4294901760
    %v2432 = vsub.f32 %v88, %v2431
    %v2433 = vand.u32 %v2432, 4294901760
    %2434 = vmatpush1.msra.mxu0 %v2433
    %2435 = vmatprep.subr.mxu0 0.0
    %v2436 = vand.u32 %v89, 4294901760
    %v2437 = vsub.f32 %v89, %v2436
    %v2438 = vand.u32 %v2437, 4294901760
    %2439 = vmatpush1.msra.mxu0 %v2438
    %2440 = vmatprep.subr.mxu0 0.0
    %2441 = vmatpush1.msra.mxu0 0.0
    %2442 = vmatprep.subr.mxu0 0.0
    %2443 = vmatpush1.msra.mxu0 0.0
    %2444 = vmatprep.subr.mxu0 0.0
    %2445 = vmatpush1.msra.mxu0 0.0
    %2446 = vmatprep.subr.mxu0 0.0
    %2447 = vmatpush1.msra.mxu0 0.0
    %2448 = vmatprep.subr.mxu0 0.0
    %2449 = vmatpush1.msra.mxu0 0.0
    %2450 = vmatprep.subr.mxu0 0.0
    %2451 = vmatpush1.msra.mxu0 0.0
    %2452 = vmatprep.subr.mxu0 0.0
    %2453 = vmatpush1.msra.mxu0 0.0
    %2454 = vmatprep.subr.mxu0 0.0
    %2455 = vmatpush1.msra.mxu0 0.0
    %2456 = vmatprep.subr.mxu0 0.0
    %2457 = vmatpush1.msra.mxu0 0.0
    %2458 = vmatprep.subr.mxu0 0.0
    %2459 = vmatpush1.msra.mxu0 0.0
    %2460 = vmatprep.subr.mxu0 0.0
    %2461 = vmatpush1.msra.mxu0 0.0
    %2462 = vmatprep.subr.mxu0 0.0
    %2463 = vmatpush1.msra.mxu0 0.0
    %2464 = vmatprep.subr.mxu0 0.0
    %2465 = vmatpush1.msra.mxu0 0.0
    %2466 = vmatprep.subr.mxu0 0.0
    %2467 = vmatpush1.msra.mxu0 0.0
    %2468 = vmatprep.subr.mxu0 0.0
    %2469 = vmatpush1.msra.mxu0 0.0
    %2470 = vmatprep.subr.mxu0 0.0
    %2471 = vmatpush1.msra.mxu0 0.0
    %2472 = vmatprep.subr.mxu0 0.0
    %2473 = vmatpush1.msra.mxu0 0.0
    %2474 = vmatprep.subr.mxu0 0.0
    %2475 = vmatpush1.msra.mxu0 0.0
    %2476 = vmatprep.subr.mxu0 0.0
    %2477 = vmatpush1.msra.mxu0 0.0
    %2478 = vmatprep.subr.mxu0 0.0
    %2479 = vmatpush1.msra.mxu0 0.0
    %2480 = vmatprep.subr.mxu0 0.0
    %2481 = vmatpush1.msra.mxu0 0.0
    %2482 = vmatprep.subr.mxu0 0.0
    %2483 = vmatpush1.msra.mxu0 0.0
    %2484 = vmatprep.subr.mxu0 0.0
    %2485 = vmatpush1.msra.mxu0 0.0
    %2486 = vmatprep.subr.mxu0 0.0
    %2487 = vmatpush1.msra.mxu0 0.0
    %2488 = vmatprep.subr.mxu0 0.0
    %2489 = vmatpush1.msra.mxu0 0.0
    %2490 = vmatprep.subr.mxu0 0.0
    %2491 = vmatpush1.msra.mxu0 0.0
    %2492 = vmatprep.subr.mxu0 0.0
    %2493 = vmatpush1.msra.mxu0 0.0
    %2494 = vmatprep.subr.mxu0 0.0
    %2495 = vmatpush1.msra.mxu0 0.0
    %2496 = vmatprep.mubr.f32.mxu0 0.0
    %v2497 = vand.u32 %v1075, 4294901760
    %2498 = vmatmul.mubr.f32.gmra.mrb[0].mxu0 %v2497
    %v2499 = vpop.f32.mrb[0].mxu0
    %v2500 = vadd.f32 %v2417, %v2499
    %v2501 = vpop.f32.mrb[0].mxu0
    %2502 = vdwg.mxu0
    %2503 = vmatprep.subr.mxu0 0.0
    %v2504 = vand.u32 %v86, 4294901760
    %2505 = vmatpush1.msra.mxu0 %v2504
    %2506 = vmatprep.subr.mxu0 0.0
    %v2507 = vand.u32 %v87, 4294901760
    %2508 = vmatpush1.msra.mxu0 %v2507
    %2509 = vmatprep.subr.mxu0 0.0
    %v2510 = vand.u32 %v88, 4294901760
    %2511 = vmatpush1.msra.mxu0 %v2510
    %2512 = vmatprep.subr.mxu0 0.0
    %v2513 = vand.u32 %v89, 4294901760
    %2514 = vmatpush1.msra.mxu0 %v2513
    %2515 = vmatprep.subr.mxu0 0.0
    %2516 = vmatpush1.msra.mxu0 0.0
    %2517 = vmatprep.subr.mxu0 0.0
    %2518 = vmatpush1.msra.mxu0 0.0
    %2519 = vmatprep.subr.mxu0 0.0
    %2520 = vmatpush1.msra.mxu0 0.0
    %2521 = vmatprep.subr.mxu0 0.0
    %2522 = vmatpush1.msra.mxu0 0.0
    %2523 = vmatprep.subr.mxu0 0.0
    %2524 = vmatpush1.msra.mxu0 0.0
    %2525 = vmatprep.subr.mxu0 0.0
    %2526 = vmatpush1.msra.mxu0 0.0
    %2527 = vmatprep.subr.mxu0 0.0
    %2528 = vmatpush1.msra.mxu0 0.0
    %2529 = vmatprep.subr.mxu0 0.0
    %2530 = vmatpush1.msra.mxu0 0.0
    %2531 = vmatprep.subr.mxu0 0.0
    %2532 = vmatpush1.msra.mxu0 0.0
    %2533 = vmatprep.subr.mxu0 0.0
    %2534 = vmatpush1.msra.mxu0 0.0
    %2535 = vmatprep.subr.mxu0 0.0
    %2536 = vmatpush1.msra.mxu0 0.0
    %2537 = vmatprep.subr.mxu0 0.0
    %2538 = vmatpush1.msra.mxu0 0.0
    %2539 = vmatprep.subr.mxu0 0.0
    %2540 = vmatpush1.msra.mxu0 0.0
    %2541 = vmatprep.subr.mxu0 0.0
    %2542 = vmatpush1.msra.mxu0 0.0
    %2543 = vmatprep.subr.mxu0 0.0
    %2544 = vmatpush1.msra.mxu0 0.0
    %2545 = vmatprep.subr.mxu0 0.0
    %2546 = vmatpush1.msra.mxu0 0.0
    %2547 = vmatprep.subr.mxu0 0.0
    %2548 = vmatpush1.msra.mxu0 0.0
    %2549 = vmatprep.subr.mxu0 0.0
    %2550 = vmatpush1.msra.mxu0 0.0
    %2551 = vmatprep.subr.mxu0 0.0
    %2552 = vmatpush1.msra.mxu0 0.0
    %2553 = vmatprep.subr.mxu0 0.0
    %2554 = vmatpush1.msra.mxu0 0.0
    %2555 = vmatprep.subr.mxu0 0.0
    %2556 = vmatpush1.msra.mxu0 0.0
    %2557 = vmatprep.subr.mxu0 0.0
    %2558 = vmatpush1.msra.mxu0 0.0
    %2559 = vmatprep.subr.mxu0 0.0
    %2560 = vmatpush1.msra.mxu0 0.0
    %2561 = vmatprep.subr.mxu0 0.0
    %2562 = vmatpush1.msra.mxu0 0.0
    %2563 = vmatprep.subr.mxu0 0.0
    %2564 = vmatpush1.msra.mxu0 0.0
    %2565 = vmatprep.subr.mxu0 0.0
    %2566 = vmatpush1.msra.mxu0 0.0
    %2567 = vmatprep.subr.mxu0 0.0
    %2568 = vmatpush1.msra.mxu0 0.0
    %2569 = vmatprep.subr.mxu0 0.0
    %2570 = vmatpush1.msra.mxu0 0.0
    %2571 = vmatprep.mubr.f32.mxu0 0.0
    %v2572 = vand.u32 %v1075, 4294901760
    %2573 = vmatmul.mubr.f32.gmra.mrb[0].mxu0 %v2572
    %v2574 = vpop.f32.mrb[0].mxu0
    %v2575 = vadd.f32 %v2500, %v2574
    %v2576 = vpop.f32.mrb[0].mxu0
    %2577 = vdwg.mxu0
    %v2579 = vrot.slane %v2575, 1
    %v2582 = vadd.f32 %v2091, %v2575
    %v2583 = vadd.f32 %v2092, %v2579
    %v2584 = vmul.f32 %v1073, 0.25
    %v2585 = vtanh.pop %v2582
    %v2586 = vtanh.pop %v2583
    %v2587 = vmul.f32 %v2585, 0.75
    %v2588 = vmul.f32 %v2586, 0.75
    %v2591 = vrot.slane %v2588, 7
    %v2592 = vsel %vm1070, %v2591, %v2587
    %v2594 = vadd.f32 %v2584, %v2592
    %v2596 = vsel %vm567, %v2594, 0
    %2598 = vmatprep.subr.mxu0 0.0
    %v2599 = vand.u32 %v90, 4294901760
    %2600 = vmatpush1.msra.mxu0 %v2599
    %2601 = vmatprep.subr.mxu0 0.0
    %v2602 = vand.u32 %v91, 4294901760
    %2603 = vmatpush1.msra.mxu0 %v2602
    %2604 = vmatprep.subr.mxu0 0.0
    %v2605 = vand.u32 %v92, 4294901760
    %2606 = vmatpush1.msra.mxu0 %v2605
    %2607 = vmatprep.subr.mxu0 0.0
    %v2608 = vand.u32 %v93, 4294901760
    %2609 = vmatpush1.msra.mxu0 %v2608
    %2610 = vmatprep.subr.mxu0 0.0
    %2611 = vmatpush1.msra.mxu0 0.0
    %2612 = vmatprep.subr.mxu0 0.0
    %2613 = vmatpush1.msra.mxu0 0.0
    %2614 = vmatprep.subr.mxu0 0.0
    %2615 = vmatpush1.msra.mxu0 0.0
    %2616 = vmatprep.subr.mxu0 0.0
    %2617 = vmatpush1.msra.mxu0 0.0
    %2618 = vmatprep.subr.mxu0 0.0
    %2619 = vmatpush1.msra.mxu0 0.0
    %2620 = vmatprep.subr.mxu0 0.0
    %2621 = vmatpush1.msra.mxu0 0.0
    %2622 = vmatprep.subr.mxu0 0.0
    %2623 = vmatpush1.msra.mxu0 0.0
    %2624 = vmatprep.subr.mxu0 0.0
    %2625 = vmatpush1.msra.mxu0 0.0
    %2626 = vmatprep.subr.mxu0 0.0
    %2627 = vmatpush1.msra.mxu0 0.0
    %2628 = vmatprep.subr.mxu0 0.0
    %2629 = vmatpush1.msra.mxu0 0.0
    %2630 = vmatprep.subr.mxu0 0.0
    %2631 = vmatpush1.msra.mxu0 0.0
    %2632 = vmatprep.subr.mxu0 0.0
    %2633 = vmatpush1.msra.mxu0 0.0
    %2634 = vmatprep.subr.mxu0 0.0
    %2635 = vmatpush1.msra.mxu0 0.0
    %2636 = vmatprep.subr.mxu0 0.0
    %2637 = vmatpush1.msra.mxu0 0.0
    %2638 = vmatprep.subr.mxu0 0.0
    %2639 = vmatpush1.msra.mxu0 0.0
    %2640 = vmatprep.subr.mxu0 0.0
    %2641 = vmatpush1.msra.mxu0 0.0
    %2642 = vmatprep.subr.mxu0 0.0
    %2643 = vmatpush1.msra.mxu0 0.0
    %2644 = vmatprep.subr.mxu0 0.0
    %2645 = vmatpush1.msra.mxu0 0.0
    %2646 = vmatprep.subr.mxu0 0.0
    %2647 = vmatpush1.msra.mxu0 0.0
    %2648 = vmatprep.subr.mxu0 0.0
    %2649 = vmatpush1.msra.mxu0 0.0
    %2650 = vmatprep.subr.mxu0 0.0
    %2651 = vmatpush1.msra.mxu0 0.0
    %2652 = vmatprep.subr.mxu0 0.0
    %2653 = vmatpush1.msra.mxu0 0.0
    %2654 = vmatprep.subr.mxu0 0.0
    %2655 = vmatpush1.msra.mxu0 0.0
    %2656 = vmatprep.subr.mxu0 0.0
    %2657 = vmatpush1.msra.mxu0 0.0
    %2658 = vmatprep.subr.mxu0 0.0
    %2659 = vmatpush1.msra.mxu0 0.0
    %2660 = vmatprep.subr.mxu0 0.0
    %2661 = vmatpush1.msra.mxu0 0.0
    %2662 = vmatprep.subr.mxu0 0.0
    %2663 = vmatpush1.msra.mxu0 0.0
    %2664 = vmatprep.subr.mxu0 0.0
    %2665 = vmatpush1.msra.mxu0 0.0
    %2666 = vmatprep.mubr.f32.mxu0 0.0
    %v2667 = vand.u32 %v2596, 4294901760
    %v2668 = vsub.f32 %v2596, %v2667
    %v2669 = vand.u32 %v2668, 4294901760
    %v2670 = vsub.f32 %v2668, %v2669
    %v2671 = vand.u32 %v2670, 4294901760
    %2672 = vmatmul.mubr.f32.gmra.mrb[0].mxu0 %v2671
    %v2673 = vpop.f32.mrb[0].mxu0
    %v2674 = vadd.f32 0.0, %v2673
    %v2675 = vpop.f32.mrb[0].mxu0
    %2676 = vdwg.mxu0
    %2677 = vmatprep.subr.mxu0 0.0
    %v2678 = vand.u32 %v90, 4294901760
    %v2679 = vsub.f32 %v90, %v2678
    %v2680 = vand.u32 %v2679, 4294901760
    %v2681 = vsub.f32 %v2679, %v2680
    %v2682 = vand.u32 %v2681, 4294901760
    %2683 = vmatpush1.msra.mxu0 %v2682
    %2684 = vmatprep.subr.mxu0 0.0
    %v2685 = vand.u32 %v91, 4294901760
    %v2686 = vsub.f32 %v91, %v2685
    %v2687 = vand.u32 %v2686, 4294901760
    %v2688 = vsub.f32 %v2686, %v2687
    %v2689 = vand.u32 %v2688, 4294901760
    %2690 = vmatpush1.msra.mxu0 %v2689
    %2691 = vmatprep.subr.mxu0 0.0
    %v2692 = vand.u32 %v92, 4294901760
    %v2693 = vsub.f32 %v92, %v2692
    %v2694 = vand.u32 %v2693, 4294901760
    %v2695 = vsub.f32 %v2693, %v2694
    %v2696 = vand.u32 %v2695, 4294901760
    %2697 = vmatpush1.msra.mxu0 %v2696
    %2698 = vmatprep.subr.mxu0 0.0
    %v2699 = vand.u32 %v93, 4294901760
    %v2700 = vsub.f32 %v93, %v2699
    %v2701 = vand.u32 %v2700, 4294901760
    %v2702 = vsub.f32 %v2700, %v2701
    %v2703 = vand.u32 %v2702, 4294901760
    %2704 = vmatpush1.msra.mxu0 %v2703
    %2705 = vmatprep.subr.mxu0 0.0
    %2706 = vmatpush1.msra.mxu0 0.0
    %2707 = vmatprep.subr.mxu0 0.0
    %2708 = vmatpush1.msra.mxu0 0.0
    %2709 = vmatprep.subr.mxu0 0.0
    %2710 = vmatpush1.msra.mxu0 0.0
    %2711 = vmatprep.subr.mxu0 0.0
    %2712 = vmatpush1.msra.mxu0 0.0
    %2713 = vmatprep.subr.mxu0 0.0
    %2714 = vmatpush1.msra.mxu0 0.0
    %2715 = vmatprep.subr.mxu0 0.0
    %2716 = vmatpush1.msra.mxu0 0.0
    %2717 = vmatprep.subr.mxu0 0.0
    %2718 = vmatpush1.msra.mxu0 0.0
    %2719 = vmatprep.subr.mxu0 0.0
    %2720 = vmatpush1.msra.mxu0 0.0
    %2721 = vmatprep.subr.mxu0 0.0
    %2722 = vmatpush1.msra.mxu0 0.0
    %2723 = vmatprep.subr.mxu0 0.0
    %2724 = vmatpush1.msra.mxu0 0.0
    %2725 = vmatprep.subr.mxu0 0.0
    %2726 = vmatpush1.msra.mxu0 0.0
    %2727 = vmatprep.subr.mxu0 0.0
    %2728 = vmatpush1.msra.mxu0 0.0
    %2729 = vmatprep.subr.mxu0 0.0
    %2730 = vmatpush1.msra.mxu0 0.0
    %2731 = vmatprep.subr.mxu0 0.0
    %2732 = vmatpush1.msra.mxu0 0.0
    %2733 = vmatprep.subr.mxu0 0.0
    %2734 = vmatpush1.msra.mxu0 0.0
    %2735 = vmatprep.subr.mxu0 0.0
    %2736 = vmatpush1.msra.mxu0 0.0
    %2737 = vmatprep.subr.mxu0 0.0
    %2738 = vmatpush1.msra.mxu0 0.0
    %2739 = vmatprep.subr.mxu0 0.0
    %2740 = vmatpush1.msra.mxu0 0.0
    %2741 = vmatprep.subr.mxu0 0.0
    %2742 = vmatpush1.msra.mxu0 0.0
    %2743 = vmatprep.subr.mxu0 0.0
    %2744 = vmatpush1.msra.mxu0 0.0
    %2745 = vmatprep.subr.mxu0 0.0
    %2746 = vmatpush1.msra.mxu0 0.0
    %2747 = vmatprep.subr.mxu0 0.0
    %2748 = vmatpush1.msra.mxu0 0.0
    %2749 = vmatprep.subr.mxu0 0.0
    %2750 = vmatpush1.msra.mxu0 0.0
    %2751 = vmatprep.subr.mxu0 0.0
    %2752 = vmatpush1.msra.mxu0 0.0
    %2753 = vmatprep.subr.mxu0 0.0
    %2754 = vmatpush1.msra.mxu0 0.0
    %2755 = vmatprep.subr.mxu0 0.0
    %2756 = vmatpush1.msra.mxu0 0.0
    %2757 = vmatprep.subr.mxu0 0.0
    %2758 = vmatpush1.msra.mxu0 0.0
    %2759 = vmatprep.subr.mxu0 0.0
    %2760 = vmatpush1.msra.mxu0 0.0
    %2761 = vmatprep.mubr.f32.mxu0 0.0
    %v2762 = vand.u32 %v2596, 4294901760
    %2763 = vmatmul.mubr.f32.gmra.mrb[0].mxu0 %v2762
    %v2764 = vpop.f32.mrb[0].mxu0
    %v2765 = vadd.f32 %v2674, %v2764
    %v2766 = vpop.f32.mrb[0].mxu0
    %2767 = vdwg.mxu0
    %2768 = vmatprep.subr.mxu0 0.0
    %v2769 = vand.u32 %v90, 4294901760
    %v2770 = vsub.f32 %v90, %v2769
    %2771 = vmatpush1.msra.mxu0 %v2770
    %2772 = vmatprep.subr.mxu0 0.0
    %v2773 = vand.u32 %v91, 4294901760
    %v2774 = vsub.f32 %v91, %v2773
    %2775 = vmatpush1.msra.mxu0 %v2774
    %2776 = vmatprep.subr.mxu0 0.0
    %v2777 = vand.u32 %v92, 4294901760
    %v2778 = vsub.f32 %v92, %v2777
    %2779 = vmatpush1.msra.mxu0 %v2778
    %2780 = vmatprep.subr.mxu0 0.0
    %v2781 = vand.u32 %v93, 4294901760
    %v2782 = vsub.f32 %v93, %v2781
    %2783 = vmatpush1.msra.mxu0 %v2782
    %2784 = vmatprep.subr.mxu0 0.0
    %2785 = vmatpush1.msra.mxu0 0.0
    %2786 = vmatprep.subr.mxu0 0.0
    %2787 = vmatpush1.msra.mxu0 0.0
    %2788 = vmatprep.subr.mxu0 0.0
    %2789 = vmatpush1.msra.mxu0 0.0
    %2790 = vmatprep.subr.mxu0 0.0
    %2791 = vmatpush1.msra.mxu0 0.0
    %2792 = vmatprep.subr.mxu0 0.0
    %2793 = vmatpush1.msra.mxu0 0.0
    %2794 = vmatprep.subr.mxu0 0.0
    %2795 = vmatpush1.msra.mxu0 0.0
    %2796 = vmatprep.subr.mxu0 0.0
    %2797 = vmatpush1.msra.mxu0 0.0
    %2798 = vmatprep.subr.mxu0 0.0
    %2799 = vmatpush1.msra.mxu0 0.0
    %2800 = vmatprep.subr.mxu0 0.0
    %2801 = vmatpush1.msra.mxu0 0.0
    %2802 = vmatprep.subr.mxu0 0.0
    %2803 = vmatpush1.msra.mxu0 0.0
    %2804 = vmatprep.subr.mxu0 0.0
    %2805 = vmatpush1.msra.mxu0 0.0
    %2806 = vmatprep.subr.mxu0 0.0
    %2807 = vmatpush1.msra.mxu0 0.0
    %2808 = vmatprep.subr.mxu0 0.0
    %2809 = vmatpush1.msra.mxu0 0.0
    %2810 = vmatprep.subr.mxu0 0.0
    %2811 = vmatpush1.msra.mxu0 0.0
    %2812 = vmatprep.subr.mxu0 0.0
    %2813 = vmatpush1.msra.mxu0 0.0
    %2814 = vmatprep.subr.mxu0 0.0
    %2815 = vmatpush1.msra.mxu0 0.0
    %2816 = vmatprep.subr.mxu0 0.0
    %2817 = vmatpush1.msra.mxu0 0.0
    %2818 = vmatprep.subr.mxu0 0.0
    %2819 = vmatpush1.msra.mxu0 0.0
    %2820 = vmatprep.subr.mxu0 0.0
    %2821 = vmatpush1.msra.mxu0 0.0
    %2822 = vmatprep.subr.mxu0 0.0
    %2823 = vmatpush1.msra.mxu0 0.0
    %2824 = vmatprep.subr.mxu0 0.0
    %2825 = vmatpush1.msra.mxu0 0.0
    %2826 = vmatprep.subr.mxu0 0.0
    %2827 = vmatpush1.msra.mxu0 0.0
    %2828 = vmatprep.subr.mxu0 0.0
    %2829 = vmatpush1.msra.mxu0 0.0
    %2830 = vmatprep.subr.mxu0 0.0
    %2831 = vmatpush1.msra.mxu0 0.0
    %2832 = vmatprep.subr.mxu0 0.0
    %2833 = vmatpush1.msra.mxu0 0.0
    %2834 = vmatprep.subr.mxu0 0.0
    %2835 = vmatpush1.msra.mxu0 0.0
    %2836 = vmatprep.subr.mxu0 0.0
    %2837 = vmatpush1.msra.mxu0 0.0
    %2838 = vmatprep.subr.mxu0 0.0
    %2839 = vmatpush1.msra.mxu0 0.0
    %2840 = vmatprep.mubr.f32.mxu0 0.0
    %v2841 = vand.u32 %v2596, 4294901760
    %v2842 = vsub.f32 %v2596, %v2841
    %2843 = vmatmul.mubr.f32.gmra.mrb[0].mxu0 %v2842
    %v2844 = vpop.f32.mrb[0].mxu0
    %v2845 = vadd.f32 %v2765, %v2844
    %v2846 = vpop.f32.mrb[0].mxu0
    %2847 = vdwg.mxu0
    %2848 = vmatprep.subr.mxu0 0.0
    %v2849 = vand.u32 %v90, 4294901760
    %2850 = vmatpush1.msra.mxu0 %v2849
    %2851 = vmatprep.subr.mxu0 0.0
    %v2852 = vand.u32 %v91, 4294901760
    %2853 = vmatpush1.msra.mxu0 %v2852
    %2854 = vmatprep.subr.mxu0 0.0
    %v2855 = vand.u32 %v92, 4294901760
    %2856 = vmatpush1.msra.mxu0 %v2855
    %2857 = vmatprep.subr.mxu0 0.0
    %v2858 = vand.u32 %v93, 4294901760
    %2859 = vmatpush1.msra.mxu0 %v2858
    %2860 = vmatprep.subr.mxu0 0.0
    %2861 = vmatpush1.msra.mxu0 0.0
    %2862 = vmatprep.subr.mxu0 0.0
    %2863 = vmatpush1.msra.mxu0 0.0
    %2864 = vmatprep.subr.mxu0 0.0
    %2865 = vmatpush1.msra.mxu0 0.0
    %2866 = vmatprep.subr.mxu0 0.0
    %2867 = vmatpush1.msra.mxu0 0.0
    %2868 = vmatprep.subr.mxu0 0.0
    %2869 = vmatpush1.msra.mxu0 0.0
    %2870 = vmatprep.subr.mxu0 0.0
    %2871 = vmatpush1.msra.mxu0 0.0
    %2872 = vmatprep.subr.mxu0 0.0
    %2873 = vmatpush1.msra.mxu0 0.0
    %2874 = vmatprep.subr.mxu0 0.0
    %2875 = vmatpush1.msra.mxu0 0.0
    %2876 = vmatprep.subr.mxu0 0.0
    %2877 = vmatpush1.msra.mxu0 0.0
    %2878 = vmatprep.subr.mxu0 0.0
    %2879 = vmatpush1.msra.mxu0 0.0
    %2880 = vmatprep.subr.mxu0 0.0
    %2881 = vmatpush1.msra.mxu0 0.0
    %2882 = vmatprep.subr.mxu0 0.0
    %2883 = vmatpush1.msra.mxu0 0.0
    %2884 = vmatprep.subr.mxu0 0.0
    %2885 = vmatpush1.msra.mxu0 0.0
    %2886 = vmatprep.subr.mxu0 0.0
    %2887 = vmatpush1.msra.mxu0 0.0
    %2888 = vmatprep.subr.mxu0 0.0
    %2889 = vmatpush1.msra.mxu0 0.0
    %2890 = vmatprep.subr.mxu0 0.0
    %2891 = vmatpush1.msra.mxu0 0.0
    %2892 = vmatprep.subr.mxu0 0.0
    %2893 = vmatpush1.msra.mxu0 0.0
    %2894 = vmatprep.subr.mxu0 0.0
    %2895 = vmatpush1.msra.mxu0 0.0
    %2896 = vmatprep.subr.mxu0 0.0
    %2897 = vmatpush1.msra.mxu0 0.0
    %2898 = vmatprep.subr.mxu0 0.0
    %2899 = vmatpush1.msra.mxu0 0.0
    %2900 = vmatprep.subr.mxu0 0.0
    %2901 = vmatpush1.msra.mxu0 0.0
    %2902 = vmatprep.subr.mxu0 0.0
    %2903 = vmatpush1.msra.mxu0 0.0
    %2904 = vmatprep.subr.mxu0 0.0
    %2905 = vmatpush1.msra.mxu0 0.0
    %2906 = vmatprep.subr.mxu0 0.0
    %2907 = vmatpush1.msra.mxu0 0.0
    %2908 = vmatprep.subr.mxu0 0.0
    %2909 = vmatpush1.msra.mxu0 0.0
    %2910 = vmatprep.subr.mxu0 0.0
    %2911 = vmatpush1.msra.mxu0 0.0
    %2912 = vmatprep.subr.mxu0 0.0
    %2913 = vmatpush1.msra.mxu0 0.0
    %2914 = vmatprep.subr.mxu0 0.0
    %2915 = vmatpush1.msra.mxu0 0.0
    %2916 = vmatprep.mubr.f32.mxu0 0.0
    %v2917 = vand.u32 %v2596, 4294901760
    %v2918 = vsub.f32 %v2596, %v2917
    %v2919 = vand.u32 %v2918, 4294901760
    %2920 = vmatmul.mubr.f32.gmra.mrb[0].mxu0 %v2919
    %v2921 = vpop.f32.mrb[0].mxu0
    %v2922 = vadd.f32 %v2845, %v2921
    %v2923 = vpop.f32.mrb[0].mxu0
    %2924 = vdwg.mxu0
    %2925 = vmatprep.subr.mxu0 0.0
    %v2926 = vand.u32 %v90, 4294901760
    %v2927 = vsub.f32 %v90, %v2926
    %v2928 = vand.u32 %v2927, 4294901760
    %2929 = vmatpush1.msra.mxu0 %v2928
    %2930 = vmatprep.subr.mxu0 0.0
    %v2931 = vand.u32 %v91, 4294901760
    %v2932 = vsub.f32 %v91, %v2931
    %v2933 = vand.u32 %v2932, 4294901760
    %2934 = vmatpush1.msra.mxu0 %v2933
    %2935 = vmatprep.subr.mxu0 0.0
    %v2936 = vand.u32 %v92, 4294901760
    %v2937 = vsub.f32 %v92, %v2936
    %v2938 = vand.u32 %v2937, 4294901760
    %2939 = vmatpush1.msra.mxu0 %v2938
    %2940 = vmatprep.subr.mxu0 0.0
    %v2941 = vand.u32 %v93, 4294901760
    %v2942 = vsub.f32 %v93, %v2941
    %v2943 = vand.u32 %v2942, 4294901760
    %2944 = vmatpush1.msra.mxu0 %v2943
    %2945 = vmatprep.subr.mxu0 0.0
    %2946 = vmatpush1.msra.mxu0 0.0
    %2947 = vmatprep.subr.mxu0 0.0
    %2948 = vmatpush1.msra.mxu0 0.0
    %2949 = vmatprep.subr.mxu0 0.0
    %2950 = vmatpush1.msra.mxu0 0.0
    %2951 = vmatprep.subr.mxu0 0.0
    %2952 = vmatpush1.msra.mxu0 0.0
    %2953 = vmatprep.subr.mxu0 0.0
    %2954 = vmatpush1.msra.mxu0 0.0
    %2955 = vmatprep.subr.mxu0 0.0
    %2956 = vmatpush1.msra.mxu0 0.0
    %2957 = vmatprep.subr.mxu0 0.0
    %2958 = vmatpush1.msra.mxu0 0.0
    %2959 = vmatprep.subr.mxu0 0.0
    %2960 = vmatpush1.msra.mxu0 0.0
    %2961 = vmatprep.subr.mxu0 0.0
    %2962 = vmatpush1.msra.mxu0 0.0
    %2963 = vmatprep.subr.mxu0 0.0
    %2964 = vmatpush1.msra.mxu0 0.0
    %2965 = vmatprep.subr.mxu0 0.0
    %2966 = vmatpush1.msra.mxu0 0.0
    %2967 = vmatprep.subr.mxu0 0.0
    %2968 = vmatpush1.msra.mxu0 0.0
    %2969 = vmatprep.subr.mxu0 0.0
    %2970 = vmatpush1.msra.mxu0 0.0
    %2971 = vmatprep.subr.mxu0 0.0
    %2972 = vmatpush1.msra.mxu0 0.0
    %2973 = vmatprep.subr.mxu0 0.0
    %2974 = vmatpush1.msra.mxu0 0.0
    %2975 = vmatprep.subr.mxu0 0.0
    %2976 = vmatpush1.msra.mxu0 0.0
    %2977 = vmatprep.subr.mxu0 0.0
    %2978 = vmatpush1.msra.mxu0 0.0
    %2979 = vmatprep.subr.mxu0 0.0
    %2980 = vmatpush1.msra.mxu0 0.0
    %2981 = vmatprep.subr.mxu0 0.0
    %2982 = vmatpush1.msra.mxu0 0.0
    %2983 = vmatprep.subr.mxu0 0.0
    %2984 = vmatpush1.msra.mxu0 0.0
    %2985 = vmatprep.subr.mxu0 0.0
    %2986 = vmatpush1.msra.mxu0 0.0
    %2987 = vmatprep.subr.mxu0 0.0
    %2988 = vmatpush1.msra.mxu0 0.0
    %2989 = vmatprep.subr.mxu0 0.0
    %2990 = vmatpush1.msra.mxu0 0.0
    %2991 = vmatprep.subr.mxu0 0.0
    %2992 = vmatpush1.msra.mxu0 0.0
    %2993 = vmatprep.subr.mxu0 0.0
    %2994 = vmatpush1.msra.mxu0 0.0
    %2995 = vmatprep.subr.mxu0 0.0
    %2996 = vmatpush1.msra.mxu0 0.0
    %2997 = vmatprep.subr.mxu0 0.0
    %2998 = vmatpush1.msra.mxu0 0.0
    %2999 = vmatprep.subr.mxu0 0.0
    %3000 = vmatpush1.msra.mxu0 0.0
    %3001 = vmatprep.mubr.f32.mxu0 0.0
    %v3002 = vand.u32 %v2596, 4294901760
    %3003 = vmatmul.mubr.f32.gmra.mrb[0].mxu0 %v3002
    %v3004 = vpop.f32.mrb[0].mxu0
    %v3005 = vadd.f32 %v2922, %v3004
    %v3006 = vpop.f32.mrb[0].mxu0
    %3007 = vdwg.mxu0
    %3008 = vmatprep.subr.mxu0 0.0
    %v3009 = vand.u32 %v90, 4294901760
    %3010 = vmatpush1.msra.mxu0 %v3009
    %3011 = vmatprep.subr.mxu0 0.0
    %v3012 = vand.u32 %v91, 4294901760
    %3013 = vmatpush1.msra.mxu0 %v3012
    %3014 = vmatprep.subr.mxu0 0.0
    %v3015 = vand.u32 %v92, 4294901760
    %3016 = vmatpush1.msra.mxu0 %v3015
    %3017 = vmatprep.subr.mxu0 0.0
    %v3018 = vand.u32 %v93, 4294901760
    %3019 = vmatpush1.msra.mxu0 %v3018
    %3020 = vmatprep.subr.mxu0 0.0
    %3021 = vmatpush1.msra.mxu0 0.0
    %3022 = vmatprep.subr.mxu0 0.0
    %3023 = vmatpush1.msra.mxu0 0.0
    %3024 = vmatprep.subr.mxu0 0.0
    %3025 = vmatpush1.msra.mxu0 0.0
    %3026 = vmatprep.subr.mxu0 0.0
    %3027 = vmatpush1.msra.mxu0 0.0
    %3028 = vmatprep.subr.mxu0 0.0
    %3029 = vmatpush1.msra.mxu0 0.0
    %3030 = vmatprep.subr.mxu0 0.0
    %3031 = vmatpush1.msra.mxu0 0.0
    %3032 = vmatprep.subr.mxu0 0.0
    %3033 = vmatpush1.msra.mxu0 0.0
    %3034 = vmatprep.subr.mxu0 0.0
    %3035 = vmatpush1.msra.mxu0 0.0
    %3036 = vmatprep.subr.mxu0 0.0
    %3037 = vmatpush1.msra.mxu0 0.0
    %3038 = vmatprep.subr.mxu0 0.0
    %3039 = vmatpush1.msra.mxu0 0.0
    %3040 = vmatprep.subr.mxu0 0.0
    %3041 = vmatpush1.msra.mxu0 0.0
    %3042 = vmatprep.subr.mxu0 0.0
    %3043 = vmatpush1.msra.mxu0 0.0
    %3044 = vmatprep.subr.mxu0 0.0
    %3045 = vmatpush1.msra.mxu0 0.0
    %3046 = vmatprep.subr.mxu0 0.0
    %3047 = vmatpush1.msra.mxu0 0.0
    %3048 = vmatprep.subr.mxu0 0.0
    %3049 = vmatpush1.msra.mxu0 0.0
    %3050 = vmatprep.subr.mxu0 0.0
    %3051 = vmatpush1.msra.mxu0 0.0
    %3052 = vmatprep.subr.mxu0 0.0
    %3053 = vmatpush1.msra.mxu0 0.0
    %3054 = vmatprep.subr.mxu0 0.0
    %3055 = vmatpush1.msra.mxu0 0.0
    %3056 = vmatprep.subr.mxu0 0.0
    %3057 = vmatpush1.msra.mxu0 0.0
    %3058 = vmatprep.subr.mxu0 0.0
    %3059 = vmatpush1.msra.mxu0 0.0
    %3060 = vmatprep.subr.mxu0 0.0
    %3061 = vmatpush1.msra.mxu0 0.0
    %3062 = vmatprep.subr.mxu0 0.0
    %3063 = vmatpush1.msra.mxu0 0.0
    %3064 = vmatprep.subr.mxu0 0.0
    %3065 = vmatpush1.msra.mxu0 0.0
    %3066 = vmatprep.subr.mxu0 0.0
    %3067 = vmatpush1.msra.mxu0 0.0
    %3068 = vmatprep.subr.mxu0 0.0
    %3069 = vmatpush1.msra.mxu0 0.0
    %3070 = vmatprep.subr.mxu0 0.0
    %3071 = vmatpush1.msra.mxu0 0.0
    %3072 = vmatprep.subr.mxu0 0.0
    %3073 = vmatpush1.msra.mxu0 0.0
    %3074 = vmatprep.subr.mxu0 0.0
    %3075 = vmatpush1.msra.mxu0 0.0
    %3076 = vmatprep.mubr.f32.mxu0 0.0
    %v3077 = vand.u32 %v2596, 4294901760
    %3078 = vmatmul.mubr.f32.gmra.mrb[0].mxu0 %v3077
    %v3079 = vpop.f32.mrb[0].mxu0
    %v3080 = vadd.f32 %v3005, %v3079
    %v3081 = vpop.f32.mrb[0].mxu0
    %3082 = vdwg.mxu0
    %3084 = vrot.lane.b32.xlu0 %v2088, 16
    %v3085 = vpop.permute.xlu0 %3084
    %v3087 = vadd.f32 %v3080, %v3085
    %v3088 = vadd.f32 %v3087, %v1568
    %v3089 = vxor.u32 %v3088, 2147483648
    %v3090 = vmul.f32 %v3089, 1.442695
    %v3091 = vpow.pop %v3090
    %v3092 = vadd.f32 %v3091, 1.0
    %v3093 = vrcp.pop %v3092
    %v3094 = vmul.f32 1.0, %v3093
    %v3095 = vsub.f32 1.0, %v3094
    %v3096 = vmul.f32 %v3095, %v1587
    %3098 = vrot.lane.b32.xlu0 %v3080, 16
    %v3099 = vpop.permute.xlu0 %3098
    %v3101 = vmul.f32 %v3094, %v3099
    %v3102 = vadd.f32 %v3096, %v3101
    %v3105 = vunpack.c.l.s4 1966171168
    %v3106 = vunpack.c.0.s8 %v3105
    %v3107 = vlaneseq
    %v3108 = vshrl.u32 %v3107, 7
    %v3109 = vsub.s32 %v3106, %v3108
    %v3110 = vrot.slane %v3102, %v3109
    %v3111 = vcombine.high %v3110, %v3110
    %v3113 = vunpack.c.l.s4 1966171168
    %v3114 = vunpack.c.0.s8 %v3113
    %v3115 = vlaneseq
    %v3116 = vshrl.u32 %v3115, 7
    %v3117 = vsub.s32 %v3114, %v3116
    %v3118 = vrot.slane %v3110, %v3117
    %v3120 = vunpack.c.l.s4 1966171168
    %v3121 = vunpack.c.0.s8 %v3120
    %v3122 = vlaneseq
    %v3123 = vshrl.u32 %v3122, 7
    %v3124 = vsub.s32 %v3121, %v3123
    %v3125 = vrot.slane %v3111, %v3124
    %v3126 = vlaneseq
    %v3127 = vshrl.u32 %v3126, 7
    %v3128 = vsub.s32 0, %v3127
    %v3129 = vrot.slane %v3118, %v3128
    %v3130 = vlaneseq
    %v3131 = vshrl.u32 %v3130, 7
    %v3132 = vsub.s32 0, %v3131
    %v3133 = vrot.slane %v3125, %v3132
    %3134 = vrot.lane.b32.xlu0 %v3129, 112
    %v3135 = vpop.permute.xlu0 %3134
    %3136 = vrot.lane.b32.xlu0 %v3133, 112
    %v3137 = vpop.permute.xlu0 %3136
    %3140 = vst.msk [vmem:[#allocation12 + $0x1] sm:$0x1] %vm1625, %v3135
    %3141 = vst.msk [vmem:[#allocation12 + $0x9] sm:$0x1] %vm1625, %v3137
    %3142 = vrot.lane.b32.xlu0 %v3102, 112
    %v3143 = vpop.permute.xlu0 %3142
    %v3144 = vsel %vm102, %v3143, 0
    %3146 = vmatprep.subr.mxu0 0.0
    %v3147 = vand.u32 %v94, 4294901760
    %3148 = vmatpush1.msra.mxu0 %v3147
    %3149 = vmatprep.subr.mxu0 0.0
    %v3150 = vand.u32 %v95, 4294901760
    %3151 = vmatpush1.msra.mxu0 %v3150
    %3152 = vmatprep.subr.mxu0 0.0
    %3153 = vmatpush1.msra.mxu0 0.0
    %3154 = vmatprep.subr.mxu0 0.0
    %3155 = vmatpush1.msra.mxu0 0.0
    %3156 = vmatprep.subr.mxu0 0.0
    %3157 = vmatpush1.msra.mxu0 0.0
    %3158 = vmatprep.subr.mxu0 0.0
    %3159 = vmatpush1.msra.mxu0 0.0
    %3160 = vmatprep.subr.mxu0 0.0
    %3161 = vmatpush1.msra.mxu0 0.0
    %3162 = vmatprep.subr.mxu0 0.0
    %3163 = vmatpush1.msra.mxu0 0.0
    %3164 = vmatprep.subr.mxu0 0.0
    %3165 = vmatpush1.msra.mxu0 0.0
    %3166 = vmatprep.subr.mxu0 0.0
    %3167 = vmatpush1.msra.mxu0 0.0
    %3168 = vmatprep.subr.mxu0 0.0
    %3169 = vmatpush1.msra.mxu0 0.0
    %3170 = vmatprep.subr.mxu0 0.0
    %3171 = vmatpush1.msra.mxu0 0.0
    %3172 = vmatprep.subr.mxu0 0.0
    %3173 = vmatpush1.msra.mxu0 0.0
    %3174 = vmatprep.subr.mxu0 0.0
    %3175 = vmatpush1.msra.mxu0 0.0
    %3176 = vmatprep.subr.mxu0 0.0
    %3177 = vmatpush1.msra.mxu0 0.0
    %3178 = vmatprep.subr.mxu0 0.0
    %3179 = vmatpush1.msra.mxu0 0.0
    %3180 = vmatprep.subr.mxu0 0.0
    %3181 = vmatpush1.msra.mxu0 0.0
    %3182 = vmatprep.subr.mxu0 0.0
    %3183 = vmatpush1.msra.mxu0 0.0
    %3184 = vmatprep.subr.mxu0 0.0
    %3185 = vmatpush1.msra.mxu0 0.0
    %3186 = vmatprep.subr.mxu0 0.0
    %3187 = vmatpush1.msra.mxu0 0.0
    %3188 = vmatprep.subr.mxu0 0.0
    %3189 = vmatpush1.msra.mxu0 0.0
    %3190 = vmatprep.subr.mxu0 0.0
    %3191 = vmatpush1.msra.mxu0 0.0
    %3192 = vmatprep.subr.mxu0 0.0
    %3193 = vmatpush1.msra.mxu0 0.0
    %3194 = vmatprep.subr.mxu0 0.0
    %3195 = vmatpush1.msra.mxu0 0.0
    %3196 = vmatprep.subr.mxu0 0.0
    %3197 = vmatpush1.msra.mxu0 0.0
    %3198 = vmatprep.subr.mxu0 0.0
    %3199 = vmatpush1.msra.mxu0 0.0
    %3200 = vmatprep.subr.mxu0 0.0
    %3201 = vmatpush1.msra.mxu0 0.0
    %3202 = vmatprep.subr.mxu0 0.0
    %3203 = vmatpush1.msra.mxu0 0.0
    %3204 = vmatprep.subr.mxu0 0.0
    %3205 = vmatpush1.msra.mxu0 0.0
    %3206 = vmatprep.subr.mxu0 0.0
    %3207 = vmatpush1.msra.mxu0 0.0
    %3208 = vmatprep.subr.mxu0 0.0
    %3209 = vmatpush1.msra.mxu0 0.0
    %3210 = vmatprep.subr.mxu0 0.0
    %3211 = vmatpush1.msra.mxu0 0.0
    %3212 = vmatprep.mubr.f32.mxu0 0.0
    %v3213 = vand.u32 %v3144, 4294901760
    %v3214 = vsub.f32 %v3144, %v3213
    %v3215 = vand.u32 %v3214, 4294901760
    %v3216 = vsub.f32 %v3214, %v3215
    %v3217 = vand.u32 %v3216, 4294901760
    %3218 = vmatmul.mubr.f32.gmra.mrb[0].mxu0 %v3217
    %v3219 = vpop.f32.mrb[0].mxu0
    %v3220 = vadd.f32 0.0, %v3219
    %v3221 = vpop.f32.mrb[0].mxu0
    %3222 = vdwg.mxu0
    %3223 = vmatprep.subr.mxu0 0.0
    %v3224 = vand.u32 %v94, 4294901760
    %v3225 = vsub.f32 %v94, %v3224
    %v3226 = vand.u32 %v3225, 4294901760
    %v3227 = vsub.f32 %v3225, %v3226
    %v3228 = vand.u32 %v3227, 4294901760
    %3229 = vmatpush1.msra.mxu0 %v3228
    %3230 = vmatprep.subr.mxu0 0.0
    %v3231 = vand.u32 %v95, 4294901760
    %v3232 = vsub.f32 %v95, %v3231
    %v3233 = vand.u32 %v3232, 4294901760
    %v3234 = vsub.f32 %v3232, %v3233
    %v3235 = vand.u32 %v3234, 4294901760
    %3236 = vmatpush1.msra.mxu0 %v3235
    %3237 = vmatprep.subr.mxu0 0.0
    %3238 = vmatpush1.msra.mxu0 0.0
    %3239 = vmatprep.subr.mxu0 0.0
    %3240 = vmatpush1.msra.mxu0 0.0
    %3241 = vmatprep.subr.mxu0 0.0
    %3242 = vmatpush1.msra.mxu0 0.0
    %3243 = vmatprep.subr.mxu0 0.0
    %3244 = vmatpush1.msra.mxu0 0.0
    %3245 = vmatprep.subr.mxu0 0.0
    %3246 = vmatpush1.msra.mxu0 0.0
    %3247 = vmatprep.subr.mxu0 0.0
    %3248 = vmatpush1.msra.mxu0 0.0
    %3249 = vmatprep.subr.mxu0 0.0
    %3250 = vmatpush1.msra.mxu0 0.0
    %3251 = vmatprep.subr.mxu0 0.0
    %3252 = vmatpush1.msra.mxu0 0.0
    %3253 = vmatprep.subr.mxu0 0.0
    %3254 = vmatpush1.msra.mxu0 0.0
    %3255 = vmatprep.subr.mxu0 0.0
    %3256 = vmatpush1.msra.mxu0 0.0
    %3257 = vmatprep.subr.mxu0 0.0
    %3258 = vmatpush1.msra.mxu0 0.0
    %3259 = vmatprep.subr.mxu0 0.0
    %3260 = vmatpush1.msra.mxu0 0.0
    %3261 = vmatprep.subr.mxu0 0.0
    %3262 = vmatpush1.msra.mxu0 0.0
    %3263 = vmatprep.subr.mxu0 0.0
    %3264 = vmatpush1.msra.mxu0 0.0
    %3265 = vmatprep.subr.mxu0 0.0
    %3266 = vmatpush1.msra.mxu0 0.0
    %3267 = vmatprep.subr.mxu0 0.0
    %3268 = vmatpush1.msra.mxu0 0.0
    %3269 = vmatprep.subr.mxu0 0.0
    %3270 = vmatpush1.msra.mxu0 0.0
    %3271 = vmatprep.subr.mxu0 0.0
    %3272 = vmatpush1.msra.mxu0 0.0
    %3273 = vmatprep.subr.mxu0 0.0
    %3274 = vmatpush1.msra.mxu0 0.0
    %3275 = vmatprep.subr.mxu0 0.0
    %3276 = vmatpush1.msra.mxu0 0.0
    %3277 = vmatprep.subr.mxu0 0.0
    %3278 = vmatpush1.msra.mxu0 0.0
    %3279 = vmatprep.subr.mxu0 0.0
    %3280 = vmatpush1.msra.mxu0 0.0
    %3281 = vmatprep.subr.mxu0 0.0
    %3282 = vmatpush1.msra.mxu0 0.0
    %3283 = vmatprep.subr.mxu0 0.0
    %3284 = vmatpush1.msra.mxu0 0.0
    %3285 = vmatprep.subr.mxu0 0.0
    %3286 = vmatpush1.msra.mxu0 0.0
    %3287 = vmatprep.subr.mxu0 0.0
    %3288 = vmatpush1.msra.mxu0 0.0
    %3289 = vmatprep.subr.mxu0 0.0
    %3290 = vmatpush1.msra.mxu0 0.0
    %3291 = vmatprep.subr.mxu0 0.0
    %3292 = vmatpush1.msra.mxu0 0.0
    %3293 = vmatprep.subr.mxu0 0.0
    %3294 = vmatpush1.msra.mxu0 0.0
    %3295 = vmatprep.subr.mxu0 0.0
    %3296 = vmatpush1.msra.mxu0 0.0
    %3297 = vmatprep.mubr.f32.mxu0 0.0
    %v3298 = vand.u32 %v3144, 4294901760
    %3299 = vmatmul.mubr.f32.gmra.mrb[0].mxu0 %v3298
    %v3300 = vpop.f32.mrb[0].mxu0
    %v3301 = vadd.f32 %v3220, %v3300
    %v3302 = vpop.f32.mrb[0].mxu0
    %3303 = vdwg.mxu0
    %3304 = vmatprep.subr.mxu0 0.0
    %v3305 = vand.u32 %v94, 4294901760
    %v3306 = vsub.f32 %v94, %v3305
    %3307 = vmatpush1.msra.mxu0 %v3306
    %3308 = vmatprep.subr.mxu0 0.0
    %v3309 = vand.u32 %v95, 4294901760
    %v3310 = vsub.f32 %v95, %v3309
    %3311 = vmatpush1.msra.mxu0 %v3310
    %3312 = vmatprep.subr.mxu0 0.0
    %3313 = vmatpush1.msra.mxu0 0.0
    %3314 = vmatprep.subr.mxu0 0.0
    %3315 = vmatpush1.msra.mxu0 0.0
    %3316 = vmatprep.subr.mxu0 0.0
    %3317 = vmatpush1.msra.mxu0 0.0
    %3318 = vmatprep.subr.mxu0 0.0
    %3319 = vmatpush1.msra.mxu0 0.0
    %3320 = vmatprep.subr.mxu0 0.0
    %3321 = vmatpush1.msra.mxu0 0.0
    %3322 = vmatprep.subr.mxu0 0.0
    %3323 = vmatpush1.msra.mxu0 0.0
    %3324 = vmatprep.subr.mxu0 0.0
    %3325 = vmatpush1.msra.mxu0 0.0
    %3326 = vmatprep.subr.mxu0 0.0
    %3327 = vmatpush1.msra.mxu0 0.0
    %3328 = vmatprep.subr.mxu0 0.0
    %3329 = vmatpush1.msra.mxu0 0.0
    %3330 = vmatprep.subr.mxu0 0.0
    %3331 = vmatpush1.msra.mxu0 0.0
    %3332 = vmatprep.subr.mxu0 0.0
    %3333 = vmatpush1.msra.mxu0 0.0
    %3334 = vmatprep.subr.mxu0 0.0
    %3335 = vmatpush1.msra.mxu0 0.0
    %3336 = vmatprep.subr.mxu0 0.0
    %3337 = vmatpush1.msra.mxu0 0.0
    %3338 = vmatprep.subr.mxu0 0.0
    %3339 = vmatpush1.msra.mxu0 0.0
    %3340 = vmatprep.subr.mxu0 0.0
    %3341 = vmatpush1.msra.mxu0 0.0
    %3342 = vmatprep.subr.mxu0 0.0
    %3343 = vmatpush1.msra.mxu0 0.0
    %3344 = vmatprep.subr.mxu0 0.0
    %3345 = vmatpush1.msra.mxu0 0.0
    %3346 = vmatprep.subr.mxu0 0.0
    %3347 = vmatpush1.msra.mxu0 0.0
    %3348 = vmatprep.subr.mxu0 0.0
    %3349 = vmatpush1.msra.mxu0 0.0
    %3350 = vmatprep.subr.mxu0 0.0
    %3351 = vmatpush1.msra.mxu0 0.0
    %3352 = vmatprep.subr.mxu0 0.0
    %3353 = vmatpush1.msra.mxu0 0.0
    %3354 = vmatprep.subr.mxu0 0.0
    %3355 = vmatpush1.msra.mxu0 0.0
    %3356 = vmatprep.subr.mxu0 0.0
    %3357 = vmatpush1.msra.mxu0 0.0
    %3358 = vmatprep.subr.mxu0 0.0
    %3359 = vmatpush1.msra.mxu0 0.0
    %3360 = vmatprep.subr.mxu0 0.0
    %3361 = vmatpush1.msra.mxu0 0.0
    %3362 = vmatprep.subr.mxu0 0.0
    %3363 = vmatpush1.msra.mxu0 0.0
    %3364 = vmatprep.subr.mxu0 0.0
    %3365 = vmatpush1.msra.mxu0 0.0
    %3366 = vmatprep.subr.mxu0 0.0
    %3367 = vmatpush1.msra.mxu0 0.0
    %3368 = vmatprep.subr.mxu0 0.0
    %3369 = vmatpush1.msra.mxu0 0.0
    %3370 = vmatprep.subr.mxu0 0.0
    %3371 = vmatpush1.msra.mxu0 0.0
    %3372 = vmatprep.mubr.f32.mxu0 0.0
    %v3373 = vand.u32 %v3144, 4294901760
    %v3374 = vsub.f32 %v3144, %v3373
    %3375 = vmatmul.mubr.f32.gmra.mrb[0].mxu0 %v3374
    %v3376 = vpop.f32.mrb[0].mxu0
    %v3377 = vadd.f32 %v3301, %v3376
    %v3378 = vpop.f32.mrb[0].mxu0
    %3379 = vdwg.mxu0
    %3380 = vmatprep.subr.mxu0 0.0
    %v3381 = vand.u32 %v94, 4294901760
    %3382 = vmatpush1.msra.mxu0 %v3381
    %3383 = vmatprep.subr.mxu0 0.0
    %v3384 = vand.u32 %v95, 4294901760
    %3385 = vmatpush1.msra.mxu0 %v3384
    %3386 = vmatprep.subr.mxu0 0.0
    %3387 = vmatpush1.msra.mxu0 0.0
    %3388 = vmatprep.subr.mxu0 0.0
    %3389 = vmatpush1.msra.mxu0 0.0
    %3390 = vmatprep.subr.mxu0 0.0
    %3391 = vmatpush1.msra.mxu0 0.0
    %3392 = vmatprep.subr.mxu0 0.0
    %3393 = vmatpush1.msra.mxu0 0.0
    %3394 = vmatprep.subr.mxu0 0.0
    %3395 = vmatpush1.msra.mxu0 0.0
    %3396 = vmatprep.subr.mxu0 0.0
    %3397 = vmatpush1.msra.mxu0 0.0
    %3398 = vmatprep.subr.mxu0 0.0
    %3399 = vmatpush1.msra.mxu0 0.0
    %3400 = vmatprep.subr.mxu0 0.0
    %3401 = vmatpush1.msra.mxu0 0.0
    %3402 = vmatprep.subr.mxu0 0.0
    %3403 = vmatpush1.msra.mxu0 0.0
    %3404 = vmatprep.subr.mxu0 0.0
    %3405 = vmatpush1.msra.mxu0 0.0
    %3406 = vmatprep.subr.mxu0 0.0
    %3407 = vmatpush1.msra.mxu0 0.0
    %3408 = vmatprep.subr.mxu0 0.0
    %3409 = vmatpush1.msra.mxu0 0.0
    %3410 = vmatprep.subr.mxu0 0.0
    %3411 = vmatpush1.msra.mxu0 0.0
    %3412 = vmatprep.subr.mxu0 0.0
    %3413 = vmatpush1.msra.mxu0 0.0
    %3414 = vmatprep.subr.mxu0 0.0
    %3415 = vmatpush1.msra.mxu0 0.0
    %3416 = vmatprep.subr.mxu0 0.0
    %3417 = vmatpush1.msra.mxu0 0.0
    %3418 = vmatprep.subr.mxu0 0.0
    %3419 = vmatpush1.msra.mxu0 0.0
    %3420 = vmatprep.subr.mxu0 0.0
    %3421 = vmatpush1.msra.mxu0 0.0
    %3422 = vmatprep.subr.mxu0 0.0
    %3423 = vmatpush1.msra.mxu0 0.0
    %3424 = vmatprep.subr.mxu0 0.0
    %3425 = vmatpush1.msra.mxu0 0.0
    %3426 = vmatprep.subr.mxu0 0.0
    %3427 = vmatpush1.msra.mxu0 0.0
    %3428 = vmatprep.subr.mxu0 0.0
    %3429 = vmatpush1.msra.mxu0 0.0
    %3430 = vmatprep.subr.mxu0 0.0
    %3431 = vmatpush1.msra.mxu0 0.0
    %3432 = vmatprep.subr.mxu0 0.0
    %3433 = vmatpush1.msra.mxu0 0.0
    %3434 = vmatprep.subr.mxu0 0.0
    %3435 = vmatpush1.msra.mxu0 0.0
    %3436 = vmatprep.subr.mxu0 0.0
    %3437 = vmatpush1.msra.mxu0 0.0
    %3438 = vmatprep.subr.mxu0 0.0
    %3439 = vmatpush1.msra.mxu0 0.0
    %3440 = vmatprep.subr.mxu0 0.0
    %3441 = vmatpush1.msra.mxu0 0.0
    %3442 = vmatprep.subr.mxu0 0.0
    %3443 = vmatpush1.msra.mxu0 0.0
    %3444 = vmatprep.subr.mxu0 0.0
    %3445 = vmatpush1.msra.mxu0 0.0
    %3446 = vmatprep.mubr.f32.mxu0 0.0
    %v3447 = vand.u32 %v3144, 4294901760
    %v3448 = vsub.f32 %v3144, %v3447
    %v3449 = vand.u32 %v3448, 4294901760
    %3450 = vmatmul.mubr.f32.gmra.mrb[0].mxu0 %v3449
    %v3451 = vpop.f32.mrb[0].mxu0
    %v3452 = vadd.f32 %v3377, %v3451
    %v3453 = vpop.f32.mrb[0].mxu0
    %3454 = vdwg.mxu0
    %3455 = vmatprep.subr.mxu0 0.0
    %v3456 = vand.u32 %v94, 4294901760
    %v3457 = vsub.f32 %v94, %v3456
    %v3458 = vand.u32 %v3457, 4294901760
    %3459 = vmatpush1.msra.mxu0 %v3458
    %3460 = vmatprep.subr.mxu0 0.0
    %v3461 = vand.u32 %v95, 4294901760
    %v3462 = vsub.f32 %v95, %v3461
    %v3463 = vand.u32 %v3462, 4294901760
    %3464 = vmatpush1.msra.mxu0 %v3463
    %3465 = vmatprep.subr.mxu0 0.0
    %3466 = vmatpush1.msra.mxu0 0.0
    %3467 = vmatprep.subr.mxu0 0.0
    %3468 = vmatpush1.msra.mxu0 0.0
    %3469 = vmatprep.subr.mxu0 0.0
    %3470 = vmatpush1.msra.mxu0 0.0
    %3471 = vmatprep.subr.mxu0 0.0
    %3472 = vmatpush1.msra.mxu0 0.0
    %3473 = vmatprep.subr.mxu0 0.0
    %3474 = vmatpush1.msra.mxu0 0.0
    %3475 = vmatprep.subr.mxu0 0.0
    %3476 = vmatpush1.msra.mxu0 0.0
    %3477 = vmatprep.subr.mxu0 0.0
    %3478 = vmatpush1.msra.mxu0 0.0
    %3479 = vmatprep.subr.mxu0 0.0
    %3480 = vmatpush1.msra.mxu0 0.0
    %3481 = vmatprep.subr.mxu0 0.0
    %3482 = vmatpush1.msra.mxu0 0.0
    %3483 = vmatprep.subr.mxu0 0.0
    %3484 = vmatpush1.msra.mxu0 0.0
    %3485 = vmatprep.subr.mxu0 0.0
    %3486 = vmatpush1.msra.mxu0 0.0
    %3487 = vmatprep.subr.mxu0 0.0
    %3488 = vmatpush1.msra.mxu0 0.0
    %3489 = vmatprep.subr.mxu0 0.0
    %3490 = vmatpush1.msra.mxu0 0.0
    %3491 = vmatprep.subr.mxu0 0.0
    %3492 = vmatpush1.msra.mxu0 0.0
    %3493 = vmatprep.subr.mxu0 0.0
    %3494 = vmatpush1.msra.mxu0 0.0
    %3495 = vmatprep.subr.mxu0 0.0
    %3496 = vmatpush1.msra.mxu0 0.0
    %3497 = vmatprep.subr.mxu0 0.0
    %3498 = vmatpush1.msra.mxu0 0.0
    %3499 = vmatprep.subr.mxu0 0.0
    %3500 = vmatpush1.msra.mxu0 0.0
    %3501 = vmatprep.subr.mxu0 0.0
    %3502 = vmatpush1.msra.mxu0 0.0
    %3503 = vmatprep.subr.mxu0 0.0
    %3504 = vmatpush1.msra.mxu0 0.0
    %3505 = vmatprep.subr.mxu0 0.0
    %3506 = vmatpush1.msra.mxu0 0.0
    %3507 = vmatprep.subr.mxu0 0.0
    %3508 = vmatpush1.msra.mxu0 0.0
    %3509 = vmatprep.subr.mxu0 0.0
    %3510 = vmatpush1.msra.mxu0 0.0
    %3511 = vmatprep.subr.mxu0 0.0
    %3512 = vmatpush1.msra.mxu0 0.0
    %3513 = vmatprep.subr.mxu0 0.0
    %3514 = vmatpush1.msra.mxu0 0.0
    %3515 = vmatprep.subr.mxu0 0.0
    %3516 = vmatpush1.msra.mxu0 0.0
    %3517 = vmatprep.subr.mxu0 0.0
    %3518 = vmatpush1.msra.mxu0 0.0
    %3519 = vmatprep.subr.mxu0 0.0
    %3520 = vmatpush1.msra.mxu0 0.0
    %3521 = vmatprep.subr.mxu0 0.0
    %3522 = vmatpush1.msra.mxu0 0.0
    %3523 = vmatprep.subr.mxu0 0.0
    %3524 = vmatpush1.msra.mxu0 0.0
    %3525 = vmatprep.mubr.f32.mxu0 0.0
    %v3526 = vand.u32 %v3144, 4294901760
    %3527 = vmatmul.mubr.f32.gmra.mrb[0].mxu0 %v3526
    %v3528 = vpop.f32.mrb[0].mxu0
    %v3529 = vadd.f32 %v3452, %v3528
    %v3530 = vpop.f32.mrb[0].mxu0
    %3531 = vdwg.mxu0
    %3532 = vmatprep.subr.mxu0 0.0
    %v3533 = vand.u32 %v94, 4294901760
    %3534 = vmatpush1.msra.mxu0 %v3533
    %3535 = vmatprep.subr.mxu0 0.0
    %v3536 = vand.u32 %v95, 4294901760
    %3537 = vmatpush1.msra.mxu0 %v3536
    %3538 = vmatprep.subr.mxu0 0.0
    %3539 = vmatpush1.msra.mxu0 0.0
    %3540 = vmatprep.subr.mxu0 0.0
    %3541 = vmatpush1.msra.mxu0 0.0
    %3542 = vmatprep.subr.mxu0 0.0
    %3543 = vmatpush1.msra.mxu0 0.0
    %3544 = vmatprep.subr.mxu0 0.0
    %3545 = vmatpush1.msra.mxu0 0.0
    %3546 = vmatprep.subr.mxu0 0.0
    %3547 = vmatpush1.msra.mxu0 0.0
    %3548 = vmatprep.subr.mxu0 0.0
    %3549 = vmatpush1.msra.mxu0 0.0
    %3550 = vmatprep.subr.mxu0 0.0
    %3551 = vmatpush1.msra.mxu0 0.0
    %3552 = vmatprep.subr.mxu0 0.0
    %3553 = vmatpush1.msra.mxu0 0.0
    %3554 = vmatprep.subr.mxu0 0.0
    %3555 = vmatpush1.msra.mxu0 0.0
    %3556 = vmatprep.subr.mxu0 0.0
    %3557 = vmatpush1.msra.mxu0 0.0
    %3558 = vmatprep.subr.mxu0 0.0
    %3559 = vmatpush1.msra.mxu0 0.0
    %3560 = vmatprep.subr.mxu0 0.0
    %3561 = vmatpush1.msra.mxu0 0.0
    %3562 = vmatprep.subr.mxu0 0.0
    %3563 = vmatpush1.msra.mxu0 0.0
    %3564 = vmatprep.subr.mxu0 0.0
    %3565 = vmatpush1.msra.mxu0 0.0
    %3566 = vmatprep.subr.mxu0 0.0
    %3567 = vmatpush1.msra.mxu0 0.0
    %3568 = vmatprep.subr.mxu0 0.0
    %3569 = vmatpush1.msra.mxu0 0.0
    %3570 = vmatprep.subr.mxu0 0.0
    %3571 = vmatpush1.msra.mxu0 0.0
    %3572 = vmatprep.subr.mxu0 0.0
    %3573 = vmatpush1.msra.mxu0 0.0
    %3574 = vmatprep.subr.mxu0 0.0
    %3575 = vmatpush1.msra.mxu0 0.0
    %3576 = vmatprep.subr.mxu0 0.0
    %3577 = vmatpush1.msra.mxu0 0.0
    %3578 = vmatprep.subr.mxu0 0.0
    %3579 = vmatpush1.msra.mxu0 0.0
    %3580 = vmatprep.subr.mxu0 0.0
    %3581 = vmatpush1.msra.mxu0 0.0
    %3582 = vmatprep.subr.mxu0 0.0
    %3583 = vmatpush1.msra.mxu0 0.0
    %3584 = vmatprep.subr.mxu0 0.0
    %3585 = vmatpush1.msra.mxu0 0.0
    %3586 = vmatprep.subr.mxu0 0.0
    %3587 = vmatpush1.msra.mxu0 0.0
    %3588 = vmatprep.subr.mxu0 0.0
    %3589 = vmatpush1.msra.mxu0 0.0
    %3590 = vmatprep.subr.mxu0 0.0
    %3591 = vmatpush1.msra.mxu0 0.0
    %3592 = vmatprep.subr.mxu0 0.0
    %3593 = vmatpush1.msra.mxu0 0.0
    %3594 = vmatprep.subr.mxu0 0.0
    %3595 = vmatpush1.msra.mxu0 0.0
    %3596 = vmatprep.subr.mxu0 0.0
    %3597 = vmatpush1.msra.mxu0 0.0
    %3598 = vmatprep.mubr.f32.mxu0 0.0
    %v3599 = vand.u32 %v3144, 4294901760
    %3600 = vmatmul.mubr.f32.gmra.mrb[0].mxu0 %v3599
    %v3601 = vpop.f32.mrb[0].mxu0
    %v3602 = vadd.f32 %v3529, %v3601
    %v3603 = vpop.f32.mrb[0].mxu0
    %3604 = vdwg.mxu0
    %v3605 = vld [vmem:[#allocation4 + $0x2] sm:$0x1]
    %v3606 = vld [vmem:[#allocation4 + $0xa] sm:$0x1]
    %3607 = vmatprep.subr.mxu0 0.0
    %v3608 = vand.u32 %v86, 4294901760
    %3609 = vmatpush1.msra.mxu0 %v3608
    %3610 = vmatprep.subr.mxu0 0.0
    %v3611 = vand.u32 %v87, 4294901760
    %3612 = vmatpush1.msra.mxu0 %v3611
    %3613 = vmatprep.subr.mxu0 0.0
    %v3614 = vand.u32 %v88, 4294901760
    %3615 = vmatpush1.msra.mxu0 %v3614
    %3616 = vmatprep.subr.mxu0 0.0
    %v3617 = vand.u32 %v89, 4294901760
    %3618 = vmatpush1.msra.mxu0 %v3617
    %3619 = vmatprep.subr.mxu0 0.0
    %3620 = vmatpush1.msra.mxu0 0.0
    %3621 = vmatprep.subr.mxu0 0.0
    %3622 = vmatpush1.msra.mxu0 0.0
    %3623 = vmatprep.subr.mxu0 0.0
    %3624 = vmatpush1.msra.mxu0 0.0
    %3625 = vmatprep.subr.mxu0 0.0
    %3626 = vmatpush1.msra.mxu0 0.0
    %3627 = vmatprep.subr.mxu0 0.0
    %3628 = vmatpush1.msra.mxu0 0.0
    %3629 = vmatprep.subr.mxu0 0.0
    %3630 = vmatpush1.msra.mxu0 0.0
    %3631 = vmatprep.subr.mxu0 0.0
    %3632 = vmatpush1.msra.mxu0 0.0
    %3633 = vmatprep.subr.mxu0 0.0
    %3634 = vmatpush1.msra.mxu0 0.0
    %3635 = vmatprep.subr.mxu0 0.0
    %3636 = vmatpush1.msra.mxu0 0.0
    %3637 = vmatprep.subr.mxu0 0.0
    %3638 = vmatpush1.msra.mxu0 0.0
    %3639 = vmatprep.subr.mxu0 0.0
    %3640 = vmatpush1.msra.mxu0 0.0
    %3641 = vmatprep.subr.mxu0 0.0
    %3642 = vmatpush1.msra.mxu0 0.0
    %3643 = vmatprep.subr.mxu0 0.0
    %3644 = vmatpush1.msra.mxu0 0.0
    %3645 = vmatprep.subr.mxu0 0.0
    %3646 = vmatpush1.msra.mxu0 0.0
    %3647 = vmatprep.subr.mxu0 0.0
    %3648 = vmatpush1.msra.mxu0 0.0
    %3649 = vmatprep.subr.mxu0 0.0
    %3650 = vmatpush1.msra.mxu0 0.0
    %3651 = vmatprep.subr.mxu0 0.0
    %3652 = vmatpush1.msra.mxu0 0.0
    %3653 = vmatprep.subr.mxu0 0.0
    %3654 = vmatpush1.msra.mxu0 0.0
    %3655 = vmatprep.subr.mxu0 0.0
    %3656 = vmatpush1.msra.mxu0 0.0
    %3657 = vmatprep.subr.mxu0 0.0
    %3658 = vmatpush1.msra.mxu0 0.0
    %3659 = vmatprep.subr.mxu0 0.0
    %3660 = vmatpush1.msra.mxu0 0.0
    %3661 = vmatprep.subr.mxu0 0.0
    %3662 = vmatpush1.msra.mxu0 0.0
    %3663 = vmatprep.subr.mxu0 0.0
    %3664 = vmatpush1.msra.mxu0 0.0
    %3665 = vmatprep.subr.mxu0 0.0
    %3666 = vmatpush1.msra.mxu0 0.0
    %3667 = vmatprep.subr.mxu0 0.0
    %3668 = vmatpush1.msra.mxu0 0.0
    %3669 = vmatprep.subr.mxu0 0.0
    %3670 = vmatpush1.msra.mxu0 0.0
    %3671 = vmatprep.subr.mxu0 0.0
    %3672 = vmatpush1.msra.mxu0 0.0
    %3673 = vmatprep.subr.mxu0 0.0
    %3674 = vmatpush1.msra.mxu0 0.0
    %3675 = vmatprep.mubr.f32.mxu0 0.0
    %v3676 = vand.u32 %v2596, 4294901760
    %v3677 = vsub.f32 %v2596, %v3676
    %v3678 = vand.u32 %v3677, 4294901760
    %v3679 = vsub.f32 %v3677, %v3678
    %v3680 = vand.u32 %v3679, 4294901760
    %3681 = vmatmul.mubr.f32.gmra.mrb[0].mxu0 %v3680
    %v3682 = vpop.f32.mrb[0].mxu0
    %v3683 = vadd.f32 0.0, %v3682
    %v3684 = vpop.f32.mrb[0].mxu0
    %3685 = vdwg.mxu0
    %3686 = vmatprep.subr.mxu0 0.0
    %v3687 = vand.u32 %v86, 4294901760
    %v3688 = vsub.f32 %v86, %v3687
    %v3689 = vand.u32 %v3688, 4294901760
    %v3690 = vsub.f32 %v3688, %v3689
    %v3691 = vand.u32 %v3690, 4294901760
    %3692 = vmatpush1.msra.mxu0 %v3691
    %3693 = vmatprep.subr.mxu0 0.0
    %v3694 = vand.u32 %v87, 4294901760
    %v3695 = vsub.f32 %v87, %v3694
    %v3696 = vand.u32 %v3695, 4294901760
    %v3697 = vsub.f32 %v3695, %v3696
    %v3698 = vand.u32 %v3697, 4294901760
    %3699 = vmatpush1.msra.mxu0 %v3698
    %3700 = vmatprep.subr.mxu0 0.0
    %v3701 = vand.u32 %v88, 4294901760
    %v3702 = vsub.f32 %v88, %v3701
    %v3703 = vand.u32 %v3702, 4294901760
    %v3704 = vsub.f32 %v3702, %v3703
    %v3705 = vand.u32 %v3704, 4294901760
    %3706 = vmatpush1.msra.mxu0 %v3705
    %3707 = vmatprep.subr.mxu0 0.0
    %v3708 = vand.u32 %v89, 4294901760
    %v3709 = vsub.f32 %v89, %v3708
    %v3710 = vand.u32 %v3709, 4294901760
    %v3711 = vsub.f32 %v3709, %v3710
    %v3712 = vand.u32 %v3711, 4294901760
    %3713 = vmatpush1.msra.mxu0 %v3712
    %3714 = vmatprep.subr.mxu0 0.0
    %3715 = vmatpush1.msra.mxu0 0.0
    %3716 = vmatprep.subr.mxu0 0.0
    %3717 = vmatpush1.msra.mxu0 0.0
    %3718 = vmatprep.subr.mxu0 0.0
    %3719 = vmatpush1.msra.mxu0 0.0
    %3720 = vmatprep.subr.mxu0 0.0
    %3721 = vmatpush1.msra.mxu0 0.0
    %3722 = vmatprep.subr.mxu0 0.0
    %3723 = vmatpush1.msra.mxu0 0.0
    %3724 = vmatprep.subr.mxu0 0.0
    %3725 = vmatpush1.msra.mxu0 0.0
    %3726 = vmatprep.subr.mxu0 0.0
    %3727 = vmatpush1.msra.mxu0 0.0
    %3728 = vmatprep.subr.mxu0 0.0
    %3729 = vmatpush1.msra.mxu0 0.0
    %3730 = vmatprep.subr.mxu0 0.0
    %3731 = vmatpush1.msra.mxu0 0.0
    %3732 = vmatprep.subr.mxu0 0.0
    %3733 = vmatpush1.msra.mxu0 0.0
    %3734 = vmatprep.subr.mxu0 0.0
    %3735 = vmatpush1.msra.mxu0 0.0
    %3736 = vmatprep.subr.mxu0 0.0
    %3737 = vmatpush1.msra.mxu0 0.0
    %3738 = vmatprep.subr.mxu0 0.0
    %3739 = vmatpush1.msra.mxu0 0.0
    %3740 = vmatprep.subr.mxu0 0.0
    %3741 = vmatpush1.msra.mxu0 0.0
    %3742 = vmatprep.subr.mxu0 0.0
    %3743 = vmatpush1.msra.mxu0 0.0
    %3744 = vmatprep.subr.mxu0 0.0
    %3745 = vmatpush1.msra.mxu0 0.0
    %3746 = vmatprep.subr.mxu0 0.0
    %3747 = vmatpush1.msra.mxu0 0.0
    %3748 = vmatprep.subr.mxu0 0.0
    %3749 = vmatpush1.msra.mxu0 0.0
    %3750 = vmatprep.subr.mxu0 0.0
    %3751 = vmatpush1.msra.mxu0 0.0
    %3752 = vmatprep.subr.mxu0 0.0
    %3753 = vmatpush1.msra.mxu0 0.0
    %3754 = vmatprep.subr.mxu0 0.0
    %3755 = vmatpush1.msra.mxu0 0.0
    %3756 = vmatprep.subr.mxu0 0.0
    %3757 = vmatpush1.msra.mxu0 0.0
    %3758 = vmatprep.subr.mxu0 0.0
    %3759 = vmatpush1.msra.mxu0 0.0
    %3760 = vmatprep.subr.mxu0 0.0
    %3761 = vmatpush1.msra.mxu0 0.0
    %3762 = vmatprep.subr.mxu0 0.0
    %3763 = vmatpush1.msra.mxu0 0.0
    %3764 = vmatprep.subr.mxu0 0.0
    %3765 = vmatpush1.msra.mxu0 0.0
    %3766 = vmatprep.subr.mxu0 0.0
    %3767 = vmatpush1.msra.mxu0 0.0
    %3768 = vmatprep.subr.mxu0 0.0
    %3769 = vmatpush1.msra.mxu0 0.0
    %3770 = vmatprep.mubr.f32.mxu0 0.0
    %v3771 = vand.u32 %v2596, 4294901760
    %3772 = vmatmul.mubr.f32.gmra.mrb[0].mxu0 %v3771
    %v3773 = vpop.f32.mrb[0].mxu0
    %v3774 = vadd.f32 %v3683, %v3773
    %v3775 = vpop.f32.mrb[0].mxu0
    %3776 = vdwg.mxu0
    %3777 = vmatprep.subr.mxu0 0.0
    %v3778 = vand.u32 %v86, 4294901760
    %v3779 = vsub.f32 %v86, %v3778
    %3780 = vmatpush1.msra.mxu0 %v3779
    %3781 = vmatprep.subr.mxu0 0.0
    %v3782 = vand.u32 %v87, 4294901760
    %v3783 = vsub.f32 %v87, %v3782
    %3784 = vmatpush1.msra.mxu0 %v3783
    %3785 = vmatprep.subr.mxu0 0.0
    %v3786 = vand.u32 %v88, 4294901760
    %v3787 = vsub.f32 %v88, %v3786
    %3788 = vmatpush1.msra.mxu0 %v3787
    %3789 = vmatprep.subr.mxu0 0.0
    %v3790 = vand.u32 %v89, 4294901760
    %v3791 = vsub.f32 %v89, %v3790
    %3792 = vmatpush1.msra.mxu0 %v3791
    %3793 = vmatprep.subr.mxu0 0.0
    %3794 = vmatpush1.msra.mxu0 0.0
    %3795 = vmatprep.subr.mxu0 0.0
    %3796 = vmatpush1.msra.mxu0 0.0
    %3797 = vmatprep.subr.mxu0 0.0
    %3798 = vmatpush1.msra.mxu0 0.0
    %3799 = vmatprep.subr.mxu0 0.0
    %3800 = vmatpush1.msra.mxu0 0.0
    %3801 = vmatprep.subr.mxu0 0.0
    %3802 = vmatpush1.msra.mxu0 0.0
    %3803 = vmatprep.subr.mxu0 0.0
    %3804 = vmatpush1.msra.mxu0 0.0
    %3805 = vmatprep.subr.mxu0 0.0
    %3806 = vmatpush1.msra.mxu0 0.0
    %3807 = vmatprep.subr.mxu0 0.0
    %3808 = vmatpush1.msra.mxu0 0.0
    %3809 = vmatprep.subr.mxu0 0.0
    %3810 = vmatpush1.msra.mxu0 0.0
    %3811 = vmatprep.subr.mxu0 0.0
    %3812 = vmatpush1.msra.mxu0 0.0
    %3813 = vmatprep.subr.mxu0 0.0
    %3814 = vmatpush1.msra.mxu0 0.0
    %3815 = vmatprep.subr.mxu0 0.0
    %3816 = vmatpush1.msra.mxu0 0.0
    %3817 = vmatprep.subr.mxu0 0.0
    %3818 = vmatpush1.msra.mxu0 0.0
    %3819 = vmatprep.subr.mxu0 0.0
    %3820 = vmatpush1.msra.mxu0 0.0
    %3821 = vmatprep.subr.mxu0 0.0
    %3822 = vmatpush1.msra.mxu0 0.0
    %3823 = vmatprep.subr.mxu0 0.0
    %3824 = vmatpush1.msra.mxu0 0.0
    %3825 = vmatprep.subr.mxu0 0.0
    %3826 = vmatpush1.msra.mxu0 0.0
    %3827 = vmatprep.subr.mxu0 0.0
    %3828 = vmatpush1.msra.mxu0 0.0
    %3829 = vmatprep.subr.mxu0 0.0
    %3830 = vmatpush1.msra.mxu0 0.0
    %3831 = vmatprep.subr.mxu0 0.0
    %3832 = vmatpush1.msra.mxu0 0.0
    %3833 = vmatprep.subr.mxu0 0.0
    %3834 = vmatpush1.msra.mxu0 0.0
    %3835 = vmatprep.subr.mxu0 0.0
    %3836 = vmatpush1.msra.mxu0 0.0
    %3837 = vmatprep.subr.mxu0 0.0
    %3838 = vmatpush1.msra.mxu0 0.0
    %3839 = vmatprep.subr.mxu0 0.0
    %3840 = vmatpush1.msra.mxu0 0.0
    %3841 = vmatprep.subr.mxu0 0.0
    %3842 = vmatpush1.msra.mxu0 0.0
    %3843 = vmatprep.subr.mxu0 0.0
    %3844 = vmatpush1.msra.mxu0 0.0
    %3845 = vmatprep.subr.mxu0 0.0
    %3846 = vmatpush1.msra.mxu0 0.0
    %3847 = vmatprep.subr.mxu0 0.0
    %3848 = vmatpush1.msra.mxu0 0.0
    %3849 = vmatprep.mubr.f32.mxu0 0.0
    %v3850 = vand.u32 %v2596, 4294901760
    %v3851 = vsub.f32 %v2596, %v3850
    %3852 = vmatmul.mubr.f32.gmra.mrb[0].mxu0 %v3851
    %v3853 = vpop.f32.mrb[0].mxu0
    %v3854 = vadd.f32 %v3774, %v3853
    %v3855 = vpop.f32.mrb[0].mxu0
    %3856 = vdwg.mxu0
    %3857 = vmatprep.subr.mxu0 0.0
    %v3858 = vand.u32 %v86, 4294901760
    %3859 = vmatpush1.msra.mxu0 %v3858
    %3860 = vmatprep.subr.mxu0 0.0
    %v3861 = vand.u32 %v87, 4294901760
    %3862 = vmatpush1.msra.mxu0 %v3861
    %3863 = vmatprep.subr.mxu0 0.0
    %v3864 = vand.u32 %v88, 4294901760
    %3865 = vmatpush1.msra.mxu0 %v3864
    %3866 = vmatprep.subr.mxu0 0.0
    %v3867 = vand.u32 %v89, 4294901760
    %3868 = vmatpush1.msra.mxu0 %v3867
    %3869 = vmatprep.subr.mxu0 0.0
    %3870 = vmatpush1.msra.mxu0 0.0
    %3871 = vmatprep.subr.mxu0 0.0
    %3872 = vmatpush1.msra.mxu0 0.0
    %3873 = vmatprep.subr.mxu0 0.0
    %3874 = vmatpush1.msra.mxu0 0.0
    %3875 = vmatprep.subr.mxu0 0.0
    %3876 = vmatpush1.msra.mxu0 0.0
    %3877 = vmatprep.subr.mxu0 0.0
    %3878 = vmatpush1.msra.mxu0 0.0
    %3879 = vmatprep.subr.mxu0 0.0
    %3880 = vmatpush1.msra.mxu0 0.0
    %3881 = vmatprep.subr.mxu0 0.0
    %3882 = vmatpush1.msra.mxu0 0.0
    %3883 = vmatprep.subr.mxu0 0.0
    %3884 = vmatpush1.msra.mxu0 0.0
    %3885 = vmatprep.subr.mxu0 0.0
    %3886 = vmatpush1.msra.mxu0 0.0
    %3887 = vmatprep.subr.mxu0 0.0
    %3888 = vmatpush1.msra.mxu0 0.0
    %3889 = vmatprep.subr.mxu0 0.0
    %3890 = vmatpush1.msra.mxu0 0.0
    %3891 = vmatprep.subr.mxu0 0.0
    %3892 = vmatpush1.msra.mxu0 0.0
    %3893 = vmatprep.subr.mxu0 0.0
    %3894 = vmatpush1.msra.mxu0 0.0
    %3895 = vmatprep.subr.mxu0 0.0
    %3896 = vmatpush1.msra.mxu0 0.0
    %3897 = vmatprep.subr.mxu0 0.0
    %3898 = vmatpush1.msra.mxu0 0.0
    %3899 = vmatprep.subr.mxu0 0.0
    %3900 = vmatpush1.msra.mxu0 0.0
    %3901 = vmatprep.subr.mxu0 0.0
    %3902 = vmatpush1.msra.mxu0 0.0
    %3903 = vmatprep.subr.mxu0 0.0
    %3904 = vmatpush1.msra.mxu0 0.0
    %3905 = vmatprep.subr.mxu0 0.0
    %3906 = vmatpush1.msra.mxu0 0.0
    %3907 = vmatprep.subr.mxu0 0.0
    %3908 = vmatpush1.msra.mxu0 0.0
    %3909 = vmatprep.subr.mxu0 0.0
    %3910 = vmatpush1.msra.mxu0 0.0
    %3911 = vmatprep.subr.mxu0 0.0
    %3912 = vmatpush1.msra.mxu0 0.0
    %3913 = vmatprep.subr.mxu0 0.0
    %3914 = vmatpush1.msra.mxu0 0.0
    %3915 = vmatprep.subr.mxu0 0.0
    %3916 = vmatpush1.msra.mxu0 0.0
    %3917 = vmatprep.subr.mxu0 0.0
    %3918 = vmatpush1.msra.mxu0 0.0
    %3919 = vmatprep.subr.mxu0 0.0
    %3920 = vmatpush1.msra.mxu0 0.0
    %3921 = vmatprep.subr.mxu0 0.0
    %3922 = vmatpush1.msra.mxu0 0.0
    %3923 = vmatprep.subr.mxu0 0.0
    %3924 = vmatpush1.msra.mxu0 0.0
    %3925 = vmatprep.mubr.f32.mxu0 0.0
    %v3926 = vand.u32 %v2596, 4294901760
    %v3927 = vsub.f32 %v2596, %v3926
    %v3928 = vand.u32 %v3927, 4294901760
    %3929 = vmatmul.mubr.f32.gmra.mrb[0].mxu0 %v3928
    %v3930 = vpop.f32.mrb[0].mxu0
    %v3931 = vadd.f32 %v3854, %v3930
    %v3932 = vpop.f32.mrb[0].mxu0
    %3933 = vdwg.mxu0
    %3934 = vmatprep.subr.mxu0 0.0
    %v3935 = vand.u32 %v86, 4294901760
    %v3936 = vsub.f32 %v86, %v3935
    %v3937 = vand.u32 %v3936, 4294901760
    %3938 = vmatpush1.msra.mxu0 %v3937
    %3939 = vmatprep.subr.mxu0 0.0
    %v3940 = vand.u32 %v87, 4294901760
    %v3941 = vsub.f32 %v87, %v3940
    %v3942 = vand.u32 %v3941, 4294901760
    %3943 = vmatpush1.msra.mxu0 %v3942
    %3944 = vmatprep.subr.mxu0 0.0
    %v3945 = vand.u32 %v88, 4294901760
    %v3946 = vsub.f32 %v88, %v3945
    %v3947 = vand.u32 %v3946, 4294901760
    %3948 = vmatpush1.msra.mxu0 %v3947
    %3949 = vmatprep.subr.mxu0 0.0
    %v3950 = vand.u32 %v89, 4294901760
    %v3951 = vsub.f32 %v89, %v3950
    %v3952 = vand.u32 %v3951, 4294901760
    %3953 = vmatpush1.msra.mxu0 %v3952
    %3954 = vmatprep.subr.mxu0 0.0
    %3955 = vmatpush1.msra.mxu0 0.0
    %3956 = vmatprep.subr.mxu0 0.0
    %3957 = vmatpush1.msra.mxu0 0.0
    %3958 = vmatprep.subr.mxu0 0.0
    %3959 = vmatpush1.msra.mxu0 0.0
    %3960 = vmatprep.subr.mxu0 0.0
    %3961 = vmatpush1.msra.mxu0 0.0
    %3962 = vmatprep.subr.mxu0 0.0
    %3963 = vmatpush1.msra.mxu0 0.0
    %3964 = vmatprep.subr.mxu0 0.0
    %3965 = vmatpush1.msra.mxu0 0.0
    %3966 = vmatprep.subr.mxu0 0.0
    %3967 = vmatpush1.msra.mxu0 0.0
    %3968 = vmatprep.subr.mxu0 0.0
    %3969 = vmatpush1.msra.mxu0 0.0
    %3970 = vmatprep.subr.mxu0 0.0
    %3971 = vmatpush1.msra.mxu0 0.0
    %3972 = vmatprep.subr.mxu0 0.0
    %3973 = vmatpush1.msra.mxu0 0.0
    %3974 = vmatprep.subr.mxu0 0.0
    %3975 = vmatpush1.msra.mxu0 0.0
    %3976 = vmatprep.subr.mxu0 0.0
    %3977 = vmatpush1.msra.mxu0 0.0
    %3978 = vmatprep.subr.mxu0 0.0
    %3979 = vmatpush1.msra.mxu0 0.0
    %3980 = vmatprep.subr.mxu0 0.0
    %3981 = vmatpush1.msra.mxu0 0.0
    %3982 = vmatprep.subr.mxu0 0.0
    %3983 = vmatpush1.msra.mxu0 0.0
    %3984 = vmatprep.subr.mxu0 0.0
    %3985 = vmatpush1.msra.mxu0 0.0
    %3986 = vmatprep.subr.mxu0 0.0
    %3987 = vmatpush1.msra.mxu0 0.0
    %3988 = vmatprep.subr.mxu0 0.0
    %3989 = vmatpush1.msra.mxu0 0.0
    %3990 = vmatprep.subr.mxu0 0.0
    %3991 = vmatpush1.msra.mxu0 0.0
    %3992 = vmatprep.subr.mxu0 0.0
    %3993 = vmatpush1.msra.mxu0 0.0
    %3994 = vmatprep.subr.mxu0 0.0
    %3995 = vmatpush1.msra.mxu0 0.0
    %3996 = vmatprep.subr.mxu0 0.0
    %3997 = vmatpush1.msra.mxu0 0.0
    %3998 = vmatprep.subr.mxu0 0.0
    %3999 = vmatpush1.msra.mxu0 0.0
    %4000 = vmatprep.subr.mxu0 0.0
    %4001 = vmatpush1.msra.mxu0 0.0
    %4002 = vmatprep.subr.mxu0 0.0
    %4003 = vmatpush1.msra.mxu0 0.0
    %4004 = vmatprep.subr.mxu0 0.0
    %4005 = vmatpush1.msra.mxu0 0.0
    %4006 = vmatprep.subr.mxu0 0.0
    %4007 = vmatpush1.msra.mxu0 0.0
    %4008 = vmatprep.subr.mxu0 0.0
    %4009 = vmatpush1.msra.mxu0 0.0
    %4010 = vmatprep.mubr.f32.mxu0 0.0
    %v4011 = vand.u32 %v2596, 4294901760
    %4012 = vmatmul.mubr.f32.gmra.mrb[0].mxu0 %v4011
    %v4013 = vpop.f32.mrb[0].mxu0
    %v4014 = vadd.f32 %v3931, %v4013
    %v4015 = vpop.f32.mrb[0].mxu0
    %4016 = vdwg.mxu0
    %4017 = vmatprep.subr.mxu0 0.0
    %v4018 = vand.u32 %v86, 4294901760
    %4019 = vmatpush1.msra.mxu0 %v4018
    %4020 = vmatprep.subr.mxu0 0.0
    %v4021 = vand.u32 %v87, 4294901760
    %4022 = vmatpush1.msra.mxu0 %v4021
    %4023 = vmatprep.subr.mxu0 0.0
    %v4024 = vand.u32 %v88, 4294901760
    %4025 = vmatpush1.msra.mxu0 %v4024
    %4026 = vmatprep.subr.mxu0 0.0
    %v4027 = vand.u32 %v89, 4294901760
    %4028 = vmatpush1.msra.mxu0 %v4027
    %4029 = vmatprep.subr.mxu0 0.0
    %4030 = vmatpush1.msra.mxu0 0.0
    %4031 = vmatprep.subr.mxu0 0.0
    %4032 = vmatpush1.msra.mxu0 0.0
    %4033 = vmatprep.subr.mxu0 0.0
    %4034 = vmatpush1.msra.mxu0 0.0
    %4035 = vmatprep.subr.mxu0 0.0
    %4036 = vmatpush1.msra.mxu0 0.0
    %4037 = vmatprep.subr.mxu0 0.0
    %4038 = vmatpush1.msra.mxu0 0.0
    %4039 = vmatprep.subr.mxu0 0.0
    %4040 = vmatpush1.msra.mxu0 0.0
    %4041 = vmatprep.subr.mxu0 0.0
    %4042 = vmatpush1.msra.mxu0 0.0
    %4043 = vmatprep.subr.mxu0 0.0
    %4044 = vmatpush1.msra.mxu0 0.0
    %4045 = vmatprep.subr.mxu0 0.0
    %4046 = vmatpush1.msra.mxu0 0.0
    %4047 = vmatprep.subr.mxu0 0.0
    %4048 = vmatpush1.msra.mxu0 0.0
    %4049 = vmatprep.subr.mxu0 0.0
    %4050 = vmatpush1.msra.mxu0 0.0
    %4051 = vmatprep.subr.mxu0 0.0
    %4052 = vmatpush1.msra.mxu0 0.0
    %4053 = vmatprep.subr.mxu0 0.0
    %4054 = vmatpush1.msra.mxu0 0.0
    %4055 = vmatprep.subr.mxu0 0.0
    %4056 = vmatpush1.msra.mxu0 0.0
    %4057 = vmatprep.subr.mxu0 0.0
    %4058 = vmatpush1.msra.mxu0 0.0
    %4059 = vmatprep.subr.mxu0 0.0
    %4060 = vmatpush1.msra.mxu0 0.0
    %4061 = vmatprep.subr.mxu0 0.0
    %4062 = vmatpush1.msra.mxu0 0.0
    %4063 = vmatprep.subr.mxu0 0.0
    %4064 = vmatpush1.msra.mxu0 0.0
    %4065 = vmatprep.subr.mxu0 0.0
    %4066 = vmatpush1.msra.mxu0 0.0
    %4067 = vmatprep.subr.mxu0 0.0
    %4068 = vmatpush1.msra.mxu0 0.0
    %4069 = vmatprep.subr.mxu0 0.0
    %4070 = vmatpush1.msra.mxu0 0.0
    %4071 = vmatprep.subr.mxu0 0.0
    %4072 = vmatpush1.msra.mxu0 0.0
    %4073 = vmatprep.subr.mxu0 0.0
    %4074 = vmatpush1.msra.mxu0 0.0
    %4075 = vmatprep.subr.mxu0 0.0
    %4076 = vmatpush1.msra.mxu0 0.0
    %4077 = vmatprep.subr.mxu0 0.0
    %4078 = vmatpush1.msra.mxu0 0.0
    %4079 = vmatprep.subr.mxu0 0.0
    %4080 = vmatpush1.msra.mxu0 0.0
    %4081 = vmatprep.subr.mxu0 0.0
    %4082 = vmatpush1.msra.mxu0 0.0
    %4083 = vmatprep.subr.mxu0 0.0
    %4084 = vmatpush1.msra.mxu0 0.0
    %4085 = vmatprep.mubr.f32.mxu0 0.0
    %v4086 = vand.u32 %v2596, 4294901760
    %4087 = vmatmul.mubr.f32.gmra.mrb[0].mxu0 %v4086
    %v4088 = vpop.f32.mrb[0].mxu0
    %v4089 = vadd.f32 %v4014, %v4088
    %v4090 = vpop.f32.mrb[0].mxu0
    %4091 = vdwg.mxu0
    %v4093 = vrot.slane %v4089, 1
    %v4096 = vadd.f32 %v3605, %v4089
    %v4097 = vadd.f32 %v3606, %v4093
    %v4098 = vmul.f32 %v2594, 0.25
    %v4099 = vtanh.pop %v4096
    %v4100 = vtanh.pop %v4097
    %v4101 = vmul.f32 %v4099, 0.75
    %v4102 = vmul.f32 %v4100, 0.75
    %v4105 = vrot.slane %v4102, 7
    %v4106 = vsel %vm1070, %v4105, %v4101
    %v4108 = vadd.f32 %v4098, %v4106
    %v4110 = vsel %vm567, %v4108, 0
    %4112 = vmatprep.subr.mxu0 0.0
    %v4113 = vand.u32 %v90, 4294901760
    %4114 = vmatpush1.msra.mxu0 %v4113
    %4115 = vmatprep.subr.mxu0 0.0
    %v4116 = vand.u32 %v91, 4294901760
    %4117 = vmatpush1.msra.mxu0 %v4116
    %4118 = vmatprep.subr.mxu0 0.0
    %v4119 = vand.u32 %v92, 4294901760
    %4120 = vmatpush1.msra.mxu0 %v4119
    %4121 = vmatprep.subr.mxu0 0.0
    %v4122 = vand.u32 %v93, 4294901760
    %4123 = vmatpush1.msra.mxu0 %v4122
    %4124 = vmatprep.subr.mxu0 0.0
    %4125 = vmatpush1.msra.mxu0 0.0
    %4126 = vmatprep.subr.mxu0 0.0
    %4127 = vmatpush1.msra.mxu0 0.0
    %4128 = vmatprep.subr.mxu0 0.0
    %4129 = vmatpush1.msra.mxu0 0.0
    %4130 = vmatprep.subr.mxu0 0.0
    %4131 = vmatpush1.msra.mxu0 0.0
    %4132 = vmatprep.subr.mxu0 0.0
    %4133 = vmatpush1.msra.mxu0 0.0
    %4134 = vmatprep.subr.mxu0 0.0
    %4135 = vmatpush1.msra.mxu0 0.0
    %4136 = vmatprep.subr.mxu0 0.0
    %4137 = vmatpush1.msra.mxu0 0.0
    %4138 = vmatprep.subr.mxu0 0.0
    %4139 = vmatpush1.msra.mxu0 0.0
    %4140 = vmatprep.subr.mxu0 0.0
    %4141 = vmatpush1.msra.mxu0 0.0
    %4142 = vmatprep.subr.mxu0 0.0
    %4143 = vmatpush1.msra.mxu0 0.0
    %4144 = vmatprep.subr.mxu0 0.0
    %4145 = vmatpush1.msra.mxu0 0.0
    %4146 = vmatprep.subr.mxu0 0.0
    %4147 = vmatpush1.msra.mxu0 0.0
    %4148 = vmatprep.subr.mxu0 0.0
    %4149 = vmatpush1.msra.mxu0 0.0
    %4150 = vmatprep.subr.mxu0 0.0
    %4151 = vmatpush1.msra.mxu0 0.0
    %4152 = vmatprep.subr.mxu0 0.0
    %4153 = vmatpush1.msra.mxu0 0.0
    %4154 = vmatprep.subr.mxu0 0.0
    %4155 = vmatpush1.msra.mxu0 0.0
    %4156 = vmatprep.subr.mxu0 0.0
    %4157 = vmatpush1.msra.mxu0 0.0
    %4158 = vmatprep.subr.mxu0 0.0
    %4159 = vmatpush1.msra.mxu0 0.0
    %4160 = vmatprep.subr.mxu0 0.0
    %4161 = vmatpush1.msra.mxu0 0.0
    %4162 = vmatprep.subr.mxu0 0.0
    %4163 = vmatpush1.msra.mxu0 0.0
    %4164 = vmatprep.subr.mxu0 0.0
    %4165 = vmatpush1.msra.mxu0 0.0
    %4166 = vmatprep.subr.mxu0 0.0
    %4167 = vmatpush1.msra.mxu0 0.0
    %4168 = vmatprep.subr.mxu0 0.0
    %4169 = vmatpush1.msra.mxu0 0.0
    %4170 = vmatprep.subr.mxu0 0.0
    %4171 = vmatpush1.msra.mxu0 0.0
    %4172 = vmatprep.subr.mxu0 0.0
    %4173 = vmatpush1.msra.mxu0 0.0
    %4174 = vmatprep.subr.mxu0 0.0
    %4175 = vmatpush1.msra.mxu0 0.0
    %4176 = vmatprep.subr.mxu0 0.0
    %4177 = vmatpush1.msra.mxu0 0.0
    %4178 = vmatprep.subr.mxu0 0.0
    %4179 = vmatpush1.msra.mxu0 0.0
    %4180 = vmatprep.mubr.f32.mxu0 0.0
    %v4181 = vand.u32 %v4110, 4294901760
    %v4182 = vsub.f32 %v4110, %v4181
    %v4183 = vand.u32 %v4182, 4294901760
    %v4184 = vsub.f32 %v4182, %v4183
    %v4185 = vand.u32 %v4184, 4294901760
    %4186 = vmatmul.mubr.f32.gmra.mrb[0].mxu0 %v4185
    %v4187 = vpop.f32.mrb[0].mxu0
    %v4188 = vadd.f32 0.0, %v4187
    %v4189 = vpop.f32.mrb[0].mxu0
    %4190 = vdwg.mxu0
    %4191 = vmatprep.subr.mxu0 0.0
    %v4192 = vand.u32 %v90, 4294901760
    %v4193 = vsub.f32 %v90, %v4192
    %v4194 = vand.u32 %v4193, 4294901760
    %v4195 = vsub.f32 %v4193, %v4194
    %v4196 = vand.u32 %v4195, 4294901760
    %4197 = vmatpush1.msra.mxu0 %v4196
    %4198 = vmatprep.subr.mxu0 0.0
    %v4199 = vand.u32 %v91, 4294901760
    %v4200 = vsub.f32 %v91, %v4199
    %v4201 = vand.u32 %v4200, 4294901760
    %v4202 = vsub.f32 %v4200, %v4201
    %v4203 = vand.u32 %v4202, 4294901760
    %4204 = vmatpush1.msra.mxu0 %v4203
    %4205 = vmatprep.subr.mxu0 0.0
    %v4206 = vand.u32 %v92, 4294901760
    %v4207 = vsub.f32 %v92, %v4206
    %v4208 = vand.u32 %v4207, 4294901760
    %v4209 = vsub.f32 %v4207, %v4208
    %v4210 = vand.u32 %v4209, 4294901760
    %4211 = vmatpush1.msra.mxu0 %v4210
    %4212 = vmatprep.subr.mxu0 0.0
    %v4213 = vand.u32 %v93, 4294901760
    %v4214 = vsub.f32 %v93, %v4213
    %v4215 = vand.u32 %v4214, 4294901760
    %v4216 = vsub.f32 %v4214, %v4215
    %v4217 = vand.u32 %v4216, 4294901760
    %4218 = vmatpush1.msra.mxu0 %v4217
    %4219 = vmatprep.subr.mxu0 0.0
    %4220 = vmatpush1.msra.mxu0 0.0
    %4221 = vmatprep.subr.mxu0 0.0
    %4222 = vmatpush1.msra.mxu0 0.0
    %4223 = vmatprep.subr.mxu0 0.0
    %4224 = vmatpush1.msra.mxu0 0.0
    %4225 = vmatprep.subr.mxu0 0.0
    %4226 = vmatpush1.msra.mxu0 0.0
    %4227 = vmatprep.subr.mxu0 0.0
    %4228 = vmatpush1.msra.mxu0 0.0
    %4229 = vmatprep.subr.mxu0 0.0
    %4230 = vmatpush1.msra.mxu0 0.0
    %4231 = vmatprep.subr.mxu0 0.0
    %4232 = vmatpush1.msra.mxu0 0.0
    %4233 = vmatprep.subr.mxu0 0.0
    %4234 = vmatpush1.msra.mxu0 0.0
    %4235 = vmatprep.subr.mxu0 0.0
    %4236 = vmatpush1.msra.mxu0 0.0
    %4237 = vmatprep.subr.mxu0 0.0
    %4238 = vmatpush1.msra.mxu0 0.0
    %4239 = vmatprep.subr.mxu0 0.0
    %4240 = vmatpush1.msra.mxu0 0.0
    %4241 = vmatprep.subr.mxu0 0.0
    %4242 = vmatpush1.msra.mxu0 0.0
    %4243 = vmatprep.subr.mxu0 0.0
    %4244 = vmatpush1.msra.mxu0 0.0
    %4245 = vmatprep.subr.mxu0 0.0
    %4246 = vmatpush1.msra.mxu0 0.0
    %4247 = vmatprep.subr.mxu0 0.0
    %4248 = vmatpush1.msra.mxu0 0.0
    %4249 = vmatprep.subr.mxu0 0.0
    %4250 = vmatpush1.msra.mxu0 0.0
    %4251 = vmatprep.subr.mxu0 0.0
    %4252 = vmatpush1.msra.mxu0 0.0
    %4253 = vmatprep.subr.mxu0 0.0
    %4254 = vmatpush1.msra.mxu0 0.0
    %4255 = vmatprep.subr.mxu0 0.0
    %4256 = vmatpush1.msra.mxu0 0.0
    %4257 = vmatprep.subr.mxu0 0.0
    %4258 = vmatpush1.msra.mxu0 0.0
    %4259 = vmatprep.subr.mxu0 0.0
    %4260 = vmatpush1.msra.mxu0 0.0
    %4261 = vmatprep.subr.mxu0 0.0
    %4262 = vmatpush1.msra.mxu0 0.0
    %4263 = vmatprep.subr.mxu0 0.0
    %4264 = vmatpush1.msra.mxu0 0.0
    %4265 = vmatprep.subr.mxu0 0.0
    %4266 = vmatpush1.msra.mxu0 0.0
    %4267 = vmatprep.subr.mxu0 0.0
    %4268 = vmatpush1.msra.mxu0 0.0
    %4269 = vmatprep.subr.mxu0 0.0
    %4270 = vmatpush1.msra.mxu0 0.0
    %4271 = vmatprep.subr.mxu0 0.0
    %4272 = vmatpush1.msra.mxu0 0.0
    %4273 = vmatprep.subr.mxu0 0.0
    %4274 = vmatpush1.msra.mxu0 0.0
    %4275 = vmatprep.mubr.f32.mxu0 0.0
    %v4276 = vand.u32 %v4110, 4294901760
    %4277 = vmatmul.mubr.f32.gmra.mrb[0].mxu0 %v4276
    %v4278 = vpop.f32.mrb[0].mxu0
    %v4279 = vadd.f32 %v4188, %v4278
    %v4280 = vpop.f32.mrb[0].mxu0
    %4281 = vdwg.mxu0
    %4282 = vmatprep.subr.mxu0 0.0
    %v4283 = vand.u32 %v90, 4294901760
    %v4284 = vsub.f32 %v90, %v4283
    %4285 = vmatpush1.msra.mxu0 %v4284
    %4286 = vmatprep.subr.mxu0 0.0
    %v4287 = vand.u32 %v91, 4294901760
    %v4288 = vsub.f32 %v91, %v4287
    %4289 = vmatpush1.msra.mxu0 %v4288
    %4290 = vmatprep.subr.mxu0 0.0
    %v4291 = vand.u32 %v92, 4294901760
    %v4292 = vsub.f32 %v92, %v4291
    %4293 = vmatpush1.msra.mxu0 %v4292
    %4294 = vmatprep.subr.mxu0 0.0
    %v4295 = vand.u32 %v93, 4294901760
    %v4296 = vsub.f32 %v93, %v4295
    %4297 = vmatpush1.msra.mxu0 %v4296
    %4298 = vmatprep.subr.mxu0 0.0
    %4299 = vmatpush1.msra.mxu0 0.0
    %4300 = vmatprep.subr.mxu0 0.0
    %4301 = vmatpush1.msra.mxu0 0.0
    %4302 = vmatprep.subr.mxu0 0.0
    %4303 = vmatpush1.msra.mxu0 0.0
    %4304 = vmatprep.subr.mxu0 0.0
    %4305 = vmatpush1.msra.mxu0 0.0
    %4306 = vmatprep.subr.mxu0 0.0
    %4307 = vmatpush1.msra.mxu0 0.0
    %4308 = vmatprep.subr.mxu0 0.0
    %4309 = vmatpush1.msra.mxu0 0.0
    %4310 = vmatprep.subr.mxu0 0.0
    %4311 = vmatpush1.msra.mxu0 0.0
    %4312 = vmatprep.subr.mxu0 0.0
    %4313 = vmatpush1.msra.mxu0 0.0
    %4314 = vmatprep.subr.mxu0 0.0
    %4315 = vmatpush1.msra.mxu0 0.0
    %4316 = vmatprep.subr.mxu0 0.0
    %4317 = vmatpush1.msra.mxu0 0.0
    %4318 = vmatprep.subr.mxu0 0.0
    %4319 = vmatpush1.msra.mxu0 0.0
    %4320 = vmatprep.subr.mxu0 0.0
    %4321 = vmatpush1.msra.mxu0 0.0
    %4322 = vmatprep.subr.mxu0 0.0
    %4323 = vmatpush1.msra.mxu0 0.0
    %4324 = vmatprep.subr.mxu0 0.0
    %4325 = vmatpush1.msra.mxu0 0.0
    %4326 = vmatprep.subr.mxu0 0.0
    %4327 = vmatpush1.msra.mxu0 0.0
    %4328 = vmatprep.subr.mxu0 0.0
    %4329 = vmatpush1.msra.mxu0 0.0
    %4330 = vmatprep.subr.mxu0 0.0
    %4331 = vmatpush1.msra.mxu0 0.0
    %4332 = vmatprep.subr.mxu0 0.0
    %4333 = vmatpush1.msra.mxu0 0.0
    %4334 = vmatprep.subr.mxu0 0.0
    %4335 = vmatpush1.msra.mxu0 0.0
    %4336 = vmatprep.subr.mxu0 0.0
    %4337 = vmatpush1.msra.mxu0 0.0
    %4338 = vmatprep.subr.mxu0 0.0
    %4339 = vmatpush1.msra.mxu0 0.0
    %4340 = vmatprep.subr.mxu0 0.0
    %4341 = vmatpush1.msra.mxu0 0.0
    %4342 = vmatprep.subr.mxu0 0.0
    %4343 = vmatpush1.msra.mxu0 0.0
    %4344 = vmatprep.subr.mxu0 0.0
    %4345 = vmatpush1.msra.mxu0 0.0
    %4346 = vmatprep.subr.mxu0 0.0
    %4347 = vmatpush1.msra.mxu0 0.0
    %4348 = vmatprep.subr.mxu0 0.0
    %4349 = vmatpush1.msra.mxu0 0.0
    %4350 = vmatprep.subr.mxu0 0.0
    %4351 = vmatpush1.msra.mxu0 0.0
    %4352 = vmatprep.subr.mxu0 0.0
    %4353 = vmatpush1.msra.mxu0 0.0
    %4354 = vmatprep.mubr.f32.mxu0 0.0
    %v4355 = vand.u32 %v4110, 4294901760
    %v4356 = vsub.f32 %v4110, %v4355
    %4357 = vmatmul.mubr.f32.gmra.mrb[0].mxu0 %v4356
    %v4358 = vpop.f32.mrb[0].mxu0
    %v4359 = vadd.f32 %v4279, %v4358
    %v4360 = vpop.f32.mrb[0].mxu0
    %4361 = vdwg.mxu0
    %4362 = vmatprep.subr.mxu0 0.0
    %v4363 = vand.u32 %v90, 4294901760
    %4364 = vmatpush1.msra.mxu0 %v4363
    %4365 = vmatprep.subr.mxu0 0.0
    %v4366 = vand.u32 %v91, 4294901760
    %4367 = vmatpush1.msra.mxu0 %v4366
    %4368 = vmatprep.subr.mxu0 0.0
    %v4369 = vand.u32 %v92, 4294901760
    %4370 = vmatpush1.msra.mxu0 %v4369
    %4371 = vmatprep.subr.mxu0 0.0
    %v4372 = vand.u32 %v93, 4294901760
    %4373 = vmatpush1.msra.mxu0 %v4372
    %4374 = vmatprep.subr.mxu0 0.0
    %4375 = vmatpush1.msra.mxu0 0.0
    %4376 = vmatprep.subr.mxu0 0.0
    %4377 = vmatpush1.msra.mxu0 0.0
    %4378 = vmatprep.subr.mxu0 0.0
    %4379 = vmatpush1.msra.mxu0 0.0
    %4380 = vmatprep.subr.mxu0 0.0
    %4381 = vmatpush1.msra.mxu0 0.0
    %4382 = vmatprep.subr.mxu0 0.0
    %4383 = vmatpush1.msra.mxu0 0.0
    %4384 = vmatprep.subr.mxu0 0.0
    %4385 = vmatpush1.msra.mxu0 0.0
    %4386 = vmatprep.subr.mxu0 0.0
    %4387 = vmatpush1.msra.mxu0 0.0
    %4388 = vmatprep.subr.mxu0 0.0
    %4389 = vmatpush1.msra.mxu0 0.0
    %4390 = vmatprep.subr.mxu0 0.0
    %4391 = vmatpush1.msra.mxu0 0.0
    %4392 = vmatprep.subr.mxu0 0.0
    %4393 = vmatpush1.msra.mxu0 0.0
    %4394 = vmatprep.subr.mxu0 0.0
    %4395 = vmatpush1.msra.mxu0 0.0
    %4396 = vmatprep.subr.mxu0 0.0
    %4397 = vmatpush1.msra.mxu0 0.0
    %4398 = vmatprep.subr.mxu0 0.0
    %4399 = vmatpush1.msra.mxu0 0.0
    %4400 = vmatprep.subr.mxu0 0.0
    %4401 = vmatpush1.msra.mxu0 0.0
    %4402 = vmatprep.subr.mxu0 0.0
    %4403 = vmatpush1.msra.mxu0 0.0
    %4404 = vmatprep.subr.mxu0 0.0
    %4405 = vmatpush1.msra.mxu0 0.0
    %4406 = vmatprep.subr.mxu0 0.0
    %4407 = vmatpush1.msra.mxu0 0.0
    %4408 = vmatprep.subr.mxu0 0.0
    %4409 = vmatpush1.msra.mxu0 0.0
    %4410 = vmatprep.subr.mxu0 0.0
    %4411 = vmatpush1.msra.mxu0 0.0
    %4412 = vmatprep.subr.mxu0 0.0
    %4413 = vmatpush1.msra.mxu0 0.0
    %4414 = vmatprep.subr.mxu0 0.0
    %4415 = vmatpush1.msra.mxu0 0.0
    %4416 = vmatprep.subr.mxu0 0.0
    %4417 = vmatpush1.msra.mxu0 0.0
    %4418 = vmatprep.subr.mxu0 0.0
    %4419 = vmatpush1.msra.mxu0 0.0
    %4420 = vmatprep.subr.mxu0 0.0
    %4421 = vmatpush1.msra.mxu0 0.0
    %4422 = vmatprep.subr.mxu0 0.0
    %4423 = vmatpush1.msra.mxu0 0.0
    %4424 = vmatprep.subr.mxu0 0.0
    %4425 = vmatpush1.msra.mxu0 0.0
    %4426 = vmatprep.subr.mxu0 0.0
    %4427 = vmatpush1.msra.mxu0 0.0
    %4428 = vmatprep.subr.mxu0 0.0
    %4429 = vmatpush1.msra.mxu0 0.0
    %4430 = vmatprep.mubr.f32.mxu0 0.0
    %v4431 = vand.u32 %v4110, 4294901760
    %v4432 = vsub.f32 %v4110, %v4431
    %v4433 = vand.u32 %v4432, 4294901760
    %4434 = vmatmul.mubr.f32.gmra.mrb[0].mxu0 %v4433
    %v4435 = vpop.f32.mrb[0].mxu0
    %v4436 = vadd.f32 %v4359, %v4435
    %v4437 = vpop.f32.mrb[0].mxu0
    %4438 = vdwg.mxu0
    %4439 = vmatprep.subr.mxu0 0.0
    %v4440 = vand.u32 %v90, 4294901760
    %v4441 = vsub.f32 %v90, %v4440
    %v4442 = vand.u32 %v4441, 4294901760
    %4443 = vmatpush1.msra.mxu0 %v4442
    %4444 = vmatprep.subr.mxu0 0.0
    %v4445 = vand.u32 %v91, 4294901760
    %v4446 = vsub.f32 %v91, %v4445
    %v4447 = vand.u32 %v4446, 4294901760
    %4448 = vmatpush1.msra.mxu0 %v4447
    %4449 = vmatprep.subr.mxu0 0.0
    %v4450 = vand.u32 %v92, 4294901760
    %v4451 = vsub.f32 %v92, %v4450
    %v4452 = vand.u32 %v4451, 4294901760
    %4453 = vmatpush1.msra.mxu0 %v4452
    %4454 = vmatprep.subr.mxu0 0.0
    %v4455 = vand.u32 %v93, 4294901760
    %v4456 = vsub.f32 %v93, %v4455
    %v4457 = vand.u32 %v4456, 4294901760
    %4458 = vmatpush1.msra.mxu0 %v4457
    %4459 = vmatprep.subr.mxu0 0.0
    %4460 = vmatpush1.msra.mxu0 0.0
    %4461 = vmatprep.subr.mxu0 0.0
    %4462 = vmatpush1.msra.mxu0 0.0
    %4463 = vmatprep.subr.mxu0 0.0
    %4464 = vmatpush1.msra.mxu0 0.0
    %4465 = vmatprep.subr.mxu0 0.0
    %4466 = vmatpush1.msra.mxu0 0.0
    %4467 = vmatprep.subr.mxu0 0.0
    %4468 = vmatpush1.msra.mxu0 0.0
    %4469 = vmatprep.subr.mxu0 0.0
    %4470 = vmatpush1.msra.mxu0 0.0
    %4471 = vmatprep.subr.mxu0 0.0
    %4472 = vmatpush1.msra.mxu0 0.0
    %4473 = vmatprep.subr.mxu0 0.0
    %4474 = vmatpush1.msra.mxu0 0.0
    %4475 = vmatprep.subr.mxu0 0.0
    %4476 = vmatpush1.msra.mxu0 0.0
    %4477 = vmatprep.subr.mxu0 0.0
    %4478 = vmatpush1.msra.mxu0 0.0
    %4479 = vmatprep.subr.mxu0 0.0
    %4480 = vmatpush1.msra.mxu0 0.0
    %4481 = vmatprep.subr.mxu0 0.0
    %4482 = vmatpush1.msra.mxu0 0.0
    %4483 = vmatprep.subr.mxu0 0.0
    %4484 = vmatpush1.msra.mxu0 0.0
    %4485 = vmatprep.subr.mxu0 0.0
    %4486 = vmatpush1.msra.mxu0 0.0
    %4487 = vmatprep.subr.mxu0 0.0
    %4488 = vmatpush1.msra.mxu0 0.0
    %4489 = vmatprep.subr.mxu0 0.0
    %4490 = vmatpush1.msra.mxu0 0.0
    %4491 = vmatprep.subr.mxu0 0.0
    %4492 = vmatpush1.msra.mxu0 0.0
    %4493 = vmatprep.subr.mxu0 0.0
    %4494 = vmatpush1.msra.mxu0 0.0
    %4495 = vmatprep.subr.mxu0 0.0
    %4496 = vmatpush1.msra.mxu0 0.0
    %4497 = vmatprep.subr.mxu0 0.0
    %4498 = vmatpush1.msra.mxu0 0.0
    %4499 = vmatprep.subr.mxu0 0.0
    %4500 = vmatpush1.msra.mxu0 0.0
    %4501 = vmatprep.subr.mxu0 0.0
    %4502 = vmatpush1.msra.mxu0 0.0
    %4503 = vmatprep.subr.mxu0 0.0
    %4504 = vmatpush1.msra.mxu0 0.0
    %4505 = vmatprep.subr.mxu0 0.0
    %4506 = vmatpush1.msra.mxu0 0.0
    %4507 = vmatprep.subr.mxu0 0.0
    %4508 = vmatpush1.msra.mxu0 0.0
    %4509 = vmatprep.subr.mxu0 0.0
    %4510 = vmatpush1.msra.mxu0 0.0
    %4511 = vmatprep.subr.mxu0 0.0
    %4512 = vmatpush1.msra.mxu0 0.0
    %4513 = vmatprep.subr.mxu0 0.0
    %4514 = vmatpush1.msra.mxu0 0.0
    %4515 = vmatprep.mubr.f32.mxu0 0.0
    %v4516 = vand.u32 %v4110, 4294901760
    %4517 = vmatmul.mubr.f32.gmra.mrb[0].mxu0 %v4516
    %v4518 = vpop.f32.mrb[0].mxu0
    %v4519 = vadd.f32 %v4436, %v4518
    %v4520 = vpop.f32.mrb[0].mxu0
    %4521 = vdwg.mxu0
    %4522 = vmatprep.subr.mxu0 0.0
    %v4523 = vand.u32 %v90, 4294901760
    %4524 = vmatpush1.msra.mxu0 %v4523
    %4525 = vmatprep.subr.mxu0 0.0
    %v4526 = vand.u32 %v91, 4294901760
    %4527 = vmatpush1.msra.mxu0 %v4526
    %4528 = vmatprep.subr.mxu0 0.0
    %v4529 = vand.u32 %v92, 4294901760
    %4530 = vmatpush1.msra.mxu0 %v4529
    %4531 = vmatprep.subr.mxu0 0.0
    %v4532 = vand.u32 %v93, 4294901760
    %4533 = vmatpush1.msra.mxu0 %v4532
    %4534 = vmatprep.subr.mxu0 0.0
    %4535 = vmatpush1.msra.mxu0 0.0
    %4536 = vmatprep.subr.mxu0 0.0
    %4537 = vmatpush1.msra.mxu0 0.0
    %4538 = vmatprep.subr.mxu0 0.0
    %4539 = vmatpush1.msra.mxu0 0.0
    %4540 = vmatprep.subr.mxu0 0.0
    %4541 = vmatpush1.msra.mxu0 0.0
    %4542 = vmatprep.subr.mxu0 0.0
    %4543 = vmatpush1.msra.mxu0 0.0
    %4544 = vmatprep.subr.mxu0 0.0
    %4545 = vmatpush1.msra.mxu0 0.0
    %4546 = vmatprep.subr.mxu0 0.0
    %4547 = vmatpush1.msra.mxu0 0.0
    %4548 = vmatprep.subr.mxu0 0.0
    %4549 = vmatpush1.msra.mxu0 0.0
    %4550 = vmatprep.subr.mxu0 0.0
    %4551 = vmatpush1.msra.mxu0 0.0
    %4552 = vmatprep.subr.mxu0 0.0
    %4553 = vmatpush1.msra.mxu0 0.0
    %4554 = vmatprep.subr.mxu0 0.0
    %4555 = vmatpush1.msra.mxu0 0.0
    %4556 = vmatprep.subr.mxu0 0.0
    %4557 = vmatpush1.msra.mxu0 0.0
    %4558 = vmatprep.subr.mxu0 0.0
    %4559 = vmatpush1.msra.mxu0 0.0
    %4560 = vmatprep.subr.mxu0 0.0
    %4561 = vmatpush1.msra.mxu0 0.0
    %4562 = vmatprep.subr.mxu0 0.0
    %4563 = vmatpush1.msra.mxu0 0.0
    %4564 = vmatprep.subr.mxu0 0.0
    %4565 = vmatpush1.msra.mxu0 0.0
    %4566 = vmatprep.subr.mxu0 0.0
    %4567 = vmatpush1.msra.mxu0 0.0
    %4568 = vmatprep.subr.mxu0 0.0
    %4569 = vmatpush1.msra.mxu0 0.0
    %4570 = vmatprep.subr.mxu0 0.0
    %4571 = vmatpush1.msra.mxu0 0.0
    %4572 = vmatprep.subr.mxu0 0.0
    %4573 = vmatpush1.msra.mxu0 0.0
    %4574 = vmatprep.subr.mxu0 0.0
    %4575 = vmatpush1.msra.mxu0 0.0
    %4576 = vmatprep.subr.mxu0 0.0
    %4577 = vmatpush1.msra.mxu0 0.0
    %4578 = vmatprep.subr.mxu0 0.0
    %4579 = vmatpush1.msra.mxu0 0.0
    %4580 = vmatprep.subr.mxu0 0.0
    %4581 = vmatpush1.msra.mxu0 0.0
    %4582 = vmatprep.subr.mxu0 0.0
    %4583 = vmatpush1.msra.mxu0 0.0
    %4584 = vmatprep.subr.mxu0 0.0
    %4585 = vmatpush1.msra.mxu0 0.0
    %4586 = vmatprep.subr.mxu0 0.0
    %4587 = vmatpush1.msra.mxu0 0.0
    %4588 = vmatprep.subr.mxu0 0.0
    %4589 = vmatpush1.msra.mxu0 0.0
    %4590 = vmatprep.mubr.f32.mxu0 0.0
    %v4591 = vand.u32 %v4110, 4294901760
    %4592 = vmatmul.mubr.f32.gmra.mrb[0].mxu0 %v4591
    %v4593 = vpop.f32.mrb[0].mxu0
    %v4594 = vadd.f32 %v4519, %v4593
    %v4595 = vpop.f32.mrb[0].mxu0
    %4596 = vdwg.mxu0
    %4598 = vrot.lane.b32.xlu0 %v3602, 16
    %v4599 = vpop.permute.xlu0 %4598
    %v4601 = vadd.f32 %v4594, %v4599
    %v4602 = vadd.f32 %v4601, %v1568
    %v4603 = vxor.u32 %v4602, 2147483648
    %v4604 = vmul.f32 %v4603, 1.442695
    %v4605 = vpow.pop %v4604
    %v4606 = vadd.f32 %v4605, 1.0
    %v4607 = vrcp.pop %v4606
    %v4608 = vmul.f32 1.0, %v4607
    %v4609 = vsub.f32 1.0, %v4608
    %v4610 = vmul.f32 %v4609, %v3102
    %4612 = vrot.lane.b32.xlu0 %v4594, 16
    %v4613 = vpop.permute.xlu0 %4612
    %v4615 = vmul.f32 %v4608, %v4613
    %v4616 = vadd.f32 %v4610, %v4615
    %v4619 = vunpack.c.l.s4 1966171168
    %v4620 = vunpack.c.0.s8 %v4619
    %v4621 = vlaneseq
    %v4622 = vshrl.u32 %v4621, 7
    %v4623 = vsub.s32 %v4620, %v4622
    %v4624 = vrot.slane %v4616, %v4623
    %v4625 = vcombine.high %v4624, %v4624
    %v4627 = vunpack.c.l.s4 1966171168
    %v4628 = vunpack.c.0.s8 %v4627
    %v4629 = vlaneseq
    %v4630 = vshrl.u32 %v4629, 7
    %v4631 = vsub.s32 %v4628, %v4630
    %v4632 = vrot.slane %v4624, %v4631
    %v4634 = vunpack.c.l.s4 1966171168
    %v4635 = vunpack.c.0.s8 %v4634
    %v4636 = vlaneseq
    %v4637 = vshrl.u32 %v4636, 7
    %v4638 = vsub.s32 %v4635, %v4637
    %v4639 = vrot.slane %v4625, %v4638
    %v4640 = vlaneseq
    %v4641 = vshrl.u32 %v4640, 7
    %v4642 = vsub.s32 0, %v4641
    %v4643 = vrot.slane %v4632, %v4642
    %v4644 = vlaneseq
    %v4645 = vshrl.u32 %v4644, 7
    %v4646 = vsub.s32 0, %v4645
    %v4647 = vrot.slane %v4639, %v4646
    %4648 = vrot.lane.b32.xlu0 %v4643, 112
    %v4649 = vpop.permute.xlu0 %4648
    %4650 = vrot.lane.b32.xlu0 %v4647, 112
    %v4651 = vpop.permute.xlu0 %4650
    %4654 = vst.msk [vmem:[#allocation12 + $0x2] sm:$0x1] %vm1625, %v4649
    %4655 = vst.msk [vmem:[#allocation12 + $0xa] sm:$0x1] %vm1625, %v4651
    %4656 = vrot.lane.b32.xlu0 %v4616, 112
    %v4657 = vpop.permute.xlu0 %4656
    %v4658 = vsel %vm102, %v4657, 0
    %4660 = vmatprep.subr.mxu0 0.0
    %v4661 = vand.u32 %v94, 4294901760
    %4662 = vmatpush1.msra.mxu0 %v4661
    %4663 = vmatprep.subr.mxu0 0.0
    %v4664 = vand.u32 %v95, 4294901760
    %4665 = vmatpush1.msra.mxu0 %v4664
    %4666 = vmatprep.subr.mxu0 0.0
    %4667 = vmatpush1.msra.mxu0 0.0
    %4668 = vmatprep.subr.mxu0 0.0
    %4669 = vmatpush1.msra.mxu0 0.0
    %4670 = vmatprep.subr.mxu0 0.0
    %4671 = vmatpush1.msra.mxu0 0.0
    %4672 = vmatprep.subr.mxu0 0.0
    %4673 = vmatpush1.msra.mxu0 0.0
    %4674 = vmatprep.subr.mxu0 0.0
    %4675 = vmatpush1.msra.mxu0 0.0
    %4676 = vmatprep.subr.mxu0 0.0
    %4677 = vmatpush1.msra.mxu0 0.0
    %4678 = vmatprep.subr.mxu0 0.0
    %4679 = vmatpush1.msra.mxu0 0.0
    %4680 = vmatprep.subr.mxu0 0.0
    %4681 = vmatpush1.msra.mxu0 0.0
    %4682 = vmatprep.subr.mxu0 0.0
    %4683 = vmatpush1.msra.mxu0 0.0
    %4684 = vmatprep.subr.mxu0 0.0
    %4685 = vmatpush1.msra.mxu0 0.0
    %4686 = vmatprep.subr.mxu0 0.0
    %4687 = vmatpush1.msra.mxu0 0.0
    %4688 = vmatprep.subr.mxu0 0.0
    %4689 = vmatpush1.msra.mxu0 0.0
    %4690 = vmatprep.subr.mxu0 0.0
    %4691 = vmatpush1.msra.mxu0 0.0
    %4692 = vmatprep.subr.mxu0 0.0
    %4693 = vmatpush1.msra.mxu0 0.0
    %4694 = vmatprep.subr.mxu0 0.0
    %4695 = vmatpush1.msra.mxu0 0.0
    %4696 = vmatprep.subr.mxu0 0.0
    %4697 = vmatpush1.msra.mxu0 0.0
    %4698 = vmatprep.subr.mxu0 0.0
    %4699 = vmatpush1.msra.mxu0 0.0
    %4700 = vmatprep.subr.mxu0 0.0
    %4701 = vmatpush1.msra.mxu0 0.0
    %4702 = vmatprep.subr.mxu0 0.0
    %4703 = vmatpush1.msra.mxu0 0.0
    %4704 = vmatprep.subr.mxu0 0.0
    %4705 = vmatpush1.msra.mxu0 0.0
    %4706 = vmatprep.subr.mxu0 0.0
    %4707 = vmatpush1.msra.mxu0 0.0
    %4708 = vmatprep.subr.mxu0 0.0
    %4709 = vmatpush1.msra.mxu0 0.0
    %4710 = vmatprep.subr.mxu0 0.0
    %4711 = vmatpush1.msra.mxu0 0.0
    %4712 = vmatprep.subr.mxu0 0.0
    %4713 = vmatpush1.msra.mxu0 0.0
    %4714 = vmatprep.subr.mxu0 0.0
    %4715 = vmatpush1.msra.mxu0 0.0
    %4716 = vmatprep.subr.mxu0 0.0
    %4717 = vmatpush1.msra.mxu0 0.0
    %4718 = vmatprep.subr.mxu0 0.0
    %4719 = vmatpush1.msra.mxu0 0.0
    %4720 = vmatprep.subr.mxu0 0.0
    %4721 = vmatpush1.msra.mxu0 0.0
    %4722 = vmatprep.subr.mxu0 0.0
    %4723 = vmatpush1.msra.mxu0 0.0
    %4724 = vmatprep.subr.mxu0 0.0
    %4725 = vmatpush1.msra.mxu0 0.0
    %4726 = vmatprep.mubr.f32.mxu0 0.0
    %v4727 = vand.u32 %v4658, 4294901760
    %v4728 = vsub.f32 %v4658, %v4727
    %v4729 = vand.u32 %v4728, 4294901760
    %v4730 = vsub.f32 %v4728, %v4729
    %v4731 = vand.u32 %v4730, 4294901760
    %4732 = vmatmul.mubr.f32.gmra.mrb[0].mxu0 %v4731
    %v4733 = vpop.f32.mrb[0].mxu0
    %v4734 = vadd.f32 0.0, %v4733
    %v4735 = vpop.f32.mrb[0].mxu0
    %4736 = vdwg.mxu0
    %4737 = vmatprep.subr.mxu0 0.0
    %v4738 = vand.u32 %v94, 4294901760
    %v4739 = vsub.f32 %v94, %v4738
    %v4740 = vand.u32 %v4739, 4294901760
    %v4741 = vsub.f32 %v4739, %v4740
    %v4742 = vand.u32 %v4741, 4294901760
    %4743 = vmatpush1.msra.mxu0 %v4742
    %4744 = vmatprep.subr.mxu0 0.0
    %v4745 = vand.u32 %v95, 4294901760
    %v4746 = vsub.f32 %v95, %v4745
    %v4747 = vand.u32 %v4746, 4294901760
    %v4748 = vsub.f32 %v4746, %v4747
    %v4749 = vand.u32 %v4748, 4294901760
    %4750 = vmatpush1.msra.mxu0 %v4749
    %4751 = vmatprep.subr.mxu0 0.0
    %4752 = vmatpush1.msra.mxu0 0.0
    %4753 = vmatprep.subr.mxu0 0.0
    %4754 = vmatpush1.msra.mxu0 0.0
    %4755 = vmatprep.subr.mxu0 0.0
    %4756 = vmatpush1.msra.mxu0 0.0
    %4757 = vmatprep.subr.mxu0 0.0
    %4758 = vmatpush1.msra.mxu0 0.0
    %4759 = vmatprep.subr.mxu0 0.0
    %4760 = vmatpush1.msra.mxu0 0.0
    %4761 = vmatprep.subr.mxu0 0.0
    %4762 = vmatpush1.msra.mxu0 0.0
    %4763 = vmatprep.subr.mxu0 0.0
    %4764 = vmatpush1.msra.mxu0 0.0
    %4765 = vmatprep.subr.mxu0 0.0
    %4766 = vmatpush1.msra.mxu0 0.0
    %4767 = vmatprep.subr.mxu0 0.0
    %4768 = vmatpush1.msra.mxu0 0.0
    %4769 = vmatprep.subr.mxu0 0.0
    %4770 = vmatpush1.msra.mxu0 0.0
    %4771 = vmatprep.subr.mxu0 0.0
    %4772 = vmatpush1.msra.mxu0 0.0
    %4773 = vmatprep.subr.mxu0 0.0
    %4774 = vmatpush1.msra.mxu0 0.0
    %4775 = vmatprep.subr.mxu0 0.0
    %4776 = vmatpush1.msra.mxu0 0.0
    %4777 = vmatprep.subr.mxu0 0.0
    %4778 = vmatpush1.msra.mxu0 0.0
    %4779 = vmatprep.subr.mxu0 0.0
    %4780 = vmatpush1.msra.mxu0 0.0
    %4781 = vmatprep.subr.mxu0 0.0
    %4782 = vmatpush1.msra.mxu0 0.0
    %4783 = vmatprep.subr.mxu0 0.0
    %4784 = vmatpush1.msra.mxu0 0.0
    %4785 = vmatprep.subr.mxu0 0.0
    %4786 = vmatpush1.msra.mxu0 0.0
    %4787 = vmatprep.subr.mxu0 0.0
    %4788 = vmatpush1.msra.mxu0 0.0
    %4789 = vmatprep.subr.mxu0 0.0
    %4790 = vmatpush1.msra.mxu0 0.0
    %4791 = vmatprep.subr.mxu0 0.0
    %4792 = vmatpush1.msra.mxu0 0.0
    %4793 = vmatprep.subr.mxu0 0.0
    %4794 = vmatpush1.msra.mxu0 0.0
    %4795 = vmatprep.subr.mxu0 0.0
    %4796 = vmatpush1.msra.mxu0 0.0
    %4797 = vmatprep.subr.mxu0 0.0
    %4798 = vmatpush1.msra.mxu0 0.0
    %4799 = vmatprep.subr.mxu0 0.0
    %4800 = vmatpush1.msra.mxu0 0.0
    %4801 = vmatprep.subr.mxu0 0.0
    %4802 = vmatpush1.msra.mxu0 0.0
    %4803 = vmatprep.subr.mxu0 0.0
    %4804 = vmatpush1.msra.mxu0 0.0
    %4805 = vmatprep.subr.mxu0 0.0
    %4806 = vmatpush1.msra.mxu0 0.0
    %4807 = vmatprep.subr.mxu0 0.0
    %4808 = vmatpush1.msra.mxu0 0.0
    %4809 = vmatprep.subr.mxu0 0.0
    %4810 = vmatpush1.msra.mxu0 0.0
    %4811 = vmatprep.mubr.f32.mxu0 0.0
    %v4812 = vand.u32 %v4658, 4294901760
    %4813 = vmatmul.mubr.f32.gmra.mrb[0].mxu0 %v4812
    %v4814 = vpop.f32.mrb[0].mxu0
    %v4815 = vadd.f32 %v4734, %v4814
    %v4816 = vpop.f32.mrb[0].mxu0
    %4817 = vdwg.mxu0
    %4818 = vmatprep.subr.mxu0 0.0
    %v4819 = vand.u32 %v94, 4294901760
    %v4820 = vsub.f32 %v94, %v4819
    %4821 = vmatpush1.msra.mxu0 %v4820
    %4822 = vmatprep.subr.mxu0 0.0
    %v4823 = vand.u32 %v95, 4294901760
    %v4824 = vsub.f32 %v95, %v4823
    %4825 = vmatpush1.msra.mxu0 %v4824
    %4826 = vmatprep.subr.mxu0 0.0
    %4827 = vmatpush1.msra.mxu0 0.0
    %4828 = vmatprep.subr.mxu0 0.0
    %4829 = vmatpush1.msra.mxu0 0.0
    %4830 = vmatprep.subr.mxu0 0.0
    %4831 = vmatpush1.msra.mxu0 0.0
    %4832 = vmatprep.subr.mxu0 0.0
    %4833 = vmatpush1.msra.mxu0 0.0
    %4834 = vmatprep.subr.mxu0 0.0
    %4835 = vmatpush1.msra.mxu0 0.0
    %4836 = vmatprep.subr.mxu0 0.0
    %4837 = vmatpush1.msra.mxu0 0.0
    %4838 = vmatprep.subr.mxu0 0.0
    %4839 = vmatpush1.msra.mxu0 0.0
    %4840 = vmatprep.subr.mxu0 0.0
    %4841 = vmatpush1.msra.mxu0 0.0
    %4842 = vmatprep.subr.mxu0 0.0
    %4843 = vmatpush1.msra.mxu0 0.0
    %4844 = vmatprep.subr.mxu0 0.0
    %4845 = vmatpush1.msra.mxu0 0.0
    %4846 = vmatprep.subr.mxu0 0.0
    %4847 = vmatpush1.msra.mxu0 0.0
    %4848 = vmatprep.subr.mxu0 0.0
    %4849 = vmatpush1.msra.mxu0 0.0
    %4850 = vmatprep.subr.mxu0 0.0
    %4851 = vmatpush1.msra.mxu0 0.0
    %4852 = vmatprep.subr.mxu0 0.0
    %4853 = vmatpush1.msra.mxu0 0.0
    %4854 = vmatprep.subr.mxu0 0.0
    %4855 = vmatpush1.msra.mxu0 0.0
    %4856 = vmatprep.subr.mxu0 0.0
    %4857 = vmatpush1.msra.mxu0 0.0
    %4858 = vmatprep.subr.mxu0 0.0
    %4859 = vmatpush1.msra.mxu0 0.0
    %4860 = vmatprep.subr.mxu0 0.0
    %4861 = vmatpush1.msra.mxu0 0.0
    %4862 = vmatprep.subr.mxu0 0.0
    %4863 = vmatpush1.msra.mxu0 0.0
    %4864 = vmatprep.subr.mxu0 0.0
    %4865 = vmatpush1.msra.mxu0 0.0
    %4866 = vmatprep.subr.mxu0 0.0
    %4867 = vmatpush1.msra.mxu0 0.0
    %4868 = vmatprep.subr.mxu0 0.0
    %4869 = vmatpush1.msra.mxu0 0.0
    %4870 = vmatprep.subr.mxu0 0.0
    %4871 = vmatpush1.msra.mxu0 0.0
    %4872 = vmatprep.subr.mxu0 0.0
    %4873 = vmatpush1.msra.mxu0 0.0
    %4874 = vmatprep.subr.mxu0 0.0
    %4875 = vmatpush1.msra.mxu0 0.0
    %4876 = vmatprep.subr.mxu0 0.0
    %4877 = vmatpush1.msra.mxu0 0.0
    %4878 = vmatprep.subr.mxu0 0.0
    %4879 = vmatpush1.msra.mxu0 0.0
    %4880 = vmatprep.subr.mxu0 0.0
    %4881 = vmatpush1.msra.mxu0 0.0
    %4882 = vmatprep.subr.mxu0 0.0
    %4883 = vmatpush1.msra.mxu0 0.0
    %4884 = vmatprep.subr.mxu0 0.0
    %4885 = vmatpush1.msra.mxu0 0.0
    %4886 = vmatprep.mubr.f32.mxu0 0.0
    %v4887 = vand.u32 %v4658, 4294901760
    %v4888 = vsub.f32 %v4658, %v4887
    %4889 = vmatmul.mubr.f32.gmra.mrb[0].mxu0 %v4888
    %v4890 = vpop.f32.mrb[0].mxu0
    %v4891 = vadd.f32 %v4815, %v4890
    %v4892 = vpop.f32.mrb[0].mxu0
    %4893 = vdwg.mxu0
    %4894 = vmatprep.subr.mxu0 0.0
    %v4895 = vand.u32 %v94, 4294901760
    %4896 = vmatpush1.msra.mxu0 %v4895
    %4897 = vmatprep.subr.mxu0 0.0
    %v4898 = vand.u32 %v95, 4294901760
    %4899 = vmatpush1.msra.mxu0 %v4898
    %4900 = vmatprep.subr.mxu0 0.0
    %4901 = vmatpush1.msra.mxu0 0.0
    %4902 = vmatprep.subr.mxu0 0.0
    %4903 = vmatpush1.msra.mxu0 0.0
    %4904 = vmatprep.subr.mxu0 0.0
    %4905 = vmatpush1.msra.mxu0 0.0
    %4906 = vmatprep.subr.mxu0 0.0
    %4907 = vmatpush1.msra.mxu0 0.0
    %4908 = vmatprep.subr.mxu0 0.0
    %4909 = vmatpush1.msra.mxu0 0.0
    %4910 = vmatprep.subr.mxu0 0.0
    %4911 = vmatpush1.msra.mxu0 0.0
    %4912 = vmatprep.subr.mxu0 0.0
    %4913 = vmatpush1.msra.mxu0 0.0
    %4914 = vmatprep.subr.mxu0 0.0
    %4915 = vmatpush1.msra.mxu0 0.0
    %4916 = vmatprep.subr.mxu0 0.0
    %4917 = vmatpush1.msra.mxu0 0.0
    %4918 = vmatprep.subr.mxu0 0.0
    %4919 = vmatpush1.msra.mxu0 0.0
    %4920 = vmatprep.subr.mxu0 0.0
    %4921 = vmatpush1.msra.mxu0 0.0
    %4922 = vmatprep.subr.mxu0 0.0
    %4923 = vmatpush1.msra.mxu0 0.0
    %4924 = vmatprep.subr.mxu0 0.0
    %4925 = vmatpush1.msra.mxu0 0.0
    %4926 = vmatprep.subr.mxu0 0.0
    %4927 = vmatpush1.msra.mxu0 0.0
    %4928 = vmatprep.subr.mxu0 0.0
    %4929 = vmatpush1.msra.mxu0 0.0
    %4930 = vmatprep.subr.mxu0 0.0
    %4931 = vmatpush1.msra.mxu0 0.0
    %4932 = vmatprep.subr.mxu0 0.0
    %4933 = vmatpush1.msra.mxu0 0.0
    %4934 = vmatprep.subr.mxu0 0.0
    %4935 = vmatpush1.msra.mxu0 0.0
    %4936 = vmatprep.subr.mxu0 0.0
    %4937 = vmatpush1.msra.mxu0 0.0
    %4938 = vmatprep.subr.mxu0 0.0
    %4939 = vmatpush1.msra.mxu0 0.0
    %4940 = vmatprep.subr.mxu0 0.0
    %4941 = vmatpush1.msra.mxu0 0.0
    %4942 = vmatprep.subr.mxu0 0.0
    %4943 = vmatpush1.msra.mxu0 0.0
    %4944 = vmatprep.subr.mxu0 0.0
    %4945 = vmatpush1.msra.mxu0 0.0
    %4946 = vmatprep.subr.mxu0 0.0
    %4947 = vmatpush1.msra.mxu0 0.0
    %4948 = vmatprep.subr.mxu0 0.0
    %4949 = vmatpush1.msra.mxu0 0.0
    %4950 = vmatprep.subr.mxu0 0.0
    %4951 = vmatpush1.msra.mxu0 0.0
    %4952 = vmatprep.subr.mxu0 0.0
    %4953 = vmatpush1.msra.mxu0 0.0
    %4954 = vmatprep.subr.mxu0 0.0
    %4955 = vmatpush1.msra.mxu0 0.0
    %4956 = vmatprep.subr.mxu0 0.0
    %4957 = vmatpush1.msra.mxu0 0.0
    %4958 = vmatprep.subr.mxu0 0.0
    %4959 = vmatpush1.msra.mxu0 0.0
    %4960 = vmatprep.mubr.f32.mxu0 0.0
    %v4961 = vand.u32 %v4658, 4294901760
    %v4962 = vsub.f32 %v4658, %v4961
    %v4963 = vand.u32 %v4962, 4294901760
    %4964 = vmatmul.mubr.f32.gmra.mrb[0].mxu0 %v4963
    %v4965 = vpop.f32.mrb[0].mxu0
    %v4966 = vadd.f32 %v4891, %v4965
    %v4967 = vpop.f32.mrb[0].mxu0
    %4968 = vdwg.mxu0
    %4969 = vmatprep.subr.mxu0 0.0
    %v4970 = vand.u32 %v94, 4294901760
    %v4971 = vsub.f32 %v94, %v4970
    %v4972 = vand.u32 %v4971, 4294901760
    %4973 = vmatpush1.msra.mxu0 %v4972
    %4974 = vmatprep.subr.mxu0 0.0
    %v4975 = vand.u32 %v95, 4294901760
    %v4976 = vsub.f32 %v95, %v4975
    %v4977 = vand.u32 %v4976, 4294901760
    %4978 = vmatpush1.msra.mxu0 %v4977
    %4979 = vmatprep.subr.mxu0 0.0
    %4980 = vmatpush1.msra.mxu0 0.0
    %4981 = vmatprep.subr.mxu0 0.0
    %4982 = vmatpush1.msra.mxu0 0.0
    %4983 = vmatprep.subr.mxu0 0.0
    %4984 = vmatpush1.msra.mxu0 0.0
    %4985 = vmatprep.subr.mxu0 0.0
    %4986 = vmatpush1.msra.mxu0 0.0
    %4987 = vmatprep.subr.mxu0 0.0
    %4988 = vmatpush1.msra.mxu0 0.0
    %4989 = vmatprep.subr.mxu0 0.0
    %4990 = vmatpush1.msra.mxu0 0.0
    %4991 = vmatprep.subr.mxu0 0.0
    %4992 = vmatpush1.msra.mxu0 0.0
    %4993 = vmatprep.subr.mxu0 0.0
    %4994 = vmatpush1.msra.mxu0 0.0
    %4995 = vmatprep.subr.mxu0 0.0
    %4996 = vmatpush1.msra.mxu0 0.0
    %4997 = vmatprep.subr.mxu0 0.0
    %4998 = vmatpush1.msra.mxu0 0.0
    %4999 = vmatprep.subr.mxu0 0.0
    %5000 = vmatpush1.msra.mxu0 0.0
    %5001 = vmatprep.subr.mxu0 0.0
    %5002 = vmatpush1.msra.mxu0 0.0
    %5003 = vmatprep.subr.mxu0 0.0
    %5004 = vmatpush1.msra.mxu0 0.0
    %5005 = vmatprep.subr.mxu0 0.0
    %5006 = vmatpush1.msra.mxu0 0.0
    %5007 = vmatprep.subr.mxu0 0.0
    %5008 = vmatpush1.msra.mxu0 0.0
    %5009 = vmatprep.subr.mxu0 0.0
    %5010 = vmatpush1.msra.mxu0 0.0
    %5011 = vmatprep.subr.mxu0 0.0
    %5012 = vmatpush1.msra.mxu0 0.0
    %5013 = vmatprep.subr.mxu0 0.0
    %5014 = vmatpush1.msra.mxu0 0.0
    %5015 = vmatprep.subr.mxu0 0.0
    %5016 = vmatpush1.msra.mxu0 0.0
    %5017 = vmatprep.subr.mxu0 0.0
    %5018 = vmatpush1.msra.mxu0 0.0
    %5019 = vmatprep.subr.mxu0 0.0
    %5020 = vmatpush1.msra.mxu0 0.0
    %5021 = vmatprep.subr.mxu0 0.0
    %5022 = vmatpush1.msra.mxu0 0.0
    %5023 = vmatprep.subr.mxu0 0.0
    %5024 = vmatpush1.msra.mxu0 0.0
    %5025 = vmatprep.subr.mxu0 0.0
    %5026 = vmatpush1.msra.mxu0 0.0
    %5027 = vmatprep.subr.mxu0 0.0
    %5028 = vmatpush1.msra.mxu0 0.0
    %5029 = vmatprep.subr.mxu0 0.0
    %5030 = vmatpush1.msra.mxu0 0.0
    %5031 = vmatprep.subr.mxu0 0.0
    %5032 = vmatpush1.msra.mxu0 0.0
    %5033 = vmatprep.subr.mxu0 0.0
    %5034 = vmatpush1.msra.mxu0 0.0
    %5035 = vmatprep.subr.mxu0 0.0
    %5036 = vmatpush1.msra.mxu0 0.0
    %5037 = vmatprep.subr.mxu0 0.0
    %5038 = vmatpush1.msra.mxu0 0.0
    %5039 = vmatprep.mubr.f32.mxu0 0.0
    %v5040 = vand.u32 %v4658, 4294901760
    %5041 = vmatmul.mubr.f32.gmra.mrb[0].mxu0 %v5040
    %v5042 = vpop.f32.mrb[0].mxu0
    %v5043 = vadd.f32 %v4966, %v5042
    %v5044 = vpop.f32.mrb[0].mxu0
    %5045 = vdwg.mxu0
    %5046 = vmatprep.subr.mxu0 0.0
    %v5047 = vand.u32 %v94, 4294901760
    %5048 = vmatpush1.msra.mxu0 %v5047
    %5049 = vmatprep.subr.mxu0 0.0
    %v5050 = vand.u32 %v95, 4294901760
    %5051 = vmatpush1.msra.mxu0 %v5050
    %5052 = vmatprep.subr.mxu0 0.0
    %5053 = vmatpush1.msra.mxu0 0.0
    %5054 = vmatprep.subr.mxu0 0.0
    %5055 = vmatpush1.msra.mxu0 0.0
    %5056 = vmatprep.subr.mxu0 0.0
    %5057 = vmatpush1.msra.mxu0 0.0
    %5058 = vmatprep.subr.mxu0 0.0
    %5059 = vmatpush1.msra.mxu0 0.0
    %5060 = vmatprep.subr.mxu0 0.0
    %5061 = vmatpush1.msra.mxu0 0.0
    %5062 = vmatprep.subr.mxu0 0.0
    %5063 = vmatpush1.msra.mxu0 0.0
    %5064 = vmatprep.subr.mxu0 0.0
    %5065 = vmatpush1.msra.mxu0 0.0
    %5066 = vmatprep.subr.mxu0 0.0
    %5067 = vmatpush1.msra.mxu0 0.0
    %5068 = vmatprep.subr.mxu0 0.0
    %5069 = vmatpush1.msra.mxu0 0.0
    %5070 = vmatprep.subr.mxu0 0.0
    %5071 = vmatpush1.msra.mxu0 0.0
    %5072 = vmatprep.subr.mxu0 0.0
    %5073 = vmatpush1.msra.mxu0 0.0
    %5074 = vmatprep.subr.mxu0 0.0
    %5075 = vmatpush1.msra.mxu0 0.0
    %5076 = vmatprep.subr.mxu0 0.0
    %5077 = vmatpush1.msra.mxu0 0.0
    %5078 = vmatprep.subr.mxu0 0.0
    %5079 = vmatpush1.msra.mxu0 0.0
    %5080 = vmatprep.subr.mxu0 0.0
    %5081 = vmatpush1.msra.mxu0 0.0
    %5082 = vmatprep.subr.mxu0 0.0
    %5083 = vmatpush1.msra.mxu0 0.0
    %5084 = vmatprep.subr.mxu0 0.0
    %5085 = vmatpush1.msra.mxu0 0.0
    %5086 = vmatprep.subr.mxu0 0.0
    %5087 = vmatpush1.msra.mxu0 0.0
    %5088 = vmatprep.subr.mxu0 0.0
    %5089 = vmatpush1.msra.mxu0 0.0
    %5090 = vmatprep.subr.mxu0 0.0
    %5091 = vmatpush1.msra.mxu0 0.0
    %5092 = vmatprep.subr.mxu0 0.0
    %5093 = vmatpush1.msra.mxu0 0.0
    %5094 = vmatprep.subr.mxu0 0.0
    %5095 = vmatpush1.msra.mxu0 0.0
    %5096 = vmatprep.subr.mxu0 0.0
    %5097 = vmatpush1.msra.mxu0 0.0
    %5098 = vmatprep.subr.mxu0 0.0
    %5099 = vmatpush1.msra.mxu0 0.0
    %5100 = vmatprep.subr.mxu0 0.0
    %5101 = vmatpush1.msra.mxu0 0.0
    %5102 = vmatprep.subr.mxu0 0.0
    %5103 = vmatpush1.msra.mxu0 0.0
    %5104 = vmatprep.subr.mxu0 0.0
    %5105 = vmatpush1.msra.mxu0 0.0
    %5106 = vmatprep.subr.mxu0 0.0
    %5107 = vmatpush1.msra.mxu0 0.0
    %5108 = vmatprep.subr.mxu0 0.0
    %5109 = vmatpush1.msra.mxu0 0.0
    %5110 = vmatprep.subr.mxu0 0.0
    %5111 = vmatpush1.msra.mxu0 0.0
    %5112 = vmatprep.mubr.f32.mxu0 0.0
    %v5113 = vand.u32 %v4658, 4294901760
    %5114 = vmatmul.mubr.f32.gmra.mrb[0].mxu0 %v5113
    %v5115 = vpop.f32.mrb[0].mxu0
    %v5116 = vadd.f32 %v5043, %v5115
    %v5117 = vpop.f32.mrb[0].mxu0
    %5118 = vdwg.mxu0
    %v5119 = vld [vmem:[#allocation4 + $0x3] sm:$0x1]
    %v5120 = vld [vmem:[#allocation4 + $0xb] sm:$0x1]
    %5121 = vmatprep.subr.mxu0 0.0
    %v5122 = vand.u32 %v86, 4294901760
    %5123 = vmatpush1.msra.mxu0 %v5122
    %5124 = vmatprep.subr.mxu0 0.0
    %v5125 = vand.u32 %v87, 4294901760
    %5126 = vmatpush1.msra.mxu0 %v5125
    %5127 = vmatprep.subr.mxu0 0.0
    %v5128 = vand.u32 %v88, 4294901760
    %5129 = vmatpush1.msra.mxu0 %v5128
    %5130 = vmatprep.subr.mxu0 0.0
    %v5131 = vand.u32 %v89, 4294901760
    %5132 = vmatpush1.msra.mxu0 %v5131
    %5133 = vmatprep.subr.mxu0 0.0
    %5134 = vmatpush1.msra.mxu0 0.0
    %5135 = vmatprep.subr.mxu0 0.0
    %5136 = vmatpush1.msra.mxu0 0.0
    %5137 = vmatprep.subr.mxu0 0.0
    %5138 = vmatpush1.msra.mxu0 0.0
    %5139 = vmatprep.subr.mxu0 0.0
    %5140 = vmatpush1.msra.mxu0 0.0
    %5141 = vmatprep.subr.mxu0 0.0
    %5142 = vmatpush1.msra.mxu0 0.0
    %5143 = vmatprep.subr.mxu0 0.0
    %5144 = vmatpush1.msra.mxu0 0.0
    %5145 = vmatprep.subr.mxu0 0.0
    %5146 = vmatpush1.msra.mxu0 0.0
    %5147 = vmatprep.subr.mxu0 0.0
    %5148 = vmatpush1.msra.mxu0 0.0
    %5149 = vmatprep.subr.mxu0 0.0
    %5150 = vmatpush1.msra.mxu0 0.0
    %5151 = vmatprep.subr.mxu0 0.0
    %5152 = vmatpush1.msra.mxu0 0.0
    %5153 = vmatprep.subr.mxu0 0.0
    %5154 = vmatpush1.msra.mxu0 0.0
    %5155 = vmatprep.subr.mxu0 0.0
    %5156 = vmatpush1.msra.mxu0 0.0
    %5157 = vmatprep.subr.mxu0 0.0
    %5158 = vmatpush1.msra.mxu0 0.0
    %5159 = vmatprep.subr.mxu0 0.0
    %5160 = vmatpush1.msra.mxu0 0.0
    %5161 = vmatprep.subr.mxu0 0.0
    %5162 = vmatpush1.msra.mxu0 0.0
    %5163 = vmatprep.subr.mxu0 0.0
    %5164 = vmatpush1.msra.mxu0 0.0
    %5165 = vmatprep.subr.mxu0 0.0
    %5166 = vmatpush1.msra.mxu0 0.0
    %5167 = vmatprep.subr.mxu0 0.0
    %5168 = vmatpush1.msra.mxu0 0.0
    %5169 = vmatprep.subr.mxu0 0.0
    %5170 = vmatpush1.msra.mxu0 0.0
    %5171 = vmatprep.subr.mxu0 0.0
    %5172 = vmatpush1.msra.mxu0 0.0
    %5173 = vmatprep.subr.mxu0 0.0
    %5174 = vmatpush1.msra.mxu0 0.0
    %5175 = vmatprep.subr.mxu0 0.0
    %5176 = vmatpush1.msra.mxu0 0.0
    %5177 = vmatprep.subr.mxu0 0.0
    %5178 = vmatpush1.msra.mxu0 0.0
    %5179 = vmatprep.subr.mxu0 0.0
    %5180 = vmatpush1.msra.mxu0 0.0
    %5181 = vmatprep.subr.mxu0 0.0
    %5182 = vmatpush1.msra.mxu0 0.0
    %5183 = vmatprep.subr.mxu0 0.0
    %5184 = vmatpush1.msra.mxu0 0.0
    %5185 = vmatprep.subr.mxu0 0.0
    %5186 = vmatpush1.msra.mxu0 0.0
    %5187 = vmatprep.subr.mxu0 0.0
    %5188 = vmatpush1.msra.mxu0 0.0
    %5189 = vmatprep.mubr.f32.mxu0 0.0
    %v5190 = vand.u32 %v4110, 4294901760
    %v5191 = vsub.f32 %v4110, %v5190
    %v5192 = vand.u32 %v5191, 4294901760
    %v5193 = vsub.f32 %v5191, %v5192
    %v5194 = vand.u32 %v5193, 4294901760
    %5195 = vmatmul.mubr.f32.gmra.mrb[0].mxu0 %v5194
    %v5196 = vpop.f32.mrb[0].mxu0
    %v5197 = vadd.f32 0.0, %v5196
    %v5198 = vpop.f32.mrb[0].mxu0
    %5199 = vdwg.mxu0
    %5200 = vmatprep.subr.mxu0 0.0
    %v5201 = vand.u32 %v86, 4294901760
    %v5202 = vsub.f32 %v86, %v5201
    %v5203 = vand.u32 %v5202, 4294901760
    %v5204 = vsub.f32 %v5202, %v5203
    %v5205 = vand.u32 %v5204, 4294901760
    %5206 = vmatpush1.msra.mxu0 %v5205
    %5207 = vmatprep.subr.mxu0 0.0
    %v5208 = vand.u32 %v87, 4294901760
    %v5209 = vsub.f32 %v87, %v5208
    %v5210 = vand.u32 %v5209, 4294901760
    %v5211 = vsub.f32 %v5209, %v5210
    %v5212 = vand.u32 %v5211, 4294901760
    %5213 = vmatpush1.msra.mxu0 %v5212
    %5214 = vmatprep.subr.mxu0 0.0
    %v5215 = vand.u32 %v88, 4294901760
    %v5216 = vsub.f32 %v88, %v5215
    %v5217 = vand.u32 %v5216, 4294901760
    %v5218 = vsub.f32 %v5216, %v5217
    %v5219 = vand.u32 %v5218, 4294901760
    %5220 = vmatpush1.msra.mxu0 %v5219
    %5221 = vmatprep.subr.mxu0 0.0
    %v5222 = vand.u32 %v89, 4294901760
    %v5223 = vsub.f32 %v89, %v5222
    %v5224 = vand.u32 %v5223, 4294901760
    %v5225 = vsub.f32 %v5223, %v5224
    %v5226 = vand.u32 %v5225, 4294901760
    %5227 = vmatpush1.msra.mxu0 %v5226
    %5228 = vmatprep.subr.mxu0 0.0
    %5229 = vmatpush1.msra.mxu0 0.0
    %5230 = vmatprep.subr.mxu0 0.0
    %5231 = vmatpush1.msra.mxu0 0.0
    %5232 = vmatprep.subr.mxu0 0.0
    %5233 = vmatpush1.msra.mxu0 0.0
    %5234 = vmatprep.subr.mxu0 0.0
    %5235 = vmatpush1.msra.mxu0 0.0
    %5236 = vmatprep.subr.mxu0 0.0
    %5237 = vmatpush1.msra.mxu0 0.0
    %5238 = vmatprep.subr.mxu0 0.0
    %5239 = vmatpush1.msra.mxu0 0.0
    %5240 = vmatprep.subr.mxu0 0.0
    %5241 = vmatpush1.msra.mxu0 0.0
    %5242 = vmatprep.subr.mxu0 0.0
    %5243 = vmatpush1.msra.mxu0 0.0
    %5244 = vmatprep.subr.mxu0 0.0
    %5245 = vmatpush1.msra.mxu0 0.0
    %5246 = vmatprep.subr.mxu0 0.0
    %5247 = vmatpush1.msra.mxu0 0.0
    %5248 = vmatprep.subr.mxu0 0.0
    %5249 = vmatpush1.msra.mxu0 0.0
    %5250 = vmatprep.subr.mxu0 0.0
    %5251 = vmatpush1.msra.mxu0 0.0
    %5252 = vmatprep.subr.mxu0 0.0
    %5253 = vmatpush1.msra.mxu0 0.0
    %5254 = vmatprep.subr.mxu0 0.0
    %5255 = vmatpush1.msra.mxu0 0.0
    %5256 = vmatprep.subr.mxu0 0.0
    %5257 = vmatpush1.msra.mxu0 0.0
    %5258 = vmatprep.subr.mxu0 0.0
    %5259 = vmatpush1.msra.mxu0 0.0
    %5260 = vmatprep.subr.mxu0 0.0
    %5261 = vmatpush1.msra.mxu0 0.0
    %5262 = vmatprep.subr.mxu0 0.0
    %5263 = vmatpush1.msra.mxu0 0.0
    %5264 = vmatprep.subr.mxu0 0.0
    %5265 = vmatpush1.msra.mxu0 0.0
    %5266 = vmatprep.subr.mxu0 0.0
    %5267 = vmatpush1.msra.mxu0 0.0
    %5268 = vmatprep.subr.mxu0 0.0
    %5269 = vmatpush1.msra.mxu0 0.0
    %5270 = vmatprep.subr.mxu0 0.0
    %5271 = vmatpush1.msra.mxu0 0.0
    %5272 = vmatprep.subr.mxu0 0.0
    %5273 = vmatpush1.msra.mxu0 0.0
    %5274 = vmatprep.subr.mxu0 0.0
    %5275 = vmatpush1.msra.mxu0 0.0
    %5276 = vmatprep.subr.mxu0 0.0
    %5277 = vmatpush1.msra.mxu0 0.0
    %5278 = vmatprep.subr.mxu0 0.0
    %5279 = vmatpush1.msra.mxu0 0.0
    %5280 = vmatprep.subr.mxu0 0.0
    %5281 = vmatpush1.msra.mxu0 0.0
    %5282 = vmatprep.subr.mxu0 0.0
    %5283 = vmatpush1.msra.mxu0 0.0
    %5284 = vmatprep.mubr.f32.mxu0 0.0
    %v5285 = vand.u32 %v4110, 4294901760
    %5286 = vmatmul.mubr.f32.gmra.mrb[0].mxu0 %v5285
    %v5287 = vpop.f32.mrb[0].mxu0
    %v5288 = vadd.f32 %v5197, %v5287
    %v5289 = vpop.f32.mrb[0].mxu0
    %5290 = vdwg.mxu0
    %5291 = vmatprep.subr.mxu0 0.0
    %v5292 = vand.u32 %v86, 4294901760
    %v5293 = vsub.f32 %v86, %v5292
    %5294 = vmatpush1.msra.mxu0 %v5293
    %5295 = vmatprep.subr.mxu0 0.0
    %v5296 = vand.u32 %v87, 4294901760
    %v5297 = vsub.f32 %v87, %v5296
    %5298 = vmatpush1.msra.mxu0 %v5297
    %5299 = vmatprep.subr.mxu0 0.0
    %v5300 = vand.u32 %v88, 4294901760
    %v5301 = vsub.f32 %v88, %v5300
    %5302 = vmatpush1.msra.mxu0 %v5301
    %5303 = vmatprep.subr.mxu0 0.0
    %v5304 = vand.u32 %v89, 4294901760
    %v5305 = vsub.f32 %v89, %v5304
    %5306 = vmatpush1.msra.mxu0 %v5305
    %5307 = vmatprep.subr.mxu0 0.0
    %5308 = vmatpush1.msra.mxu0 0.0
    %5309 = vmatprep.subr.mxu0 0.0
    %5310 = vmatpush1.msra.mxu0 0.0
    %5311 = vmatprep.subr.mxu0 0.0
    %5312 = vmatpush1.msra.mxu0 0.0
    %5313 = vmatprep.subr.mxu0 0.0
    %5314 = vmatpush1.msra.mxu0 0.0
    %5315 = vmatprep.subr.mxu0 0.0
    %5316 = vmatpush1.msra.mxu0 0.0
    %5317 = vmatprep.subr.mxu0 0.0
    %5318 = vmatpush1.msra.mxu0 0.0
    %5319 = vmatprep.subr.mxu0 0.0
    %5320 = vmatpush1.msra.mxu0 0.0
    %5321 = vmatprep.subr.mxu0 0.0
    %5322 = vmatpush1.msra.mxu0 0.0
    %5323 = vmatprep.subr.mxu0 0.0
    %5324 = vmatpush1.msra.mxu0 0.0
    %5325 = vmatprep.subr.mxu0 0.0
    %5326 = vmatpush1.msra.mxu0 0.0
    %5327 = vmatprep.subr.mxu0 0.0
    %5328 = vmatpush1.msra.mxu0 0.0
    %5329 = vmatprep.subr.mxu0 0.0
    %5330 = vmatpush1.msra.mxu0 0.0
    %5331 = vmatprep.subr.mxu0 0.0
    %5332 = vmatpush1.msra.mxu0 0.0
    %5333 = vmatprep.subr.mxu0 0.0
    %5334 = vmatpush1.msra.mxu0 0.0
    %5335 = vmatprep.subr.mxu0 0.0
    %5336 = vmatpush1.msra.mxu0 0.0
    %5337 = vmatprep.subr.mxu0 0.0
    %5338 = vmatpush1.msra.mxu0 0.0
    %5339 = vmatprep.subr.mxu0 0.0
    %5340 = vmatpush1.msra.mxu0 0.0
    %5341 = vmatprep.subr.mxu0 0.0
    %5342 = vmatpush1.msra.mxu0 0.0
    %5343 = vmatprep.subr.mxu0 0.0
    %5344 = vmatpush1.msra.mxu0 0.0
    %5345 = vmatprep.subr.mxu0 0.0
    %5346 = vmatpush1.msra.mxu0 0.0
    %5347 = vmatprep.subr.mxu0 0.0
    %5348 = vmatpush1.msra.mxu0 0.0
    %5349 = vmatprep.subr.mxu0 0.0
    %5350 = vmatpush1.msra.mxu0 0.0
    %5351 = vmatprep.subr.mxu0 0.0
    %5352 = vmatpush1.msra.mxu0 0.0
    %5353 = vmatprep.subr.mxu0 0.0
    %5354 = vmatpush1.msra.mxu0 0.0
    %5355 = vmatprep.subr.mxu0 0.0
    %5356 = vmatpush1.msra.mxu0 0.0
    %5357 = vmatprep.subr.mxu0 0.0
    %5358 = vmatpush1.msra.mxu0 0.0
    %5359 = vmatprep.subr.mxu0 0.0
    %5360 = vmatpush1.msra.mxu0 0.0
    %5361 = vmatprep.subr.mxu0 0.0
    %5362 = vmatpush1.msra.mxu0 0.0
    %5363 = vmatprep.mubr.f32.mxu0 0.0
    %v5364 = vand.u32 %v4110, 4294901760
    %v5365 = vsub.f32 %v4110, %v5364
    %5366 = vmatmul.mubr.f32.gmra.mrb[0].mxu0 %v5365
    %v5367 = vpop.f32.mrb[0].mxu0
    %v5368 = vadd.f32 %v5288, %v5367
    %v5369 = vpop.f32.mrb[0].mxu0
    %5370 = vdwg.mxu0
    %5371 = vmatprep.subr.mxu0 0.0
    %v5372 = vand.u32 %v86, 4294901760
    %5373 = vmatpush1.msra.mxu0 %v5372
    %5374 = vmatprep.subr.mxu0 0.0
    %v5375 = vand.u32 %v87, 4294901760
    %5376 = vmatpush1.msra.mxu0 %v5375
    %5377 = vmatprep.subr.mxu0 0.0
    %v5378 = vand.u32 %v88, 4294901760
    %5379 = vmatpush1.msra.mxu0 %v5378
    %5380 = vmatprep.subr.mxu0 0.0
    %v5381 = vand.u32 %v89, 4294901760
    %5382 = vmatpush1.msra.mxu0 %v5381
    %5383 = vmatprep.subr.mxu0 0.0
    %5384 = vmatpush1.msra.mxu0 0.0
    %5385 = vmatprep.subr.mxu0 0.0
    %5386 = vmatpush1.msra.mxu0 0.0
    %5387 = vmatprep.subr.mxu0 0.0
    %5388 = vmatpush1.msra.mxu0 0.0
    %5389 = vmatprep.subr.mxu0 0.0
    %5390 = vmatpush1.msra.mxu0 0.0
    %5391 = vmatprep.subr.mxu0 0.0
    %5392 = vmatpush1.msra.mxu0 0.0
    %5393 = vmatprep.subr.mxu0 0.0
    %5394 = vmatpush1.msra.mxu0 0.0
    %5395 = vmatprep.subr.mxu0 0.0
    %5396 = vmatpush1.msra.mxu0 0.0
    %5397 = vmatprep.subr.mxu0 0.0
    %5398 = vmatpush1.msra.mxu0 0.0
    %5399 = vmatprep.subr.mxu0 0.0
    %5400 = vmatpush1.msra.mxu0 0.0
    %5401 = vmatprep.subr.mxu0 0.0
    %5402 = vmatpush1.msra.mxu0 0.0
    %5403 = vmatprep.subr.mxu0 0.0
    %5404 = vmatpush1.msra.mxu0 0.0
    %5405 = vmatprep.subr.mxu0 0.0
    %5406 = vmatpush1.msra.mxu0 0.0
    %5407 = vmatprep.subr.mxu0 0.0
    %5408 = vmatpush1.msra.mxu0 0.0
    %5409 = vmatprep.subr.mxu0 0.0
    %5410 = vmatpush1.msra.mxu0 0.0
    %5411 = vmatprep.subr.mxu0 0.0
    %5412 = vmatpush1.msra.mxu0 0.0
    %5413 = vmatprep.subr.mxu0 0.0
    %5414 = vmatpush1.msra.mxu0 0.0
    %5415 = vmatprep.subr.mxu0 0.0
    %5416 = vmatpush1.msra.mxu0 0.0
    %5417 = vmatprep.subr.mxu0 0.0
    %5418 = vmatpush1.msra.mxu0 0.0
    %5419 = vmatprep.subr.mxu0 0.0
    %5420 = vmatpush1.msra.mxu0 0.0
    %5421 = vmatprep.subr.mxu0 0.0
    %5422 = vmatpush1.msra.mxu0 0.0
    %5423 = vmatprep.subr.mxu0 0.0
    %5424 = vmatpush1.msra.mxu0 0.0
    %5425 = vmatprep.subr.mxu0 0.0
    %5426 = vmatpush1.msra.mxu0 0.0
    %5427 = vmatprep.subr.mxu0 0.0
    %5428 = vmatpush1.msra.mxu0 0.0
    %5429 = vmatprep.subr.mxu0 0.0
    %5430 = vmatpush1.msra.mxu0 0.0
    %5431 = vmatprep.subr.mxu0 0.0
    %5432 = vmatpush1.msra.mxu0 0.0
    %5433 = vmatprep.subr.mxu0 0.0
    %5434 = vmatpush1.msra.mxu0 0.0
    %5435 = vmatprep.subr.mxu0 0.0
    %5436 = vmatpush1.msra.mxu0 0.0
    %5437 = vmatprep.subr.mxu0 0.0
    %5438 = vmatpush1.msra.mxu0 0.0
    %5439 = vmatprep.mubr.f32.mxu0 0.0
    %v5440 = vand.u32 %v4110, 4294901760
    %v5441 = vsub.f32 %v4110, %v5440
    %v5442 = vand.u32 %v5441, 4294901760
    %5443 = vmatmul.mubr.f32.gmra.mrb[0].mxu0 %v5442
    %v5444 = vpop.f32.mrb[0].mxu0
    %v5445 = vadd.f32 %v5368, %v5444
    %v5446 = vpop.f32.mrb[0].mxu0
    %5447 = vdwg.mxu0
    %5448 = vmatprep.subr.mxu0 0.0
    %v5449 = vand.u32 %v86, 4294901760
    %v5450 = vsub.f32 %v86, %v5449
    %v5451 = vand.u32 %v5450, 4294901760
    %5452 = vmatpush1.msra.mxu0 %v5451
    %5453 = vmatprep.subr.mxu0 0.0
    %v5454 = vand.u32 %v87, 4294901760
    %v5455 = vsub.f32 %v87, %v5454
    %v5456 = vand.u32 %v5455, 4294901760
    %5457 = vmatpush1.msra.mxu0 %v5456
    %5458 = vmatprep.subr.mxu0 0.0
    %v5459 = vand.u32 %v88, 4294901760
    %v5460 = vsub.f32 %v88, %v5459
    %v5461 = vand.u32 %v5460, 4294901760
    %5462 = vmatpush1.msra.mxu0 %v5461
    %5463 = vmatprep.subr.mxu0 0.0
    %v5464 = vand.u32 %v89, 4294901760
    %v5465 = vsub.f32 %v89, %v5464
    %v5466 = vand.u32 %v5465, 4294901760
    %5467 = vmatpush1.msra.mxu0 %v5466
    %5468 = vmatprep.subr.mxu0 0.0
    %5469 = vmatpush1.msra.mxu0 0.0
    %5470 = vmatprep.subr.mxu0 0.0
    %5471 = vmatpush1.msra.mxu0 0.0
    %5472 = vmatprep.subr.mxu0 0.0
    %5473 = vmatpush1.msra.mxu0 0.0
    %5474 = vmatprep.subr.mxu0 0.0
    %5475 = vmatpush1.msra.mxu0 0.0
    %5476 = vmatprep.subr.mxu0 0.0
    %5477 = vmatpush1.msra.mxu0 0.0
    %5478 = vmatprep.subr.mxu0 0.0
    %5479 = vmatpush1.msra.mxu0 0.0
    %5480 = vmatprep.subr.mxu0 0.0
    %5481 = vmatpush1.msra.mxu0 0.0
    %5482 = vmatprep.subr.mxu0 0.0
    %5483 = vmatpush1.msra.mxu0 0.0
    %5484 = vmatprep.subr.mxu0 0.0
    %5485 = vmatpush1.msra.mxu0 0.0
    %5486 = vmatprep.subr.mxu0 0.0
    %5487 = vmatpush1.msra.mxu0 0.0
    %5488 = vmatprep.subr.mxu0 0.0
    %5489 = vmatpush1.msra.mxu0 0.0
    %5490 = vmatprep.subr.mxu0 0.0
    %5491 = vmatpush1.msra.mxu0 0.0
    %5492 = vmatprep.subr.mxu0 0.0
    %5493 = vmatpush1.msra.mxu0 0.0
    %5494 = vmatprep.subr.mxu0 0.0
    %5495 = vmatpush1.msra.mxu0 0.0
    %5496 = vmatprep.subr.mxu0 0.0
    %5497 = vmatpush1.msra.mxu0 0.0
    %5498 = vmatprep.subr.mxu0 0.0
    %5499 = vmatpush1.msra.mxu0 0.0
    %5500 = vmatprep.subr.mxu0 0.0
    %5501 = vmatpush1.msra.mxu0 0.0
    %5502 = vmatprep.subr.mxu0 0.0
    %5503 = vmatpush1.msra.mxu0 0.0
    %5504 = vmatprep.subr.mxu0 0.0
    %5505 = vmatpush1.msra.mxu0 0.0
    %5506 = vmatprep.subr.mxu0 0.0
    %5507 = vmatpush1.msra.mxu0 0.0
    %5508 = vmatprep.subr.mxu0 0.0
    %5509 = vmatpush1.msra.mxu0 0.0
    %5510 = vmatprep.subr.mxu0 0.0
    %5511 = vmatpush1.msra.mxu0 0.0
    %5512 = vmatprep.subr.mxu0 0.0
    %5513 = vmatpush1.msra.mxu0 0.0
    %5514 = vmatprep.subr.mxu0 0.0
    %5515 = vmatpush1.msra.mxu0 0.0
    %5516 = vmatprep.subr.mxu0 0.0
    %5517 = vmatpush1.msra.mxu0 0.0
    %5518 = vmatprep.subr.mxu0 0.0
    %5519 = vmatpush1.msra.mxu0 0.0
    %5520 = vmatprep.subr.mxu0 0.0
    %5521 = vmatpush1.msra.mxu0 0.0
    %5522 = vmatprep.subr.mxu0 0.0
    %5523 = vmatpush1.msra.mxu0 0.0
    %5524 = vmatprep.mubr.f32.mxu0 0.0
    %v5525 = vand.u32 %v4110, 4294901760
    %5526 = vmatmul.mubr.f32.gmra.mrb[0].mxu0 %v5525
    %v5527 = vpop.f32.mrb[0].mxu0
    %v5528 = vadd.f32 %v5445, %v5527
    %v5529 = vpop.f32.mrb[0].mxu0
    %5530 = vdwg.mxu0
    %5531 = vmatprep.subr.mxu0 0.0
    %v5532 = vand.u32 %v86, 4294901760
    %5533 = vmatpush1.msra.mxu0 %v5532
    %5534 = vmatprep.subr.mxu0 0.0
    %v5535 = vand.u32 %v87, 4294901760
    %5536 = vmatpush1.msra.mxu0 %v5535
    %5537 = vmatprep.subr.mxu0 0.0
    %v5538 = vand.u32 %v88, 4294901760
    %5539 = vmatpush1.msra.mxu0 %v5538
    %5540 = vmatprep.subr.mxu0 0.0
    %v5541 = vand.u32 %v89, 4294901760
    %5542 = vmatpush1.msra.mxu0 %v5541
    %5543 = vmatprep.subr.mxu0 0.0
    %5544 = vmatpush1.msra.mxu0 0.0
    %5545 = vmatprep.subr.mxu0 0.0
    %5546 = vmatpush1.msra.mxu0 0.0
    %5547 = vmatprep.subr.mxu0 0.0
    %5548 = vmatpush1.msra.mxu0 0.0
    %5549 = vmatprep.subr.mxu0 0.0
    %5550 = vmatpush1.msra.mxu0 0.0
    %5551 = vmatprep.subr.mxu0 0.0
    %5552 = vmatpush1.msra.mxu0 0.0
    %5553 = vmatprep.subr.mxu0 0.0
    %5554 = vmatpush1.msra.mxu0 0.0
    %5555 = vmatprep.subr.mxu0 0.0
    %5556 = vmatpush1.msra.mxu0 0.0
    %5557 = vmatprep.subr.mxu0 0.0
    %5558 = vmatpush1.msra.mxu0 0.0
    %5559 = vmatprep.subr.mxu0 0.0
    %5560 = vmatpush1.msra.mxu0 0.0
    %5561 = vmatprep.subr.mxu0 0.0
    %5562 = vmatpush1.msra.mxu0 0.0
    %5563 = vmatprep.subr.mxu0 0.0
    %5564 = vmatpush1.msra.mxu0 0.0
    %5565 = vmatprep.subr.mxu0 0.0
    %5566 = vmatpush1.msra.mxu0 0.0
    %5567 = vmatprep.subr.mxu0 0.0
    %5568 = vmatpush1.msra.mxu0 0.0
    %5569 = vmatprep.subr.mxu0 0.0
    %5570 = vmatpush1.msra.mxu0 0.0
    %5571 = vmatprep.subr.mxu0 0.0
    %5572 = vmatpush1.msra.mxu0 0.0
    %5573 = vmatprep.subr.mxu0 0.0
    %5574 = vmatpush1.msra.mxu0 0.0
    %5575 = vmatprep.subr.mxu0 0.0
    %5576 = vmatpush1.msra.mxu0 0.0
    %5577 = vmatprep.subr.mxu0 0.0
    %5578 = vmatpush1.msra.mxu0 0.0
    %5579 = vmatprep.subr.mxu0 0.0
    %5580 = vmatpush1.msra.mxu0 0.0
    %5581 = vmatprep.subr.mxu0 0.0
    %5582 = vmatpush1.msra.mxu0 0.0
    %5583 = vmatprep.subr.mxu0 0.0
    %5584 = vmatpush1.msra.mxu0 0.0
    %5585 = vmatprep.subr.mxu0 0.0
    %5586 = vmatpush1.msra.mxu0 0.0
    %5587 = vmatprep.subr.mxu0 0.0
    %5588 = vmatpush1.msra.mxu0 0.0
    %5589 = vmatprep.subr.mxu0 0.0
    %5590 = vmatpush1.msra.mxu0 0.0
    %5591 = vmatprep.subr.mxu0 0.0
    %5592 = vmatpush1.msra.mxu0 0.0
    %5593 = vmatprep.subr.mxu0 0.0
    %5594 = vmatpush1.msra.mxu0 0.0
    %5595 = vmatprep.subr.mxu0 0.0
    %5596 = vmatpush1.msra.mxu0 0.0
    %5597 = vmatprep.subr.mxu0 0.0
    %5598 = vmatpush1.msra.mxu0 0.0
    %5599 = vmatprep.mubr.f32.mxu0 0.0
    %v5600 = vand.u32 %v4110, 4294901760
    %5601 = vmatmul.mubr.f32.gmra.mrb[0].mxu0 %v5600
    %v5602 = vpop.f32.mrb[0].mxu0
    %v5603 = vadd.f32 %v5528, %v5602
    %v5604 = vpop.f32.mrb[0].mxu0
    %5605 = vdwg.mxu0
    %v5607 = vrot.slane %v5603, 1
    %v5610 = vadd.f32 %v5119, %v5603
    %v5611 = vadd.f32 %v5120, %v5607
    %v5612 = vmul.f32 %v4108, 0.25
    %v5613 = vtanh.pop %v5610
    %v5614 = vtanh.pop %v5611
    %v5615 = vmul.f32 %v5613, 0.75
    %v5616 = vmul.f32 %v5614, 0.75
    %v5619 = vrot.slane %v5616, 7
    %v5620 = vsel %vm1070, %v5619, %v5615
    %v5622 = vadd.f32 %v5612, %v5620
    %v5624 = vsel %vm567, %v5622, 0
    %5626 = vmatprep.subr.mxu0 0.0
    %v5627 = vand.u32 %v90, 4294901760
    %5628 = vmatpush1.msra.mxu0 %v5627
    %5629 = vmatprep.subr.mxu0 0.0
    %v5630 = vand.u32 %v91, 4294901760
    %5631 = vmatpush1.msra.mxu0 %v5630
    %5632 = vmatprep.subr.mxu0 0.0
    %v5633 = vand.u32 %v92, 4294901760
    %5634 = vmatpush1.msra.mxu0 %v5633
    %5635 = vmatprep.subr.mxu0 0.0
    %v5636 = vand.u32 %v93, 4294901760
    %5637 = vmatpush1.msra.mxu0 %v5636
    %5638 = vmatprep.subr.mxu0 0.0
    %5639 = vmatpush1.msra.mxu0 0.0
    %5640 = vmatprep.subr.mxu0 0.0
    %5641 = vmatpush1.msra.mxu0 0.0
    %5642 = vmatprep.subr.mxu0 0.0
    %5643 = vmatpush1.msra.mxu0 0.0
    %5644 = vmatprep.subr.mxu0 0.0
    %5645 = vmatpush1.msra.mxu0 0.0
    %5646 = vmatprep.subr.mxu0 0.0
    %5647 = vmatpush1.msra.mxu0 0.0
    %5648 = vmatprep.subr.mxu0 0.0
    %5649 = vmatpush1.msra.mxu0 0.0
    %5650 = vmatprep.subr.mxu0 0.0
    %5651 = vmatpush1.msra.mxu0 0.0
    %5652 = vmatprep.subr.mxu0 0.0
    %5653 = vmatpush1.msra.mxu0 0.0
    %5654 = vmatprep.subr.mxu0 0.0
    %5655 = vmatpush1.msra.mxu0 0.0
    %5656 = vmatprep.subr.mxu0 0.0
    %5657 = vmatpush1.msra.mxu0 0.0
    %5658 = vmatprep.subr.mxu0 0.0
    %5659 = vmatpush1.msra.mxu0 0.0
    %5660 = vmatprep.subr.mxu0 0.0
    %5661 = vmatpush1.msra.mxu0 0.0
    %5662 = vmatprep.subr.mxu0 0.0
    %5663 = vmatpush1.msra.mxu0 0.0
    %5664 = vmatprep.subr.mxu0 0.0
    %5665 = vmatpush1.msra.mxu0 0.0
    %5666 = vmatprep.subr.mxu0 0.0
    %5667 = vmatpush1.msra.mxu0 0.0
    %5668 = vmatprep.subr.mxu0 0.0
    %5669 = vmatpush1.msra.mxu0 0.0
    %5670 = vmatprep.subr.mxu0 0.0
    %5671 = vmatpush1.msra.mxu0 0.0
    %5672 = vmatprep.subr.mxu0 0.0
    %5673 = vmatpush1.msra.mxu0 0.0
    %5674 = vmatprep.subr.mxu0 0.0
    %5675 = vmatpush1.msra.mxu0 0.0
    %5676 = vmatprep.subr.mxu0 0.0
    %5677 = vmatpush1.msra.mxu0 0.0
    %5678 = vmatprep.subr.mxu0 0.0
    %5679 = vmatpush1.msra.mxu0 0.0
    %5680 = vmatprep.subr.mxu0 0.0
    %5681 = vmatpush1.msra.mxu0 0.0
    %5682 = vmatprep.subr.mxu0 0.0
    %5683 = vmatpush1.msra.mxu0 0.0
    %5684 = vmatprep.subr.mxu0 0.0
    %5685 = vmatpush1.msra.mxu0 0.0
    %5686 = vmatprep.subr.mxu0 0.0
    %5687 = vmatpush1.msra.mxu0 0.0
    %5688 = vmatprep.subr.mxu0 0.0
    %5689 = vmatpush1.msra.mxu0 0.0
    %5690 = vmatprep.subr.mxu0 0.0
    %5691 = vmatpush1.msra.mxu0 0.0
    %5692 = vmatprep.subr.mxu0 0.0
    %5693 = vmatpush1.msra.mxu0 0.0
    %5694 = vmatprep.mubr.f32.mxu0 0.0
    %v5695 = vand.u32 %v5624, 4294901760
    %v5696 = vsub.f32 %v5624, %v5695
    %v5697 = vand.u32 %v5696, 4294901760
    %v5698 = vsub.f32 %v5696, %v5697
    %v5699 = vand.u32 %v5698, 4294901760
    %5700 = vmatmul.mubr.f32.gmra.mrb[0].mxu0 %v5699
    %v5701 = vpop.f32.mrb[0].mxu0
    %v5702 = vadd.f32 0.0, %v5701
    %v5703 = vpop.f32.mrb[0].mxu0
    %5704 = vdwg.mxu0
    %5705 = vmatprep.subr.mxu0 0.0
    %v5706 = vand.u32 %v90, 4294901760
    %v5707 = vsub.f32 %v90, %v5706
    %v5708 = vand.u32 %v5707, 4294901760
    %v5709 = vsub.f32 %v5707, %v5708
    %v5710 = vand.u32 %v5709, 4294901760
    %5711 = vmatpush1.msra.mxu0 %v5710
    %5712 = vmatprep.subr.mxu0 0.0
    %v5713 = vand.u32 %v91, 4294901760
    %v5714 = vsub.f32 %v91, %v5713
    %v5715 = vand.u32 %v5714, 4294901760
    %v5716 = vsub.f32 %v5714, %v5715
    %v5717 = vand.u32 %v5716, 4294901760
    %5718 = vmatpush1.msra.mxu0 %v5717
    %5719 = vmatprep.subr.mxu0 0.0
    %v5720 = vand.u32 %v92, 4294901760
    %v5721 = vsub.f32 %v92, %v5720
    %v5722 = vand.u32 %v5721, 4294901760
    %v5723 = vsub.f32 %v5721, %v5722
    %v5724 = vand.u32 %v5723, 4294901760
    %5725 = vmatpush1.msra.mxu0 %v5724
    %5726 = vmatprep.subr.mxu0 0.0
    %v5727 = vand.u32 %v93, 4294901760
    %v5728 = vsub.f32 %v93, %v5727
    %v5729 = vand.u32 %v5728, 4294901760
    %v5730 = vsub.f32 %v5728, %v5729
    %v5731 = vand.u32 %v5730, 4294901760
    %5732 = vmatpush1.msra.mxu0 %v5731
    %5733 = vmatprep.subr.mxu0 0.0
    %5734 = vmatpush1.msra.mxu0 0.0
    %5735 = vmatprep.subr.mxu0 0.0
    %5736 = vmatpush1.msra.mxu0 0.0
    %5737 = vmatprep.subr.mxu0 0.0
    %5738 = vmatpush1.msra.mxu0 0.0
    %5739 = vmatprep.subr.mxu0 0.0
    %5740 = vmatpush1.msra.mxu0 0.0
    %5741 = vmatprep.subr.mxu0 0.0
    %5742 = vmatpush1.msra.mxu0 0.0
    %5743 = vmatprep.subr.mxu0 0.0
    %5744 = vmatpush1.msra.mxu0 0.0
    %5745 = vmatprep.subr.mxu0 0.0
    %5746 = vmatpush1.msra.mxu0 0.0
    %5747 = vmatprep.subr.mxu0 0.0
    %5748 = vmatpush1.msra.mxu0 0.0
    %5749 = vmatprep.subr.mxu0 0.0
    %5750 = vmatpush1.msra.mxu0 0.0
    %5751 = vmatprep.subr.mxu0 0.0
    %5752 = vmatpush1.msra.mxu0 0.0
    %5753 = vmatprep.subr.mxu0 0.0
    %5754 = vmatpush1.msra.mxu0 0.0
    %5755 = vmatprep.subr.mxu0 0.0
    %5756 = vmatpush1.msra.mxu0 0.0
    %5757 = vmatprep.subr.mxu0 0.0
    %5758 = vmatpush1.msra.mxu0 0.0
    %5759 = vmatprep.subr.mxu0 0.0
    %5760 = vmatpush1.msra.mxu0 0.0
    %5761 = vmatprep.subr.mxu0 0.0
    %5762 = vmatpush1.msra.mxu0 0.0
    %5763 = vmatprep.subr.mxu0 0.0
    %5764 = vmatpush1.msra.mxu0 0.0
    %5765 = vmatprep.subr.mxu0 0.0
    %5766 = vmatpush1.msra.mxu0 0.0
    %5767 = vmatprep.subr.mxu0 0.0
    %5768 = vmatpush1.msra.mxu0 0.0
    %5769 = vmatprep.subr.mxu0 0.0
    %5770 = vmatpush1.msra.mxu0 0.0
    %5771 = vmatprep.subr.mxu0 0.0
    %5772 = vmatpush1.msra.mxu0 0.0
    %5773 = vmatprep.subr.mxu0 0.0
    %5774 = vmatpush1.msra.mxu0 0.0
    %5775 = vmatprep.subr.mxu0 0.0
    %5776 = vmatpush1.msra.mxu0 0.0
    %5777 = vmatprep.subr.mxu0 0.0
    %5778 = vmatpush1.msra.mxu0 0.0
    %5779 = vmatprep.subr.mxu0 0.0
    %5780 = vmatpush1.msra.mxu0 0.0
    %5781 = vmatprep.subr.mxu0 0.0
    %5782 = vmatpush1.msra.mxu0 0.0
    %5783 = vmatprep.subr.mxu0 0.0
    %5784 = vmatpush1.msra.mxu0 0.0
    %5785 = vmatprep.subr.mxu0 0.0
    %5786 = vmatpush1.msra.mxu0 0.0
    %5787 = vmatprep.subr.mxu0 0.0
    %5788 = vmatpush1.msra.mxu0 0.0
    %5789 = vmatprep.mubr.f32.mxu0 0.0
    %v5790 = vand.u32 %v5624, 4294901760
    %5791 = vmatmul.mubr.f32.gmra.mrb[0].mxu0 %v5790
    %v5792 = vpop.f32.mrb[0].mxu0
    %v5793 = vadd.f32 %v5702, %v5792
    %v5794 = vpop.f32.mrb[0].mxu0
    %5795 = vdwg.mxu0
    %5796 = vmatprep.subr.mxu0 0.0
    %v5797 = vand.u32 %v90, 4294901760
    %v5798 = vsub.f32 %v90, %v5797
    %5799 = vmatpush1.msra.mxu0 %v5798
    %5800 = vmatprep.subr.mxu0 0.0
    %v5801 = vand.u32 %v91, 4294901760
    %v5802 = vsub.f32 %v91, %v5801
    %5803 = vmatpush1.msra.mxu0 %v5802
    %5804 = vmatprep.subr.mxu0 0.0
    %v5805 = vand.u32 %v92, 4294901760
    %v5806 = vsub.f32 %v92, %v5805
    %5807 = vmatpush1.msra.mxu0 %v5806
    %5808 = vmatprep.subr.mxu0 0.0
    %v5809 = vand.u32 %v93, 4294901760
    %v5810 = vsub.f32 %v93, %v5809
    %5811 = vmatpush1.msra.mxu0 %v5810
    %5812 = vmatprep.subr.mxu0 0.0
    %5813 = vmatpush1.msra.mxu0 0.0
    %5814 = vmatprep.subr.mxu0 0.0
    %5815 = vmatpush1.msra.mxu0 0.0
    %5816 = vmatprep.subr.mxu0 0.0
    %5817 = vmatpush1.msra.mxu0 0.0
    %5818 = vmatprep.subr.mxu0 0.0
    %5819 = vmatpush1.msra.mxu0 0.0
    %5820 = vmatprep.subr.mxu0 0.0
    %5821 = vmatpush1.msra.mxu0 0.0
    %5822 = vmatprep.subr.mxu0 0.0
    %5823 = vmatpush1.msra.mxu0 0.0
    %5824 = vmatprep.subr.mxu0 0.0
    %5825 = vmatpush1.msra.mxu0 0.0
    %5826 = vmatprep.subr.mxu0 0.0
    %5827 = vmatpush1.msra.mxu0 0.0
    %5828 = vmatprep.subr.mxu0 0.0
    %5829 = vmatpush1.msra.mxu0 0.0
    %5830 = vmatprep.subr.mxu0 0.0
    %5831 = vmatpush1.msra.mxu0 0.0
    %5832 = vmatprep.subr.mxu0 0.0
    %5833 = vmatpush1.msra.mxu0 0.0
    %5834 = vmatprep.subr.mxu0 0.0
    %5835 = vmatpush1.msra.mxu0 0.0
    %5836 = vmatprep.subr.mxu0 0.0
    %5837 = vmatpush1.msra.mxu0 0.0
    %5838 = vmatprep.subr.mxu0 0.0
    %5839 = vmatpush1.msra.mxu0 0.0
    %5840 = vmatprep.subr.mxu0 0.0
    %5841 = vmatpush1.msra.mxu0 0.0
    %5842 = vmatprep.subr.mxu0 0.0
    %5843 = vmatpush1.msra.mxu0 0.0
    %5844 = vmatprep.subr.mxu0 0.0
    %5845 = vmatpush1.msra.mxu0 0.0
    %5846 = vmatprep.subr.mxu0 0.0
    %5847 = vmatpush1.msra.mxu0 0.0
    %5848 = vmatprep.subr.mxu0 0.0
    %5849 = vmatpush1.msra.mxu0 0.0
    %5850 = vmatprep.subr.mxu0 0.0
    %5851 = vmatpush1.msra.mxu0 0.0
    %5852 = vmatprep.subr.mxu0 0.0
    %5853 = vmatpush1.msra.mxu0 0.0
    %5854 = vmatprep.subr.mxu0 0.0
    %5855 = vmatpush1.msra.mxu0 0.0
    %5856 = vmatprep.subr.mxu0 0.0
    %5857 = vmatpush1.msra.mxu0 0.0
    %5858 = vmatprep.subr.mxu0 0.0
    %5859 = vmatpush1.msra.mxu0 0.0
    %5860 = vmatprep.subr.mxu0 0.0
    %5861 = vmatpush1.msra.mxu0 0.0
    %5862 = vmatprep.subr.mxu0 0.0
    %5863 = vmatpush1.msra.mxu0 0.0
    %5864 = vmatprep.subr.mxu0 0.0
    %5865 = vmatpush1.msra.mxu0 0.0
    %5866 = vmatprep.subr.mxu0 0.0
    %5867 = vmatpush1.msra.mxu0 0.0
    %5868 = vmatprep.mubr.f32.mxu0 0.0
    %v5869 = vand.u32 %v5624, 4294901760
    %v5870 = vsub.f32 %v5624, %v5869
    %5871 = vmatmul.mubr.f32.gmra.mrb[0].mxu0 %v5870
    %v5872 = vpop.f32.mrb[0].mxu0
    %v5873 = vadd.f32 %v5793, %v5872
    %v5874 = vpop.f32.mrb[0].mxu0
    %5875 = vdwg.mxu0
    %5876 = vmatprep.subr.mxu0 0.0
    %v5877 = vand.u32 %v90, 4294901760
    %5878 = vmatpush1.msra.mxu0 %v5877
    %5879 = vmatprep.subr.mxu0 0.0
    %v5880 = vand.u32 %v91, 4294901760
    %5881 = vmatpush1.msra.mxu0 %v5880
    %5882 = vmatprep.subr.mxu0 0.0
    %v5883 = vand.u32 %v92, 4294901760
    %5884 = vmatpush1.msra.mxu0 %v5883
    %5885 = vmatprep.subr.mxu0 0.0
    %v5886 = vand.u32 %v93, 4294901760
    %5887 = vmatpush1.msra.mxu0 %v5886
    %5888 = vmatprep.subr.mxu0 0.0
    %5889 = vmatpush1.msra.mxu0 0.0
    %5890 = vmatprep.subr.mxu0 0.0
    %5891 = vmatpush1.msra.mxu0 0.0
    %5892 = vmatprep.subr.mxu0 0.0
    %5893 = vmatpush1.msra.mxu0 0.0
    %5894 = vmatprep.subr.mxu0 0.0
    %5895 = vmatpush1.msra.mxu0 0.0
    %5896 = vmatprep.subr.mxu0 0.0
    %5897 = vmatpush1.msra.mxu0 0.0
    %5898 = vmatprep.subr.mxu0 0.0
    %5899 = vmatpush1.msra.mxu0 0.0
    %5900 = vmatprep.subr.mxu0 0.0
    %5901 = vmatpush1.msra.mxu0 0.0
    %5902 = vmatprep.subr.mxu0 0.0
    %5903 = vmatpush1.msra.mxu0 0.0
    %5904 = vmatprep.subr.mxu0 0.0
    %5905 = vmatpush1.msra.mxu0 0.0
    %5906 = vmatprep.subr.mxu0 0.0
    %5907 = vmatpush1.msra.mxu0 0.0
    %5908 = vmatprep.subr.mxu0 0.0
    %5909 = vmatpush1.msra.mxu0 0.0
    %5910 = vmatprep.subr.mxu0 0.0
    %5911 = vmatpush1.msra.mxu0 0.0
    %5912 = vmatprep.subr.mxu0 0.0
    %5913 = vmatpush1.msra.mxu0 0.0
    %5914 = vmatprep.subr.mxu0 0.0
    %5915 = vmatpush1.msra.mxu0 0.0
    %5916 = vmatprep.subr.mxu0 0.0
    %5917 = vmatpush1.msra.mxu0 0.0
    %5918 = vmatprep.subr.mxu0 0.0
    %5919 = vmatpush1.msra.mxu0 0.0
    %5920 = vmatprep.subr.mxu0 0.0
    %5921 = vmatpush1.msra.mxu0 0.0
    %5922 = vmatprep.subr.mxu0 0.0
    %5923 = vmatpush1.msra.mxu0 0.0
    %5924 = vmatprep.subr.mxu0 0.0
    %5925 = vmatpush1.msra.mxu0 0.0
    %5926 = vmatprep.subr.mxu0 0.0
    %5927 = vmatpush1.msra.mxu0 0.0
    %5928 = vmatprep.subr.mxu0 0.0
    %5929 = vmatpush1.msra.mxu0 0.0
    %5930 = vmatprep.subr.mxu0 0.0
    %5931 = vmatpush1.msra.mxu0 0.0
    %5932 = vmatprep.subr.mxu0 0.0
    %5933 = vmatpush1.msra.mxu0 0.0
    %5934 = vmatprep.subr.mxu0 0.0
    %5935 = vmatpush1.msra.mxu0 0.0
    %5936 = vmatprep.subr.mxu0 0.0
    %5937 = vmatpush1.msra.mxu0 0.0
    %5938 = vmatprep.subr.mxu0 0.0
    %5939 = vmatpush1.msra.mxu0 0.0
    %5940 = vmatprep.subr.mxu0 0.0
    %5941 = vmatpush1.msra.mxu0 0.0
    %5942 = vmatprep.subr.mxu0 0.0
    %5943 = vmatpush1.msra.mxu0 0.0
    %5944 = vmatprep.mubr.f32.mxu0 0.0
    %v5945 = vand.u32 %v5624, 4294901760
    %v5946 = vsub.f32 %v5624, %v5945
    %v5947 = vand.u32 %v5946, 4294901760
    %5948 = vmatmul.mubr.f32.gmra.mrb[0].mxu0 %v5947
    %v5949 = vpop.f32.mrb[0].mxu0
    %v5950 = vadd.f32 %v5873, %v5949
    %v5951 = vpop.f32.mrb[0].mxu0
    %5952 = vdwg.mxu0
    %5953 = vmatprep.subr.mxu0 0.0
    %v5954 = vand.u32 %v90, 4294901760
    %v5955 = vsub.f32 %v90, %v5954
    %v5956 = vand.u32 %v5955, 4294901760
    %5957 = vmatpush1.msra.mxu0 %v5956
    %5958 = vmatprep.subr.mxu0 0.0
    %v5959 = vand.u32 %v91, 4294901760
    %v5960 = vsub.f32 %v91, %v5959
    %v5961 = vand.u32 %v5960, 4294901760
    %5962 = vmatpush1.msra.mxu0 %v5961
    %5963 = vmatprep.subr.mxu0 0.0
    %v5964 = vand.u32 %v92, 4294901760
    %v5965 = vsub.f32 %v92, %v5964
    %v5966 = vand.u32 %v5965, 4294901760
    %5967 = vmatpush1.msra.mxu0 %v5966
    %5968 = vmatprep.subr.mxu0 0.0
    %v5969 = vand.u32 %v93, 4294901760
    %v5970 = vsub.f32 %v93, %v5969
    %v5971 = vand.u32 %v5970, 4294901760
    %5972 = vmatpush1.msra.mxu0 %v5971
    %5973 = vmatprep.subr.mxu0 0.0
    %5974 = vmatpush1.msra.mxu0 0.0
    %5975 = vmatprep.subr.mxu0 0.0
    %5976 = vmatpush1.msra.mxu0 0.0
    %5977 = vmatprep.subr.mxu0 0.0
    %5978 = vmatpush1.msra.mxu0 0.0
    %5979 = vmatprep.subr.mxu0 0.0
    %5980 = vmatpush1.msra.mxu0 0.0
    %5981 = vmatprep.subr.mxu0 0.0
    %5982 = vmatpush1.msra.mxu0 0.0
    %5983 = vmatprep.subr.mxu0 0.0
    %5984 = vmatpush1.msra.mxu0 0.0
    %5985 = vmatprep.subr.mxu0 0.0
    %5986 = vmatpush1.msra.mxu0 0.0
    %5987 = vmatprep.subr.mxu0 0.0
    %5988 = vmatpush1.msra.mxu0 0.0
    %5989 = vmatprep.subr.mxu0 0.0
    %5990 = vmatpush1.msra.mxu0 0.0
    %5991 = vmatprep.subr.mxu0 0.0
    %5992 = vmatpush1.msra.mxu0 0.0
    %5993 = vmatprep.subr.mxu0 0.0
    %5994 = vmatpush1.msra.mxu0 0.0
    %5995 = vmatprep.subr.mxu0 0.0
    %5996 = vmatpush1.msra.mxu0 0.0
    %5997 = vmatprep.subr.mxu0 0.0
    %5998 = vmatpush1.msra.mxu0 0.0
    %5999 = vmatprep.subr.mxu0 0.0
    %6000 = vmatpush1.msra.mxu0 0.0
    %6001 = vmatprep.subr.mxu0 0.0
    %6002 = vmatpush1.msra.mxu0 0.0
    %6003 = vmatprep.subr.mxu0 0.0
    %6004 = vmatpush1.msra.mxu0 0.0
    %6005 = vmatprep.subr.mxu0 0.0
    %6006 = vmatpush1.msra.mxu0 0.0
    %6007 = vmatprep.subr.mxu0 0.0
    %6008 = vmatpush1.msra.mxu0 0.0
    %6009 = vmatprep.subr.mxu0 0.0
    %6010 = vmatpush1.msra.mxu0 0.0
    %6011 = vmatprep.subr.mxu0 0.0
    %6012 = vmatpush1.msra.mxu0 0.0
    %6013 = vmatprep.subr.mxu0 0.0
    %6014 = vmatpush1.msra.mxu0 0.0
    %6015 = vmatprep.subr.mxu0 0.0
    %6016 = vmatpush1.msra.mxu0 0.0
    %6017 = vmatprep.subr.mxu0 0.0
    %6018 = vmatpush1.msra.mxu0 0.0
    %6019 = vmatprep.subr.mxu0 0.0
    %6020 = vmatpush1.msra.mxu0 0.0
    %6021 = vmatprep.subr.mxu0 0.0
    %6022 = vmatpush1.msra.mxu0 0.0
    %6023 = vmatprep.subr.mxu0 0.0
    %6024 = vmatpush1.msra.mxu0 0.0
    %6025 = vmatprep.subr.mxu0 0.0
    %6026 = vmatpush1.msra.mxu0 0.0
    %6027 = vmatprep.subr.mxu0 0.0
    %6028 = vmatpush1.msra.mxu0 0.0
    %6029 = vmatprep.mubr.f32.mxu0 0.0
    %v6030 = vand.u32 %v5624, 4294901760
    %6031 = vmatmul.mubr.f32.gmra.mrb[0].mxu0 %v6030
    %v6032 = vpop.f32.mrb[0].mxu0
    %v6033 = vadd.f32 %v5950, %v6032
    %v6034 = vpop.f32.mrb[0].mxu0
    %6035 = vdwg.mxu0
    %6036 = vmatprep.subr.mxu0 0.0
    %v6037 = vand.u32 %v90, 4294901760
    %6038 = vmatpush1.msra.mxu0 %v6037
    %6039 = vmatprep.subr.mxu0 0.0
    %v6040 = vand.u32 %v91, 4294901760
    %6041 = vmatpush1.msra.mxu0 %v6040
    %6042 = vmatprep.subr.mxu0 0.0
    %v6043 = vand.u32 %v92, 4294901760
    %6044 = vmatpush1.msra.mxu0 %v6043
    %6045 = vmatprep.subr.mxu0 0.0
    %v6046 = vand.u32 %v93, 4294901760
    %6047 = vmatpush1.msra.mxu0 %v6046
    %6048 = vmatprep.subr.mxu0 0.0
    %6049 = vmatpush1.msra.mxu0 0.0
    %6050 = vmatprep.subr.mxu0 0.0
    %6051 = vmatpush1.msra.mxu0 0.0
    %6052 = vmatprep.subr.mxu0 0.0
    %6053 = vmatpush1.msra.mxu0 0.0
    %6054 = vmatprep.subr.mxu0 0.0
    %6055 = vmatpush1.msra.mxu0 0.0
    %6056 = vmatprep.subr.mxu0 0.0
    %6057 = vmatpush1.msra.mxu0 0.0
    %6058 = vmatprep.subr.mxu0 0.0
    %6059 = vmatpush1.msra.mxu0 0.0
    %6060 = vmatprep.subr.mxu0 0.0
    %6061 = vmatpush1.msra.mxu0 0.0
    %6062 = vmatprep.subr.mxu0 0.0
    %6063 = vmatpush1.msra.mxu0 0.0
    %6064 = vmatprep.subr.mxu0 0.0
    %6065 = vmatpush1.msra.mxu0 0.0
    %6066 = vmatprep.subr.mxu0 0.0
    %6067 = vmatpush1.msra.mxu0 0.0
    %6068 = vmatprep.subr.mxu0 0.0
    %6069 = vmatpush1.msra.mxu0 0.0
    %6070 = vmatprep.subr.mxu0 0.0
    %6071 = vmatpush1.msra.mxu0 0.0
    %6072 = vmatprep.subr.mxu0 0.0
    %6073 = vmatpush1.msra.mxu0 0.0
    %6074 = vmatprep.subr.mxu0 0.0
    %6075 = vmatpush1.msra.mxu0 0.0
    %6076 = vmatprep.subr.mxu0 0.0
    %6077 = vmatpush1.msra.mxu0 0.0
    %6078 = vmatprep.subr.mxu0 0.0
    %6079 = vmatpush1.msra.mxu0 0.0
    %6080 = vmatprep.subr.mxu0 0.0
    %6081 = vmatpush1.msra.mxu0 0.0
    %6082 = vmatprep.subr.mxu0 0.0
    %6083 = vmatpush1.msra.mxu0 0.0
    %6084 = vmatprep.subr.mxu0 0.0
    %6085 = vmatpush1.msra.mxu0 0.0
    %6086 = vmatprep.subr.mxu0 0.0
    %6087 = vmatpush1.msra.mxu0 0.0
    %6088 = vmatprep.subr.mxu0 0.0
    %6089 = vmatpush1.msra.mxu0 0.0
    %6090 = vmatprep.subr.mxu0 0.0
    %6091 = vmatpush1.msra.mxu0 0.0
    %6092 = vmatprep.subr.mxu0 0.0
    %6093 = vmatpush1.msra.mxu0 0.0
    %6094 = vmatprep.subr.mxu0 0.0
    %6095 = vmatpush1.msra.mxu0 0.0
    %6096 = vmatprep.subr.mxu0 0.0
    %6097 = vmatpush1.msra.mxu0 0.0
    %6098 = vmatprep.subr.mxu0 0.0
    %6099 = vmatpush1.msra.mxu0 0.0
    %6100 = vmatprep.subr.mxu0 0.0
    %6101 = vmatpush1.msra.mxu0 0.0
    %6102 = vmatprep.subr.mxu0 0.0
    %6103 = vmatpush1.msra.mxu0 0.0
    %6104 = vmatprep.mubr.f32.mxu0 0.0
    %v6105 = vand.u32 %v5624, 4294901760
    %6106 = vmatmul.mubr.f32.gmra.mrb[0].mxu0 %v6105
    %v6107 = vpop.f32.mrb[0].mxu0
    %v6108 = vadd.f32 %v6033, %v6107
    %v6109 = vpop.f32.mrb[0].mxu0
    %6110 = vdwg.mxu0
    %6112 = vrot.lane.b32.xlu0 %v5116, 16
    %v6113 = vpop.permute.xlu0 %6112
    %v6115 = vadd.f32 %v6108, %v6113
    %v6116 = vadd.f32 %v6115, %v1568
    %v6117 = vxor.u32 %v6116, 2147483648
    %v6118 = vmul.f32 %v6117, 1.442695
    %v6119 = vpow.pop %v6118
    %v6120 = vadd.f32 %v6119, 1.0
    %v6121 = vrcp.pop %v6120
    %v6122 = vmul.f32 1.0, %v6121
    %v6123 = vsub.f32 1.0, %v6122
    %v6124 = vmul.f32 %v6123, %v4616
    %6126 = vrot.lane.b32.xlu0 %v6108, 16
    %v6127 = vpop.permute.xlu0 %6126
    %v6129 = vmul.f32 %v6122, %v6127
    %v6130 = vadd.f32 %v6124, %v6129
    %v6133 = vunpack.c.l.s4 1966171168
    %v6134 = vunpack.c.0.s8 %v6133
    %v6135 = vlaneseq
    %v6136 = vshrl.u32 %v6135, 7
    %v6137 = vsub.s32 %v6134, %v6136
    %v6138 = vrot.slane %v6130, %v6137
    %v6139 = vcombine.high %v6138, %v6138
    %v6141 = vunpack.c.l.s4 1966171168
    %v6142 = vunpack.c.0.s8 %v6141
    %v6143 = vlaneseq
    %v6144 = vshrl.u32 %v6143, 7
    %v6145 = vsub.s32 %v6142, %v6144
    %v6146 = vrot.slane %v6138, %v6145
    %v6148 = vunpack.c.l.s4 1966171168
    %v6149 = vunpack.c.0.s8 %v6148
    %v6150 = vlaneseq
    %v6151 = vshrl.u32 %v6150, 7
    %v6152 = vsub.s32 %v6149, %v6151
    %v6153 = vrot.slane %v6139, %v6152
    %v6154 = vlaneseq
    %v6155 = vshrl.u32 %v6154, 7
    %v6156 = vsub.s32 0, %v6155
    %v6157 = vrot.slane %v6146, %v6156
    %v6158 = vlaneseq
    %v6159 = vshrl.u32 %v6158, 7
    %v6160 = vsub.s32 0, %v6159
    %v6161 = vrot.slane %v6153, %v6160
    %6162 = vrot.lane.b32.xlu0 %v6157, 112
    %v6163 = vpop.permute.xlu0 %6162
    %6164 = vrot.lane.b32.xlu0 %v6161, 112
    %v6165 = vpop.permute.xlu0 %6164
    %6168 = vst.msk [vmem:[#allocation12 + $0x3] sm:$0x1] %vm1625, %v6163
    %6169 = vst.msk [vmem:[#allocation12 + $0xb] sm:$0x1] %vm1625, %v6165
    %6170 = vrot.lane.b32.xlu0 %v6130, 112
    %v6171 = vpop.permute.xlu0 %6170
    %v6172 = vsel %vm102, %v6171, 0
    %6174 = vmatprep.subr.mxu0 0.0
    %v6175 = vand.u32 %v94, 4294901760
    %6176 = vmatpush1.msra.mxu0 %v6175
    %6177 = vmatprep.subr.mxu0 0.0
    %v6178 = vand.u32 %v95, 4294901760
    %6179 = vmatpush1.msra.mxu0 %v6178
    %6180 = vmatprep.subr.mxu0 0.0
    %6181 = vmatpush1.msra.mxu0 0.0
    %6182 = vmatprep.subr.mxu0 0.0
    %6183 = vmatpush1.msra.mxu0 0.0
    %6184 = vmatprep.subr.mxu0 0.0
    %6185 = vmatpush1.msra.mxu0 0.0
    %6186 = vmatprep.subr.mxu0 0.0
    %6187 = vmatpush1.msra.mxu0 0.0
    %6188 = vmatprep.subr.mxu0 0.0
    %6189 = vmatpush1.msra.mxu0 0.0
    %6190 = vmatprep.subr.mxu0 0.0
    %6191 = vmatpush1.msra.mxu0 0.0
    %6192 = vmatprep.subr.mxu0 0.0
    %6193 = vmatpush1.msra.mxu0 0.0
    %6194 = vmatprep.subr.mxu0 0.0
    %6195 = vmatpush1.msra.mxu0 0.0
    %6196 = vmatprep.subr.mxu0 0.0
    %6197 = vmatpush1.msra.mxu0 0.0
    %6198 = vmatprep.subr.mxu0 0.0
    %6199 = vmatpush1.msra.mxu0 0.0
    %6200 = vmatprep.subr.mxu0 0.0
    %6201 = vmatpush1.msra.mxu0 0.0
    %6202 = vmatprep.subr.mxu0 0.0
    %6203 = vmatpush1.msra.mxu0 0.0
    %6204 = vmatprep.subr.mxu0 0.0
    %6205 = vmatpush1.msra.mxu0 0.0
    %6206 = vmatprep.subr.mxu0 0.0
    %6207 = vmatpush1.msra.mxu0 0.0
    %6208 = vmatprep.subr.mxu0 0.0
    %6209 = vmatpush1.msra.mxu0 0.0
    %6210 = vmatprep.subr.mxu0 0.0
    %6211 = vmatpush1.msra.mxu0 0.0
    %6212 = vmatprep.subr.mxu0 0.0
    %6213 = vmatpush1.msra.mxu0 0.0
    %6214 = vmatprep.subr.mxu0 0.0
    %6215 = vmatpush1.msra.mxu0 0.0
    %6216 = vmatprep.subr.mxu0 0.0
    %6217 = vmatpush1.msra.mxu0 0.0
    %6218 = vmatprep.subr.mxu0 0.0
    %6219 = vmatpush1.msra.mxu0 0.0
    %6220 = vmatprep.subr.mxu0 0.0
    %6221 = vmatpush1.msra.mxu0 0.0
    %6222 = vmatprep.subr.mxu0 0.0
    %6223 = vmatpush1.msra.mxu0 0.0
    %6224 = vmatprep.subr.mxu0 0.0
    %6225 = vmatpush1.msra.mxu0 0.0
    %6226 = vmatprep.subr.mxu0 0.0
    %6227 = vmatpush1.msra.mxu0 0.0
    %6228 = vmatprep.subr.mxu0 0.0
    %6229 = vmatpush1.msra.mxu0 0.0
    %6230 = vmatprep.subr.mxu0 0.0
    %6231 = vmatpush1.msra.mxu0 0.0
    %6232 = vmatprep.subr.mxu0 0.0
    %6233 = vmatpush1.msra.mxu0 0.0
    %6234 = vmatprep.subr.mxu0 0.0
    %6235 = vmatpush1.msra.mxu0 0.0
    %6236 = vmatprep.subr.mxu0 0.0
    %6237 = vmatpush1.msra.mxu0 0.0
    %6238 = vmatprep.subr.mxu0 0.0
    %6239 = vmatpush1.msra.mxu0 0.0
    %6240 = vmatprep.mubr.f32.mxu0 0.0
    %v6241 = vand.u32 %v6172, 4294901760
    %v6242 = vsub.f32 %v6172, %v6241
    %v6243 = vand.u32 %v6242, 4294901760
    %v6244 = vsub.f32 %v6242, %v6243
    %v6245 = vand.u32 %v6244, 4294901760
    %6246 = vmatmul.mubr.f32.gmra.mrb[0].mxu0 %v6245
    %v6247 = vpop.f32.mrb[0].mxu0
    %v6248 = vadd.f32 0.0, %v6247
    %v6249 = vpop.f32.mrb[0].mxu0
    %6250 = vdwg.mxu0
    %6251 = vmatprep.subr.mxu0 0.0
    %v6252 = vand.u32 %v94, 4294901760
    %v6253 = vsub.f32 %v94, %v6252
    %v6254 = vand.u32 %v6253, 4294901760
    %v6255 = vsub.f32 %v6253, %v6254
    %v6256 = vand.u32 %v6255, 4294901760
    %6257 = vmatpush1.msra.mxu0 %v6256
    %6258 = vmatprep.subr.mxu0 0.0
    %v6259 = vand.u32 %v95, 4294901760
    %v6260 = vsub.f32 %v95, %v6259
    %v6261 = vand.u32 %v6260, 4294901760
    %v6262 = vsub.f32 %v6260, %v6261
    %v6263 = vand.u32 %v6262, 4294901760
    %6264 = vmatpush1.msra.mxu0 %v6263
    %6265 = vmatprep.subr.mxu0 0.0
    %6266 = vmatpush1.msra.mxu0 0.0
    %6267 = vmatprep.subr.mxu0 0.0
    %6268 = vmatpush1.msra.mxu0 0.0
    %6269 = vmatprep.subr.mxu0 0.0
    %6270 = vmatpush1.msra.mxu0 0.0
    %6271 = vmatprep.subr.mxu0 0.0
    %6272 = vmatpush1.msra.mxu0 0.0
    %6273 = vmatprep.subr.mxu0 0.0
    %6274 = vmatpush1.msra.mxu0 0.0
    %6275 = vmatprep.subr.mxu0 0.0
    %6276 = vmatpush1.msra.mxu0 0.0
    %6277 = vmatprep.subr.mxu0 0.0
    %6278 = vmatpush1.msra.mxu0 0.0
    %6279 = vmatprep.subr.mxu0 0.0
    %6280 = vmatpush1.msra.mxu0 0.0
    %6281 = vmatprep.subr.mxu0 0.0
    %6282 = vmatpush1.msra.mxu0 0.0
    %6283 = vmatprep.subr.mxu0 0.0
    %6284 = vmatpush1.msra.mxu0 0.0
    %6285 = vmatprep.subr.mxu0 0.0
    %6286 = vmatpush1.msra.mxu0 0.0
    %6287 = vmatprep.subr.mxu0 0.0
    %6288 = vmatpush1.msra.mxu0 0.0
    %6289 = vmatprep.subr.mxu0 0.0
    %6290 = vmatpush1.msra.mxu0 0.0
    %6291 = vmatprep.subr.mxu0 0.0
    %6292 = vmatpush1.msra.mxu0 0.0
    %6293 = vmatprep.subr.mxu0 0.0
    %6294 = vmatpush1.msra.mxu0 0.0
    %6295 = vmatprep.subr.mxu0 0.0
    %6296 = vmatpush1.msra.mxu0 0.0
    %6297 = vmatprep.subr.mxu0 0.0
    %6298 = vmatpush1.msra.mxu0 0.0
    %6299 = vmatprep.subr.mxu0 0.0
    %6300 = vmatpush1.msra.mxu0 0.0
    %6301 = vmatprep.subr.mxu0 0.0
    %6302 = vmatpush1.msra.mxu0 0.0
    %6303 = vmatprep.subr.mxu0 0.0
    %6304 = vmatpush1.msra.mxu0 0.0
    %6305 = vmatprep.subr.mxu0 0.0
    %6306 = vmatpush1.msra.mxu0 0.0
    %6307 = vmatprep.subr.mxu0 0.0
    %6308 = vmatpush1.msra.mxu0 0.0
    %6309 = vmatprep.subr.mxu0 0.0
    %6310 = vmatpush1.msra.mxu0 0.0
    %6311 = vmatprep.subr.mxu0 0.0
    %6312 = vmatpush1.msra.mxu0 0.0
    %6313 = vmatprep.subr.mxu0 0.0
    %6314 = vmatpush1.msra.mxu0 0.0
    %6315 = vmatprep.subr.mxu0 0.0
    %6316 = vmatpush1.msra.mxu0 0.0
    %6317 = vmatprep.subr.mxu0 0.0
    %6318 = vmatpush1.msra.mxu0 0.0
    %6319 = vmatprep.subr.mxu0 0.0
    %6320 = vmatpush1.msra.mxu0 0.0
    %6321 = vmatprep.subr.mxu0 0.0
    %6322 = vmatpush1.msra.mxu0 0.0
    %6323 = vmatprep.subr.mxu0 0.0
    %6324 = vmatpush1.msra.mxu0 0.0
    %6325 = vmatprep.mubr.f32.mxu0 0.0
    %v6326 = vand.u32 %v6172, 4294901760
    %6327 = vmatmul.mubr.f32.gmra.mrb[0].mxu0 %v6326
    %v6328 = vpop.f32.mrb[0].mxu0
    %v6329 = vadd.f32 %v6248, %v6328
    %v6330 = vpop.f32.mrb[0].mxu0
    %6331 = vdwg.mxu0
    %6332 = vmatprep.subr.mxu0 0.0
    %v6333 = vand.u32 %v94, 4294901760
    %v6334 = vsub.f32 %v94, %v6333
    %6335 = vmatpush1.msra.mxu0 %v6334
    %6336 = vmatprep.subr.mxu0 0.0
    %v6337 = vand.u32 %v95, 4294901760
    %v6338 = vsub.f32 %v95, %v6337
    %6339 = vmatpush1.msra.mxu0 %v6338
    %6340 = vmatprep.subr.mxu0 0.0
    %6341 = vmatpush1.msra.mxu0 0.0
    %6342 = vmatprep.subr.mxu0 0.0
    %6343 = vmatpush1.msra.mxu0 0.0
    %6344 = vmatprep.subr.mxu0 0.0
    %6345 = vmatpush1.msra.mxu0 0.0
    %6346 = vmatprep.subr.mxu0 0.0
    %6347 = vmatpush1.msra.mxu0 0.0
    %6348 = vmatprep.subr.mxu0 0.0
    %6349 = vmatpush1.msra.mxu0 0.0
    %6350 = vmatprep.subr.mxu0 0.0
    %6351 = vmatpush1.msra.mxu0 0.0
    %6352 = vmatprep.subr.mxu0 0.0
    %6353 = vmatpush1.msra.mxu0 0.0
    %6354 = vmatprep.subr.mxu0 0.0
    %6355 = vmatpush1.msra.mxu0 0.0
    %6356 = vmatprep.subr.mxu0 0.0
    %6357 = vmatpush1.msra.mxu0 0.0
    %6358 = vmatprep.subr.mxu0 0.0
    %6359 = vmatpush1.msra.mxu0 0.0
    %6360 = vmatprep.subr.mxu0 0.0
    %6361 = vmatpush1.msra.mxu0 0.0
    %6362 = vmatprep.subr.mxu0 0.0
    %6363 = vmatpush1.msra.mxu0 0.0
    %6364 = vmatprep.subr.mxu0 0.0
    %6365 = vmatpush1.msra.mxu0 0.0
    %6366 = vmatprep.subr.mxu0 0.0
    %6367 = vmatpush1.msra.mxu0 0.0
    %6368 = vmatprep.subr.mxu0 0.0
    %6369 = vmatpush1.msra.mxu0 0.0
    %6370 = vmatprep.subr.mxu0 0.0
    %6371 = vmatpush1.msra.mxu0 0.0
    %6372 = vmatprep.subr.mxu0 0.0
    %6373 = vmatpush1.msra.mxu0 0.0
    %6374 = vmatprep.subr.mxu0 0.0
    %6375 = vmatpush1.msra.mxu0 0.0
    %6376 = vmatprep.subr.mxu0 0.0
    %6377 = vmatpush1.msra.mxu0 0.0
    %6378 = vmatprep.subr.mxu0 0.0
    %6379 = vmatpush1.msra.mxu0 0.0
    %6380 = vmatprep.subr.mxu0 0.0
    %6381 = vmatpush1.msra.mxu0 0.0
    %6382 = vmatprep.subr.mxu0 0.0
    %6383 = vmatpush1.msra.mxu0 0.0
    %6384 = vmatprep.subr.mxu0 0.0
    %6385 = vmatpush1.msra.mxu0 0.0
    %6386 = vmatprep.subr.mxu0 0.0
    %6387 = vmatpush1.msra.mxu0 0.0
    %6388 = vmatprep.subr.mxu0 0.0
    %6389 = vmatpush1.msra.mxu0 0.0
    %6390 = vmatprep.subr.mxu0 0.0
    %6391 = vmatpush1.msra.mxu0 0.0
    %6392 = vmatprep.subr.mxu0 0.0
    %6393 = vmatpush1.msra.mxu0 0.0
    %6394 = vmatprep.subr.mxu0 0.0
    %6395 = vmatpush1.msra.mxu0 0.0
    %6396 = vmatprep.subr.mxu0 0.0
    %6397 = vmatpush1.msra.mxu0 0.0
    %6398 = vmatprep.subr.mxu0 0.0
    %6399 = vmatpush1.msra.mxu0 0.0
    %6400 = vmatprep.mubr.f32.mxu0 0.0
    %v6401 = vand.u32 %v6172, 4294901760
    %v6402 = vsub.f32 %v6172, %v6401
    %6403 = vmatmul.mubr.f32.gmra.mrb[0].mxu0 %v6402
    %v6404 = vpop.f32.mrb[0].mxu0
    %v6405 = vadd.f32 %v6329, %v6404
    %v6406 = vpop.f32.mrb[0].mxu0
    %6407 = vdwg.mxu0
    %6408 = vmatprep.subr.mxu0 0.0
    %v6409 = vand.u32 %v94, 4294901760
    %6410 = vmatpush1.msra.mxu0 %v6409
    %6411 = vmatprep.subr.mxu0 0.0
    %v6412 = vand.u32 %v95, 4294901760
    %6413 = vmatpush1.msra.mxu0 %v6412
    %6414 = vmatprep.subr.mxu0 0.0
    %6415 = vmatpush1.msra.mxu0 0.0
    %6416 = vmatprep.subr.mxu0 0.0
    %6417 = vmatpush1.msra.mxu0 0.0
    %6418 = vmatprep.subr.mxu0 0.0
    %6419 = vmatpush1.msra.mxu0 0.0
    %6420 = vmatprep.subr.mxu0 0.0
    %6421 = vmatpush1.msra.mxu0 0.0
    %6422 = vmatprep.subr.mxu0 0.0
    %6423 = vmatpush1.msra.mxu0 0.0
    %6424 = vmatprep.subr.mxu0 0.0
    %6425 = vmatpush1.msra.mxu0 0.0
    %6426 = vmatprep.subr.mxu0 0.0
    %6427 = vmatpush1.msra.mxu0 0.0
    %6428 = vmatprep.subr.mxu0 0.0
    %6429 = vmatpush1.msra.mxu0 0.0
    %6430 = vmatprep.subr.mxu0 0.0
    %6431 = vmatpush1.msra.mxu0 0.0
    %6432 = vmatprep.subr.mxu0 0.0
    %6433 = vmatpush1.msra.mxu0 0.0
    %6434 = vmatprep.subr.mxu0 0.0
    %6435 = vmatpush1.msra.mxu0 0.0
    %6436 = vmatprep.subr.mxu0 0.0
    %6437 = vmatpush1.msra.mxu0 0.0
    %6438 = vmatprep.subr.mxu0 0.0
    %6439 = vmatpush1.msra.mxu0 0.0
    %6440 = vmatprep.subr.mxu0 0.0
    %6441 = vmatpush1.msra.mxu0 0.0
    %6442 = vmatprep.subr.mxu0 0.0
    %6443 = vmatpush1.msra.mxu0 0.0
    %6444 = vmatprep.subr.mxu0 0.0
    %6445 = vmatpush1.msra.mxu0 0.0
    %6446 = vmatprep.subr.mxu0 0.0
    %6447 = vmatpush1.msra.mxu0 0.0
    %6448 = vmatprep.subr.mxu0 0.0
    %6449 = vmatpush1.msra.mxu0 0.0
    %6450 = vmatprep.subr.mxu0 0.0
    %6451 = vmatpush1.msra.mxu0 0.0
    %6452 = vmatprep.subr.mxu0 0.0
    %6453 = vmatpush1.msra.mxu0 0.0
    %6454 = vmatprep.subr.mxu0 0.0
    %6455 = vmatpush1.msra.mxu0 0.0
    %6456 = vmatprep.subr.mxu0 0.0
    %6457 = vmatpush1.msra.mxu0 0.0
    %6458 = vmatprep.subr.mxu0 0.0
    %6459 = vmatpush1.msra.mxu0 0.0
    %6460 = vmatprep.subr.mxu0 0.0
    %6461 = vmatpush1.msra.mxu0 0.0
    %6462 = vmatprep.subr.mxu0 0.0
    %6463 = vmatpush1.msra.mxu0 0.0
    %6464 = vmatprep.subr.mxu0 0.0
    %6465 = vmatpush1.msra.mxu0 0.0
    %6466 = vmatprep.subr.mxu0 0.0
    %6467 = vmatpush1.msra.mxu0 0.0
    %6468 = vmatprep.subr.mxu0 0.0
    %6469 = vmatpush1.msra.mxu0 0.0
    %6470 = vmatprep.subr.mxu0 0.0
    %6471 = vmatpush1.msra.mxu0 0.0
    %6472 = vmatprep.subr.mxu0 0.0
    %6473 = vmatpush1.msra.mxu0 0.0
    %6474 = vmatprep.mubr.f32.mxu0 0.0
    %v6475 = vand.u32 %v6172, 4294901760
    %v6476 = vsub.f32 %v6172, %v6475
    %v6477 = vand.u32 %v6476, 4294901760
    %6478 = vmatmul.mubr.f32.gmra.mrb[0].mxu0 %v6477
    %v6479 = vpop.f32.mrb[0].mxu0
    %v6480 = vadd.f32 %v6405, %v6479
    %v6481 = vpop.f32.mrb[0].mxu0
    %6482 = vdwg.mxu0
    %6483 = vmatprep.subr.mxu0 0.0
    %v6484 = vand.u32 %v94, 4294901760
    %v6485 = vsub.f32 %v94, %v6484
    %v6486 = vand.u32 %v6485, 4294901760
    %6487 = vmatpush1.msra.mxu0 %v6486
    %6488 = vmatprep.subr.mxu0 0.0
    %v6489 = vand.u32 %v95, 4294901760
    %v6490 = vsub.f32 %v95, %v6489
    %v6491 = vand.u32 %v6490, 4294901760
    %6492 = vmatpush1.msra.mxu0 %v6491
    %6493 = vmatprep.subr.mxu0 0.0
    %6494 = vmatpush1.msra.mxu0 0.0
    %6495 = vmatprep.subr.mxu0 0.0
    %6496 = vmatpush1.msra.mxu0 0.0
    %6497 = vmatprep.subr.mxu0 0.0
    %6498 = vmatpush1.msra.mxu0 0.0
    %6499 = vmatprep.subr.mxu0 0.0
    %6500 = vmatpush1.msra.mxu0 0.0
    %6501 = vmatprep.subr.mxu0 0.0
    %6502 = vmatpush1.msra.mxu0 0.0
    %6503 = vmatprep.subr.mxu0 0.0
    %6504 = vmatpush1.msra.mxu0 0.0
    %6505 = vmatprep.subr.mxu0 0.0
    %6506 = vmatpush1.msra.mxu0 0.0
    %6507 = vmatprep.subr.mxu0 0.0
    %6508 = vmatpush1.msra.mxu0 0.0
    %6509 = vmatprep.subr.mxu0 0.0
    %6510 = vmatpush1.msra.mxu0 0.0
    %6511 = vmatprep.subr.mxu0 0.0
    %6512 = vmatpush1.msra.mxu0 0.0
    %6513 = vmatprep.subr.mxu0 0.0
    %6514 = vmatpush1.msra.mxu0 0.0
    %6515 = vmatprep.subr.mxu0 0.0
    %6516 = vmatpush1.msra.mxu0 0.0
    %6517 = vmatprep.subr.mxu0 0.0
    %6518 = vmatpush1.msra.mxu0 0.0
    %6519 = vmatprep.subr.mxu0 0.0
    %6520 = vmatpush1.msra.mxu0 0.0
    %6521 = vmatprep.subr.mxu0 0.0
    %6522 = vmatpush1.msra.mxu0 0.0
    %6523 = vmatprep.subr.mxu0 0.0
    %6524 = vmatpush1.msra.mxu0 0.0
    %6525 = vmatprep.subr.mxu0 0.0
    %6526 = vmatpush1.msra.mxu0 0.0
    %6527 = vmatprep.subr.mxu0 0.0
    %6528 = vmatpush1.msra.mxu0 0.0
    %6529 = vmatprep.subr.mxu0 0.0
    %6530 = vmatpush1.msra.mxu0 0.0
    %6531 = vmatprep.subr.mxu0 0.0
    %6532 = vmatpush1.msra.mxu0 0.0
    %6533 = vmatprep.subr.mxu0 0.0
    %6534 = vmatpush1.msra.mxu0 0.0
    %6535 = vmatprep.subr.mxu0 0.0
    %6536 = vmatpush1.msra.mxu0 0.0
    %6537 = vmatprep.subr.mxu0 0.0
    %6538 = vmatpush1.msra.mxu0 0.0
    %6539 = vmatprep.subr.mxu0 0.0
    %6540 = vmatpush1.msra.mxu0 0.0
    %6541 = vmatprep.subr.mxu0 0.0
    %6542 = vmatpush1.msra.mxu0 0.0
    %6543 = vmatprep.subr.mxu0 0.0
    %6544 = vmatpush1.msra.mxu0 0.0
    %6545 = vmatprep.subr.mxu0 0.0
    %6546 = vmatpush1.msra.mxu0 0.0
    %6547 = vmatprep.subr.mxu0 0.0
    %6548 = vmatpush1.msra.mxu0 0.0
    %6549 = vmatprep.subr.mxu0 0.0
    %6550 = vmatpush1.msra.mxu0 0.0
    %6551 = vmatprep.subr.mxu0 0.0
    %6552 = vmatpush1.msra.mxu0 0.0
    %6553 = vmatprep.mubr.f32.mxu0 0.0
    %v6554 = vand.u32 %v6172, 4294901760
    %6555 = vmatmul.mubr.f32.gmra.mrb[0].mxu0 %v6554
    %v6556 = vpop.f32.mrb[0].mxu0
    %v6557 = vadd.f32 %v6480, %v6556
    %v6558 = vpop.f32.mrb[0].mxu0
    %6559 = vdwg.mxu0
    %6560 = vmatprep.subr.mxu0 0.0
    %v6561 = vand.u32 %v94, 4294901760
    %6562 = vmatpush1.msra.mxu0 %v6561
    %6563 = vmatprep.subr.mxu0 0.0
    %v6564 = vand.u32 %v95, 4294901760
    %6565 = vmatpush1.msra.mxu0 %v6564
    %6566 = vmatprep.subr.mxu0 0.0
    %6567 = vmatpush1.msra.mxu0 0.0
    %6568 = vmatprep.subr.mxu0 0.0
    %6569 = vmatpush1.msra.mxu0 0.0
    %6570 = vmatprep.subr.mxu0 0.0
    %6571 = vmatpush1.msra.mxu0 0.0
    %6572 = vmatprep.subr.mxu0 0.0
    %6573 = vmatpush1.msra.mxu0 0.0
    %6574 = vmatprep.subr.mxu0 0.0
    %6575 = vmatpush1.msra.mxu0 0.0
    %6576 = vmatprep.subr.mxu0 0.0
    %6577 = vmatpush1.msra.mxu0 0.0
    %6578 = vmatprep.subr.mxu0 0.0
    %6579 = vmatpush1.msra.mxu0 0.0
    %6580 = vmatprep.subr.mxu0 0.0
    %6581 = vmatpush1.msra.mxu0 0.0
    %6582 = vmatprep.subr.mxu0 0.0
    %6583 = vmatpush1.msra.mxu0 0.0
    %6584 = vmatprep.subr.mxu0 0.0
    %6585 = vmatpush1.msra.mxu0 0.0
    %6586 = vmatprep.subr.mxu0 0.0
    %6587 = vmatpush1.msra.mxu0 0.0
    %6588 = vmatprep.subr.mxu0 0.0
    %6589 = vmatpush1.msra.mxu0 0.0
    %6590 = vmatprep.subr.mxu0 0.0
    %6591 = vmatpush1.msra.mxu0 0.0
    %6592 = vmatprep.subr.mxu0 0.0
    %6593 = vmatpush1.msra.mxu0 0.0
    %6594 = vmatprep.subr.mxu0 0.0
    %6595 = vmatpush1.msra.mxu0 0.0
    %6596 = vmatprep.subr.mxu0 0.0
    %6597 = vmatpush1.msra.mxu0 0.0
    %6598 = vmatprep.subr.mxu0 0.0
    %6599 = vmatpush1.msra.mxu0 0.0
    %6600 = vmatprep.subr.mxu0 0.0
    %6601 = vmatpush1.msra.mxu0 0.0
    %6602 = vmatprep.subr.mxu0 0.0
    %6603 = vmatpush1.msra.mxu0 0.0
    %6604 = vmatprep.subr.mxu0 0.0
    %6605 = vmatpush1.msra.mxu0 0.0
    %6606 = vmatprep.subr.mxu0 0.0
    %6607 = vmatpush1.msra.mxu0 0.0
    %6608 = vmatprep.subr.mxu0 0.0
    %6609 = vmatpush1.msra.mxu0 0.0
    %6610 = vmatprep.subr.mxu0 0.0
    %6611 = vmatpush1.msra.mxu0 0.0
    %6612 = vmatprep.subr.mxu0 0.0
    %6613 = vmatpush1.msra.mxu0 0.0
    %6614 = vmatprep.subr.mxu0 0.0
    %6615 = vmatpush1.msra.mxu0 0.0
    %6616 = vmatprep.subr.mxu0 0.0
    %6617 = vmatpush1.msra.mxu0 0.0
    %6618 = vmatprep.subr.mxu0 0.0
    %6619 = vmatpush1.msra.mxu0 0.0
    %6620 = vmatprep.subr.mxu0 0.0
    %6621 = vmatpush1.msra.mxu0 0.0
    %6622 = vmatprep.subr.mxu0 0.0
    %6623 = vmatpush1.msra.mxu0 0.0
    %6624 = vmatprep.subr.mxu0 0.0
    %6625 = vmatpush1.msra.mxu0 0.0
    %6626 = vmatprep.mubr.f32.mxu0 0.0
    %v6627 = vand.u32 %v6172, 4294901760
    %6628 = vmatmul.mubr.f32.gmra.mrb[0].mxu0 %v6627
    %v6629 = vpop.f32.mrb[0].mxu0
    %v6630 = vadd.f32 %v6557, %v6629
    %v6631 = vpop.f32.mrb[0].mxu0
    %6632 = vdwg.mxu0
    %v6633 = vld [vmem:[#allocation4 + $0x4] sm:$0x1]
    %v6634 = vld [vmem:[#allocation4 + $0xc] sm:$0x1]
    %6635 = vmatprep.subr.mxu0 0.0
    %v6636 = vand.u32 %v86, 4294901760
    %6637 = vmatpush1.msra.mxu0 %v6636
    %6638 = vmatprep.subr.mxu0 0.0
    %v6639 = vand.u32 %v87, 4294901760
    %6640 = vmatpush1.msra.mxu0 %v6639
    %6641 = vmatprep.subr.mxu0 0.0
    %v6642 = vand.u32 %v88, 4294901760
    %6643 = vmatpush1.msra.mxu0 %v6642
    %6644 = vmatprep.subr.mxu0 0.0
    %v6645 = vand.u32 %v89, 4294901760
    %6646 = vmatpush1.msra.mxu0 %v6645
    %6647 = vmatprep.subr.mxu0 0.0
    %6648 = vmatpush1.msra.mxu0 0.0
    %6649 = vmatprep.subr.mxu0 0.0
    %6650 = vmatpush1.msra.mxu0 0.0
    %6651 = vmatprep.subr.mxu0 0.0
    %6652 = vmatpush1.msra.mxu0 0.0
    %6653 = vmatprep.subr.mxu0 0.0
    %6654 = vmatpush1.msra.mxu0 0.0
    %6655 = vmatprep.subr.mxu0 0.0
    %6656 = vmatpush1.msra.mxu0 0.0
    %6657 = vmatprep.subr.mxu0 0.0
    %6658 = vmatpush1.msra.mxu0 0.0
    %6659 = vmatprep.subr.mxu0 0.0
    %6660 = vmatpush1.msra.mxu0 0.0
    %6661 = vmatprep.subr.mxu0 0.0
    %6662 = vmatpush1.msra.mxu0 0.0
    %6663 = vmatprep.subr.mxu0 0.0
    %6664 = vmatpush1.msra.mxu0 0.0
    %6665 = vmatprep.subr.mxu0 0.0
    %6666 = vmatpush1.msra.mxu0 0.0
    %6667 = vmatprep.subr.mxu0 0.0
    %6668 = vmatpush1.msra.mxu0 0.0
    %6669 = vmatprep.subr.mxu0 0.0
    %6670 = vmatpush1.msra.mxu0 0.0
    %6671 = vmatprep.subr.mxu0 0.0
    %6672 = vmatpush1.msra.mxu0 0.0
    %6673 = vmatprep.subr.mxu0 0.0
    %6674 = vmatpush1.msra.mxu0 0.0
    %6675 = vmatprep.subr.mxu0 0.0
    %6676 = vmatpush1.msra.mxu0 0.0
    %6677 = vmatprep.subr.mxu0 0.0
    %6678 = vmatpush1.msra.mxu0 0.0
    %6679 = vmatprep.subr.mxu0 0.0
    %6680 = vmatpush1.msra.mxu0 0.0
    %6681 = vmatprep.subr.mxu0 0.0
    %6682 = vmatpush1.msra.mxu0 0.0
    %6683 = vmatprep.subr.mxu0 0.0
    %6684 = vmatpush1.msra.mxu0 0.0
    %6685 = vmatprep.subr.mxu0 0.0
    %6686 = vmatpush1.msra.mxu0 0.0
    %6687 = vmatprep.subr.mxu0 0.0
    %6688 = vmatpush1.msra.mxu0 0.0
    %6689 = vmatprep.subr.mxu0 0.0
    %6690 = vmatpush1.msra.mxu0 0.0
    %6691 = vmatprep.subr.mxu0 0.0
    %6692 = vmatpush1.msra.mxu0 0.0
    %6693 = vmatprep.subr.mxu0 0.0
    %6694 = vmatpush1.msra.mxu0 0.0
    %6695 = vmatprep.subr.mxu0 0.0
    %6696 = vmatpush1.msra.mxu0 0.0
    %6697 = vmatprep.subr.mxu0 0.0
    %6698 = vmatpush1.msra.mxu0 0.0
    %6699 = vmatprep.subr.mxu0 0.0
    %6700 = vmatpush1.msra.mxu0 0.0
    %6701 = vmatprep.subr.mxu0 0.0
    %6702 = vmatpush1.msra.mxu0 0.0
    %6703 = vmatprep.mubr.f32.mxu0 0.0
    %v6704 = vand.u32 %v5624, 4294901760
    %v6705 = vsub.f32 %v5624, %v6704
    %v6706 = vand.u32 %v6705, 4294901760
    %v6707 = vsub.f32 %v6705, %v6706
    %v6708 = vand.u32 %v6707, 4294901760
    %6709 = vmatmul.mubr.f32.gmra.mrb[0].mxu0 %v6708
    %v6710 = vpop.f32.mrb[0].mxu0
    %v6711 = vadd.f32 0.0, %v6710
    %v6712 = vpop.f32.mrb[0].mxu0
    %6713 = vdwg.mxu0
    %6714 = vmatprep.subr.mxu0 0.0
    %v6715 = vand.u32 %v86, 4294901760
    %v6716 = vsub.f32 %v86, %v6715
    %v6717 = vand.u32 %v6716, 4294901760
    %v6718 = vsub.f32 %v6716, %v6717
    %v6719 = vand.u32 %v6718, 4294901760
    %6720 = vmatpush1.msra.mxu0 %v6719
    %6721 = vmatprep.subr.mxu0 0.0
    %v6722 = vand.u32 %v87, 4294901760
    %v6723 = vsub.f32 %v87, %v6722
    %v6724 = vand.u32 %v6723, 4294901760
    %v6725 = vsub.f32 %v6723, %v6724
    %v6726 = vand.u32 %v6725, 4294901760
    %6727 = vmatpush1.msra.mxu0 %v6726
    %6728 = vmatprep.subr.mxu0 0.0
    %v6729 = vand.u32 %v88, 4294901760
    %v6730 = vsub.f32 %v88, %v6729
    %v6731 = vand.u32 %v6730, 4294901760
    %v6732 = vsub.f32 %v6730, %v6731
    %v6733 = vand.u32 %v6732, 4294901760
    %6734 = vmatpush1.msra.mxu0 %v6733
    %6735 = vmatprep.subr.mxu0 0.0
    %v6736 = vand.u32 %v89, 4294901760
    %v6737 = vsub.f32 %v89, %v6736
    %v6738 = vand.u32 %v6737, 4294901760
    %v6739 = vsub.f32 %v6737, %v6738
    %v6740 = vand.u32 %v6739, 4294901760
    %6741 = vmatpush1.msra.mxu0 %v6740
    %6742 = vmatprep.subr.mxu0 0.0
    %6743 = vmatpush1.msra.mxu0 0.0
    %6744 = vmatprep.subr.mxu0 0.0
    %6745 = vmatpush1.msra.mxu0 0.0
    %6746 = vmatprep.subr.mxu0 0.0
    %6747 = vmatpush1.msra.mxu0 0.0
    %6748 = vmatprep.subr.mxu0 0.0
    %6749 = vmatpush1.msra.mxu0 0.0
    %6750 = vmatprep.subr.mxu0 0.0
    %6751 = vmatpush1.msra.mxu0 0.0
    %6752 = vmatprep.subr.mxu0 0.0
    %6753 = vmatpush1.msra.mxu0 0.0
    %6754 = vmatprep.subr.mxu0 0.0
    %6755 = vmatpush1.msra.mxu0 0.0
    %6756 = vmatprep.subr.mxu0 0.0
    %6757 = vmatpush1.msra.mxu0 0.0
    %6758 = vmatprep.subr.mxu0 0.0
    %6759 = vmatpush1.msra.mxu0 0.0
    %6760 = vmatprep.subr.mxu0 0.0
    %6761 = vmatpush1.msra.mxu0 0.0
    %6762 = vmatprep.subr.mxu0 0.0
    %6763 = vmatpush1.msra.mxu0 0.0
    %6764 = vmatprep.subr.mxu0 0.0
    %6765 = vmatpush1.msra.mxu0 0.0
    %6766 = vmatprep.subr.mxu0 0.0
    %6767 = vmatpush1.msra.mxu0 0.0
    %6768 = vmatprep.subr.mxu0 0.0
    %6769 = vmatpush1.msra.mxu0 0.0
    %6770 = vmatprep.subr.mxu0 0.0
    %6771 = vmatpush1.msra.mxu0 0.0
    %6772 = vmatprep.subr.mxu0 0.0
    %6773 = vmatpush1.msra.mxu0 0.0
    %6774 = vmatprep.subr.mxu0 0.0
    %6775 = vmatpush1.msra.mxu0 0.0
    %6776 = vmatprep.subr.mxu0 0.0
    %6777 = vmatpush1.msra.mxu0 0.0
    %6778 = vmatprep.subr.mxu0 0.0
    %6779 = vmatpush1.msra.mxu0 0.0
    %6780 = vmatprep.subr.mxu0 0.0
    %6781 = vmatpush1.msra.mxu0 0.0
    %6782 = vmatprep.subr.mxu0 0.0
    %6783 = vmatpush1.msra.mxu0 0.0
    %6784 = vmatprep.subr.mxu0 0.0
    %6785 = vmatpush1.msra.mxu0 0.0
    %6786 = vmatprep.subr.mxu0 0.0
    %6787 = vmatpush1.msra.mxu0 0.0
    %6788 = vmatprep.subr.mxu0 0.0
    %6789 = vmatpush1.msra.mxu0 0.0
    %6790 = vmatprep.subr.mxu0 0.0
    %6791 = vmatpush1.msra.mxu0 0.0
    %6792 = vmatprep.subr.mxu0 0.0
    %6793 = vmatpush1.msra.mxu0 0.0
    %6794 = vmatprep.subr.mxu0 0.0
    %6795 = vmatpush1.msra.mxu0 0.0
    %6796 = vmatprep.subr.mxu0 0.0
    %6797 = vmatpush1.msra.mxu0 0.0
    %6798 = vmatprep.mubr.f32.mxu0 0.0
    %v6799 = vand.u32 %v5624, 4294901760
    %6800 = vmatmul.mubr.f32.gmra.mrb[0].mxu0 %v6799
    %v6801 = vpop.f32.mrb[0].mxu0
    %v6802 = vadd.f32 %v6711, %v6801
    %v6803 = vpop.f32.mrb[0].mxu0
    %6804 = vdwg.mxu0
    %6805 = vmatprep.subr.mxu0 0.0
    %v6806 = vand.u32 %v86, 4294901760
    %v6807 = vsub.f32 %v86, %v6806
    %6808 = vmatpush1.msra.mxu0 %v6807
    %6809 = vmatprep.subr.mxu0 0.0
    %v6810 = vand.u32 %v87, 4294901760
    %v6811 = vsub.f32 %v87, %v6810
    %6812 = vmatpush1.msra.mxu0 %v6811
    %6813 = vmatprep.subr.mxu0 0.0
    %v6814 = vand.u32 %v88, 4294901760
    %v6815 = vsub.f32 %v88, %v6814
    %6816 = vmatpush1.msra.mxu0 %v6815
    %6817 = vmatprep.subr.mxu0 0.0
    %v6818 = vand.u32 %v89, 4294901760
    %v6819 = vsub.f32 %v89, %v6818
    %6820 = vmatpush1.msra.mxu0 %v6819
    %6821 = vmatprep.subr.mxu0 0.0
    %6822 = vmatpush1.msra.mxu0 0.0
    %6823 = vmatprep.subr.mxu0 0.0
    %6824 = vmatpush1.msra.mxu0 0.0
    %6825 = vmatprep.subr.mxu0 0.0
    %6826 = vmatpush1.msra.mxu0 0.0
    %6827 = vmatprep.subr.mxu0 0.0
    %6828 = vmatpush1.msra.mxu0 0.0
    %6829 = vmatprep.subr.mxu0 0.0
    %6830 = vmatpush1.msra.mxu0 0.0
    %6831 = vmatprep.subr.mxu0 0.0
    %6832 = vmatpush1.msra.mxu0 0.0
    %6833 = vmatprep.subr.mxu0 0.0
    %6834 = vmatpush1.msra.mxu0 0.0
    %6835 = vmatprep.subr.mxu0 0.0
    %6836 = vmatpush1.msra.mxu0 0.0
    %6837 = vmatprep.subr.mxu0 0.0
    %6838 = vmatpush1.msra.mxu0 0.0
    %6839 = vmatprep.subr.mxu0 0.0
    %6840 = vmatpush1.msra.mxu0 0.0
    %6841 = vmatprep.subr.mxu0 0.0
    %6842 = vmatpush1.msra.mxu0 0.0
    %6843 = vmatprep.subr.mxu0 0.0
    %6844 = vmatpush1.msra.mxu0 0.0
    %6845 = vmatprep.subr.mxu0 0.0
    %6846 = vmatpush1.msra.mxu0 0.0
    %6847 = vmatprep.subr.mxu0 0.0
    %6848 = vmatpush1.msra.mxu0 0.0
    %6849 = vmatprep.subr.mxu0 0.0
    %6850 = vmatpush1.msra.mxu0 0.0
    %6851 = vmatprep.subr.mxu0 0.0
    %6852 = vmatpush1.msra.mxu0 0.0
    %6853 = vmatprep.subr.mxu0 0.0
    %6854 = vmatpush1.msra.mxu0 0.0
    %6855 = vmatprep.subr.mxu0 0.0
    %6856 = vmatpush1.msra.mxu0 0.0
    %6857 = vmatprep.subr.mxu0 0.0
    %6858 = vmatpush1.msra.mxu0 0.0
    %6859 = vmatprep.subr.mxu0 0.0
    %6860 = vmatpush1.msra.mxu0 0.0
    %6861 = vmatprep.subr.mxu0 0.0
    %6862 = vmatpush1.msra.mxu0 0.0
    %6863 = vmatprep.subr.mxu0 0.0
    %6864 = vmatpush1.msra.mxu0 0.0
    %6865 = vmatprep.subr.mxu0 0.0
    %6866 = vmatpush1.msra.mxu0 0.0
    %6867 = vmatprep.subr.mxu0 0.0
    %6868 = vmatpush1.msra.mxu0 0.0
    %6869 = vmatprep.subr.mxu0 0.0
    %6870 = vmatpush1.msra.mxu0 0.0
    %6871 = vmatprep.subr.mxu0 0.0
    %6872 = vmatpush1.msra.mxu0 0.0
    %6873 = vmatprep.subr.mxu0 0.0
    %6874 = vmatpush1.msra.mxu0 0.0
    %6875 = vmatprep.subr.mxu0 0.0
    %6876 = vmatpush1.msra.mxu0 0.0
    %6877 = vmatprep.mubr.f32.mxu0 0.0
    %v6878 = vand.u32 %v5624, 4294901760
    %v6879 = vsub.f32 %v5624, %v6878
    %6880 = vmatmul.mubr.f32.gmra.mrb[0].mxu0 %v6879
    %v6881 = vpop.f32.mrb[0].mxu0
    %v6882 = vadd.f32 %v6802, %v6881
    %v6883 = vpop.f32.mrb[0].mxu0
    %6884 = vdwg.mxu0
    %6885 = vmatprep.subr.mxu0 0.0
    %v6886 = vand.u32 %v86, 4294901760
    %6887 = vmatpush1.msra.mxu0 %v6886
    %6888 = vmatprep.subr.mxu0 0.0
    %v6889 = vand.u32 %v87, 4294901760
    %6890 = vmatpush1.msra.mxu0 %v6889
    %6891 = vmatprep.subr.mxu0 0.0
    %v6892 = vand.u32 %v88, 4294901760
    %6893 = vmatpush1.msra.mxu0 %v6892
    %6894 = vmatprep.subr.mxu0 0.0
    %v6895 = vand.u32 %v89, 4294901760
    %6896 = vmatpush1.msra.mxu0 %v6895
    %6897 = vmatprep.subr.mxu0 0.0
    %6898 = vmatpush1.msra.mxu0 0.0
    %6899 = vmatprep.subr.mxu0 0.0
    %6900 = vmatpush1.msra.mxu0 0.0
    %6901 = vmatprep.subr.mxu0 0.0
    %6902 = vmatpush1.msra.mxu0 0.0
    %6903 = vmatprep.subr.mxu0 0.0
    %6904 = vmatpush1.msra.mxu0 0.0
    %6905 = vmatprep.subr.mxu0 0.0
    %6906 = vmatpush1.msra.mxu0 0.0
    %6907 = vmatprep.subr.mxu0 0.0
    %6908 = vmatpush1.msra.mxu0 0.0
    %6909 = vmatprep.subr.mxu0 0.0
    %6910 = vmatpush1.msra.mxu0 0.0
    %6911 = vmatprep.subr.mxu0 0.0
    %6912 = vmatpush1.msra.mxu0 0.0
    %6913 = vmatprep.subr.mxu0 0.0
    %6914 = vmatpush1.msra.mxu0 0.0
    %6915 = vmatprep.subr.mxu0 0.0
    %6916 = vmatpush1.msra.mxu0 0.0
    %6917 = vmatprep.subr.mxu0 0.0
    %6918 = vmatpush1.msra.mxu0 0.0
    %6919 = vmatprep.subr.mxu0 0.0
    %6920 = vmatpush1.msra.mxu0 0.0
    %6921 = vmatprep.subr.mxu0 0.0
    %6922 = vmatpush1.msra.mxu0 0.0
    %6923 = vmatprep.subr.mxu0 0.0
    %6924 = vmatpush1.msra.mxu0 0.0
    %6925 = vmatprep.subr.mxu0 0.0
    %6926 = vmatpush1.msra.mxu0 0.0
    %6927 = vmatprep.subr.mxu0 0.0
    %6928 = vmatpush1.msra.mxu0 0.0
    %6929 = vmatprep.subr.mxu0 0.0
    %6930 = vmatpush1.msra.mxu0 0.0
    %6931 = vmatprep.subr.mxu0 0.0
    %6932 = vmatpush1.msra.mxu0 0.0
    %6933 = vmatprep.subr.mxu0 0.0
    %6934 = vmatpush1.msra.mxu0 0.0
    %6935 = vmatprep.subr.mxu0 0.0
    %6936 = vmatpush1.msra.mxu0 0.0
    %6937 = vmatprep.subr.mxu0 0.0
    %6938 = vmatpush1.msra.mxu0 0.0
    %6939 = vmatprep.subr.mxu0 0.0
    %6940 = vmatpush1.msra.mxu0 0.0
    %6941 = vmatprep.subr.mxu0 0.0
    %6942 = vmatpush1.msra.mxu0 0.0
    %6943 = vmatprep.subr.mxu0 0.0
    %6944 = vmatpush1.msra.mxu0 0.0
    %6945 = vmatprep.subr.mxu0 0.0
    %6946 = vmatpush1.msra.mxu0 0.0
    %6947 = vmatprep.subr.mxu0 0.0
    %6948 = vmatpush1.msra.mxu0 0.0
    %6949 = vmatprep.subr.mxu0 0.0
    %6950 = vmatpush1.msra.mxu0 0.0
    %6951 = vmatprep.subr.mxu0 0.0
    %6952 = vmatpush1.msra.mxu0 0.0
    %6953 = vmatprep.mubr.f32.mxu0 0.0
    %v6954 = vand.u32 %v5624, 4294901760
    %v6955 = vsub.f32 %v5624, %v6954
    %v6956 = vand.u32 %v6955, 4294901760
    %6957 = vmatmul.mubr.f32.gmra.mrb[0].mxu0 %v6956
    %v6958 = vpop.f32.mrb[0].mxu0
    %v6959 = vadd.f32 %v6882, %v6958
    %v6960 = vpop.f32.mrb[0].mxu0
    %6961 = vdwg.mxu0
    %6962 = vmatprep.subr.mxu0 0.0
    %v6963 = vand.u32 %v86, 4294901760
    %v6964 = vsub.f32 %v86, %v6963
    %v6965 = vand.u32 %v6964, 4294901760
    %6966 = vmatpush1.msra.mxu0 %v6965
    %6967 = vmatprep.subr.mxu0 0.0
    %v6968 = vand.u32 %v87, 4294901760
    %v6969 = vsub.f32 %v87, %v6968
    %v6970 = vand.u32 %v6969, 4294901760
    %6971 = vmatpush1.msra.mxu0 %v6970
    %6972 = vmatprep.subr.mxu0 0.0
    %v6973 = vand.u32 %v88, 4294901760
    %v6974 = vsub.f32 %v88, %v6973
    %v6975 = vand.u32 %v6974, 4294901760
    %6976 = vmatpush1.msra.mxu0 %v6975
    %6977 = vmatprep.subr.mxu0 0.0
    %v6978 = vand.u32 %v89, 4294901760
    %v6979 = vsub.f32 %v89, %v6978
    %v6980 = vand.u32 %v6979, 4294901760
    %6981 = vmatpush1.msra.mxu0 %v6980
    %6982 = vmatprep.subr.mxu0 0.0
    %6983 = vmatpush1.msra.mxu0 0.0
    %6984 = vmatprep.subr.mxu0 0.0
    %6985 = vmatpush1.msra.mxu0 0.0
    %6986 = vmatprep.subr.mxu0 0.0
    %6987 = vmatpush1.msra.mxu0 0.0
    %6988 = vmatprep.subr.mxu0 0.0
    %6989 = vmatpush1.msra.mxu0 0.0
    %6990 = vmatprep.subr.mxu0 0.0
    %6991 = vmatpush1.msra.mxu0 0.0
    %6992 = vmatprep.subr.mxu0 0.0
    %6993 = vmatpush1.msra.mxu0 0.0
    %6994 = vmatprep.subr.mxu0 0.0
    %6995 = vmatpush1.msra.mxu0 0.0
    %6996 = vmatprep.subr.mxu0 0.0
    %6997 = vmatpush1.msra.mxu0 0.0
    %6998 = vmatprep.subr.mxu0 0.0
    %6999 = vmatpush1.msra.mxu0 0.0
    %7000 = vmatprep.subr.mxu0 0.0
    %7001 = vmatpush1.msra.mxu0 0.0
    %7002 = vmatprep.subr.mxu0 0.0
    %7003 = vmatpush1.msra.mxu0 0.0
    %7004 = vmatprep.subr.mxu0 0.0
    %7005 = vmatpush1.msra.mxu0 0.0
    %7006 = vmatprep.subr.mxu0 0.0
    %7007 = vmatpush1.msra.mxu0 0.0
    %7008 = vmatprep.subr.mxu0 0.0
    %7009 = vmatpush1.msra.mxu0 0.0
    %7010 = vmatprep.subr.mxu0 0.0
    %7011 = vmatpush1.msra.mxu0 0.0
    %7012 = vmatprep.subr.mxu0 0.0
    %7013 = vmatpush1.msra.mxu0 0.0
    %7014 = vmatprep.subr.mxu0 0.0
    %7015 = vmatpush1.msra.mxu0 0.0
    %7016 = vmatprep.subr.mxu0 0.0
    %7017 = vmatpush1.msra.mxu0 0.0
    %7018 = vmatprep.subr.mxu0 0.0
    %7019 = vmatpush1.msra.mxu0 0.0
    %7020 = vmatprep.subr.mxu0 0.0
    %7021 = vmatpush1.msra.mxu0 0.0
    %7022 = vmatprep.subr.mxu0 0.0
    %7023 = vmatpush1.msra.mxu0 0.0
    %7024 = vmatprep.subr.mxu0 0.0
    %7025 = vmatpush1.msra.mxu0 0.0
    %7026 = vmatprep.subr.mxu0 0.0
    %7027 = vmatpush1.msra.mxu0 0.0
    %7028 = vmatprep.subr.mxu0 0.0
    %7029 = vmatpush1.msra.mxu0 0.0
    %7030 = vmatprep.subr.mxu0 0.0
    %7031 = vmatpush1.msra.mxu0 0.0
    %7032 = vmatprep.subr.mxu0 0.0
    %7033 = vmatpush1.msra.mxu0 0.0
    %7034 = vmatprep.subr.mxu0 0.0
    %7035 = vmatpush1.msra.mxu0 0.0
    %7036 = vmatprep.subr.mxu0 0.0
    %7037 = vmatpush1.msra.mxu0 0.0
    %7038 = vmatprep.mubr.f32.mxu0 0.0
    %v7039 = vand.u32 %v5624, 4294901760
    %7040 = vmatmul.mubr.f32.gmra.mrb[0].mxu0 %v7039
    %v7041 = vpop.f32.mrb[0].mxu0
    %v7042 = vadd.f32 %v6959, %v7041
    %v7043 = vpop.f32.mrb[0].mxu0
    %7044 = vdwg.mxu0
    %7045 = vmatprep.subr.mxu0 0.0
    %v7046 = vand.u32 %v86, 4294901760
    %7047 = vmatpush1.msra.mxu0 %v7046
    %7048 = vmatprep.subr.mxu0 0.0
    %v7049 = vand.u32 %v87, 4294901760
    %7050 = vmatpush1.msra.mxu0 %v7049
    %7051 = vmatprep.subr.mxu0 0.0
    %v7052 = vand.u32 %v88, 4294901760
    %7053 = vmatpush1.msra.mxu0 %v7052
    %7054 = vmatprep.subr.mxu0 0.0
    %v7055 = vand.u32 %v89, 4294901760
    %7056 = vmatpush1.msra.mxu0 %v7055
    %7057 = vmatprep.subr.mxu0 0.0
    %7058 = vmatpush1.msra.mxu0 0.0
    %7059 = vmatprep.subr.mxu0 0.0
    %7060 = vmatpush1.msra.mxu0 0.0
    %7061 = vmatprep.subr.mxu0 0.0
    %7062 = vmatpush1.msra.mxu0 0.0
    %7063 = vmatprep.subr.mxu0 0.0
    %7064 = vmatpush1.msra.mxu0 0.0
    %7065 = vmatprep.subr.mxu0 0.0
    %7066 = vmatpush1.msra.mxu0 0.0
    %7067 = vmatprep.subr.mxu0 0.0
    %7068 = vmatpush1.msra.mxu0 0.0
    %7069 = vmatprep.subr.mxu0 0.0
    %7070 = vmatpush1.msra.mxu0 0.0
    %7071 = vmatprep.subr.mxu0 0.0
    %7072 = vmatpush1.msra.mxu0 0.0
    %7073 = vmatprep.subr.mxu0 0.0
    %7074 = vmatpush1.msra.mxu0 0.0
    %7075 = vmatprep.subr.mxu0 0.0
    %7076 = vmatpush1.msra.mxu0 0.0
    %7077 = vmatprep.subr.mxu0 0.0
    %7078 = vmatpush1.msra.mxu0 0.0
    %7079 = vmatprep.subr.mxu0 0.0
    %7080 = vmatpush1.msra.mxu0 0.0
    %7081 = vmatprep.subr.mxu0 0.0
    %7082 = vmatpush1.msra.mxu0 0.0
    %7083 = vmatprep.subr.mxu0 0.0
    %7084 = vmatpush1.msra.mxu0 0.0
    %7085 = vmatprep.subr.mxu0 0.0
    %7086 = vmatpush1.msra.mxu0 0.0
    %7087 = vmatprep.subr.mxu0 0.0
    %7088 = vmatpush1.msra.mxu0 0.0
    %7089 = vmatprep.subr.mxu0 0.0
    %7090 = vmatpush1.msra.mxu0 0.0
    %7091 = vmatprep.subr.mxu0 0.0
    %7092 = vmatpush1.msra.mxu0 0.0
    %7093 = vmatprep.subr.mxu0 0.0
    %7094 = vmatpush1.msra.mxu0 0.0
    %7095 = vmatprep.subr.mxu0 0.0
    %7096 = vmatpush1.msra.mxu0 0.0
    %7097 = vmatprep.subr.mxu0 0.0
    %7098 = vmatpush1.msra.mxu0 0.0
    %7099 = vmatprep.subr.mxu0 0.0
    %7100 = vmatpush1.msra.mxu0 0.0
    %7101 = vmatprep.subr.mxu0 0.0
    %7102 = vmatpush1.msra.mxu0 0.0
    %7103 = vmatprep.subr.mxu0 0.0
    %7104 = vmatpush1.msra.mxu0 0.0
    %7105 = vmatprep.subr.mxu0 0.0
    %7106 = vmatpush1.msra.mxu0 0.0
    %7107 = vmatprep.subr.mxu0 0.0
    %7108 = vmatpush1.msra.mxu0 0.0
    %7109 = vmatprep.subr.mxu0 0.0
    %7110 = vmatpush1.msra.mxu0 0.0
    %7111 = vmatprep.subr.mxu0 0.0
    %7112 = vmatpush1.msra.mxu0 0.0
    %7113 = vmatprep.mubr.f32.mxu0 0.0
    %v7114 = vand.u32 %v5624, 4294901760
    %7115 = vmatmul.mubr.f32.gmra.mrb[0].mxu0 %v7114
    %v7116 = vpop.f32.mrb[0].mxu0
    %v7117 = vadd.f32 %v7042, %v7116
    %v7118 = vpop.f32.mrb[0].mxu0
    %7119 = vdwg.mxu0
    %v7121 = vrot.slane %v7117, 1
    %v7124 = vadd.f32 %v6633, %v7117
    %v7125 = vadd.f32 %v6634, %v7121
    %v7126 = vmul.f32 %v5622, 0.25
    %v7127 = vtanh.pop %v7124
    %v7128 = vtanh.pop %v7125
    %v7129 = vmul.f32 %v7127, 0.75
    %v7130 = vmul.f32 %v7128, 0.75
    %v7133 = vrot.slane %v7130, 7
    %v7134 = vsel %vm1070, %v7133, %v7129
    %v7136 = vadd.f32 %v7126, %v7134
    %v7138 = vsel %vm567, %v7136, 0
    %7140 = vmatprep.subr.mxu0 0.0
    %v7141 = vand.u32 %v90, 4294901760
    %7142 = vmatpush1.msra.mxu0 %v7141
    %7143 = vmatprep.subr.mxu0 0.0
    %v7144 = vand.u32 %v91, 4294901760
    %7145 = vmatpush1.msra.mxu0 %v7144
    %7146 = vmatprep.subr.mxu0 0.0
    %v7147 = vand.u32 %v92, 4294901760
    %7148 = vmatpush1.msra.mxu0 %v7147
    %7149 = vmatprep.subr.mxu0 0.0
    %v7150 = vand.u32 %v93, 4294901760
    %7151 = vmatpush1.msra.mxu0 %v7150
    %7152 = vmatprep.subr.mxu0 0.0
    %7153 = vmatpush1.msra.mxu0 0.0
    %7154 = vmatprep.subr.mxu0 0.0
    %7155 = vmatpush1.msra.mxu0 0.0
    %7156 = vmatprep.subr.mxu0 0.0
    %7157 = vmatpush1.msra.mxu0 0.0
    %7158 = vmatprep.subr.mxu0 0.0
    %7159 = vmatpush1.msra.mxu0 0.0
    %7160 = vmatprep.subr.mxu0 0.0
    %7161 = vmatpush1.msra.mxu0 0.0
    %7162 = vmatprep.subr.mxu0 0.0
    %7163 = vmatpush1.msra.mxu0 0.0
    %7164 = vmatprep.subr.mxu0 0.0
    %7165 = vmatpush1.msra.mxu0 0.0
    %7166 = vmatprep.subr.mxu0 0.0
    %7167 = vmatpush1.msra.mxu0 0.0
    %7168 = vmatprep.subr.mxu0 0.0
    %7169 = vmatpush1.msra.mxu0 0.0
    %7170 = vmatprep.subr.mxu0 0.0
    %7171 = vmatpush1.msra.mxu0 0.0
    %7172 = vmatprep.subr.mxu0 0.0
    %7173 = vmatpush1.msra.mxu0 0.0
    %7174 = vmatprep.subr.mxu0 0.0
    %7175 = vmatpush1.msra.mxu0 0.0
    %7176 = vmatprep.subr.mxu0 0.0
    %7177 = vmatpush1.msra.mxu0 0.0
    %7178 = vmatprep.subr.mxu0 0.0
    %7179 = vmatpush1.msra.mxu0 0.0
    %7180 = vmatprep.subr.mxu0 0.0
    %7181 = vmatpush1.msra.mxu0 0.0
    %7182 = vmatprep.subr.mxu0 0.0
    %7183 = vmatpush1.msra.mxu0 0.0
    %7184 = vmatprep.subr.mxu0 0.0
    %7185 = vmatpush1.msra.mxu0 0.0
    %7186 = vmatprep.subr.mxu0 0.0
    %7187 = vmatpush1.msra.mxu0 0.0
    %7188 = vmatprep.subr.mxu0 0.0
    %7189 = vmatpush1.msra.mxu0 0.0
    %7190 = vmatprep.subr.mxu0 0.0
    %7191 = vmatpush1.msra.mxu0 0.0
    %7192 = vmatprep.subr.mxu0 0.0
    %7193 = vmatpush1.msra.mxu0 0.0
    %7194 = vmatprep.subr.mxu0 0.0
    %7195 = vmatpush1.msra.mxu0 0.0
    %7196 = vmatprep.subr.mxu0 0.0
    %7197 = vmatpush1.msra.mxu0 0.0
    %7198 = vmatprep.subr.mxu0 0.0
    %7199 = vmatpush1.msra.mxu0 0.0
    %7200 = vmatprep.subr.mxu0 0.0
    %7201 = vmatpush1.msra.mxu0 0.0
    %7202 = vmatprep.subr.mxu0 0.0
    %7203 = vmatpush1.msra.mxu0 0.0
    %7204 = vmatprep.subr.mxu0 0.0
    %7205 = vmatpush1.msra.mxu0 0.0
    %7206 = vmatprep.subr.mxu0 0.0
    %7207 = vmatpush1.msra.mxu0 0.0
    %7208 = vmatprep.mubr.f32.mxu0 0.0
    %v7209 = vand.u32 %v7138, 4294901760
    %v7210 = vsub.f32 %v7138, %v7209
    %v7211 = vand.u32 %v7210, 4294901760
    %v7212 = vsub.f32 %v7210, %v7211
    %v7213 = vand.u32 %v7212, 4294901760
    %7214 = vmatmul.mubr.f32.gmra.mrb[0].mxu0 %v7213
    %v7215 = vpop.f32.mrb[0].mxu0
    %v7216 = vadd.f32 0.0, %v7215
    %v7217 = vpop.f32.mrb[0].mxu0
    %7218 = vdwg.mxu0
    %7219 = vmatprep.subr.mxu0 0.0
    %v7220 = vand.u32 %v90, 4294901760
    %v7221 = vsub.f32 %v90, %v7220
    %v7222 = vand.u32 %v7221, 4294901760
    %v7223 = vsub.f32 %v7221, %v7222
    %v7224 = vand.u32 %v7223, 4294901760
    %7225 = vmatpush1.msra.mxu0 %v7224
    %7226 = vmatprep.subr.mxu0 0.0
    %v7227 = vand.u32 %v91, 4294901760
    %v7228 = vsub.f32 %v91, %v7227
    %v7229 = vand.u32 %v7228, 4294901760
    %v7230 = vsub.f32 %v7228, %v7229
    %v7231 = vand.u32 %v7230, 4294901760
    %7232 = vmatpush1.msra.mxu0 %v7231
    %7233 = vmatprep.subr.mxu0 0.0
    %v7234 = vand.u32 %v92, 4294901760
    %v7235 = vsub.f32 %v92, %v7234
    %v7236 = vand.u32 %v7235, 4294901760
    %v7237 = vsub.f32 %v7235, %v7236
    %v7238 = vand.u32 %v7237, 4294901760
    %7239 = vmatpush1.msra.mxu0 %v7238
    %7240 = vmatprep.subr.mxu0 0.0
    %v7241 = vand.u32 %v93, 4294901760
    %v7242 = vsub.f32 %v93, %v7241
    %v7243 = vand.u32 %v7242, 4294901760
    %v7244 = vsub.f32 %v7242, %v7243
    %v7245 = vand.u32 %v7244, 4294901760
    %7246 = vmatpush1.msra.mxu0 %v7245
    %7247 = vmatprep.subr.mxu0 0.0
    %7248 = vmatpush1.msra.mxu0 0.0
    %7249 = vmatprep.subr.mxu0 0.0
    %7250 = vmatpush1.msra.mxu0 0.0
    %7251 = vmatprep.subr.mxu0 0.0
    %7252 = vmatpush1.msra.mxu0 0.0
    %7253 = vmatprep.subr.mxu0 0.0
    %7254 = vmatpush1.msra.mxu0 0.0
    %7255 = vmatprep.subr.mxu0 0.0
    %7256 = vmatpush1.msra.mxu0 0.0
    %7257 = vmatprep.subr.mxu0 0.0
    %7258 = vmatpush1.msra.mxu0 0.0
    %7259 = vmatprep.subr.mxu0 0.0
    %7260 = vmatpush1.msra.mxu0 0.0
    %7261 = vmatprep.subr.mxu0 0.0
    %7262 = vmatpush1.msra.mxu0 0.0
    %7263 = vmatprep.subr.mxu0 0.0
    %7264 = vmatpush1.msra.mxu0 0.0
    %7265 = vmatprep.subr.mxu0 0.0
    %7266 = vmatpush1.msra.mxu0 0.0
    %7267 = vmatprep.subr.mxu0 0.0
    %7268 = vmatpush1.msra.mxu0 0.0
    %7269 = vmatprep.subr.mxu0 0.0
    %7270 = vmatpush1.msra.mxu0 0.0
    %7271 = vmatprep.subr.mxu0 0.0
    %7272 = vmatpush1.msra.mxu0 0.0
    %7273 = vmatprep.subr.mxu0 0.0
    %7274 = vmatpush1.msra.mxu0 0.0
    %7275 = vmatprep.subr.mxu0 0.0
    %7276 = vmatpush1.msra.mxu0 0.0
    %7277 = vmatprep.subr.mxu0 0.0
    %7278 = vmatpush1.msra.mxu0 0.0
    %7279 = vmatprep.subr.mxu0 0.0
    %7280 = vmatpush1.msra.mxu0 0.0
    %7281 = vmatprep.subr.mxu0 0.0
    %7282 = vmatpush1.msra.mxu0 0.0
    %7283 = vmatprep.subr.mxu0 0.0
    %7284 = vmatpush1.msra.mxu0 0.0
    %7285 = vmatprep.subr.mxu0 0.0
    %7286 = vmatpush1.msra.mxu0 0.0
    %7287 = vmatprep.subr.mxu0 0.0
    %7288 = vmatpush1.msra.mxu0 0.0
    %7289 = vmatprep.subr.mxu0 0.0
    %7290 = vmatpush1.msra.mxu0 0.0
    %7291 = vmatprep.subr.mxu0 0.0
    %7292 = vmatpush1.msra.mxu0 0.0
    %7293 = vmatprep.subr.mxu0 0.0
    %7294 = vmatpush1.msra.mxu0 0.0
    %7295 = vmatprep.subr.mxu0 0.0
    %7296 = vmatpush1.msra.mxu0 0.0
    %7297 = vmatprep.subr.mxu0 0.0
    %7298 = vmatpush1.msra.mxu0 0.0
    %7299 = vmatprep.subr.mxu0 0.0
    %7300 = vmatpush1.msra.mxu0 0.0
    %7301 = vmatprep.subr.mxu0 0.0
    %7302 = vmatpush1.msra.mxu0 0.0
    %7303 = vmatprep.mubr.f32.mxu0 0.0
    %v7304 = vand.u32 %v7138, 4294901760
    %7305 = vmatmul.mubr.f32.gmra.mrb[0].mxu0 %v7304
    %v7306 = vpop.f32.mrb[0].mxu0
    %v7307 = vadd.f32 %v7216, %v7306
    %v7308 = vpop.f32.mrb[0].mxu0
    %7309 = vdwg.mxu0
    %7310 = vmatprep.subr.mxu0 0.0
    %v7311 = vand.u32 %v90, 4294901760
    %v7312 = vsub.f32 %v90, %v7311
    %7313 = vmatpush1.msra.mxu0 %v7312
    %7314 = vmatprep.subr.mxu0 0.0
    %v7315 = vand.u32 %v91, 4294901760
    %v7316 = vsub.f32 %v91, %v7315
    %7317 = vmatpush1.msra.mxu0 %v7316
    %7318 = vmatprep.subr.mxu0 0.0
    %v7319 = vand.u32 %v92, 4294901760
    %v7320 = vsub.f32 %v92, %v7319
    %7321 = vmatpush1.msra.mxu0 %v7320
    %7322 = vmatprep.subr.mxu0 0.0
    %v7323 = vand.u32 %v93, 4294901760
    %v7324 = vsub.f32 %v93, %v7323
    %7325 = vmatpush1.msra.mxu0 %v7324
    %7326 = vmatprep.subr.mxu0 0.0
    %7327 = vmatpush1.msra.mxu0 0.0
    %7328 = vmatprep.subr.mxu0 0.0
    %7329 = vmatpush1.msra.mxu0 0.0
    %7330 = vmatprep.subr.mxu0 0.0
    %7331 = vmatpush1.msra.mxu0 0.0
    %7332 = vmatprep.subr.mxu0 0.0
    %7333 = vmatpush1.msra.mxu0 0.0
    %7334 = vmatprep.subr.mxu0 0.0
    %7335 = vmatpush1.msra.mxu0 0.0
    %7336 = vmatprep.subr.mxu0 0.0
    %7337 = vmatpush1.msra.mxu0 0.0
    %7338 = vmatprep.subr.mxu0 0.0
    %7339 = vmatpush1.msra.mxu0 0.0
    %7340 = vmatprep.subr.mxu0 0.0
    %7341 = vmatpush1.msra.mxu0 0.0
    %7342 = vmatprep.subr.mxu0 0.0
    %7343 = vmatpush1.msra.mxu0 0.0
    %7344 = vmatprep.subr.mxu0 0.0
    %7345 = vmatpush1.msra.mxu0 0.0
    %7346 = vmatprep.subr.mxu0 0.0
    %7347 = vmatpush1.msra.mxu0 0.0
    %7348 = vmatprep.subr.mxu0 0.0
    %7349 = vmatpush1.msra.mxu0 0.0
    %7350 = vmatprep.subr.mxu0 0.0
    %7351 = vmatpush1.msra.mxu0 0.0
    %7352 = vmatprep.subr.mxu0 0.0
    %7353 = vmatpush1.msra.mxu0 0.0
    %7354 = vmatprep.subr.mxu0 0.0
    %7355 = vmatpush1.msra.mxu0 0.0
    %7356 = vmatprep.subr.mxu0 0.0
    %7357 = vmatpush1.msra.mxu0 0.0
    %7358 = vmatprep.subr.mxu0 0.0
    %7359 = vmatpush1.msra.mxu0 0.0
    %7360 = vmatprep.subr.mxu0 0.0
    %7361 = vmatpush1.msra.mxu0 0.0
    %7362 = vmatprep.subr.mxu0 0.0
    %7363 = vmatpush1.msra.mxu0 0.0
    %7364 = vmatprep.subr.mxu0 0.0
    %7365 = vmatpush1.msra.mxu0 0.0
    %7366 = vmatprep.subr.mxu0 0.0
    %7367 = vmatpush1.msra.mxu0 0.0
    %7368 = vmatprep.subr.mxu0 0.0
    %7369 = vmatpush1.msra.mxu0 0.0
    %7370 = vmatprep.subr.mxu0 0.0
    %7371 = vmatpush1.msra.mxu0 0.0
    %7372 = vmatprep.subr.mxu0 0.0
    %7373 = vmatpush1.msra.mxu0 0.0
    %7374 = vmatprep.subr.mxu0 0.0
    %7375 = vmatpush1.msra.mxu0 0.0
    %7376 = vmatprep.subr.mxu0 0.0
    %7377 = vmatpush1.msra.mxu0 0.0
    %7378 = vmatprep.subr.mxu0 0.0
    %7379 = vmatpush1.msra.mxu0 0.0
    %7380 = vmatprep.subr.mxu0 0.0
    %7381 = vmatpush1.msra.mxu0 0.0
    %7382 = vmatprep.mubr.f32.mxu0 0.0
    %v7383 = vand.u32 %v7138, 4294901760
    %v7384 = vsub.f32 %v7138, %v7383
    %7385 = vmatmul.mubr.f32.gmra.mrb[0].mxu0 %v7384
    %v7386 = vpop.f32.mrb[0].mxu0
    %v7387 = vadd.f32 %v7307, %v7386
    %v7388 = vpop.f32.mrb[0].mxu0
    %7389 = vdwg.mxu0
    %7390 = vmatprep.subr.mxu0 0.0
    %v7391 = vand.u32 %v90, 4294901760
    %7392 = vmatpush1.msra.mxu0 %v7391
    %7393 = vmatprep.subr.mxu0 0.0
    %v7394 = vand.u32 %v91, 4294901760
    %7395 = vmatpush1.msra.mxu0 %v7394
    %7396 = vmatprep.subr.mxu0 0.0
    %v7397 = vand.u32 %v92, 4294901760
    %7398 = vmatpush1.msra.mxu0 %v7397
    %7399 = vmatprep.subr.mxu0 0.0
    %v7400 = vand.u32 %v93, 4294901760
    %7401 = vmatpush1.msra.mxu0 %v7400
    %7402 = vmatprep.subr.mxu0 0.0
    %7403 = vmatpush1.msra.mxu0 0.0
    %7404 = vmatprep.subr.mxu0 0.0
    %7405 = vmatpush1.msra.mxu0 0.0
    %7406 = vmatprep.subr.mxu0 0.0
    %7407 = vmatpush1.msra.mxu0 0.0
    %7408 = vmatprep.subr.mxu0 0.0
    %7409 = vmatpush1.msra.mxu0 0.0
    %7410 = vmatprep.subr.mxu0 0.0
    %7411 = vmatpush1.msra.mxu0 0.0
    %7412 = vmatprep.subr.mxu0 0.0
    %7413 = vmatpush1.msra.mxu0 0.0
    %7414 = vmatprep.subr.mxu0 0.0
    %7415 = vmatpush1.msra.mxu0 0.0
    %7416 = vmatprep.subr.mxu0 0.0
    %7417 = vmatpush1.msra.mxu0 0.0
    %7418 = vmatprep.subr.mxu0 0.0
    %7419 = vmatpush1.msra.mxu0 0.0
    %7420 = vmatprep.subr.mxu0 0.0
    %7421 = vmatpush1.msra.mxu0 0.0
    %7422 = vmatprep.subr.mxu0 0.0
    %7423 = vmatpush1.msra.mxu0 0.0
    %7424 = vmatprep.subr.mxu0 0.0
    %7425 = vmatpush1.msra.mxu0 0.0
    %7426 = vmatprep.subr.mxu0 0.0
    %7427 = vmatpush1.msra.mxu0 0.0
    %7428 = vmatprep.subr.mxu0 0.0
    %7429 = vmatpush1.msra.mxu0 0.0
    %7430 = vmatprep.subr.mxu0 0.0
    %7431 = vmatpush1.msra.mxu0 0.0
    %7432 = vmatprep.subr.mxu0 0.0
    %7433 = vmatpush1.msra.mxu0 0.0
    %7434 = vmatprep.subr.mxu0 0.0
    %7435 = vmatpush1.msra.mxu0 0.0
    %7436 = vmatprep.subr.mxu0 0.0
    %7437 = vmatpush1.msra.mxu0 0.0
    %7438 = vmatprep.subr.mxu0 0.0
    %7439 = vmatpush1.msra.mxu0 0.0
    %7440 = vmatprep.subr.mxu0 0.0
    %7441 = vmatpush1.msra.mxu0 0.0
    %7442 = vmatprep.subr.mxu0 0.0
    %7443 = vmatpush1.msra.mxu0 0.0
    %7444 = vmatprep.subr.mxu0 0.0
    %7445 = vmatpush1.msra.mxu0 0.0
    %7446 = vmatprep.subr.mxu0 0.0
    %7447 = vmatpush1.msra.mxu0 0.0
    %7448 = vmatprep.subr.mxu0 0.0
    %7449 = vmatpush1.msra.mxu0 0.0
    %7450 = vmatprep.subr.mxu0 0.0
    %7451 = vmatpush1.msra.mxu0 0.0
    %7452 = vmatprep.subr.mxu0 0.0
    %7453 = vmatpush1.msra.mxu0 0.0
    %7454 = vmatprep.subr.mxu0 0.0
    %7455 = vmatpush1.msra.mxu0 0.0
    %7456 = vmatprep.subr.mxu0 0.0
    %7457 = vmatpush1.msra.mxu0 0.0
    %7458 = vmatprep.mubr.f32.mxu0 0.0
    %v7459 = vand.u32 %v7138, 4294901760
    %v7460 = vsub.f32 %v7138, %v7459
    %v7461 = vand.u32 %v7460, 4294901760
    %7462 = vmatmul.mubr.f32.gmra.mrb[0].mxu0 %v7461
    %v7463 = vpop.f32.mrb[0].mxu0
    %v7464 = vadd.f32 %v7387, %v7463
    %v7465 = vpop.f32.mrb[0].mxu0
    %7466 = vdwg.mxu0
    %7467 = vmatprep.subr.mxu0 0.0
    %v7468 = vand.u32 %v90, 4294901760
    %v7469 = vsub.f32 %v90, %v7468
    %v7470 = vand.u32 %v7469, 4294901760
    %7471 = vmatpush1.msra.mxu0 %v7470
    %7472 = vmatprep.subr.mxu0 0.0
    %v7473 = vand.u32 %v91, 4294901760
    %v7474 = vsub.f32 %v91, %v7473
    %v7475 = vand.u32 %v7474, 4294901760
    %7476 = vmatpush1.msra.mxu0 %v7475
    %7477 = vmatprep.subr.mxu0 0.0
    %v7478 = vand.u32 %v92, 4294901760
    %v7479 = vsub.f32 %v92, %v7478
    %v7480 = vand.u32 %v7479, 4294901760
    %7481 = vmatpush1.msra.mxu0 %v7480
    %7482 = vmatprep.subr.mxu0 0.0
    %v7483 = vand.u32 %v93, 4294901760
    %v7484 = vsub.f32 %v93, %v7483
    %v7485 = vand.u32 %v7484, 4294901760
    %7486 = vmatpush1.msra.mxu0 %v7485
    %7487 = vmatprep.subr.mxu0 0.0
    %7488 = vmatpush1.msra.mxu0 0.0
    %7489 = vmatprep.subr.mxu0 0.0
    %7490 = vmatpush1.msra.mxu0 0.0
    %7491 = vmatprep.subr.mxu0 0.0
    %7492 = vmatpush1.msra.mxu0 0.0
    %7493 = vmatprep.subr.mxu0 0.0
    %7494 = vmatpush1.msra.mxu0 0.0
    %7495 = vmatprep.subr.mxu0 0.0
    %7496 = vmatpush1.msra.mxu0 0.0
    %7497 = vmatprep.subr.mxu0 0.0
    %7498 = vmatpush1.msra.mxu0 0.0
    %7499 = vmatprep.subr.mxu0 0.0
    %7500 = vmatpush1.msra.mxu0 0.0
    %7501 = vmatprep.subr.mxu0 0.0
    %7502 = vmatpush1.msra.mxu0 0.0
    %7503 = vmatprep.subr.mxu0 0.0
    %7504 = vmatpush1.msra.mxu0 0.0
    %7505 = vmatprep.subr.mxu0 0.0
    %7506 = vmatpush1.msra.mxu0 0.0
    %7507 = vmatprep.subr.mxu0 0.0
    %7508 = vmatpush1.msra.mxu0 0.0
    %7509 = vmatprep.subr.mxu0 0.0
    %7510 = vmatpush1.msra.mxu0 0.0
    %7511 = vmatprep.subr.mxu0 0.0
    %7512 = vmatpush1.msra.mxu0 0.0
    %7513 = vmatprep.subr.mxu0 0.0
    %7514 = vmatpush1.msra.mxu0 0.0
    %7515 = vmatprep.subr.mxu0 0.0
    %7516 = vmatpush1.msra.mxu0 0.0
    %7517 = vmatprep.subr.mxu0 0.0
    %7518 = vmatpush1.msra.mxu0 0.0
    %7519 = vmatprep.subr.mxu0 0.0
    %7520 = vmatpush1.msra.mxu0 0.0
    %7521 = vmatprep.subr.mxu0 0.0
    %7522 = vmatpush1.msra.mxu0 0.0
    %7523 = vmatprep.subr.mxu0 0.0
    %7524 = vmatpush1.msra.mxu0 0.0
    %7525 = vmatprep.subr.mxu0 0.0
    %7526 = vmatpush1.msra.mxu0 0.0
    %7527 = vmatprep.subr.mxu0 0.0
    %7528 = vmatpush1.msra.mxu0 0.0
    %7529 = vmatprep.subr.mxu0 0.0
    %7530 = vmatpush1.msra.mxu0 0.0
    %7531 = vmatprep.subr.mxu0 0.0
    %7532 = vmatpush1.msra.mxu0 0.0
    %7533 = vmatprep.subr.mxu0 0.0
    %7534 = vmatpush1.msra.mxu0 0.0
    %7535 = vmatprep.subr.mxu0 0.0
    %7536 = vmatpush1.msra.mxu0 0.0
    %7537 = vmatprep.subr.mxu0 0.0
    %7538 = vmatpush1.msra.mxu0 0.0
    %7539 = vmatprep.subr.mxu0 0.0
    %7540 = vmatpush1.msra.mxu0 0.0
    %7541 = vmatprep.subr.mxu0 0.0
    %7542 = vmatpush1.msra.mxu0 0.0
    %7543 = vmatprep.mubr.f32.mxu0 0.0
    %v7544 = vand.u32 %v7138, 4294901760
    %7545 = vmatmul.mubr.f32.gmra.mrb[0].mxu0 %v7544
    %v7546 = vpop.f32.mrb[0].mxu0
    %v7547 = vadd.f32 %v7464, %v7546
    %v7548 = vpop.f32.mrb[0].mxu0
    %7549 = vdwg.mxu0
    %7550 = vmatprep.subr.mxu0 0.0
    %v7551 = vand.u32 %v90, 4294901760
    %7552 = vmatpush1.msra.mxu0 %v7551
    %7553 = vmatprep.subr.mxu0 0.0
    %v7554 = vand.u32 %v91, 4294901760
    %7555 = vmatpush1.msra.mxu0 %v7554
    %7556 = vmatprep.subr.mxu0 0.0
    %v7557 = vand.u32 %v92, 4294901760
    %7558 = vmatpush1.msra.mxu0 %v7557
    %7559 = vmatprep.subr.mxu0 0.0
    %v7560 = vand.u32 %v93, 4294901760
    %7561 = vmatpush1.msra.mxu0 %v7560
    %7562 = vmatprep.subr.mxu0 0.0
    %7563 = vmatpush1.msra.mxu0 0.0
    %7564 = vmatprep.subr.mxu0 0.0
    %7565 = vmatpush1.msra.mxu0 0.0
    %7566 = vmatprep.subr.mxu0 0.0
    %7567 = vmatpush1.msra.mxu0 0.0
    %7568 = vmatprep.subr.mxu0 0.0
    %7569 = vmatpush1.msra.mxu0 0.0
    %7570 = vmatprep.subr.mxu0 0.0
    %7571 = vmatpush1.msra.mxu0 0.0
    %7572 = vmatprep.subr.mxu0 0.0
    %7573 = vmatpush1.msra.mxu0 0.0
    %7574 = vmatprep.subr.mxu0 0.0
    %7575 = vmatpush1.msra.mxu0 0.0
    %7576 = vmatprep.subr.mxu0 0.0
    %7577 = vmatpush1.msra.mxu0 0.0
    %7578 = vmatprep.subr.mxu0 0.0
    %7579 = vmatpush1.msra.mxu0 0.0
    %7580 = vmatprep.subr.mxu0 0.0
    %7581 = vmatpush1.msra.mxu0 0.0
    %7582 = vmatprep.subr.mxu0 0.0
    %7583 = vmatpush1.msra.mxu0 0.0
    %7584 = vmatprep.subr.mxu0 0.0
    %7585 = vmatpush1.msra.mxu0 0.0
    %7586 = vmatprep.subr.mxu0 0.0
    %7587 = vmatpush1.msra.mxu0 0.0
    %7588 = vmatprep.subr.mxu0 0.0
    %7589 = vmatpush1.msra.mxu0 0.0
    %7590 = vmatprep.subr.mxu0 0.0
    %7591 = vmatpush1.msra.mxu0 0.0
    %7592 = vmatprep.subr.mxu0 0.0
    %7593 = vmatpush1.msra.mxu0 0.0
    %7594 = vmatprep.subr.mxu0 0.0
    %7595 = vmatpush1.msra.mxu0 0.0
    %7596 = vmatprep.subr.mxu0 0.0
    %7597 = vmatpush1.msra.mxu0 0.0
    %7598 = vmatprep.subr.mxu0 0.0
    %7599 = vmatpush1.msra.mxu0 0.0
    %7600 = vmatprep.subr.mxu0 0.0
    %7601 = vmatpush1.msra.mxu0 0.0
    %7602 = vmatprep.subr.mxu0 0.0
    %7603 = vmatpush1.msra.mxu0 0.0
    %7604 = vmatprep.subr.mxu0 0.0
    %7605 = vmatpush1.msra.mxu0 0.0
    %7606 = vmatprep.subr.mxu0 0.0
    %7607 = vmatpush1.msra.mxu0 0.0
    %7608 = vmatprep.subr.mxu0 0.0
    %7609 = vmatpush1.msra.mxu0 0.0
    %7610 = vmatprep.subr.mxu0 0.0
    %7611 = vmatpush1.msra.mxu0 0.0
    %7612 = vmatprep.subr.mxu0 0.0
    %7613 = vmatpush1.msra.mxu0 0.0
    %7614 = vmatprep.subr.mxu0 0.0
    %7615 = vmatpush1.msra.mxu0 0.0
    %7616 = vmatprep.subr.mxu0 0.0
    %7617 = vmatpush1.msra.mxu0 0.0
    %7618 = vmatprep.mubr.f32.mxu0 0.0
    %v7619 = vand.u32 %v7138, 4294901760
    %7620 = vmatmul.mubr.f32.gmra.mrb[0].mxu0 %v7619
    %v7621 = vpop.f32.mrb[0].mxu0
    %v7622 = vadd.f32 %v7547, %v7621
    %v7623 = vpop.f32.mrb[0].mxu0
    %7624 = vdwg.mxu0
    %7626 = vrot.lane.b32.xlu0 %v6630, 16
    %v7627 = vpop.permute.xlu0 %7626
    %v7629 = vadd.f32 %v7622, %v7627
    %v7630 = vadd.f32 %v7629, %v1568
    %v7631 = vxor.u32 %v7630, 2147483648
    %v7632 = vmul.f32 %v7631, 1.442695
    %v7633 = vpow.pop %v7632
    %v7634 = vadd.f32 %v7633, 1.0
    %v7635 = vrcp.pop %v7634
    %v7636 = vmul.f32 1.0, %v7635
    %v7637 = vsub.f32 1.0, %v7636
    %v7638 = vmul.f32 %v7637, %v6130
    %7640 = vrot.lane.b32.xlu0 %v7622, 16
    %v7641 = vpop.permute.xlu0 %7640
    %v7643 = vmul.f32 %v7636, %v7641
    %v7644 = vadd.f32 %v7638, %v7643
    %v7647 = vunpack.c.l.s4 1966171168
    %v7648 = vunpack.c.0.s8 %v7647
    %v7649 = vlaneseq
    %v7650 = vshrl.u32 %v7649, 7
    %v7651 = vsub.s32 %v7648, %v7650
    %v7652 = vrot.slane %v7644, %v7651
    %v7653 = vcombine.high %v7652, %v7652
    %v7655 = vunpack.c.l.s4 1966171168
    %v7656 = vunpack.c.0.s8 %v7655
    %v7657 = vlaneseq
    %v7658 = vshrl.u32 %v7657, 7
    %v7659 = vsub.s32 %v7656, %v7658
    %v7660 = vrot.slane %v7652, %v7659
    %v7662 = vunpack.c.l.s4 1966171168
    %v7663 = vunpack.c.0.s8 %v7662
    %v7664 = vlaneseq
    %v7665 = vshrl.u32 %v7664, 7
    %v7666 = vsub.s32 %v7663, %v7665
    %v7667 = vrot.slane %v7653, %v7666
    %v7668 = vlaneseq
    %v7669 = vshrl.u32 %v7668, 7
    %v7670 = vsub.s32 0, %v7669
    %v7671 = vrot.slane %v7660, %v7670
    %v7672 = vlaneseq
    %v7673 = vshrl.u32 %v7672, 7
    %v7674 = vsub.s32 0, %v7673
    %v7675 = vrot.slane %v7667, %v7674
    %7676 = vrot.lane.b32.xlu0 %v7671, 112
    %v7677 = vpop.permute.xlu0 %7676
    %7678 = vrot.lane.b32.xlu0 %v7675, 112
    %v7679 = vpop.permute.xlu0 %7678
    %7682 = vst.msk [vmem:[#allocation12 + $0x4] sm:$0x1] %vm1625, %v7677
    %7683 = vst.msk [vmem:[#allocation12 + $0xc] sm:$0x1] %vm1625, %v7679
    %7684 = vrot.lane.b32.xlu0 %v7644, 112
    %v7685 = vpop.permute.xlu0 %7684
    %v7686 = vsel %vm102, %v7685, 0
    %7688 = vmatprep.subr.mxu0 0.0
    %v7689 = vand.u32 %v94, 4294901760
    %7690 = vmatpush1.msra.mxu0 %v7689
    %7691 = vmatprep.subr.mxu0 0.0
    %v7692 = vand.u32 %v95, 4294901760
    %7693 = vmatpush1.msra.mxu0 %v7692
    %7694 = vmatprep.subr.mxu0 0.0
    %7695 = vmatpush1.msra.mxu0 0.0
    %7696 = vmatprep.subr.mxu0 0.0
    %7697 = vmatpush1.msra.mxu0 0.0
    %7698 = vmatprep.subr.mxu0 0.0
    %7699 = vmatpush1.msra.mxu0 0.0
    %7700 = vmatprep.subr.mxu0 0.0
    %7701 = vmatpush1.msra.mxu0 0.0
    %7702 = vmatprep.subr.mxu0 0.0
    %7703 = vmatpush1.msra.mxu0 0.0
    %7704 = vmatprep.subr.mxu0 0.0
    %7705 = vmatpush1.msra.mxu0 0.0
    %7706 = vmatprep.subr.mxu0 0.0
    %7707 = vmatpush1.msra.mxu0 0.0
    %7708 = vmatprep.subr.mxu0 0.0
    %7709 = vmatpush1.msra.mxu0 0.0
    %7710 = vmatprep.subr.mxu0 0.0
    %7711 = vmatpush1.msra.mxu0 0.0
    %7712 = vmatprep.subr.mxu0 0.0
    %7713 = vmatpush1.msra.mxu0 0.0
    %7714 = vmatprep.subr.mxu0 0.0
    %7715 = vmatpush1.msra.mxu0 0.0
    %7716 = vmatprep.subr.mxu0 0.0
    %7717 = vmatpush1.msra.mxu0 0.0
    %7718 = vmatprep.subr.mxu0 0.0
    %7719 = vmatpush1.msra.mxu0 0.0
    %7720 = vmatprep.subr.mxu0 0.0
    %7721 = vmatpush1.msra.mxu0 0.0
    %7722 = vmatprep.subr.mxu0 0.0
    %7723 = vmatpush1.msra.mxu0 0.0
    %7724 = vmatprep.subr.mxu0 0.0
    %7725 = vmatpush1.msra.mxu0 0.0
    %7726 = vmatprep.subr.mxu0 0.0
    %7727 = vmatpush1.msra.mxu0 0.0
    %7728 = vmatprep.subr.mxu0 0.0
    %7729 = vmatpush1.msra.mxu0 0.0
    %7730 = vmatprep.subr.mxu0 0.0
    %7731 = vmatpush1.msra.mxu0 0.0
    %7732 = vmatprep.subr.mxu0 0.0
    %7733 = vmatpush1.msra.mxu0 0.0
    %7734 = vmatprep.subr.mxu0 0.0
    %7735 = vmatpush1.msra.mxu0 0.0
    %7736 = vmatprep.subr.mxu0 0.0
    %7737 = vmatpush1.msra.mxu0 0.0
    %7738 = vmatprep.subr.mxu0 0.0
    %7739 = vmatpush1.msra.mxu0 0.0
    %7740 = vmatprep.subr.mxu0 0.0
    %7741 = vmatpush1.msra.mxu0 0.0
    %7742 = vmatprep.subr.mxu0 0.0
    %7743 = vmatpush1.msra.mxu0 0.0
    %7744 = vmatprep.subr.mxu0 0.0
    %7745 = vmatpush1.msra.mxu0 0.0
    %7746 = vmatprep.subr.mxu0 0.0
    %7747 = vmatpush1.msra.mxu0 0.0
    %7748 = vmatprep.subr.mxu0 0.0
    %7749 = vmatpush1.msra.mxu0 0.0
    %7750 = vmatprep.subr.mxu0 0.0
    %7751 = vmatpush1.msra.mxu0 0.0
    %7752 = vmatprep.subr.mxu0 0.0
    %7753 = vmatpush1.msra.mxu0 0.0
    %7754 = vmatprep.mubr.f32.mxu0 0.0
    %v7755 = vand.u32 %v7686, 4294901760
    %v7756 = vsub.f32 %v7686, %v7755
    %v7757 = vand.u32 %v7756, 4294901760
    %v7758 = vsub.f32 %v7756, %v7757
    %v7759 = vand.u32 %v7758, 4294901760
    %7760 = vmatmul.mubr.f32.gmra.mrb[0].mxu0 %v7759
    %v7761 = vpop.f32.mrb[0].mxu0
    %v7762 = vadd.f32 0.0, %v7761
    %v7763 = vpop.f32.mrb[0].mxu0
    %7764 = vdwg.mxu0
    %7765 = vmatprep.subr.mxu0 0.0
    %v7766 = vand.u32 %v94, 4294901760
    %v7767 = vsub.f32 %v94, %v7766
    %v7768 = vand.u32 %v7767, 4294901760
    %v7769 = vsub.f32 %v7767, %v7768
    %v7770 = vand.u32 %v7769, 4294901760
    %7771 = vmatpush1.msra.mxu0 %v7770
    %7772 = vmatprep.subr.mxu0 0.0
    %v7773 = vand.u32 %v95, 4294901760
    %v7774 = vsub.f32 %v95, %v7773
    %v7775 = vand.u32 %v7774, 4294901760
    %v7776 = vsub.f32 %v7774, %v7775
    %v7777 = vand.u32 %v7776, 4294901760
    %7778 = vmatpush1.msra.mxu0 %v7777
    %7779 = vmatprep.subr.mxu0 0.0
    %7780 = vmatpush1.msra.mxu0 0.0
    %7781 = vmatprep.subr.mxu0 0.0
    %7782 = vmatpush1.msra.mxu0 0.0
    %7783 = vmatprep.subr.mxu0 0.0
    %7784 = vmatpush1.msra.mxu0 0.0
    %7785 = vmatprep.subr.mxu0 0.0
    %7786 = vmatpush1.msra.mxu0 0.0
    %7787 = vmatprep.subr.mxu0 0.0
    %7788 = vmatpush1.msra.mxu0 0.0
    %7789 = vmatprep.subr.mxu0 0.0
    %7790 = vmatpush1.msra.mxu0 0.0
    %7791 = vmatprep.subr.mxu0 0.0
    %7792 = vmatpush1.msra.mxu0 0.0
    %7793 = vmatprep.subr.mxu0 0.0
    %7794 = vmatpush1.msra.mxu0 0.0
    %7795 = vmatprep.subr.mxu0 0.0
    %7796 = vmatpush1.msra.mxu0 0.0
    %7797 = vmatprep.subr.mxu0 0.0
    %7798 = vmatpush1.msra.mxu0 0.0
    %7799 = vmatprep.subr.mxu0 0.0
    %7800 = vmatpush1.msra.mxu0 0.0
    %7801 = vmatprep.subr.mxu0 0.0
    %7802 = vmatpush1.msra.mxu0 0.0
    %7803 = vmatprep.subr.mxu0 0.0
    %7804 = vmatpush1.msra.mxu0 0.0
    %7805 = vmatprep.subr.mxu0 0.0
    %7806 = vmatpush1.msra.mxu0 0.0
    %7807 = vmatprep.subr.mxu0 0.0
    %7808 = vmatpush1.msra.mxu0 0.0
    %7809 = vmatprep.subr.mxu0 0.0
    %7810 = vmatpush1.msra.mxu0 0.0
    %7811 = vmatprep.subr.mxu0 0.0
    %7812 = vmatpush1.msra.mxu0 0.0
    %7813 = vmatprep.subr.mxu0 0.0
    %7814 = vmatpush1.msra.mxu0 0.0
    %7815 = vmatprep.subr.mxu0 0.0
    %7816 = vmatpush1.msra.mxu0 0.0
    %7817 = vmatprep.subr.mxu0 0.0
    %7818 = vmatpush1.msra.mxu0 0.0
    %7819 = vmatprep.subr.mxu0 0.0
    %7820 = vmatpush1.msra.mxu0 0.0
    %7821 = vmatprep.subr.mxu0 0.0
    %7822 = vmatpush1.msra.mxu0 0.0
    %7823 = vmatprep.subr.mxu0 0.0
    %7824 = vmatpush1.msra.mxu0 0.0
    %7825 = vmatprep.subr.mxu0 0.0
    %7826 = vmatpush1.msra.mxu0 0.0
    %7827 = vmatprep.subr.mxu0 0.0
    %7828 = vmatpush1.msra.mxu0 0.0
    %7829 = vmatprep.subr.mxu0 0.0
    %7830 = vmatpush1.msra.mxu0 0.0
    %7831 = vmatprep.subr.mxu0 0.0
    %7832 = vmatpush1.msra.mxu0 0.0
    %7833 = vmatprep.subr.mxu0 0.0
    %7834 = vmatpush1.msra.mxu0 0.0
    %7835 = vmatprep.subr.mxu0 0.0
    %7836 = vmatpush1.msra.mxu0 0.0
    %7837 = vmatprep.subr.mxu0 0.0
    %7838 = vmatpush1.msra.mxu0 0.0
    %7839 = vmatprep.mubr.f32.mxu0 0.0
    %v7840 = vand.u32 %v7686, 4294901760
    %7841 = vmatmul.mubr.f32.gmra.mrb[0].mxu0 %v7840
    %v7842 = vpop.f32.mrb[0].mxu0
    %v7843 = vadd.f32 %v7762, %v7842
    %v7844 = vpop.f32.mrb[0].mxu0
    %7845 = vdwg.mxu0
    %7846 = vmatprep.subr.mxu0 0.0
    %v7847 = vand.u32 %v94, 4294901760
    %v7848 = vsub.f32 %v94, %v7847
    %7849 = vmatpush1.msra.mxu0 %v7848
    %7850 = vmatprep.subr.mxu0 0.0
    %v7851 = vand.u32 %v95, 4294901760
    %v7852 = vsub.f32 %v95, %v7851
    %7853 = vmatpush1.msra.mxu0 %v7852
    %7854 = vmatprep.subr.mxu0 0.0
    %7855 = vmatpush1.msra.mxu0 0.0
    %7856 = vmatprep.subr.mxu0 0.0
    %7857 = vmatpush1.msra.mxu0 0.0
    %7858 = vmatprep.subr.mxu0 0.0
    %7859 = vmatpush1.msra.mxu0 0.0
    %7860 = vmatprep.subr.mxu0 0.0
    %7861 = vmatpush1.msra.mxu0 0.0
    %7862 = vmatprep.subr.mxu0 0.0
    %7863 = vmatpush1.msra.mxu0 0.0
    %7864 = vmatprep.subr.mxu0 0.0
    %7865 = vmatpush1.msra.mxu0 0.0
    %7866 = vmatprep.subr.mxu0 0.0
    %7867 = vmatpush1.msra.mxu0 0.0
    %7868 = vmatprep.subr.mxu0 0.0
    %7869 = vmatpush1.msra.mxu0 0.0
    %7870 = vmatprep.subr.mxu0 0.0
    %7871 = vmatpush1.msra.mxu0 0.0
    %7872 = vmatprep.subr.mxu0 0.0
    %7873 = vmatpush1.msra.mxu0 0.0
    %7874 = vmatprep.subr.mxu0 0.0
    %7875 = vmatpush1.msra.mxu0 0.0
    %7876 = vmatprep.subr.mxu0 0.0
    %7877 = vmatpush1.msra.mxu0 0.0
    %7878 = vmatprep.subr.mxu0 0.0
    %7879 = vmatpush1.msra.mxu0 0.0
    %7880 = vmatprep.subr.mxu0 0.0
    %7881 = vmatpush1.msra.mxu0 0.0
    %7882 = vmatprep.subr.mxu0 0.0
    %7883 = vmatpush1.msra.mxu0 0.0
    %7884 = vmatprep.subr.mxu0 0.0
    %7885 = vmatpush1.msra.mxu0 0.0
    %7886 = vmatprep.subr.mxu0 0.0
    %7887 = vmatpush1.msra.mxu0 0.0
    %7888 = vmatprep.subr.mxu0 0.0
    %7889 = vmatpush1.msra.mxu0 0.0
    %7890 = vmatprep.subr.mxu0 0.0
    %7891 = vmatpush1.msra.mxu0 0.0
    %7892 = vmatprep.subr.mxu0 0.0
    %7893 = vmatpush1.msra.mxu0 0.0
    %7894 = vmatprep.subr.mxu0 0.0
    %7895 = vmatpush1.msra.mxu0 0.0
    %7896 = vmatprep.subr.mxu0 0.0
    %7897 = vmatpush1.msra.mxu0 0.0
    %7898 = vmatprep.subr.mxu0 0.0
    %7899 = vmatpush1.msra.mxu0 0.0
    %7900 = vmatprep.subr.mxu0 0.0
    %7901 = vmatpush1.msra.mxu0 0.0
    %7902 = vmatprep.subr.mxu0 0.0
    %7903 = vmatpush1.msra.mxu0 0.0
    %7904 = vmatprep.subr.mxu0 0.0
    %7905 = vmatpush1.msra.mxu0 0.0
    %7906 = vmatprep.subr.mxu0 0.0
    %7907 = vmatpush1.msra.mxu0 0.0
    %7908 = vmatprep.subr.mxu0 0.0
    %7909 = vmatpush1.msra.mxu0 0.0
    %7910 = vmatprep.subr.mxu0 0.0
    %7911 = vmatpush1.msra.mxu0 0.0
    %7912 = vmatprep.subr.mxu0 0.0
    %7913 = vmatpush1.msra.mxu0 0.0
    %7914 = vmatprep.mubr.f32.mxu0 0.0
    %v7915 = vand.u32 %v7686, 4294901760
    %v7916 = vsub.f32 %v7686, %v7915
    %7917 = vmatmul.mubr.f32.gmra.mrb[0].mxu0 %v7916
    %v7918 = vpop.f32.mrb[0].mxu0
    %v7919 = vadd.f32 %v7843, %v7918
    %v7920 = vpop.f32.mrb[0].mxu0
    %7921 = vdwg.mxu0
    %7922 = vmatprep.subr.mxu0 0.0
    %v7923 = vand.u32 %v94, 4294901760
    %7924 = vmatpush1.msra.mxu0 %v7923
    %7925 = vmatprep.subr.mxu0 0.0
    %v7926 = vand.u32 %v95, 4294901760
    %7927 = vmatpush1.msra.mxu0 %v7926
    %7928 = vmatprep.subr.mxu0 0.0
    %7929 = vmatpush1.msra.mxu0 0.0
    %7930 = vmatprep.subr.mxu0 0.0
    %7931 = vmatpush1.msra.mxu0 0.0
    %7932 = vmatprep.subr.mxu0 0.0
    %7933 = vmatpush1.msra.mxu0 0.0
    %7934 = vmatprep.subr.mxu0 0.0
    %7935 = vmatpush1.msra.mxu0 0.0
    %7936 = vmatprep.subr.mxu0 0.0
    %7937 = vmatpush1.msra.mxu0 0.0
    %7938 = vmatprep.subr.mxu0 0.0
    %7939 = vmatpush1.msra.mxu0 0.0
    %7940 = vmatprep.subr.mxu0 0.0
    %7941 = vmatpush1.msra.mxu0 0.0
    %7942 = vmatprep.subr.mxu0 0.0
    %7943 = vmatpush1.msra.mxu0 0.0
    %7944 = vmatprep.subr.mxu0 0.0
    %7945 = vmatpush1.msra.mxu0 0.0
    %7946 = vmatprep.subr.mxu0 0.0
    %7947 = vmatpush1.msra.mxu0 0.0
    %7948 = vmatprep.subr.mxu0 0.0
    %7949 = vmatpush1.msra.mxu0 0.0
    %7950 = vmatprep.subr.mxu0 0.0
    %7951 = vmatpush1.msra.mxu0 0.0
    %7952 = vmatprep.subr.mxu0 0.0
    %7953 = vmatpush1.msra.mxu0 0.0
    %7954 = vmatprep.subr.mxu0 0.0
    %7955 = vmatpush1.msra.mxu0 0.0
    %7956 = vmatprep.subr.mxu0 0.0
    %7957 = vmatpush1.msra.mxu0 0.0
    %7958 = vmatprep.subr.mxu0 0.0
    %7959 = vmatpush1.msra.mxu0 0.0
    %7960 = vmatprep.subr.mxu0 0.0
    %7961 = vmatpush1.msra.mxu0 0.0
    %7962 = vmatprep.subr.mxu0 0.0
    %7963 = vmatpush1.msra.mxu0 0.0
    %7964 = vmatprep.subr.mxu0 0.0
    %7965 = vmatpush1.msra.mxu0 0.0
    %7966 = vmatprep.subr.mxu0 0.0
    %7967 = vmatpush1.msra.mxu0 0.0
    %7968 = vmatprep.subr.mxu0 0.0
    %7969 = vmatpush1.msra.mxu0 0.0
    %7970 = vmatprep.subr.mxu0 0.0
    %7971 = vmatpush1.msra.mxu0 0.0
    %7972 = vmatprep.subr.mxu0 0.0
    %7973 = vmatpush1.msra.mxu0 0.0
    %7974 = vmatprep.subr.mxu0 0.0
    %7975 = vmatpush1.msra.mxu0 0.0
    %7976 = vmatprep.subr.mxu0 0.0
    %7977 = vmatpush1.msra.mxu0 0.0
    %7978 = vmatprep.subr.mxu0 0.0
    %7979 = vmatpush1.msra.mxu0 0.0
    %7980 = vmatprep.subr.mxu0 0.0
    %7981 = vmatpush1.msra.mxu0 0.0
    %7982 = vmatprep.subr.mxu0 0.0
    %7983 = vmatpush1.msra.mxu0 0.0
    %7984 = vmatprep.subr.mxu0 0.0
    %7985 = vmatpush1.msra.mxu0 0.0
    %7986 = vmatprep.subr.mxu0 0.0
    %7987 = vmatpush1.msra.mxu0 0.0
    %7988 = vmatprep.mubr.f32.mxu0 0.0
    %v7989 = vand.u32 %v7686, 4294901760
    %v7990 = vsub.f32 %v7686, %v7989
    %v7991 = vand.u32 %v7990, 4294901760
    %7992 = vmatmul.mubr.f32.gmra.mrb[0].mxu0 %v7991
    %v7993 = vpop.f32.mrb[0].mxu0
    %v7994 = vadd.f32 %v7919, %v7993
    %v7995 = vpop.f32.mrb[0].mxu0
    %7996 = vdwg.mxu0
    %7997 = vmatprep.subr.mxu0 0.0
    %v7998 = vand.u32 %v94, 4294901760
    %v7999 = vsub.f32 %v94, %v7998
    %v8000 = vand.u32 %v7999, 4294901760
    %8001 = vmatpush1.msra.mxu0 %v8000
    %8002 = vmatprep.subr.mxu0 0.0
    %v8003 = vand.u32 %v95, 4294901760
    %v8004 = vsub.f32 %v95, %v8003
    %v8005 = vand.u32 %v8004, 4294901760
    %8006 = vmatpush1.msra.mxu0 %v8005
    %8007 = vmatprep.subr.mxu0 0.0
    %8008 = vmatpush1.msra.mxu0 0.0
    %8009 = vmatprep.subr.mxu0 0.0
    %8010 = vmatpush1.msra.mxu0 0.0
    %8011 = vmatprep.subr.mxu0 0.0
    %8012 = vmatpush1.msra.mxu0 0.0
    %8013 = vmatprep.subr.mxu0 0.0
    %8014 = vmatpush1.msra.mxu0 0.0
    %8015 = vmatprep.subr.mxu0 0.0
    %8016 = vmatpush1.msra.mxu0 0.0
    %8017 = vmatprep.subr.mxu0 0.0
    %8018 = vmatpush1.msra.mxu0 0.0
    %8019 = vmatprep.subr.mxu0 0.0
    %8020 = vmatpush1.msra.mxu0 0.0
    %8021 = vmatprep.subr.mxu0 0.0
    %8022 = vmatpush1.msra.mxu0 0.0
    %8023 = vmatprep.subr.mxu0 0.0
    %8024 = vmatpush1.msra.mxu0 0.0
    %8025 = vmatprep.subr.mxu0 0.0
    %8026 = vmatpush1.msra.mxu0 0.0
    %8027 = vmatprep.subr.mxu0 0.0
    %8028 = vmatpush1.msra.mxu0 0.0
    %8029 = vmatprep.subr.mxu0 0.0
    %8030 = vmatpush1.msra.mxu0 0.0
    %8031 = vmatprep.subr.mxu0 0.0
    %8032 = vmatpush1.msra.mxu0 0.0
    %8033 = vmatprep.subr.mxu0 0.0
    %8034 = vmatpush1.msra.mxu0 0.0
    %8035 = vmatprep.subr.mxu0 0.0
    %8036 = vmatpush1.msra.mxu0 0.0
    %8037 = vmatprep.subr.mxu0 0.0
    %8038 = vmatpush1.msra.mxu0 0.0
    %8039 = vmatprep.subr.mxu0 0.0
    %8040 = vmatpush1.msra.mxu0 0.0
    %8041 = vmatprep.subr.mxu0 0.0
    %8042 = vmatpush1.msra.mxu0 0.0
    %8043 = vmatprep.subr.mxu0 0.0
    %8044 = vmatpush1.msra.mxu0 0.0
    %8045 = vmatprep.subr.mxu0 0.0
    %8046 = vmatpush1.msra.mxu0 0.0
    %8047 = vmatprep.subr.mxu0 0.0
    %8048 = vmatpush1.msra.mxu0 0.0
    %8049 = vmatprep.subr.mxu0 0.0
    %8050 = vmatpush1.msra.mxu0 0.0
    %8051 = vmatprep.subr.mxu0 0.0
    %8052 = vmatpush1.msra.mxu0 0.0
    %8053 = vmatprep.subr.mxu0 0.0
    %8054 = vmatpush1.msra.mxu0 0.0
    %8055 = vmatprep.subr.mxu0 0.0
    %8056 = vmatpush1.msra.mxu0 0.0
    %8057 = vmatprep.subr.mxu0 0.0
    %8058 = vmatpush1.msra.mxu0 0.0
    %8059 = vmatprep.subr.mxu0 0.0
    %8060 = vmatpush1.msra.mxu0 0.0
    %8061 = vmatprep.subr.mxu0 0.0
    %8062 = vmatpush1.msra.mxu0 0.0
    %8063 = vmatprep.subr.mxu0 0.0
    %8064 = vmatpush1.msra.mxu0 0.0
    %8065 = vmatprep.subr.mxu0 0.0
    %8066 = vmatpush1.msra.mxu0 0.0
    %8067 = vmatprep.mubr.f32.mxu0 0.0
    %v8068 = vand.u32 %v7686, 4294901760
    %8069 = vmatmul.mubr.f32.gmra.mrb[0].mxu0 %v8068
    %v8070 = vpop.f32.mrb[0].mxu0
    %v8071 = vadd.f32 %v7994, %v8070
    %v8072 = vpop.f32.mrb[0].mxu0
    %8073 = vdwg.mxu0
    %8074 = vmatprep.subr.mxu0 0.0
    %v8075 = vand.u32 %v94, 4294901760
    %8076 = vmatpush1.msra.mxu0 %v8075
    %8077 = vmatprep.subr.mxu0 0.0
    %v8078 = vand.u32 %v95, 4294901760
    %8079 = vmatpush1.msra.mxu0 %v8078
    %8080 = vmatprep.subr.mxu0 0.0
    %8081 = vmatpush1.msra.mxu0 0.0
    %8082 = vmatprep.subr.mxu0 0.0
    %8083 = vmatpush1.msra.mxu0 0.0
    %8084 = vmatprep.subr.mxu0 0.0
    %8085 = vmatpush1.msra.mxu0 0.0
    %8086 = vmatprep.subr.mxu0 0.0
    %8087 = vmatpush1.msra.mxu0 0.0
    %8088 = vmatprep.subr.mxu0 0.0
    %8089 = vmatpush1.msra.mxu0 0.0
    %8090 = vmatprep.subr.mxu0 0.0
    %8091 = vmatpush1.msra.mxu0 0.0
    %8092 = vmatprep.subr.mxu0 0.0
    %8093 = vmatpush1.msra.mxu0 0.0
    %8094 = vmatprep.subr.mxu0 0.0
    %8095 = vmatpush1.msra.mxu0 0.0
    %8096 = vmatprep.subr.mxu0 0.0
    %8097 = vmatpush1.msra.mxu0 0.0
    %8098 = vmatprep.subr.mxu0 0.0
    %8099 = vmatpush1.msra.mxu0 0.0
    %8100 = vmatprep.subr.mxu0 0.0
    %8101 = vmatpush1.msra.mxu0 0.0
    %8102 = vmatprep.subr.mxu0 0.0
    %8103 = vmatpush1.msra.mxu0 0.0
    %8104 = vmatprep.subr.mxu0 0.0
    %8105 = vmatpush1.msra.mxu0 0.0
    %8106 = vmatprep.subr.mxu0 0.0
    %8107 = vmatpush1.msra.mxu0 0.0
    %8108 = vmatprep.subr.mxu0 0.0
    %8109 = vmatpush1.msra.mxu0 0.0
    %8110 = vmatprep.subr.mxu0 0.0
    %8111 = vmatpush1.msra.mxu0 0.0
    %8112 = vmatprep.subr.mxu0 0.0
    %8113 = vmatpush1.msra.mxu0 0.0
    %8114 = vmatprep.subr.mxu0 0.0
    %8115 = vmatpush1.msra.mxu0 0.0
    %8116 = vmatprep.subr.mxu0 0.0
    %8117 = vmatpush1.msra.mxu0 0.0
    %8118 = vmatprep.subr.mxu0 0.0
    %8119 = vmatpush1.msra.mxu0 0.0
    %8120 = vmatprep.subr.mxu0 0.0
    %8121 = vmatpush1.msra.mxu0 0.0
    %8122 = vmatprep.subr.mxu0 0.0
    %8123 = vmatpush1.msra.mxu0 0.0
    %8124 = vmatprep.subr.mxu0 0.0
    %8125 = vmatpush1.msra.mxu0 0.0
    %8126 = vmatprep.subr.mxu0 0.0
    %8127 = vmatpush1.msra.mxu0 0.0
    %8128 = vmatprep.subr.mxu0 0.0
    %8129 = vmatpush1.msra.mxu0 0.0
    %8130 = vmatprep.subr.mxu0 0.0
    %8131 = vmatpush1.msra.mxu0 0.0
    %8132 = vmatprep.subr.mxu0 0.0
    %8133 = vmatpush1.msra.mxu0 0.0
    %8134 = vmatprep.subr.mxu0 0.0
    %8135 = vmatpush1.msra.mxu0 0.0
    %8136 = vmatprep.subr.mxu0 0.0
    %8137 = vmatpush1.msra.mxu0 0.0
    %8138 = vmatprep.subr.mxu0 0.0
    %8139 = vmatpush1.msra.mxu0 0.0
    %8140 = vmatprep.mubr.f32.mxu0 0.0
    %v8141 = vand.u32 %v7686, 4294901760
    %8142 = vmatmul.mubr.f32.gmra.mrb[0].mxu0 %v8141
    %v8143 = vpop.f32.mrb[0].mxu0
    %v8144 = vadd.f32 %v8071, %v8143
    %v8145 = vpop.f32.mrb[0].mxu0
    %8146 = vdwg.mxu0
    %v8147 = vld [vmem:[#allocation4 + $0x5] sm:$0x1]
    %v8148 = vld [vmem:[#allocation4 + $0xd] sm:$0x1]
    %8149 = vmatprep.subr.mxu0 0.0
    %v8150 = vand.u32 %v86, 4294901760
    %8151 = vmatpush1.msra.mxu0 %v8150
    %8152 = vmatprep.subr.mxu0 0.0
    %v8153 = vand.u32 %v87, 4294901760
    %8154 = vmatpush1.msra.mxu0 %v8153
    %8155 = vmatprep.subr.mxu0 0.0
    %v8156 = vand.u32 %v88, 4294901760
    %8157 = vmatpush1.msra.mxu0 %v8156
    %8158 = vmatprep.subr.mxu0 0.0
    %v8159 = vand.u32 %v89, 4294901760
    %8160 = vmatpush1.msra.mxu0 %v8159
    %8161 = vmatprep.subr.mxu0 0.0
    %8162 = vmatpush1.msra.mxu0 0.0
    %8163 = vmatprep.subr.mxu0 0.0
    %8164 = vmatpush1.msra.mxu0 0.0
    %8165 = vmatprep.subr.mxu0 0.0
    %8166 = vmatpush1.msra.mxu0 0.0
    %8167 = vmatprep.subr.mxu0 0.0
    %8168 = vmatpush1.msra.mxu0 0.0
    %8169 = vmatprep.subr.mxu0 0.0
    %8170 = vmatpush1.msra.mxu0 0.0
    %8171 = vmatprep.subr.mxu0 0.0
    %8172 = vmatpush1.msra.mxu0 0.0
    %8173 = vmatprep.subr.mxu0 0.0
    %8174 = vmatpush1.msra.mxu0 0.0
    %8175 = vmatprep.subr.mxu0 0.0
    %8176 = vmatpush1.msra.mxu0 0.0
    %8177 = vmatprep.subr.mxu0 0.0
    %8178 = vmatpush1.msra.mxu0 0.0
    %8179 = vmatprep.subr.mxu0 0.0
    %8180 = vmatpush1.msra.mxu0 0.0
    %8181 = vmatprep.subr.mxu0 0.0
    %8182 = vmatpush1.msra.mxu0 0.0
    %8183 = vmatprep.subr.mxu0 0.0
    %8184 = vmatpush1.msra.mxu0 0.0
    %8185 = vmatprep.subr.mxu0 0.0
    %8186 = vmatpush1.msra.mxu0 0.0
    %8187 = vmatprep.subr.mxu0 0.0
    %8188 = vmatpush1.msra.mxu0 0.0
    %8189 = vmatprep.subr.mxu0 0.0
    %8190 = vmatpush1.msra.mxu0 0.0
    %8191 = vmatprep.subr.mxu0 0.0
    %8192 = vmatpush1.msra.mxu0 0.0
    %8193 = vmatprep.subr.mxu0 0.0
    %8194 = vmatpush1.msra.mxu0 0.0
    %8195 = vmatprep.subr.mxu0 0.0
    %8196 = vmatpush1.msra.mxu0 0.0
    %8197 = vmatprep.subr.mxu0 0.0
    %8198 = vmatpush1.msra.mxu0 0.0
    %8199 = vmatprep.subr.mxu0 0.0
    %8200 = vmatpush1.msra.mxu0 0.0
    %8201 = vmatprep.subr.mxu0 0.0
    %8202 = vmatpush1.msra.mxu0 0.0
    %8203 = vmatprep.subr.mxu0 0.0
    %8204 = vmatpush1.msra.mxu0 0.0
    %8205 = vmatprep.subr.mxu0 0.0
    %8206 = vmatpush1.msra.mxu0 0.0
    %8207 = vmatprep.subr.mxu0 0.0
    %8208 = vmatpush1.msra.mxu0 0.0
    %8209 = vmatprep.subr.mxu0 0.0
    %8210 = vmatpush1.msra.mxu0 0.0
    %8211 = vmatprep.subr.mxu0 0.0
    %8212 = vmatpush1.msra.mxu0 0.0
    %8213 = vmatprep.subr.mxu0 0.0
    %8214 = vmatpush1.msra.mxu0 0.0
    %8215 = vmatprep.subr.mxu0 0.0
    %8216 = vmatpush1.msra.mxu0 0.0
    %8217 = vmatprep.mubr.f32.mxu0 0.0
    %v8218 = vand.u32 %v7138, 4294901760
    %v8219 = vsub.f32 %v7138, %v8218
    %v8220 = vand.u32 %v8219, 4294901760
    %v8221 = vsub.f32 %v8219, %v8220
    %v8222 = vand.u32 %v8221, 4294901760
    %8223 = vmatmul.mubr.f32.gmra.mrb[0].mxu0 %v8222
    %v8224 = vpop.f32.mrb[0].mxu0
    %v8225 = vadd.f32 0.0, %v8224
    %v8226 = vpop.f32.mrb[0].mxu0
    %8227 = vdwg.mxu0
    %8228 = vmatprep.subr.mxu0 0.0
    %v8229 = vand.u32 %v86, 4294901760
    %v8230 = vsub.f32 %v86, %v8229
    %v8231 = vand.u32 %v8230, 4294901760
    %v8232 = vsub.f32 %v8230, %v8231
    %v8233 = vand.u32 %v8232, 4294901760
    %8234 = vmatpush1.msra.mxu0 %v8233
    %8235 = vmatprep.subr.mxu0 0.0
    %v8236 = vand.u32 %v87, 4294901760
    %v8237 = vsub.f32 %v87, %v8236
    %v8238 = vand.u32 %v8237, 4294901760
    %v8239 = vsub.f32 %v8237, %v8238
    %v8240 = vand.u32 %v8239, 4294901760
    %8241 = vmatpush1.msra.mxu0 %v8240
    %8242 = vmatprep.subr.mxu0 0.0
    %v8243 = vand.u32 %v88, 4294901760
    %v8244 = vsub.f32 %v88, %v8243
    %v8245 = vand.u32 %v8244, 4294901760
    %v8246 = vsub.f32 %v8244, %v8245
    %v8247 = vand.u32 %v8246, 4294901760
    %8248 = vmatpush1.msra.mxu0 %v8247
    %8249 = vmatprep.subr.mxu0 0.0
    %v8250 = vand.u32 %v89, 4294901760
    %v8251 = vsub.f32 %v89, %v8250
    %v8252 = vand.u32 %v8251, 4294901760
    %v8253 = vsub.f32 %v8251, %v8252
    %v8254 = vand.u32 %v8253, 4294901760
    %8255 = vmatpush1.msra.mxu0 %v8254
    %8256 = vmatprep.subr.mxu0 0.0
    %8257 = vmatpush1.msra.mxu0 0.0
    %8258 = vmatprep.subr.mxu0 0.0
    %8259 = vmatpush1.msra.mxu0 0.0
    %8260 = vmatprep.subr.mxu0 0.0
    %8261 = vmatpush1.msra.mxu0 0.0
    %8262 = vmatprep.subr.mxu0 0.0
    %8263 = vmatpush1.msra.mxu0 0.0
    %8264 = vmatprep.subr.mxu0 0.0
    %8265 = vmatpush1.msra.mxu0 0.0
    %8266 = vmatprep.subr.mxu0 0.0
    %8267 = vmatpush1.msra.mxu0 0.0
    %8268 = vmatprep.subr.mxu0 0.0
    %8269 = vmatpush1.msra.mxu0 0.0
    %8270 = vmatprep.subr.mxu0 0.0
    %8271 = vmatpush1.msra.mxu0 0.0
    %8272 = vmatprep.subr.mxu0 0.0
    %8273 = vmatpush1.msra.mxu0 0.0
    %8274 = vmatprep.subr.mxu0 0.0
    %8275 = vmatpush1.msra.mxu0 0.0
    %8276 = vmatprep.subr.mxu0 0.0
    %8277 = vmatpush1.msra.mxu0 0.0
    %8278 = vmatprep.subr.mxu0 0.0
    %8279 = vmatpush1.msra.mxu0 0.0
    %8280 = vmatprep.subr.mxu0 0.0
    %8281 = vmatpush1.msra.mxu0 0.0
    %8282 = vmatprep.subr.mxu0 0.0
    %8283 = vmatpush1.msra.mxu0 0.0
    %8284 = vmatprep.subr.mxu0 0.0
    %8285 = vmatpush1.msra.mxu0 0.0
    %8286 = vmatprep.subr.mxu0 0.0
    %8287 = vmatpush1.msra.mxu0 0.0
    %8288 = vmatprep.subr.mxu0 0.0
    %8289 = vmatpush1.msra.mxu0 0.0
    %8290 = vmatprep.subr.mxu0 0.0
    %8291 = vmatpush1.msra.mxu0 0.0
    %8292 = vmatprep.subr.mxu0 0.0
    %8293 = vmatpush1.msra.mxu0 0.0
    %8294 = vmatprep.subr.mxu0 0.0
    %8295 = vmatpush1.msra.mxu0 0.0
    %8296 = vmatprep.subr.mxu0 0.0
    %8297 = vmatpush1.msra.mxu0 0.0
    %8298 = vmatprep.subr.mxu0 0.0
    %8299 = vmatpush1.msra.mxu0 0.0
    %8300 = vmatprep.subr.mxu0 0.0
    %8301 = vmatpush1.msra.mxu0 0.0
    %8302 = vmatprep.subr.mxu0 0.0
    %8303 = vmatpush1.msra.mxu0 0.0
    %8304 = vmatprep.subr.mxu0 0.0
    %8305 = vmatpush1.msra.mxu0 0.0
    %8306 = vmatprep.subr.mxu0 0.0
    %8307 = vmatpush1.msra.mxu0 0.0
    %8308 = vmatprep.subr.mxu0 0.0
    %8309 = vmatpush1.msra.mxu0 0.0
    %8310 = vmatprep.subr.mxu0 0.0
    %8311 = vmatpush1.msra.mxu0 0.0
    %8312 = vmatprep.mubr.f32.mxu0 0.0
    %v8313 = vand.u32 %v7138, 4294901760
    %8314 = vmatmul.mubr.f32.gmra.mrb[0].mxu0 %v8313
    %v8315 = vpop.f32.mrb[0].mxu0
    %v8316 = vadd.f32 %v8225, %v8315
    %v8317 = vpop.f32.mrb[0].mxu0
    %8318 = vdwg.mxu0
    %8319 = vmatprep.subr.mxu0 0.0
    %v8320 = vand.u32 %v86, 4294901760
    %v8321 = vsub.f32 %v86, %v8320
    %8322 = vmatpush1.msra.mxu0 %v8321
    %8323 = vmatprep.subr.mxu0 0.0
    %v8324 = vand.u32 %v87, 4294901760
    %v8325 = vsub.f32 %v87, %v8324
    %8326 = vmatpush1.msra.mxu0 %v8325
    %8327 = vmatprep.subr.mxu0 0.0
    %v8328 = vand.u32 %v88, 4294901760
    %v8329 = vsub.f32 %v88, %v8328
    %8330 = vmatpush1.msra.mxu0 %v8329
    %8331 = vmatprep.subr.mxu0 0.0
    %v8332 = vand.u32 %v89, 4294901760
    %v8333 = vsub.f32 %v89, %v8332
    %8334 = vmatpush1.msra.mxu0 %v8333
    %8335 = vmatprep.subr.mxu0 0.0
    %8336 = vmatpush1.msra.mxu0 0.0
    %8337 = vmatprep.subr.mxu0 0.0
    %8338 = vmatpush1.msra.mxu0 0.0
    %8339 = vmatprep.subr.mxu0 0.0
    %8340 = vmatpush1.msra.mxu0 0.0
    %8341 = vmatprep.subr.mxu0 0.0
    %8342 = vmatpush1.msra.mxu0 0.0
    %8343 = vmatprep.subr.mxu0 0.0
    %8344 = vmatpush1.msra.mxu0 0.0
    %8345 = vmatprep.subr.mxu0 0.0
    %8346 = vmatpush1.msra.mxu0 0.0
    %8347 = vmatprep.subr.mxu0 0.0
    %8348 = vmatpush1.msra.mxu0 0.0
    %8349 = vmatprep.subr.mxu0 0.0
    %8350 = vmatpush1.msra.mxu0 0.0
    %8351 = vmatprep.subr.mxu0 0.0
    %8352 = vmatpush1.msra.mxu0 0.0
    %8353 = vmatprep.subr.mxu0 0.0
    %8354 = vmatpush1.msra.mxu0 0.0
    %8355 = vmatprep.subr.mxu0 0.0
    %8356 = vmatpush1.msra.mxu0 0.0
    %8357 = vmatprep.subr.mxu0 0.0
    %8358 = vmatpush1.msra.mxu0 0.0
    %8359 = vmatprep.subr.mxu0 0.0
    %8360 = vmatpush1.msra.mxu0 0.0
    %8361 = vmatprep.subr.mxu0 0.0
    %8362 = vmatpush1.msra.mxu0 0.0
    %8363 = vmatprep.subr.mxu0 0.0
    %8364 = vmatpush1.msra.mxu0 0.0
    %8365 = vmatprep.subr.mxu0 0.0
    %8366 = vmatpush1.msra.mxu0 0.0
    %8367 = vmatprep.subr.mxu0 0.0
    %8368 = vmatpush1.msra.mxu0 0.0
    %8369 = vmatprep.subr.mxu0 0.0
    %8370 = vmatpush1.msra.mxu0 0.0
    %8371 = vmatprep.subr.mxu0 0.0
    %8372 = vmatpush1.msra.mxu0 0.0
    %8373 = vmatprep.subr.mxu0 0.0
    %8374 = vmatpush1.msra.mxu0 0.0
    %8375 = vmatprep.subr.mxu0 0.0
    %8376 = vmatpush1.msra.mxu0 0.0
    %8377 = vmatprep.subr.mxu0 0.0
    %8378 = vmatpush1.msra.mxu0 0.0
    %8379 = vmatprep.subr.mxu0 0.0
    %8380 = vmatpush1.msra.mxu0 0.0
    %8381 = vmatprep.subr.mxu0 0.0
    %8382 = vmatpush1.msra.mxu0 0.0
    %8383 = vmatprep.subr.mxu0 0.0
    %8384 = vmatpush1.msra.mxu0 0.0
    %8385 = vmatprep.subr.mxu0 0.0
    %8386 = vmatpush1.msra.mxu0 0.0
    %8387 = vmatprep.subr.mxu0 0.0
    %8388 = vmatpush1.msra.mxu0 0.0
    %8389 = vmatprep.subr.mxu0 0.0
    %8390 = vmatpush1.msra.mxu0 0.0
    %8391 = vmatprep.mubr.f32.mxu0 0.0
    %v8392 = vand.u32 %v7138, 4294901760
    %v8393 = vsub.f32 %v7138, %v8392
    %8394 = vmatmul.mubr.f32.gmra.mrb[0].mxu0 %v8393
    %v8395 = vpop.f32.mrb[0].mxu0
    %v8396 = vadd.f32 %v8316, %v8395
    %v8397 = vpop.f32.mrb[0].mxu0
    %8398 = vdwg.mxu0
    %8399 = vmatprep.subr.mxu0 0.0
    %v8400 = vand.u32 %v86, 4294901760
    %8401 = vmatpush1.msra.mxu0 %v8400
    %8402 = vmatprep.subr.mxu0 0.0
    %v8403 = vand.u32 %v87, 4294901760
    %8404 = vmatpush1.msra.mxu0 %v8403
    %8405 = vmatprep.subr.mxu0 0.0
    %v8406 = vand.u32 %v88, 4294901760
    %8407 = vmatpush1.msra.mxu0 %v8406
    %8408 = vmatprep.subr.mxu0 0.0
    %v8409 = vand.u32 %v89, 4294901760
    %8410 = vmatpush1.msra.mxu0 %v8409
    %8411 = vmatprep.subr.mxu0 0.0
    %8412 = vmatpush1.msra.mxu0 0.0
    %8413 = vmatprep.subr.mxu0 0.0
    %8414 = vmatpush1.msra.mxu0 0.0
    %8415 = vmatprep.subr.mxu0 0.0
    %8416 = vmatpush1.msra.mxu0 0.0
    %8417 = vmatprep.subr.mxu0 0.0
    %8418 = vmatpush1.msra.mxu0 0.0
    %8419 = vmatprep.subr.mxu0 0.0
    %8420 = vmatpush1.msra.mxu0 0.0
    %8421 = vmatprep.subr.mxu0 0.0
    %8422 = vmatpush1.msra.mxu0 0.0
    %8423 = vmatprep.subr.mxu0 0.0
    %8424 = vmatpush1.msra.mxu0 0.0
    %8425 = vmatprep.subr.mxu0 0.0
    %8426 = vmatpush1.msra.mxu0 0.0
    %8427 = vmatprep.subr.mxu0 0.0
    %8428 = vmatpush1.msra.mxu0 0.0
    %8429 = vmatprep.subr.mxu0 0.0
    %8430 = vmatpush1.msra.mxu0 0.0
    %8431 = vmatprep.subr.mxu0 0.0
    %8432 = vmatpush1.msra.mxu0 0.0
    %8433 = vmatprep.subr.mxu0 0.0
    %8434 = vmatpush1.msra.mxu0 0.0
    %8435 = vmatprep.subr.mxu0 0.0
    %8436 = vmatpush1.msra.mxu0 0.0
    %8437 = vmatprep.subr.mxu0 0.0
    %8438 = vmatpush1.msra.mxu0 0.0
    %8439 = vmatprep.subr.mxu0 0.0
    %8440 = vmatpush1.msra.mxu0 0.0
    %8441 = vmatprep.subr.mxu0 0.0
    %8442 = vmatpush1.msra.mxu0 0.0
    %8443 = vmatprep.subr.mxu0 0.0
    %8444 = vmatpush1.msra.mxu0 0.0
    %8445 = vmatprep.subr.mxu0 0.0
    %8446 = vmatpush1.msra.mxu0 0.0
    %8447 = vmatprep.subr.mxu0 0.0
    %8448 = vmatpush1.msra.mxu0 0.0
    %8449 = vmatprep.subr.mxu0 0.0
    %8450 = vmatpush1.msra.mxu0 0.0
    %8451 = vmatprep.subr.mxu0 0.0
    %8452 = vmatpush1.msra.mxu0 0.0
    %8453 = vmatprep.subr.mxu0 0.0
    %8454 = vmatpush1.msra.mxu0 0.0
    %8455 = vmatprep.subr.mxu0 0.0
    %8456 = vmatpush1.msra.mxu0 0.0
    %8457 = vmatprep.subr.mxu0 0.0
    %8458 = vmatpush1.msra.mxu0 0.0
    %8459 = vmatprep.subr.mxu0 0.0
    %8460 = vmatpush1.msra.mxu0 0.0
    %8461 = vmatprep.subr.mxu0 0.0
    %8462 = vmatpush1.msra.mxu0 0.0
    %8463 = vmatprep.subr.mxu0 0.0
    %8464 = vmatpush1.msra.mxu0 0.0
    %8465 = vmatprep.subr.mxu0 0.0
    %8466 = vmatpush1.msra.mxu0 0.0
    %8467 = vmatprep.mubr.f32.mxu0 0.0
    %v8468 = vand.u32 %v7138, 4294901760
    %v8469 = vsub.f32 %v7138, %v8468
    %v8470 = vand.u32 %v8469, 4294901760
    %8471 = vmatmul.mubr.f32.gmra.mrb[0].mxu0 %v8470
    %v8472 = vpop.f32.mrb[0].mxu0
    %v8473 = vadd.f32 %v8396, %v8472
    %v8474 = vpop.f32.mrb[0].mxu0
    %8475 = vdwg.mxu0
    %8476 = vmatprep.subr.mxu0 0.0
    %v8477 = vand.u32 %v86, 4294901760
    %v8478 = vsub.f32 %v86, %v8477
    %v8479 = vand.u32 %v8478, 4294901760
    %8480 = vmatpush1.msra.mxu0 %v8479
    %8481 = vmatprep.subr.mxu0 0.0
    %v8482 = vand.u32 %v87, 4294901760
    %v8483 = vsub.f32 %v87, %v8482
    %v8484 = vand.u32 %v8483, 4294901760
    %8485 = vmatpush1.msra.mxu0 %v8484
    %8486 = vmatprep.subr.mxu0 0.0
    %v8487 = vand.u32 %v88, 4294901760
    %v8488 = vsub.f32 %v88, %v8487
    %v8489 = vand.u32 %v8488, 4294901760
    %8490 = vmatpush1.msra.mxu0 %v8489
    %8491 = vmatprep.subr.mxu0 0.0
    %v8492 = vand.u32 %v89, 4294901760
    %v8493 = vsub.f32 %v89, %v8492
    %v8494 = vand.u32 %v8493, 4294901760
    %8495 = vmatpush1.msra.mxu0 %v8494
    %8496 = vmatprep.subr.mxu0 0.0
    %8497 = vmatpush1.msra.mxu0 0.0
    %8498 = vmatprep.subr.mxu0 0.0
    %8499 = vmatpush1.msra.mxu0 0.0
    %8500 = vmatprep.subr.mxu0 0.0
    %8501 = vmatpush1.msra.mxu0 0.0
    %8502 = vmatprep.subr.mxu0 0.0
    %8503 = vmatpush1.msra.mxu0 0.0
    %8504 = vmatprep.subr.mxu0 0.0
    %8505 = vmatpush1.msra.mxu0 0.0
    %8506 = vmatprep.subr.mxu0 0.0
    %8507 = vmatpush1.msra.mxu0 0.0
    %8508 = vmatprep.subr.mxu0 0.0
    %8509 = vmatpush1.msra.mxu0 0.0
    %8510 = vmatprep.subr.mxu0 0.0
    %8511 = vmatpush1.msra.mxu0 0.0
    %8512 = vmatprep.subr.mxu0 0.0
    %8513 = vmatpush1.msra.mxu0 0.0
    %8514 = vmatprep.subr.mxu0 0.0
    %8515 = vmatpush1.msra.mxu0 0.0
    %8516 = vmatprep.subr.mxu0 0.0
    %8517 = vmatpush1.msra.mxu0 0.0
    %8518 = vmatprep.subr.mxu0 0.0
    %8519 = vmatpush1.msra.mxu0 0.0
    %8520 = vmatprep.subr.mxu0 0.0
    %8521 = vmatpush1.msra.mxu0 0.0
    %8522 = vmatprep.subr.mxu0 0.0
    %8523 = vmatpush1.msra.mxu0 0.0
    %8524 = vmatprep.subr.mxu0 0.0
    %8525 = vmatpush1.msra.mxu0 0.0
    %8526 = vmatprep.subr.mxu0 0.0
    %8527 = vmatpush1.msra.mxu0 0.0
    %8528 = vmatprep.subr.mxu0 0.0
    %8529 = vmatpush1.msra.mxu0 0.0
    %8530 = vmatprep.subr.mxu0 0.0
    %8531 = vmatpush1.msra.mxu0 0.0
    %8532 = vmatprep.subr.mxu0 0.0
    %8533 = vmatpush1.msra.mxu0 0.0
    %8534 = vmatprep.subr.mxu0 0.0
    %8535 = vmatpush1.msra.mxu0 0.0
    %8536 = vmatprep.subr.mxu0 0.0
    %8537 = vmatpush1.msra.mxu0 0.0
    %8538 = vmatprep.subr.mxu0 0.0
    %8539 = vmatpush1.msra.mxu0 0.0
    %8540 = vmatprep.subr.mxu0 0.0
    %8541 = vmatpush1.msra.mxu0 0.0
    %8542 = vmatprep.subr.mxu0 0.0
    %8543 = vmatpush1.msra.mxu0 0.0
    %8544 = vmatprep.subr.mxu0 0.0
    %8545 = vmatpush1.msra.mxu0 0.0
    %8546 = vmatprep.subr.mxu0 0.0
    %8547 = vmatpush1.msra.mxu0 0.0
    %8548 = vmatprep.subr.mxu0 0.0
    %8549 = vmatpush1.msra.mxu0 0.0
    %8550 = vmatprep.subr.mxu0 0.0
    %8551 = vmatpush1.msra.mxu0 0.0
    %8552 = vmatprep.mubr.f32.mxu0 0.0
    %v8553 = vand.u32 %v7138, 4294901760
    %8554 = vmatmul.mubr.f32.gmra.mrb[0].mxu0 %v8553
    %v8555 = vpop.f32.mrb[0].mxu0
    %v8556 = vadd.f32 %v8473, %v8555
    %v8557 = vpop.f32.mrb[0].mxu0
    %8558 = vdwg.mxu0
    %8559 = vmatprep.subr.mxu0 0.0
    %v8560 = vand.u32 %v86, 4294901760
    %8561 = vmatpush1.msra.mxu0 %v8560
    %8562 = vmatprep.subr.mxu0 0.0
    %v8563 = vand.u32 %v87, 4294901760
    %8564 = vmatpush1.msra.mxu0 %v8563
    %8565 = vmatprep.subr.mxu0 0.0
    %v8566 = vand.u32 %v88, 4294901760
    %8567 = vmatpush1.msra.mxu0 %v8566
    %8568 = vmatprep.subr.mxu0 0.0
    %v8569 = vand.u32 %v89, 4294901760
    %8570 = vmatpush1.msra.mxu0 %v8569
    %8571 = vmatprep.subr.mxu0 0.0
    %8572 = vmatpush1.msra.mxu0 0.0
    %8573 = vmatprep.subr.mxu0 0.0
    %8574 = vmatpush1.msra.mxu0 0.0
    %8575 = vmatprep.subr.mxu0 0.0
    %8576 = vmatpush1.msra.mxu0 0.0
    %8577 = vmatprep.subr.mxu0 0.0
    %8578 = vmatpush1.msra.mxu0 0.0
    %8579 = vmatprep.subr.mxu0 0.0
    %8580 = vmatpush1.msra.mxu0 0.0
    %8581 = vmatprep.subr.mxu0 0.0
    %8582 = vmatpush1.msra.mxu0 0.0
    %8583 = vmatprep.subr.mxu0 0.0
    %8584 = vmatpush1.msra.mxu0 0.0
    %8585 = vmatprep.subr.mxu0 0.0
    %8586 = vmatpush1.msra.mxu0 0.0
    %8587 = vmatprep.subr.mxu0 0.0
    %8588 = vmatpush1.msra.mxu0 0.0
    %8589 = vmatprep.subr.mxu0 0.0
    %8590 = vmatpush1.msra.mxu0 0.0
    %8591 = vmatprep.subr.mxu0 0.0
    %8592 = vmatpush1.msra.mxu0 0.0
    %8593 = vmatprep.subr.mxu0 0.0
    %8594 = vmatpush1.msra.mxu0 0.0
    %8595 = vmatprep.subr.mxu0 0.0
    %8596 = vmatpush1.msra.mxu0 0.0
    %8597 = vmatprep.subr.mxu0 0.0
    %8598 = vmatpush1.msra.mxu0 0.0
    %8599 = vmatprep.subr.mxu0 0.0
    %8600 = vmatpush1.msra.mxu0 0.0
    %8601 = vmatprep.subr.mxu0 0.0
    %8602 = vmatpush1.msra.mxu0 0.0
    %8603 = vmatprep.subr.mxu0 0.0
    %8604 = vmatpush1.msra.mxu0 0.0
    %8605 = vmatprep.subr.mxu0 0.0
    %8606 = vmatpush1.msra.mxu0 0.0
    %8607 = vmatprep.subr.mxu0 0.0
    %8608 = vmatpush1.msra.mxu0 0.0
    %8609 = vmatprep.subr.mxu0 0.0
    %8610 = vmatpush1.msra.mxu0 0.0
    %8611 = vmatprep.subr.mxu0 0.0
    %8612 = vmatpush1.msra.mxu0 0.0
    %8613 = vmatprep.subr.mxu0 0.0
    %8614 = vmatpush1.msra.mxu0 0.0
    %8615 = vmatprep.subr.mxu0 0.0
    %8616 = vmatpush1.msra.mxu0 0.0
    %8617 = vmatprep.subr.mxu0 0.0
    %8618 = vmatpush1.msra.mxu0 0.0
    %8619 = vmatprep.subr.mxu0 0.0
    %8620 = vmatpush1.msra.mxu0 0.0
    %8621 = vmatprep.subr.mxu0 0.0
    %8622 = vmatpush1.msra.mxu0 0.0
    %8623 = vmatprep.subr.mxu0 0.0
    %8624 = vmatpush1.msra.mxu0 0.0
    %8625 = vmatprep.subr.mxu0 0.0
    %8626 = vmatpush1.msra.mxu0 0.0
    %8627 = vmatprep.mubr.f32.mxu0 0.0
    %v8628 = vand.u32 %v7138, 4294901760
    %8629 = vmatmul.mubr.f32.gmra.mrb[0].mxu0 %v8628
    %v8630 = vpop.f32.mrb[0].mxu0
    %v8631 = vadd.f32 %v8556, %v8630
    %v8632 = vpop.f32.mrb[0].mxu0
    %8633 = vdwg.mxu0
    %v8635 = vrot.slane %v8631, 1
    %v8638 = vadd.f32 %v8147, %v8631
    %v8639 = vadd.f32 %v8148, %v8635
    %v8640 = vmul.f32 %v7136, 0.25
    %v8641 = vtanh.pop %v8638
    %v8642 = vtanh.pop %v8639
    %v8643 = vmul.f32 %v8641, 0.75
    %v8644 = vmul.f32 %v8642, 0.75
    %v8647 = vrot.slane %v8644, 7
    %v8648 = vsel %vm1070, %v8647, %v8643
    %v8650 = vadd.f32 %v8640, %v8648
    %v8652 = vsel %vm567, %v8650, 0
    %8654 = vmatprep.subr.mxu0 0.0
    %v8655 = vand.u32 %v90, 4294901760
    %8656 = vmatpush1.msra.mxu0 %v8655
    %8657 = vmatprep.subr.mxu0 0.0
    %v8658 = vand.u32 %v91, 4294901760
    %8659 = vmatpush1.msra.mxu0 %v8658
    %8660 = vmatprep.subr.mxu0 0.0
    %v8661 = vand.u32 %v92, 4294901760
    %8662 = vmatpush1.msra.mxu0 %v8661
    %8663 = vmatprep.subr.mxu0 0.0
    %v8664 = vand.u32 %v93, 4294901760
    %8665 = vmatpush1.msra.mxu0 %v8664
    %8666 = vmatprep.subr.mxu0 0.0
    %8667 = vmatpush1.msra.mxu0 0.0
    %8668 = vmatprep.subr.mxu0 0.0
    %8669 = vmatpush1.msra.mxu0 0.0
    %8670 = vmatprep.subr.mxu0 0.0
    %8671 = vmatpush1.msra.mxu0 0.0
    %8672 = vmatprep.subr.mxu0 0.0
    %8673 = vmatpush1.msra.mxu0 0.0
    %8674 = vmatprep.subr.mxu0 0.0
    %8675 = vmatpush1.msra.mxu0 0.0
    %8676 = vmatprep.subr.mxu0 0.0
    %8677 = vmatpush1.msra.mxu0 0.0
    %8678 = vmatprep.subr.mxu0 0.0
    %8679 = vmatpush1.msra.mxu0 0.0
    %8680 = vmatprep.subr.mxu0 0.0
    %8681 = vmatpush1.msra.mxu0 0.0
    %8682 = vmatprep.subr.mxu0 0.0
    %8683 = vmatpush1.msra.mxu0 0.0
    %8684 = vmatprep.subr.mxu0 0.0
    %8685 = vmatpush1.msra.mxu0 0.0
    %8686 = vmatprep.subr.mxu0 0.0
    %8687 = vmatpush1.msra.mxu0 0.0
    %8688 = vmatprep.subr.mxu0 0.0
    %8689 = vmatpush1.msra.mxu0 0.0
    %8690 = vmatprep.subr.mxu0 0.0
    %8691 = vmatpush1.msra.mxu0 0.0
    %8692 = vmatprep.subr.mxu0 0.0
    %8693 = vmatpush1.msra.mxu0 0.0
    %8694 = vmatprep.subr.mxu0 0.0
    %8695 = vmatpush1.msra.mxu0 0.0
    %8696 = vmatprep.subr.mxu0 0.0
    %8697 = vmatpush1.msra.mxu0 0.0
    %8698 = vmatprep.subr.mxu0 0.0
    %8699 = vmatpush1.msra.mxu0 0.0
    %8700 = vmatprep.subr.mxu0 0.0
    %8701 = vmatpush1.msra.mxu0 0.0
    %8702 = vmatprep.subr.mxu0 0.0
    %8703 = vmatpush1.msra.mxu0 0.0
    %8704 = vmatprep.subr.mxu0 0.0
    %8705 = vmatpush1.msra.mxu0 0.0
    %8706 = vmatprep.subr.mxu0 0.0
    %8707 = vmatpush1.msra.mxu0 0.0
    %8708 = vmatprep.subr.mxu0 0.0
    %8709 = vmatpush1.msra.mxu0 0.0
    %8710 = vmatprep.subr.mxu0 0.0
    %8711 = vmatpush1.msra.mxu0 0.0
    %8712 = vmatprep.subr.mxu0 0.0
    %8713 = vmatpush1.msra.mxu0 0.0
    %8714 = vmatprep.subr.mxu0 0.0
    %8715 = vmatpush1.msra.mxu0 0.0
    %8716 = vmatprep.subr.mxu0 0.0
    %8717 = vmatpush1.msra.mxu0 0.0
    %8718 = vmatprep.subr.mxu0 0.0
    %8719 = vmatpush1.msra.mxu0 0.0
    %8720 = vmatprep.subr.mxu0 0.0
    %8721 = vmatpush1.msra.mxu0 0.0
    %8722 = vmatprep.mubr.f32.mxu0 0.0
    %v8723 = vand.u32 %v8652, 4294901760
    %v8724 = vsub.f32 %v8652, %v8723
    %v8725 = vand.u32 %v8724, 4294901760
    %v8726 = vsub.f32 %v8724, %v8725
    %v8727 = vand.u32 %v8726, 4294901760
    %8728 = vmatmul.mubr.f32.gmra.mrb[0].mxu0 %v8727
    %v8729 = vpop.f32.mrb[0].mxu0
    %v8730 = vadd.f32 0.0, %v8729
    %v8731 = vpop.f32.mrb[0].mxu0
    %8732 = vdwg.mxu0
    %8733 = vmatprep.subr.mxu0 0.0
    %v8734 = vand.u32 %v90, 4294901760
    %v8735 = vsub.f32 %v90, %v8734
    %v8736 = vand.u32 %v8735, 4294901760
    %v8737 = vsub.f32 %v8735, %v8736
    %v8738 = vand.u32 %v8737, 4294901760
    %8739 = vmatpush1.msra.mxu0 %v8738
    %8740 = vmatprep.subr.mxu0 0.0
    %v8741 = vand.u32 %v91, 4294901760
    %v8742 = vsub.f32 %v91, %v8741
    %v8743 = vand.u32 %v8742, 4294901760
    %v8744 = vsub.f32 %v8742, %v8743
    %v8745 = vand.u32 %v8744, 4294901760
    %8746 = vmatpush1.msra.mxu0 %v8745
    %8747 = vmatprep.subr.mxu0 0.0
    %v8748 = vand.u32 %v92, 4294901760
    %v8749 = vsub.f32 %v92, %v8748
    %v8750 = vand.u32 %v8749, 4294901760
    %v8751 = vsub.f32 %v8749, %v8750
    %v8752 = vand.u32 %v8751, 4294901760
    %8753 = vmatpush1.msra.mxu0 %v8752
    %8754 = vmatprep.subr.mxu0 0.0
    %v8755 = vand.u32 %v93, 4294901760
    %v8756 = vsub.f32 %v93, %v8755
    %v8757 = vand.u32 %v8756, 4294901760
    %v8758 = vsub.f32 %v8756, %v8757
    %v8759 = vand.u32 %v8758, 4294901760
    %8760 = vmatpush1.msra.mxu0 %v8759
    %8761 = vmatprep.subr.mxu0 0.0
    %8762 = vmatpush1.msra.mxu0 0.0
    %8763 = vmatprep.subr.mxu0 0.0
    %8764 = vmatpush1.msra.mxu0 0.0
    %8765 = vmatprep.subr.mxu0 0.0
    %8766 = vmatpush1.msra.mxu0 0.0
    %8767 = vmatprep.subr.mxu0 0.0
    %8768 = vmatpush1.msra.mxu0 0.0
    %8769 = vmatprep.subr.mxu0 0.0
    %8770 = vmatpush1.msra.mxu0 0.0
    %8771 = vmatprep.subr.mxu0 0.0
    %8772 = vmatpush1.msra.mxu0 0.0
    %8773 = vmatprep.subr.mxu0 0.0
    %8774 = vmatpush1.msra.mxu0 0.0
    %8775 = vmatprep.subr.mxu0 0.0
    %8776 = vmatpush1.msra.mxu0 0.0
    %8777 = vmatprep.subr.mxu0 0.0
    %8778 = vmatpush1.msra.mxu0 0.0
    %8779 = vmatprep.subr.mxu0 0.0
    %8780 = vmatpush1.msra.mxu0 0.0
    %8781 = vmatprep.subr.mxu0 0.0
    %8782 = vmatpush1.msra.mxu0 0.0
    %8783 = vmatprep.subr.mxu0 0.0
    %8784 = vmatpush1.msra.mxu0 0.0
    %8785 = vmatprep.subr.mxu0 0.0
    %8786 = vmatpush1.msra.mxu0 0.0
    %8787 = vmatprep.subr.mxu0 0.0
    %8788 = vmatpush1.msra.mxu0 0.0
    %8789 = vmatprep.subr.mxu0 0.0
    %8790 = vmatpush1.msra.mxu0 0.0
    %8791 = vmatprep.subr.mxu0 0.0
    %8792 = vmatpush1.msra.mxu0 0.0
    %8793 = vmatprep.subr.mxu0 0.0
    %8794 = vmatpush1.msra.mxu0 0.0
    %8795 = vmatprep.subr.mxu0 0.0
    %8796 = vmatpush1.msra.mxu0 0.0
    %8797 = vmatprep.subr.mxu0 0.0
    %8798 = vmatpush1.msra.mxu0 0.0
    %8799 = vmatprep.subr.mxu0 0.0
    %8800 = vmatpush1.msra.mxu0 0.0
    %8801 = vmatprep.subr.mxu0 0.0
    %8802 = vmatpush1.msra.mxu0 0.0
    %8803 = vmatprep.subr.mxu0 0.0
    %8804 = vmatpush1.msra.mxu0 0.0
    %8805 = vmatprep.subr.mxu0 0.0
    %8806 = vmatpush1.msra.mxu0 0.0
    %8807 = vmatprep.subr.mxu0 0.0
    %8808 = vmatpush1.msra.mxu0 0.0
    %8809 = vmatprep.subr.mxu0 0.0
    %8810 = vmatpush1.msra.mxu0 0.0
    %8811 = vmatprep.subr.mxu0 0.0
    %8812 = vmatpush1.msra.mxu0 0.0
    %8813 = vmatprep.subr.mxu0 0.0
    %8814 = vmatpush1.msra.mxu0 0.0
    %8815 = vmatprep.subr.mxu0 0.0
    %8816 = vmatpush1.msra.mxu0 0.0
    %8817 = vmatprep.mubr.f32.mxu0 0.0
    %v8818 = vand.u32 %v8652, 4294901760
    %8819 = vmatmul.mubr.f32.gmra.mrb[0].mxu0 %v8818
    %v8820 = vpop.f32.mrb[0].mxu0
    %v8821 = vadd.f32 %v8730, %v8820
    %v8822 = vpop.f32.mrb[0].mxu0
    %8823 = vdwg.mxu0
    %8824 = vmatprep.subr.mxu0 0.0
    %v8825 = vand.u32 %v90, 4294901760
    %v8826 = vsub.f32 %v90, %v8825
    %8827 = vmatpush1.msra.mxu0 %v8826
    %8828 = vmatprep.subr.mxu0 0.0
    %v8829 = vand.u32 %v91, 4294901760
    %v8830 = vsub.f32 %v91, %v8829
    %8831 = vmatpush1.msra.mxu0 %v8830
    %8832 = vmatprep.subr.mxu0 0.0
    %v8833 = vand.u32 %v92, 4294901760
    %v8834 = vsub.f32 %v92, %v8833
    %8835 = vmatpush1.msra.mxu0 %v8834
    %8836 = vmatprep.subr.mxu0 0.0
    %v8837 = vand.u32 %v93, 4294901760
    %v8838 = vsub.f32 %v93, %v8837
    %8839 = vmatpush1.msra.mxu0 %v8838
    %8840 = vmatprep.subr.mxu0 0.0
    %8841 = vmatpush1.msra.mxu0 0.0
    %8842 = vmatprep.subr.mxu0 0.0
    %8843 = vmatpush1.msra.mxu0 0.0
    %8844 = vmatprep.subr.mxu0 0.0
    %8845 = vmatpush1.msra.mxu0 0.0
    %8846 = vmatprep.subr.mxu0 0.0
    %8847 = vmatpush1.msra.mxu0 0.0
    %8848 = vmatprep.subr.mxu0 0.0
    %8849 = vmatpush1.msra.mxu0 0.0
    %8850 = vmatprep.subr.mxu0 0.0
    %8851 = vmatpush1.msra.mxu0 0.0
    %8852 = vmatprep.subr.mxu0 0.0
    %8853 = vmatpush1.msra.mxu0 0.0
    %8854 = vmatprep.subr.mxu0 0.0
    %8855 = vmatpush1.msra.mxu0 0.0
    %8856 = vmatprep.subr.mxu0 0.0
    %8857 = vmatpush1.msra.mxu0 0.0
    %8858 = vmatprep.subr.mxu0 0.0
    %8859 = vmatpush1.msra.mxu0 0.0
    %8860 = vmatprep.subr.mxu0 0.0
    %8861 = vmatpush1.msra.mxu0 0.0
    %8862 = vmatprep.subr.mxu0 0.0
    %8863 = vmatpush1.msra.mxu0 0.0
    %8864 = vmatprep.subr.mxu0 0.0
    %8865 = vmatpush1.msra.mxu0 0.0
    %8866 = vmatprep.subr.mxu0 0.0
    %8867 = vmatpush1.msra.mxu0 0.0
    %8868 = vmatprep.subr.mxu0 0.0
    %8869 = vmatpush1.msra.mxu0 0.0
    %8870 = vmatprep.subr.mxu0 0.0
    %8871 = vmatpush1.msra.mxu0 0.0
    %8872 = vmatprep.subr.mxu0 0.0
    %8873 = vmatpush1.msra.mxu0 0.0
    %8874 = vmatprep.subr.mxu0 0.0
    %8875 = vmatpush1.msra.mxu0 0.0
    %8876 = vmatprep.subr.mxu0 0.0
    %8877 = vmatpush1.msra.mxu0 0.0
    %8878 = vmatprep.subr.mxu0 0.0
    %8879 = vmatpush1.msra.mxu0 0.0
    %8880 = vmatprep.subr.mxu0 0.0
    %8881 = vmatpush1.msra.mxu0 0.0
    %8882 = vmatprep.subr.mxu0 0.0
    %8883 = vmatpush1.msra.mxu0 0.0
    %8884 = vmatprep.subr.mxu0 0.0
    %8885 = vmatpush1.msra.mxu0 0.0
    %8886 = vmatprep.subr.mxu0 0.0
    %8887 = vmatpush1.msra.mxu0 0.0
    %8888 = vmatprep.subr.mxu0 0.0
    %8889 = vmatpush1.msra.mxu0 0.0
    %8890 = vmatprep.subr.mxu0 0.0
    %8891 = vmatpush1.msra.mxu0 0.0
    %8892 = vmatprep.subr.mxu0 0.0
    %8893 = vmatpush1.msra.mxu0 0.0
    %8894 = vmatprep.subr.mxu0 0.0
    %8895 = vmatpush1.msra.mxu0 0.0
    %8896 = vmatprep.mubr.f32.mxu0 0.0
    %v8897 = vand.u32 %v8652, 4294901760
    %v8898 = vsub.f32 %v8652, %v8897
    %8899 = vmatmul.mubr.f32.gmra.mrb[0].mxu0 %v8898
    %v8900 = vpop.f32.mrb[0].mxu0
    %v8901 = vadd.f32 %v8821, %v8900
    %v8902 = vpop.f32.mrb[0].mxu0
    %8903 = vdwg.mxu0
    %8904 = vmatprep.subr.mxu0 0.0
    %v8905 = vand.u32 %v90, 4294901760
    %8906 = vmatpush1.msra.mxu0 %v8905
    %8907 = vmatprep.subr.mxu0 0.0
    %v8908 = vand.u32 %v91, 4294901760
    %8909 = vmatpush1.msra.mxu0 %v8908
    %8910 = vmatprep.subr.mxu0 0.0
    %v8911 = vand.u32 %v92, 4294901760
    %8912 = vmatpush1.msra.mxu0 %v8911
    %8913 = vmatprep.subr.mxu0 0.0
    %v8914 = vand.u32 %v93, 4294901760
    %8915 = vmatpush1.msra.mxu0 %v8914
    %8916 = vmatprep.subr.mxu0 0.0
    %8917 = vmatpush1.msra.mxu0 0.0
    %8918 = vmatprep.subr.mxu0 0.0
    %8919 = vmatpush1.msra.mxu0 0.0
    %8920 = vmatprep.subr.mxu0 0.0
    %8921 = vmatpush1.msra.mxu0 0.0
    %8922 = vmatprep.subr.mxu0 0.0
    %8923 = vmatpush1.msra.mxu0 0.0
    %8924 = vmatprep.subr.mxu0 0.0
    %8925 = vmatpush1.msra.mxu0 0.0
    %8926 = vmatprep.subr.mxu0 0.0
    %8927 = vmatpush1.msra.mxu0 0.0
    %8928 = vmatprep.subr.mxu0 0.0
    %8929 = vmatpush1.msra.mxu0 0.0
    %8930 = vmatprep.subr.mxu0 0.0
    %8931 = vmatpush1.msra.mxu0 0.0
    %8932 = vmatprep.subr.mxu0 0.0
    %8933 = vmatpush1.msra.mxu0 0.0
    %8934 = vmatprep.subr.mxu0 0.0
    %8935 = vmatpush1.msra.mxu0 0.0
    %8936 = vmatprep.subr.mxu0 0.0
    %8937 = vmatpush1.msra.mxu0 0.0
    %8938 = vmatprep.subr.mxu0 0.0
    %8939 = vmatpush1.msra.mxu0 0.0
    %8940 = vmatprep.subr.mxu0 0.0
    %8941 = vmatpush1.msra.mxu0 0.0
    %8942 = vmatprep.subr.mxu0 0.0
    %8943 = vmatpush1.msra.mxu0 0.0
    %8944 = vmatprep.subr.mxu0 0.0
    %8945 = vmatpush1.msra.mxu0 0.0
    %8946 = vmatprep.subr.mxu0 0.0
    %8947 = vmatpush1.msra.mxu0 0.0
    %8948 = vmatprep.subr.mxu0 0.0
    %8949 = vmatpush1.msra.mxu0 0.0
    %8950 = vmatprep.subr.mxu0 0.0
    %8951 = vmatpush1.msra.mxu0 0.0
    %8952 = vmatprep.subr.mxu0 0.0
    %8953 = vmatpush1.msra.mxu0 0.0
    %8954 = vmatprep.subr.mxu0 0.0
    %8955 = vmatpush1.msra.mxu0 0.0
    %8956 = vmatprep.subr.mxu0 0.0
    %8957 = vmatpush1.msra.mxu0 0.0
    %8958 = vmatprep.subr.mxu0 0.0
    %8959 = vmatpush1.msra.mxu0 0.0
    %8960 = vmatprep.subr.mxu0 0.0
    %8961 = vmatpush1.msra.mxu0 0.0
    %8962 = vmatprep.subr.mxu0 0.0
    %8963 = vmatpush1.msra.mxu0 0.0
    %8964 = vmatprep.subr.mxu0 0.0
    %8965 = vmatpush1.msra.mxu0 0.0
    %8966 = vmatprep.subr.mxu0 0.0
    %8967 = vmatpush1.msra.mxu0 0.0
    %8968 = vmatprep.subr.mxu0 0.0
    %8969 = vmatpush1.msra.mxu0 0.0
    %8970 = vmatprep.subr.mxu0 0.0
    %8971 = vmatpush1.msra.mxu0 0.0
    %8972 = vmatprep.mubr.f32.mxu0 0.0
    %v8973 = vand.u32 %v8652, 4294901760
    %v8974 = vsub.f32 %v8652, %v8973
    %v8975 = vand.u32 %v8974, 4294901760
    %8976 = vmatmul.mubr.f32.gmra.mrb[0].mxu0 %v8975
    %v8977 = vpop.f32.mrb[0].mxu0
    %v8978 = vadd.f32 %v8901, %v8977
    %v8979 = vpop.f32.mrb[0].mxu0
    %8980 = vdwg.mxu0
    %8981 = vmatprep.subr.mxu0 0.0
    %v8982 = vand.u32 %v90, 4294901760
    %v8983 = vsub.f32 %v90, %v8982
    %v8984 = vand.u32 %v8983, 4294901760
    %8985 = vmatpush1.msra.mxu0 %v8984
    %8986 = vmatprep.subr.mxu0 0.0
    %v8987 = vand.u32 %v91, 4294901760
    %v8988 = vsub.f32 %v91, %v8987
    %v8989 = vand.u32 %v8988, 4294901760
    %8990 = vmatpush1.msra.mxu0 %v8989
    %8991 = vmatprep.subr.mxu0 0.0
    %v8992 = vand.u32 %v92, 4294901760
    %v8993 = vsub.f32 %v92, %v8992
    %v8994 = vand.u32 %v8993, 4294901760
    %8995 = vmatpush1.msra.mxu0 %v8994
    %8996 = vmatprep.subr.mxu0 0.0
    %v8997 = vand.u32 %v93, 4294901760
    %v8998 = vsub.f32 %v93, %v8997
    %v8999 = vand.u32 %v8998, 4294901760
    %9000 = vmatpush1.msra.mxu0 %v8999
    %9001 = vmatprep.subr.mxu0 0.0
    %9002 = vmatpush1.msra.mxu0 0.0
    %9003 = vmatprep.subr.mxu0 0.0
    %9004 = vmatpush1.msra.mxu0 0.0
    %9005 = vmatprep.subr.mxu0 0.0
    %9006 = vmatpush1.msra.mxu0 0.0
    %9007 = vmatprep.subr.mxu0 0.0
    %9008 = vmatpush1.msra.mxu0 0.0
    %9009 = vmatprep.subr.mxu0 0.0
    %9010 = vmatpush1.msra.mxu0 0.0
    %9011 = vmatprep.subr.mxu0 0.0
    %9012 = vmatpush1.msra.mxu0 0.0
    %9013 = vmatprep.subr.mxu0 0.0
    %9014 = vmatpush1.msra.mxu0 0.0
    %9015 = vmatprep.subr.mxu0 0.0
    %9016 = vmatpush1.msra.mxu0 0.0
    %9017 = vmatprep.subr.mxu0 0.0
    %9018 = vmatpush1.msra.mxu0 0.0
    %9019 = vmatprep.subr.mxu0 0.0
    %9020 = vmatpush1.msra.mxu0 0.0
    %9021 = vmatprep.subr.mxu0 0.0
    %9022 = vmatpush1.msra.mxu0 0.0
    %9023 = vmatprep.subr.mxu0 0.0
    %9024 = vmatpush1.msra.mxu0 0.0
    %9025 = vmatprep.subr.mxu0 0.0
    %9026 = vmatpush1.msra.mxu0 0.0
    %9027 = vmatprep.subr.mxu0 0.0
    %9028 = vmatpush1.msra.mxu0 0.0
    %9029 = vmatprep.subr.mxu0 0.0
    %9030 = vmatpush1.msra.mxu0 0.0
    %9031 = vmatprep.subr.mxu0 0.0
    %9032 = vmatpush1.msra.mxu0 0.0
    %9033 = vmatprep.subr.mxu0 0.0
    %9034 = vmatpush1.msra.mxu0 0.0
    %9035 = vmatprep.subr.mxu0 0.0
    %9036 = vmatpush1.msra.mxu0 0.0
    %9037 = vmatprep.subr.mxu0 0.0
    %9038 = vmatpush1.msra.mxu0 0.0
    %9039 = vmatprep.subr.mxu0 0.0
    %9040 = vmatpush1.msra.mxu0 0.0
    %9041 = vmatprep.subr.mxu0 0.0
    %9042 = vmatpush1.msra.mxu0 0.0
    %9043 = vmatprep.subr.mxu0 0.0
    %9044 = vmatpush1.msra.mxu0 0.0
    %9045 = vmatprep.subr.mxu0 0.0
    %9046 = vmatpush1.msra.mxu0 0.0
    %9047 = vmatprep.subr.mxu0 0.0
    %9048 = vmatpush1.msra.mxu0 0.0
    %9049 = vmatprep.subr.mxu0 0.0
    %9050 = vmatpush1.msra.mxu0 0.0
    %9051 = vmatprep.subr.mxu0 0.0
    %9052 = vmatpush1.msra.mxu0 0.0
    %9053 = vmatprep.subr.mxu0 0.0
    %9054 = vmatpush1.msra.mxu0 0.0
    %9055 = vmatprep.subr.mxu0 0.0
    %9056 = vmatpush1.msra.mxu0 0.0
    %9057 = vmatprep.mubr.f32.mxu0 0.0
    %v9058 = vand.u32 %v8652, 4294901760
    %9059 = vmatmul.mubr.f32.gmra.mrb[0].mxu0 %v9058
    %v9060 = vpop.f32.mrb[0].mxu0
    %v9061 = vadd.f32 %v8978, %v9060
    %v9062 = vpop.f32.mrb[0].mxu0
    %9063 = vdwg.mxu0
    %9064 = vmatprep.subr.mxu0 0.0
    %v9065 = vand.u32 %v90, 4294901760
    %9066 = vmatpush1.msra.mxu0 %v9065
    %9067 = vmatprep.subr.mxu0 0.0
    %v9068 = vand.u32 %v91, 4294901760
    %9069 = vmatpush1.msra.mxu0 %v9068
    %9070 = vmatprep.subr.mxu0 0.0
    %v9071 = vand.u32 %v92, 4294901760
    %9072 = vmatpush1.msra.mxu0 %v9071
    %9073 = vmatprep.subr.mxu0 0.0
    %v9074 = vand.u32 %v93, 4294901760
    %9075 = vmatpush1.msra.mxu0 %v9074
    %9076 = vmatprep.subr.mxu0 0.0
    %9077 = vmatpush1.msra.mxu0 0.0
    %9078 = vmatprep.subr.mxu0 0.0
    %9079 = vmatpush1.msra.mxu0 0.0
    %9080 = vmatprep.subr.mxu0 0.0
    %9081 = vmatpush1.msra.mxu0 0.0
    %9082 = vmatprep.subr.mxu0 0.0
    %9083 = vmatpush1.msra.mxu0 0.0
    %9084 = vmatprep.subr.mxu0 0.0
    %9085 = vmatpush1.msra.mxu0 0.0
    %9086 = vmatprep.subr.mxu0 0.0
    %9087 = vmatpush1.msra.mxu0 0.0
    %9088 = vmatprep.subr.mxu0 0.0
    %9089 = vmatpush1.msra.mxu0 0.0
    %9090 = vmatprep.subr.mxu0 0.0
    %9091 = vmatpush1.msra.mxu0 0.0
    %9092 = vmatprep.subr.mxu0 0.0
    %9093 = vmatpush1.msra.mxu0 0.0
    %9094 = vmatprep.subr.mxu0 0.0
    %9095 = vmatpush1.msra.mxu0 0.0
    %9096 = vmatprep.subr.mxu0 0.0
    %9097 = vmatpush1.msra.mxu0 0.0
    %9098 = vmatprep.subr.mxu0 0.0
    %9099 = vmatpush1.msra.mxu0 0.0
    %9100 = vmatprep.subr.mxu0 0.0
    %9101 = vmatpush1.msra.mxu0 0.0
    %9102 = vmatprep.subr.mxu0 0.0
    %9103 = vmatpush1.msra.mxu0 0.0
    %9104 = vmatprep.subr.mxu0 0.0
    %9105 = vmatpush1.msra.mxu0 0.0
    %9106 = vmatprep.subr.mxu0 0.0
    %9107 = vmatpush1.msra.mxu0 0.0
    %9108 = vmatprep.subr.mxu0 0.0
    %9109 = vmatpush1.msra.mxu0 0.0
    %9110 = vmatprep.subr.mxu0 0.0
    %9111 = vmatpush1.msra.mxu0 0.0
    %9112 = vmatprep.subr.mxu0 0.0
    %9113 = vmatpush1.msra.mxu0 0.0
    %9114 = vmatprep.subr.mxu0 0.0
    %9115 = vmatpush1.msra.mxu0 0.0
    %9116 = vmatprep.subr.mxu0 0.0
    %9117 = vmatpush1.msra.mxu0 0.0
    %9118 = vmatprep.subr.mxu0 0.0
    %9119 = vmatpush1.msra.mxu0 0.0
    %9120 = vmatprep.subr.mxu0 0.0
    %9121 = vmatpush1.msra.mxu0 0.0
    %9122 = vmatprep.subr.mxu0 0.0
    %9123 = vmatpush1.msra.mxu0 0.0
    %9124 = vmatprep.subr.mxu0 0.0
    %9125 = vmatpush1.msra.mxu0 0.0
    %9126 = vmatprep.subr.mxu0 0.0
    %9127 = vmatpush1.msra.mxu0 0.0
    %9128 = vmatprep.subr.mxu0 0.0
    %9129 = vmatpush1.msra.mxu0 0.0
    %9130 = vmatprep.subr.mxu0 0.0
    %9131 = vmatpush1.msra.mxu0 0.0
    %9132 = vmatprep.mubr.f32.mxu0 0.0
    %v9133 = vand.u32 %v8652, 4294901760
    %9134 = vmatmul.mubr.f32.gmra.mrb[0].mxu0 %v9133
    %v9135 = vpop.f32.mrb[0].mxu0
    %v9136 = vadd.f32 %v9061, %v9135
    %v9137 = vpop.f32.mrb[0].mxu0
    %9138 = vdwg.mxu0
    %9140 = vrot.lane.b32.xlu0 %v8144, 16
    %v9141 = vpop.permute.xlu0 %9140
    %v9143 = vadd.f32 %v9136, %v9141
    %v9144 = vadd.f32 %v9143, %v1568
    %v9145 = vxor.u32 %v9144, 2147483648
    %v9146 = vmul.f32 %v9145, 1.442695
    %v9147 = vpow.pop %v9146
    %v9148 = vadd.f32 %v9147, 1.0
    %v9149 = vrcp.pop %v9148
    %v9150 = vmul.f32 1.0, %v9149
    %v9151 = vsub.f32 1.0, %v9150
    %v9152 = vmul.f32 %v9151, %v7644
    %9154 = vrot.lane.b32.xlu0 %v9136, 16
    %v9155 = vpop.permute.xlu0 %9154
    %v9157 = vmul.f32 %v9150, %v9155
    %v9158 = vadd.f32 %v9152, %v9157
    %v9161 = vunpack.c.l.s4 1966171168
    %v9162 = vunpack.c.0.s8 %v9161
    %v9163 = vlaneseq
    %v9164 = vshrl.u32 %v9163, 7
    %v9165 = vsub.s32 %v9162, %v9164
    %v9166 = vrot.slane %v9158, %v9165
    %v9167 = vcombine.high %v9166, %v9166
    %v9169 = vunpack.c.l.s4 1966171168
    %v9170 = vunpack.c.0.s8 %v9169
    %v9171 = vlaneseq
    %v9172 = vshrl.u32 %v9171, 7
    %v9173 = vsub.s32 %v9170, %v9172
    %v9174 = vrot.slane %v9166, %v9173
    %v9176 = vunpack.c.l.s4 1966171168
    %v9177 = vunpack.c.0.s8 %v9176
    %v9178 = vlaneseq
    %v9179 = vshrl.u32 %v9178, 7
    %v9180 = vsub.s32 %v9177, %v9179
    %v9181 = vrot.slane %v9167, %v9180
    %v9182 = vlaneseq
    %v9183 = vshrl.u32 %v9182, 7
    %v9184 = vsub.s32 0, %v9183
    %v9185 = vrot.slane %v9174, %v9184
    %v9186 = vlaneseq
    %v9187 = vshrl.u32 %v9186, 7
    %v9188 = vsub.s32 0, %v9187
    %v9189 = vrot.slane %v9181, %v9188
    %9190 = vrot.lane.b32.xlu0 %v9185, 112
    %v9191 = vpop.permute.xlu0 %9190
    %9192 = vrot.lane.b32.xlu0 %v9189, 112
    %v9193 = vpop.permute.xlu0 %9192
    %9196 = vst.msk [vmem:[#allocation12 + $0x5] sm:$0x1] %vm1625, %v9191
    %9197 = vst.msk [vmem:[#allocation12 + $0xd] sm:$0x1] %vm1625, %v9193
    %9198 = vrot.lane.b32.xlu0 %v9158, 112
    %v9199 = vpop.permute.xlu0 %9198
    %v9200 = vsel %vm102, %v9199, 0
    %9202 = vmatprep.subr.mxu0 0.0
    %v9203 = vand.u32 %v94, 4294901760
    %9204 = vmatpush1.msra.mxu0 %v9203
    %9205 = vmatprep.subr.mxu0 0.0
    %v9206 = vand.u32 %v95, 4294901760
    %9207 = vmatpush1.msra.mxu0 %v9206
    %9208 = vmatprep.subr.mxu0 0.0
    %9209 = vmatpush1.msra.mxu0 0.0
    %9210 = vmatprep.subr.mxu0 0.0
    %9211 = vmatpush1.msra.mxu0 0.0
    %9212 = vmatprep.subr.mxu0 0.0
    %9213 = vmatpush1.msra.mxu0 0.0
    %9214 = vmatprep.subr.mxu0 0.0
    %9215 = vmatpush1.msra.mxu0 0.0
    %9216 = vmatprep.subr.mxu0 0.0
    %9217 = vmatpush1.msra.mxu0 0.0
    %9218 = vmatprep.subr.mxu0 0.0
    %9219 = vmatpush1.msra.mxu0 0.0
    %9220 = vmatprep.subr.mxu0 0.0
    %9221 = vmatpush1.msra.mxu0 0.0
    %9222 = vmatprep.subr.mxu0 0.0
    %9223 = vmatpush1.msra.mxu0 0.0
    %9224 = vmatprep.subr.mxu0 0.0
    %9225 = vmatpush1.msra.mxu0 0.0
    %9226 = vmatprep.subr.mxu0 0.0
    %9227 = vmatpush1.msra.mxu0 0.0
    %9228 = vmatprep.subr.mxu0 0.0
    %9229 = vmatpush1.msra.mxu0 0.0
    %9230 = vmatprep.subr.mxu0 0.0
    %9231 = vmatpush1.msra.mxu0 0.0
    %9232 = vmatprep.subr.mxu0 0.0
    %9233 = vmatpush1.msra.mxu0 0.0
    %9234 = vmatprep.subr.mxu0 0.0
    %9235 = vmatpush1.msra.mxu0 0.0
    %9236 = vmatprep.subr.mxu0 0.0
    %9237 = vmatpush1.msra.mxu0 0.0
    %9238 = vmatprep.subr.mxu0 0.0
    %9239 = vmatpush1.msra.mxu0 0.0
    %9240 = vmatprep.subr.mxu0 0.0
    %9241 = vmatpush1.msra.mxu0 0.0
    %9242 = vmatprep.subr.mxu0 0.0
    %9243 = vmatpush1.msra.mxu0 0.0
    %9244 = vmatprep.subr.mxu0 0.0
    %9245 = vmatpush1.msra.mxu0 0.0
    %9246 = vmatprep.subr.mxu0 0.0
    %9247 = vmatpush1.msra.mxu0 0.0
    %9248 = vmatprep.subr.mxu0 0.0
    %9249 = vmatpush1.msra.mxu0 0.0
    %9250 = vmatprep.subr.mxu0 0.0
    %9251 = vmatpush1.msra.mxu0 0.0
    %9252 = vmatprep.subr.mxu0 0.0
    %9253 = vmatpush1.msra.mxu0 0.0
    %9254 = vmatprep.subr.mxu0 0.0
    %9255 = vmatpush1.msra.mxu0 0.0
    %9256 = vmatprep.subr.mxu0 0.0
    %9257 = vmatpush1.msra.mxu0 0.0
    %9258 = vmatprep.subr.mxu0 0.0
    %9259 = vmatpush1.msra.mxu0 0.0
    %9260 = vmatprep.subr.mxu0 0.0
    %9261 = vmatpush1.msra.mxu0 0.0
    %9262 = vmatprep.subr.mxu0 0.0
    %9263 = vmatpush1.msra.mxu0 0.0
    %9264 = vmatprep.subr.mxu0 0.0
    %9265 = vmatpush1.msra.mxu0 0.0
    %9266 = vmatprep.subr.mxu0 0.0
    %9267 = vmatpush1.msra.mxu0 0.0
    %9268 = vmatprep.mubr.f32.mxu0 0.0
    %v9269 = vand.u32 %v9200, 4294901760
    %v9270 = vsub.f32 %v9200, %v9269
    %v9271 = vand.u32 %v9270, 4294901760
    %v9272 = vsub.f32 %v9270, %v9271
    %v9273 = vand.u32 %v9272, 4294901760
    %9274 = vmatmul.mubr.f32.gmra.mrb[0].mxu0 %v9273
    %v9275 = vpop.f32.mrb[0].mxu0
    %v9276 = vadd.f32 0.0, %v9275
    %v9277 = vpop.f32.mrb[0].mxu0
    %9278 = vdwg.mxu0
    %9279 = vmatprep.subr.mxu0 0.0
    %v9280 = vand.u32 %v94, 4294901760
    %v9281 = vsub.f32 %v94, %v9280
    %v9282 = vand.u32 %v9281, 4294901760
    %v9283 = vsub.f32 %v9281, %v9282
    %v9284 = vand.u32 %v9283, 4294901760
    %9285 = vmatpush1.msra.mxu0 %v9284
    %9286 = vmatprep.subr.mxu0 0.0
    %v9287 = vand.u32 %v95, 4294901760
    %v9288 = vsub.f32 %v95, %v9287
    %v9289 = vand.u32 %v9288, 4294901760
    %v9290 = vsub.f32 %v9288, %v9289
    %v9291 = vand.u32 %v9290, 4294901760
    %9292 = vmatpush1.msra.mxu0 %v9291
    %9293 = vmatprep.subr.mxu0 0.0
    %9294 = vmatpush1.msra.mxu0 0.0
    %9295 = vmatprep.subr.mxu0 0.0
    %9296 = vmatpush1.msra.mxu0 0.0
    %9297 = vmatprep.subr.mxu0 0.0
    %9298 = vmatpush1.msra.mxu0 0.0
    %9299 = vmatprep.subr.mxu0 0.0
    %9300 = vmatpush1.msra.mxu0 0.0
    %9301 = vmatprep.subr.mxu0 0.0
    %9302 = vmatpush1.msra.mxu0 0.0
    %9303 = vmatprep.subr.mxu0 0.0
    %9304 = vmatpush1.msra.mxu0 0.0
    %9305 = vmatprep.subr.mxu0 0.0
    %9306 = vmatpush1.msra.mxu0 0.0
    %9307 = vmatprep.subr.mxu0 0.0
    %9308 = vmatpush1.msra.mxu0 0.0
    %9309 = vmatprep.subr.mxu0 0.0
    %9310 = vmatpush1.msra.mxu0 0.0
    %9311 = vmatprep.subr.mxu0 0.0
    %9312 = vmatpush1.msra.mxu0 0.0
    %9313 = vmatprep.subr.mxu0 0.0
    %9314 = vmatpush1.msra.mxu0 0.0
    %9315 = vmatprep.subr.mxu0 0.0
    %9316 = vmatpush1.msra.mxu0 0.0
    %9317 = vmatprep.subr.mxu0 0.0
    %9318 = vmatpush1.msra.mxu0 0.0
    %9319 = vmatprep.subr.mxu0 0.0
    %9320 = vmatpush1.msra.mxu0 0.0
    %9321 = vmatprep.subr.mxu0 0.0
    %9322 = vmatpush1.msra.mxu0 0.0
    %9323 = vmatprep.subr.mxu0 0.0
    %9324 = vmatpush1.msra.mxu0 0.0
    %9325 = vmatprep.subr.mxu0 0.0
    %9326 = vmatpush1.msra.mxu0 0.0
    %9327 = vmatprep.subr.mxu0 0.0
    %9328 = vmatpush1.msra.mxu0 0.0
    %9329 = vmatprep.subr.mxu0 0.0
    %9330 = vmatpush1.msra.mxu0 0.0
    %9331 = vmatprep.subr.mxu0 0.0
    %9332 = vmatpush1.msra.mxu0 0.0
    %9333 = vmatprep.subr.mxu0 0.0
    %9334 = vmatpush1.msra.mxu0 0.0
    %9335 = vmatprep.subr.mxu0 0.0
    %9336 = vmatpush1.msra.mxu0 0.0
    %9337 = vmatprep.subr.mxu0 0.0
    %9338 = vmatpush1.msra.mxu0 0.0
    %9339 = vmatprep.subr.mxu0 0.0
    %9340 = vmatpush1.msra.mxu0 0.0
    %9341 = vmatprep.subr.mxu0 0.0
    %9342 = vmatpush1.msra.mxu0 0.0
    %9343 = vmatprep.subr.mxu0 0.0
    %9344 = vmatpush1.msra.mxu0 0.0
    %9345 = vmatprep.subr.mxu0 0.0
    %9346 = vmatpush1.msra.mxu0 0.0
    %9347 = vmatprep.subr.mxu0 0.0
    %9348 = vmatpush1.msra.mxu0 0.0
    %9349 = vmatprep.subr.mxu0 0.0
    %9350 = vmatpush1.msra.mxu0 0.0
    %9351 = vmatprep.subr.mxu0 0.0
    %9352 = vmatpush1.msra.mxu0 0.0
    %9353 = vmatprep.mubr.f32.mxu0 0.0
    %v9354 = vand.u32 %v9200, 4294901760
    %9355 = vmatmul.mubr.f32.gmra.mrb[0].mxu0 %v9354
    %v9356 = vpop.f32.mrb[0].mxu0
    %v9357 = vadd.f32 %v9276, %v9356
    %v9358 = vpop.f32.mrb[0].mxu0
    %9359 = vdwg.mxu0
    %9360 = vmatprep.subr.mxu0 0.0
    %v9361 = vand.u32 %v94, 4294901760
    %v9362 = vsub.f32 %v94, %v9361
    %9363 = vmatpush1.msra.mxu0 %v9362
    %9364 = vmatprep.subr.mxu0 0.0
    %v9365 = vand.u32 %v95, 4294901760
    %v9366 = vsub.f32 %v95, %v9365
    %9367 = vmatpush1.msra.mxu0 %v9366
    %9368 = vmatprep.subr.mxu0 0.0
    %9369 = vmatpush1.msra.mxu0 0.0
    %9370 = vmatprep.subr.mxu0 0.0
    %9371 = vmatpush1.msra.mxu0 0.0
    %9372 = vmatprep.subr.mxu0 0.0
    %9373 = vmatpush1.msra.mxu0 0.0
    %9374 = vmatprep.subr.mxu0 0.0
    %9375 = vmatpush1.msra.mxu0 0.0
    %9376 = vmatprep.subr.mxu0 0.0
    %9377 = vmatpush1.msra.mxu0 0.0
    %9378 = vmatprep.subr.mxu0 0.0
    %9379 = vmatpush1.msra.mxu0 0.0
    %9380 = vmatprep.subr.mxu0 0.0
    %9381 = vmatpush1.msra.mxu0 0.0
    %9382 = vmatprep.subr.mxu0 0.0
    %9383 = vmatpush1.msra.mxu0 0.0
    %9384 = vmatprep.subr.mxu0 0.0
    %9385 = vmatpush1.msra.mxu0 0.0
    %9386 = vmatprep.subr.mxu0 0.0
    %9387 = vmatpush1.msra.mxu0 0.0
    %9388 = vmatprep.subr.mxu0 0.0
    %9389 = vmatpush1.msra.mxu0 0.0
    %9390 = vmatprep.subr.mxu0 0.0
    %9391 = vmatpush1.msra.mxu0 0.0
    %9392 = vmatprep.subr.mxu0 0.0
    %9393 = vmatpush1.msra.mxu0 0.0
    %9394 = vmatprep.subr.mxu0 0.0
    %9395 = vmatpush1.msra.mxu0 0.0
    %9396 = vmatprep.subr.mxu0 0.0
    %9397 = vmatpush1.msra.mxu0 0.0
    %9398 = vmatprep.subr.mxu0 0.0
    %9399 = vmatpush1.msra.mxu0 0.0
    %9400 = vmatprep.subr.mxu0 0.0
    %9401 = vmatpush1.msra.mxu0 0.0
    %9402 = vmatprep.subr.mxu0 0.0
    %9403 = vmatpush1.msra.mxu0 0.0
    %9404 = vmatprep.subr.mxu0 0.0
    %9405 = vmatpush1.msra.mxu0 0.0
    %9406 = vmatprep.subr.mxu0 0.0
    %9407 = vmatpush1.msra.mxu0 0.0
    %9408 = vmatprep.subr.mxu0 0.0
    %9409 = vmatpush1.msra.mxu0 0.0
    %9410 = vmatprep.subr.mxu0 0.0
    %9411 = vmatpush1.msra.mxu0 0.0
    %9412 = vmatprep.subr.mxu0 0.0
    %9413 = vmatpush1.msra.mxu0 0.0
    %9414 = vmatprep.subr.mxu0 0.0
    %9415 = vmatpush1.msra.mxu0 0.0
    %9416 = vmatprep.subr.mxu0 0.0
    %9417 = vmatpush1.msra.mxu0 0.0
    %9418 = vmatprep.subr.mxu0 0.0
    %9419 = vmatpush1.msra.mxu0 0.0
    %9420 = vmatprep.subr.mxu0 0.0
    %9421 = vmatpush1.msra.mxu0 0.0
    %9422 = vmatprep.subr.mxu0 0.0
    %9423 = vmatpush1.msra.mxu0 0.0
    %9424 = vmatprep.subr.mxu0 0.0
    %9425 = vmatpush1.msra.mxu0 0.0
    %9426 = vmatprep.subr.mxu0 0.0
    %9427 = vmatpush1.msra.mxu0 0.0
    %9428 = vmatprep.mubr.f32.mxu0 0.0
    %v9429 = vand.u32 %v9200, 4294901760
    %v9430 = vsub.f32 %v9200, %v9429
    %9431 = vmatmul.mubr.f32.gmra.mrb[0].mxu0 %v9430
    %v9432 = vpop.f32.mrb[0].mxu0
    %v9433 = vadd.f32 %v9357, %v9432
    %v9434 = vpop.f32.mrb[0].mxu0
    %9435 = vdwg.mxu0
    %9436 = vmatprep.subr.mxu0 0.0
    %v9437 = vand.u32 %v94, 4294901760
    %9438 = vmatpush1.msra.mxu0 %v9437
    %9439 = vmatprep.subr.mxu0 0.0
    %v9440 = vand.u32 %v95, 4294901760
    %9441 = vmatpush1.msra.mxu0 %v9440
    %9442 = vmatprep.subr.mxu0 0.0
    %9443 = vmatpush1.msra.mxu0 0.0
    %9444 = vmatprep.subr.mxu0 0.0
    %9445 = vmatpush1.msra.mxu0 0.0
    %9446 = vmatprep.subr.mxu0 0.0
    %9447 = vmatpush1.msra.mxu0 0.0
    %9448 = vmatprep.subr.mxu0 0.0
    %9449 = vmatpush1.msra.mxu0 0.0
    %9450 = vmatprep.subr.mxu0 0.0
    %9451 = vmatpush1.msra.mxu0 0.0
    %9452 = vmatprep.subr.mxu0 0.0
    %9453 = vmatpush1.msra.mxu0 0.0
    %9454 = vmatprep.subr.mxu0 0.0
    %9455 = vmatpush1.msra.mxu0 0.0
    %9456 = vmatprep.subr.mxu0 0.0
    %9457 = vmatpush1.msra.mxu0 0.0
    %9458 = vmatprep.subr.mxu0 0.0
    %9459 = vmatpush1.msra.mxu0 0.0
    %9460 = vmatprep.subr.mxu0 0.0
    %9461 = vmatpush1.msra.mxu0 0.0
    %9462 = vmatprep.subr.mxu0 0.0
    %9463 = vmatpush1.msra.mxu0 0.0
    %9464 = vmatprep.subr.mxu0 0.0
    %9465 = vmatpush1.msra.mxu0 0.0
    %9466 = vmatprep.subr.mxu0 0.0
    %9467 = vmatpush1.msra.mxu0 0.0
    %9468 = vmatprep.subr.mxu0 0.0
    %9469 = vmatpush1.msra.mxu0 0.0
    %9470 = vmatprep.subr.mxu0 0.0
    %9471 = vmatpush1.msra.mxu0 0.0
    %9472 = vmatprep.subr.mxu0 0.0
    %9473 = vmatpush1.msra.mxu0 0.0
    %9474 = vmatprep.subr.mxu0 0.0
    %9475 = vmatpush1.msra.mxu0 0.0
    %9476 = vmatprep.subr.mxu0 0.0
    %9477 = vmatpush1.msra.mxu0 0.0
    %9478 = vmatprep.subr.mxu0 0.0
    %9479 = vmatpush1.msra.mxu0 0.0
    %9480 = vmatprep.subr.mxu0 0.0
    %9481 = vmatpush1.msra.mxu0 0.0
    %9482 = vmatprep.subr.mxu0 0.0
    %9483 = vmatpush1.msra.mxu0 0.0
    %9484 = vmatprep.subr.mxu0 0.0
    %9485 = vmatpush1.msra.mxu0 0.0
    %9486 = vmatprep.subr.mxu0 0.0
    %9487 = vmatpush1.msra.mxu0 0.0
    %9488 = vmatprep.subr.mxu0 0.0
    %9489 = vmatpush1.msra.mxu0 0.0
    %9490 = vmatprep.subr.mxu0 0.0
    %9491 = vmatpush1.msra.mxu0 0.0
    %9492 = vmatprep.subr.mxu0 0.0
    %9493 = vmatpush1.msra.mxu0 0.0
    %9494 = vmatprep.subr.mxu0 0.0
    %9495 = vmatpush1.msra.mxu0 0.0
    %9496 = vmatprep.subr.mxu0 0.0
    %9497 = vmatpush1.msra.mxu0 0.0
    %9498 = vmatprep.subr.mxu0 0.0
    %9499 = vmatpush1.msra.mxu0 0.0
    %9500 = vmatprep.subr.mxu0 0.0
    %9501 = vmatpush1.msra.mxu0 0.0
    %9502 = vmatprep.mubr.f32.mxu0 0.0
    %v9503 = vand.u32 %v9200, 4294901760
    %v9504 = vsub.f32 %v9200, %v9503
    %v9505 = vand.u32 %v9504, 4294901760
    %9506 = vmatmul.mubr.f32.gmra.mrb[0].mxu0 %v9505
    %v9507 = vpop.f32.mrb[0].mxu0
    %v9508 = vadd.f32 %v9433, %v9507
    %v9509 = vpop.f32.mrb[0].mxu0
    %9510 = vdwg.mxu0
    %9511 = vmatprep.subr.mxu0 0.0
    %v9512 = vand.u32 %v94, 4294901760
    %v9513 = vsub.f32 %v94, %v9512
    %v9514 = vand.u32 %v9513, 4294901760
    %9515 = vmatpush1.msra.mxu0 %v9514
    %9516 = vmatprep.subr.mxu0 0.0
    %v9517 = vand.u32 %v95, 4294901760
    %v9518 = vsub.f32 %v95, %v9517
    %v9519 = vand.u32 %v9518, 4294901760
    %9520 = vmatpush1.msra.mxu0 %v9519
    %9521 = vmatprep.subr.mxu0 0.0
    %9522 = vmatpush1.msra.mxu0 0.0
    %9523 = vmatprep.subr.mxu0 0.0
    %9524 = vmatpush1.msra.mxu0 0.0
    %9525 = vmatprep.subr.mxu0 0.0
    %9526 = vmatpush1.msra.mxu0 0.0
    %9527 = vmatprep.subr.mxu0 0.0
    %9528 = vmatpush1.msra.mxu0 0.0
    %9529 = vmatprep.subr.mxu0 0.0
    %9530 = vmatpush1.msra.mxu0 0.0
    %9531 = vmatprep.subr.mxu0 0.0
    %9532 = vmatpush1.msra.mxu0 0.0
    %9533 = vmatprep.subr.mxu0 0.0
    %9534 = vmatpush1.msra.mxu0 0.0
    %9535 = vmatprep.subr.mxu0 0.0
    %9536 = vmatpush1.msra.mxu0 0.0
    %9537 = vmatprep.subr.mxu0 0.0
    %9538 = vmatpush1.msra.mxu0 0.0
    %9539 = vmatprep.subr.mxu0 0.0
    %9540 = vmatpush1.msra.mxu0 0.0
    %9541 = vmatprep.subr.mxu0 0.0
    %9542 = vmatpush1.msra.mxu0 0.0
    %9543 = vmatprep.subr.mxu0 0.0
    %9544 = vmatpush1.msra.mxu0 0.0
    %9545 = vmatprep.subr.mxu0 0.0
    %9546 = vmatpush1.msra.mxu0 0.0
    %9547 = vmatprep.subr.mxu0 0.0
    %9548 = vmatpush1.msra.mxu0 0.0
    %9549 = vmatprep.subr.mxu0 0.0
    %9550 = vmatpush1.msra.mxu0 0.0
    %9551 = vmatprep.subr.mxu0 0.0
    %9552 = vmatpush1.msra.mxu0 0.0
    %9553 = vmatprep.subr.mxu0 0.0
    %9554 = vmatpush1.msra.mxu0 0.0
    %9555 = vmatprep.subr.mxu0 0.0
    %9556 = vmatpush1.msra.mxu0 0.0
    %9557 = vmatprep.subr.mxu0 0.0
    %9558 = vmatpush1.msra.mxu0 0.0
    %9559 = vmatprep.subr.mxu0 0.0
    %9560 = vmatpush1.msra.mxu0 0.0
    %9561 = vmatprep.subr.mxu0 0.0
    %9562 = vmatpush1.msra.mxu0 0.0
    %9563 = vmatprep.subr.mxu0 0.0
    %9564 = vmatpush1.msra.mxu0 0.0
    %9565 = vmatprep.subr.mxu0 0.0
    %9566 = vmatpush1.msra.mxu0 0.0
    %9567 = vmatprep.subr.mxu0 0.0
    %9568 = vmatpush1.msra.mxu0 0.0
    %9569 = vmatprep.subr.mxu0 0.0
    %9570 = vmatpush1.msra.mxu0 0.0
    %9571 = vmatprep.subr.mxu0 0.0
    %9572 = vmatpush1.msra.mxu0 0.0
    %9573 = vmatprep.subr.mxu0 0.0
    %9574 = vmatpush1.msra.mxu0 0.0
    %9575 = vmatprep.subr.mxu0 0.0
    %9576 = vmatpush1.msra.mxu0 0.0
    %9577 = vmatprep.subr.mxu0 0.0
    %9578 = vmatpush1.msra.mxu0 0.0
    %9579 = vmatprep.subr.mxu0 0.0
    %9580 = vmatpush1.msra.mxu0 0.0
    %9581 = vmatprep.mubr.f32.mxu0 0.0
    %v9582 = vand.u32 %v9200, 4294901760
    %9583 = vmatmul.mubr.f32.gmra.mrb[0].mxu0 %v9582
    %v9584 = vpop.f32.mrb[0].mxu0
    %v9585 = vadd.f32 %v9508, %v9584
    %v9586 = vpop.f32.mrb[0].mxu0
    %9587 = vdwg.mxu0
    %9588 = vmatprep.subr.mxu0 0.0
    %v9589 = vand.u32 %v94, 4294901760
    %9590 = vmatpush1.msra.mxu0 %v9589
    %9591 = vmatprep.subr.mxu0 0.0
    %v9592 = vand.u32 %v95, 4294901760
    %9593 = vmatpush1.msra.mxu0 %v9592
    %9594 = vmatprep.subr.mxu0 0.0
    %9595 = vmatpush1.msra.mxu0 0.0
    %9596 = vmatprep.subr.mxu0 0.0
    %9597 = vmatpush1.msra.mxu0 0.0
    %9598 = vmatprep.subr.mxu0 0.0
    %9599 = vmatpush1.msra.mxu0 0.0
    %9600 = vmatprep.subr.mxu0 0.0
    %9601 = vmatpush1.msra.mxu0 0.0
    %9602 = vmatprep.subr.mxu0 0.0
    %9603 = vmatpush1.msra.mxu0 0.0
    %9604 = vmatprep.subr.mxu0 0.0
    %9605 = vmatpush1.msra.mxu0 0.0
    %9606 = vmatprep.subr.mxu0 0.0
    %9607 = vmatpush1.msra.mxu0 0.0
    %9608 = vmatprep.subr.mxu0 0.0
    %9609 = vmatpush1.msra.mxu0 0.0
    %9610 = vmatprep.subr.mxu0 0.0
    %9611 = vmatpush1.msra.mxu0 0.0
    %9612 = vmatprep.subr.mxu0 0.0
    %9613 = vmatpush1.msra.mxu0 0.0
    %9614 = vmatprep.subr.mxu0 0.0
    %9615 = vmatpush1.msra.mxu0 0.0
    %9616 = vmatprep.subr.mxu0 0.0
    %9617 = vmatpush1.msra.mxu0 0.0
    %9618 = vmatprep.subr.mxu0 0.0
    %9619 = vmatpush1.msra.mxu0 0.0
    %9620 = vmatprep.subr.mxu0 0.0
    %9621 = vmatpush1.msra.mxu0 0.0
    %9622 = vmatprep.subr.mxu0 0.0
    %9623 = vmatpush1.msra.mxu0 0.0
    %9624 = vmatprep.subr.mxu0 0.0
    %9625 = vmatpush1.msra.mxu0 0.0
    %9626 = vmatprep.subr.mxu0 0.0
    %9627 = vmatpush1.msra.mxu0 0.0
    %9628 = vmatprep.subr.mxu0 0.0
    %9629 = vmatpush1.msra.mxu0 0.0
    %9630 = vmatprep.subr.mxu0 0.0
    %9631 = vmatpush1.msra.mxu0 0.0
    %9632 = vmatprep.subr.mxu0 0.0
    %9633 = vmatpush1.msra.mxu0 0.0
    %9634 = vmatprep.subr.mxu0 0.0
    %9635 = vmatpush1.msra.mxu0 0.0
    %9636 = vmatprep.subr.mxu0 0.0
    %9637 = vmatpush1.msra.mxu0 0.0
    %9638 = vmatprep.subr.mxu0 0.0
    %9639 = vmatpush1.msra.mxu0 0.0
    %9640 = vmatprep.subr.mxu0 0.0
    %9641 = vmatpush1.msra.mxu0 0.0
    %9642 = vmatprep.subr.mxu0 0.0
    %9643 = vmatpush1.msra.mxu0 0.0
    %9644 = vmatprep.subr.mxu0 0.0
    %9645 = vmatpush1.msra.mxu0 0.0
    %9646 = vmatprep.subr.mxu0 0.0
    %9647 = vmatpush1.msra.mxu0 0.0
    %9648 = vmatprep.subr.mxu0 0.0
    %9649 = vmatpush1.msra.mxu0 0.0
    %9650 = vmatprep.subr.mxu0 0.0
    %9651 = vmatpush1.msra.mxu0 0.0
    %9652 = vmatprep.subr.mxu0 0.0
    %9653 = vmatpush1.msra.mxu0 0.0
    %9654 = vmatprep.mubr.f32.mxu0 0.0
    %v9655 = vand.u32 %v9200, 4294901760
    %9656 = vmatmul.mubr.f32.gmra.mrb[0].mxu0 %v9655
    %v9657 = vpop.f32.mrb[0].mxu0
    %v9658 = vadd.f32 %v9585, %v9657
    %v9659 = vpop.f32.mrb[0].mxu0
    %9660 = vdwg.mxu0
    %v9661 = vld [vmem:[#allocation4 + $0x6] sm:$0x1]
    %v9662 = vld [vmem:[#allocation4 + $0xe] sm:$0x1]
    %9663 = vmatprep.subr.mxu0 0.0
    %v9664 = vand.u32 %v86, 4294901760
    %9665 = vmatpush1.msra.mxu0 %v9664
    %9666 = vmatprep.subr.mxu0 0.0
    %v9667 = vand.u32 %v87, 4294901760
    %9668 = vmatpush1.msra.mxu0 %v9667
    %9669 = vmatprep.subr.mxu0 0.0
    %v9670 = vand.u32 %v88, 4294901760
    %9671 = vmatpush1.msra.mxu0 %v9670
    %9672 = vmatprep.subr.mxu0 0.0
    %v9673 = vand.u32 %v89, 4294901760
    %9674 = vmatpush1.msra.mxu0 %v9673
    %9675 = vmatprep.subr.mxu0 0.0
    %9676 = vmatpush1.msra.mxu0 0.0
    %9677 = vmatprep.subr.mxu0 0.0
    %9678 = vmatpush1.msra.mxu0 0.0
    %9679 = vmatprep.subr.mxu0 0.0
    %9680 = vmatpush1.msra.mxu0 0.0
    %9681 = vmatprep.subr.mxu0 0.0
    %9682 = vmatpush1.msra.mxu0 0.0
    %9683 = vmatprep.subr.mxu0 0.0
    %9684 = vmatpush1.msra.mxu0 0.0
    %9685 = vmatprep.subr.mxu0 0.0
    %9686 = vmatpush1.msra.mxu0 0.0
    %9687 = vmatprep.subr.mxu0 0.0
    %9688 = vmatpush1.msra.mxu0 0.0
    %9689 = vmatprep.subr.mxu0 0.0
    %9690 = vmatpush1.msra.mxu0 0.0
    %9691 = vmatprep.subr.mxu0 0.0
    %9692 = vmatpush1.msra.mxu0 0.0
    %9693 = vmatprep.subr.mxu0 0.0
    %9694 = vmatpush1.msra.mxu0 0.0
    %9695 = vmatprep.subr.mxu0 0.0
    %9696 = vmatpush1.msra.mxu0 0.0
    %9697 = vmatprep.subr.mxu0 0.0
    %9698 = vmatpush1.msra.mxu0 0.0
    %9699 = vmatprep.subr.mxu0 0.0
    %9700 = vmatpush1.msra.mxu0 0.0
    %9701 = vmatprep.subr.mxu0 0.0
    %9702 = vmatpush1.msra.mxu0 0.0
    %9703 = vmatprep.subr.mxu0 0.0
    %9704 = vmatpush1.msra.mxu0 0.0
    %9705 = vmatprep.subr.mxu0 0.0
    %9706 = vmatpush1.msra.mxu0 0.0
    %9707 = vmatprep.subr.mxu0 0.0
    %9708 = vmatpush1.msra.mxu0 0.0
    %9709 = vmatprep.subr.mxu0 0.0
    %9710 = vmatpush1.msra.mxu0 0.0
    %9711 = vmatprep.subr.mxu0 0.0
    %9712 = vmatpush1.msra.mxu0 0.0
    %9713 = vmatprep.subr.mxu0 0.0
    %9714 = vmatpush1.msra.mxu0 0.0
    %9715 = vmatprep.subr.mxu0 0.0
    %9716 = vmatpush1.msra.mxu0 0.0
    %9717 = vmatprep.subr.mxu0 0.0
    %9718 = vmatpush1.msra.mxu0 0.0
    %9719 = vmatprep.subr.mxu0 0.0
    %9720 = vmatpush1.msra.mxu0 0.0
    %9721 = vmatprep.subr.mxu0 0.0
    %9722 = vmatpush1.msra.mxu0 0.0
    %9723 = vmatprep.subr.mxu0 0.0
    %9724 = vmatpush1.msra.mxu0 0.0
    %9725 = vmatprep.subr.mxu0 0.0
    %9726 = vmatpush1.msra.mxu0 0.0
    %9727 = vmatprep.subr.mxu0 0.0
    %9728 = vmatpush1.msra.mxu0 0.0
    %9729 = vmatprep.subr.mxu0 0.0
    %9730 = vmatpush1.msra.mxu0 0.0
    %9731 = vmatprep.mubr.f32.mxu0 0.0
    %v9732 = vand.u32 %v8652, 4294901760
    %v9733 = vsub.f32 %v8652, %v9732
    %v9734 = vand.u32 %v9733, 4294901760
    %v9735 = vsub.f32 %v9733, %v9734
    %v9736 = vand.u32 %v9735, 4294901760
    %9737 = vmatmul.mubr.f32.gmra.mrb[0].mxu0 %v9736
    %v9738 = vpop.f32.mrb[0].mxu0
    %v9739 = vadd.f32 0.0, %v9738
    %v9740 = vpop.f32.mrb[0].mxu0
    %9741 = vdwg.mxu0
    %9742 = vmatprep.subr.mxu0 0.0
    %v9743 = vand.u32 %v86, 4294901760
    %v9744 = vsub.f32 %v86, %v9743
    %v9745 = vand.u32 %v9744, 4294901760
    %v9746 = vsub.f32 %v9744, %v9745
    %v9747 = vand.u32 %v9746, 4294901760
    %9748 = vmatpush1.msra.mxu0 %v9747
    %9749 = vmatprep.subr.mxu0 0.0
    %v9750 = vand.u32 %v87, 4294901760
    %v9751 = vsub.f32 %v87, %v9750
    %v9752 = vand.u32 %v9751, 4294901760
    %v9753 = vsub.f32 %v9751, %v9752
    %v9754 = vand.u32 %v9753, 4294901760
    %9755 = vmatpush1.msra.mxu0 %v9754
    %9756 = vmatprep.subr.mxu0 0.0
    %v9757 = vand.u32 %v88, 4294901760
    %v9758 = vsub.f32 %v88, %v9757
    %v9759 = vand.u32 %v9758, 4294901760
    %v9760 = vsub.f32 %v9758, %v9759
    %v9761 = vand.u32 %v9760, 4294901760
    %9762 = vmatpush1.msra.mxu0 %v9761
    %9763 = vmatprep.subr.mxu0 0.0
    %v9764 = vand.u32 %v89, 4294901760
    %v9765 = vsub.f32 %v89, %v9764
    %v9766 = vand.u32 %v9765, 4294901760
    %v9767 = vsub.f32 %v9765, %v9766
    %v9768 = vand.u32 %v9767, 4294901760
    %9769 = vmatpush1.msra.mxu0 %v9768
    %9770 = vmatprep.subr.mxu0 0.0
    %9771 = vmatpush1.msra.mxu0 0.0
    %9772 = vmatprep.subr.mxu0 0.0
    %9773 = vmatpush1.msra.mxu0 0.0
    %9774 = vmatprep.subr.mxu0 0.0
    %9775 = vmatpush1.msra.mxu0 0.0
    %9776 = vmatprep.subr.mxu0 0.0
    %9777 = vmatpush1.msra.mxu0 0.0
    %9778 = vmatprep.subr.mxu0 0.0
    %9779 = vmatpush1.msra.mxu0 0.0
    %9780 = vmatprep.subr.mxu0 0.0
    %9781 = vmatpush1.msra.mxu0 0.0
    %9782 = vmatprep.subr.mxu0 0.0
    %9783 = vmatpush1.msra.mxu0 0.0
    %9784 = vmatprep.subr.mxu0 0.0
    %9785 = vmatpush1.msra.mxu0 0.0
    %9786 = vmatprep.subr.mxu0 0.0
    %9787 = vmatpush1.msra.mxu0 0.0
    %9788 = vmatprep.subr.mxu0 0.0
    %9789 = vmatpush1.msra.mxu0 0.0
    %9790 = vmatprep.subr.mxu0 0.0
    %9791 = vmatpush1.msra.mxu0 0.0
    %9792 = vmatprep.subr.mxu0 0.0
    %9793 = vmatpush1.msra.mxu0 0.0
    %9794 = vmatprep.subr.mxu0 0.0
    %9795 = vmatpush1.msra.mxu0 0.0
    %9796 = vmatprep.subr.mxu0 0.0
    %9797 = vmatpush1.msra.mxu0 0.0
    %9798 = vmatprep.subr.mxu0 0.0
    %9799 = vmatpush1.msra.mxu0 0.0
    %9800 = vmatprep.subr.mxu0 0.0
    %9801 = vmatpush1.msra.mxu0 0.0
    %9802 = vmatprep.subr.mxu0 0.0
    %9803 = vmatpush1.msra.mxu0 0.0
    %9804 = vmatprep.subr.mxu0 0.0
    %9805 = vmatpush1.msra.mxu0 0.0
    %9806 = vmatprep.subr.mxu0 0.0
    %9807 = vmatpush1.msra.mxu0 0.0
    %9808 = vmatprep.subr.mxu0 0.0
    %9809 = vmatpush1.msra.mxu0 0.0
    %9810 = vmatprep.subr.mxu0 0.0
    %9811 = vmatpush1.msra.mxu0 0.0
    %9812 = vmatprep.subr.mxu0 0.0
    %9813 = vmatpush1.msra.mxu0 0.0
    %9814 = vmatprep.subr.mxu0 0.0
    %9815 = vmatpush1.msra.mxu0 0.0
    %9816 = vmatprep.subr.mxu0 0.0
    %9817 = vmatpush1.msra.mxu0 0.0
    %9818 = vmatprep.subr.mxu0 0.0
    %9819 = vmatpush1.msra.mxu0 0.0
    %9820 = vmatprep.subr.mxu0 0.0
    %9821 = vmatpush1.msra.mxu0 0.0
    %9822 = vmatprep.subr.mxu0 0.0
    %9823 = vmatpush1.msra.mxu0 0.0
    %9824 = vmatprep.subr.mxu0 0.0
    %9825 = vmatpush1.msra.mxu0 0.0
    %9826 = vmatprep.mubr.f32.mxu0 0.0
    %v9827 = vand.u32 %v8652, 4294901760
    %9828 = vmatmul.mubr.f32.gmra.mrb[0].mxu0 %v9827
    %v9829 = vpop.f32.mrb[0].mxu0
    %v9830 = vadd.f32 %v9739, %v9829
    %v9831 = vpop.f32.mrb[0].mxu0
    %9832 = vdwg.mxu0
    %9833 = vmatprep.subr.mxu0 0.0
    %v9834 = vand.u32 %v86, 4294901760
    %v9835 = vsub.f32 %v86, %v9834
    %9836 = vmatpush1.msra.mxu0 %v9835
    %9837 = vmatprep.subr.mxu0 0.0
    %v9838 = vand.u32 %v87, 4294901760
    %v9839 = vsub.f32 %v87, %v9838
    %9840 = vmatpush1.msra.mxu0 %v9839
    %9841 = vmatprep.subr.mxu0 0.0
    %v9842 = vand.u32 %v88, 4294901760
    %v9843 = vsub.f32 %v88, %v9842
    %9844 = vmatpush1.msra.mxu0 %v9843
    %9845 = vmatprep.subr.mxu0 0.0
    %v9846 = vand.u32 %v89, 4294901760
    %v9847 = vsub.f32 %v89, %v9846
    %9848 = vmatpush1.msra.mxu0 %v9847
    %9849 = vmatprep.subr.mxu0 0.0
    %9850 = vmatpush1.msra.mxu0 0.0
    %9851 = vmatprep.subr.mxu0 0.0
    %9852 = vmatpush1.msra.mxu0 0.0
    %9853 = vmatprep.subr.mxu0 0.0
    %9854 = vmatpush1.msra.mxu0 0.0
    %9855 = vmatprep.subr.mxu0 0.0
    %9856 = vmatpush1.msra.mxu0 0.0
    %9857 = vmatprep.subr.mxu0 0.0
    %9858 = vmatpush1.msra.mxu0 0.0
    %9859 = vmatprep.subr.mxu0 0.0
    %9860 = vmatpush1.msra.mxu0 0.0
    %9861 = vmatprep.subr.mxu0 0.0
    %9862 = vmatpush1.msra.mxu0 0.0
    %9863 = vmatprep.subr.mxu0 0.0
    %9864 = vmatpush1.msra.mxu0 0.0
    %9865 = vmatprep.subr.mxu0 0.0
    %9866 = vmatpush1.msra.mxu0 0.0
    %9867 = vmatprep.subr.mxu0 0.0
    %9868 = vmatpush1.msra.mxu0 0.0
    %9869 = vmatprep.subr.mxu0 0.0
    %9870 = vmatpush1.msra.mxu0 0.0
    %9871 = vmatprep.subr.mxu0 0.0
    %9872 = vmatpush1.msra.mxu0 0.0
    %9873 = vmatprep.subr.mxu0 0.0
    %9874 = vmatpush1.msra.mxu0 0.0
    %9875 = vmatprep.subr.mxu0 0.0
    %9876 = vmatpush1.msra.mxu0 0.0
    %9877 = vmatprep.subr.mxu0 0.0
    %9878 = vmatpush1.msra.mxu0 0.0
    %9879 = vmatprep.subr.mxu0 0.0
    %9880 = vmatpush1.msra.mxu0 0.0
    %9881 = vmatprep.subr.mxu0 0.0
    %9882 = vmatpush1.msra.mxu0 0.0
    %9883 = vmatprep.subr.mxu0 0.0
    %9884 = vmatpush1.msra.mxu0 0.0
    %9885 = vmatprep.subr.mxu0 0.0
    %9886 = vmatpush1.msra.mxu0 0.0
    %9887 = vmatprep.subr.mxu0 0.0
    %9888 = vmatpush1.msra.mxu0 0.0
    %9889 = vmatprep.subr.mxu0 0.0
    %9890 = vmatpush1.msra.mxu0 0.0
    %9891 = vmatprep.subr.mxu0 0.0
    %9892 = vmatpush1.msra.mxu0 0.0
    %9893 = vmatprep.subr.mxu0 0.0
    %9894 = vmatpush1.msra.mxu0 0.0
    %9895 = vmatprep.subr.mxu0 0.0
    %9896 = vmatpush1.msra.mxu0 0.0
    %9897 = vmatprep.subr.mxu0 0.0
    %9898 = vmatpush1.msra.mxu0 0.0
    %9899 = vmatprep.subr.mxu0 0.0
    %9900 = vmatpush1.msra.mxu0 0.0
    %9901 = vmatprep.subr.mxu0 0.0
    %9902 = vmatpush1.msra.mxu0 0.0
    %9903 = vmatprep.subr.mxu0 0.0
    %9904 = vmatpush1.msra.mxu0 0.0
    %9905 = vmatprep.mubr.f32.mxu0 0.0
    %v9906 = vand.u32 %v8652, 4294901760
    %v9907 = vsub.f32 %v8652, %v9906
    %9908 = vmatmul.mubr.f32.gmra.mrb[0].mxu0 %v9907
    %v9909 = vpop.f32.mrb[0].mxu0
    %v9910 = vadd.f32 %v9830, %v9909
    %v9911 = vpop.f32.mrb[0].mxu0
    %9912 = vdwg.mxu0
    %9913 = vmatprep.subr.mxu0 0.0
    %v9914 = vand.u32 %v86, 4294901760
    %9915 = vmatpush1.msra.mxu0 %v9914
    %9916 = vmatprep.subr.mxu0 0.0
    %v9917 = vand.u32 %v87, 4294901760
    %9918 = vmatpush1.msra.mxu0 %v9917
    %9919 = vmatprep.subr.mxu0 0.0
    %v9920 = vand.u32 %v88, 4294901760
    %9921 = vmatpush1.msra.mxu0 %v9920
    %9922 = vmatprep.subr.mxu0 0.0
    %v9923 = vand.u32 %v89, 4294901760
    %9924 = vmatpush1.msra.mxu0 %v9923
    %9925 = vmatprep.subr.mxu0 0.0
    %9926 = vmatpush1.msra.mxu0 0.0
    %9927 = vmatprep.subr.mxu0 0.0
    %9928 = vmatpush1.msra.mxu0 0.0
    %9929 = vmatprep.subr.mxu0 0.0
    %9930 = vmatpush1.msra.mxu0 0.0
    %9931 = vmatprep.subr.mxu0 0.0
    %9932 = vmatpush1.msra.mxu0 0.0
    %9933 = vmatprep.subr.mxu0 0.0
    %9934 = vmatpush1.msra.mxu0 0.0
    %9935 = vmatprep.subr.mxu0 0.0
    %9936 = vmatpush1.msra.mxu0 0.0
    %9937 = vmatprep.subr.mxu0 0.0
    %9938 = vmatpush1.msra.mxu0 0.0
    %9939 = vmatprep.subr.mxu0 0.0
    %9940 = vmatpush1.msra.mxu0 0.0
    %9941 = vmatprep.subr.mxu0 0.0
    %9942 = vmatpush1.msra.mxu0 0.0
    %9943 = vmatprep.subr.mxu0 0.0
    %9944 = vmatpush1.msra.mxu0 0.0
    %9945 = vmatprep.subr.mxu0 0.0
    %9946 = vmatpush1.msra.mxu0 0.0
    %9947 = vmatprep.subr.mxu0 0.0
    %9948 = vmatpush1.msra.mxu0 0.0
    %9949 = vmatprep.subr.mxu0 0.0
    %9950 = vmatpush1.msra.mxu0 0.0
    %9951 = vmatprep.subr.mxu0 0.0
    %9952 = vmatpush1.msra.mxu0 0.0
    %9953 = vmatprep.subr.mxu0 0.0
    %9954 = vmatpush1.msra.mxu0 0.0
    %9955 = vmatprep.subr.mxu0 0.0
    %9956 = vmatpush1.msra.mxu0 0.0
    %9957 = vmatprep.subr.mxu0 0.0
    %9958 = vmatpush1.msra.mxu0 0.0
    %9959 = vmatprep.subr.mxu0 0.0
    %9960 = vmatpush1.msra.mxu0 0.0
    %9961 = vmatprep.subr.mxu0 0.0
    %9962 = vmatpush1.msra.mxu0 0.0
    %9963 = vmatprep.subr.mxu0 0.0
    %9964 = vmatpush1.msra.mxu0 0.0
    %9965 = vmatprep.subr.mxu0 0.0
    %9966 = vmatpush1.msra.mxu0 0.0
    %9967 = vmatprep.subr.mxu0 0.0
    %9968 = vmatpush1.msra.mxu0 0.0
    %9969 = vmatprep.subr.mxu0 0.0
    %9970 = vmatpush1.msra.mxu0 0.0
    %9971 = vmatprep.subr.mxu0 0.0
    %9972 = vmatpush1.msra.mxu0 0.0
    %9973 = vmatprep.subr.mxu0 0.0
    %9974 = vmatpush1.msra.mxu0 0.0
    %9975 = vmatprep.subr.mxu0 0.0
    %9976 = vmatpush1.msra.mxu0 0.0
    %9977 = vmatprep.subr.mxu0 0.0
    %9978 = vmatpush1.msra.mxu0 0.0
    %9979 = vmatprep.subr.mxu0 0.0
    %9980 = vmatpush1.msra.mxu0 0.0
    %9981 = vmatprep.mubr.f32.mxu0 0.0
    %v9982 = vand.u32 %v8652, 4294901760
    %v9983 = vsub.f32 %v8652, %v9982
    %v9984 = vand.u32 %v9983, 4294901760
    %9985 = vmatmul.mubr.f32.gmra.mrb[0].mxu0 %v9984
    %v9986 = vpop.f32.mrb[0].mxu0
    %v9987 = vadd.f32 %v9910, %v9986
    %v9988 = vpop.f32.mrb[0].mxu0
    %9989 = vdwg.mxu0
    %9990 = vmatprep.subr.mxu0 0.0
    %v9991 = vand.u32 %v86, 4294901760
    %v9992 = vsub.f32 %v86, %v9991
    %v9993 = vand.u32 %v9992, 4294901760
    %9994 = vmatpush1.msra.mxu0 %v9993
    %9995 = vmatprep.subr.mxu0 0.0
    %v9996 = vand.u32 %v87, 4294901760
    %v9997 = vsub.f32 %v87, %v9996
    %v9998 = vand.u32 %v9997, 4294901760
    %9999 = vmatpush1.msra.mxu0 %v9998
    %10000 = vmatprep.subr.mxu0 0.0
    %v10001 = vand.u32 %v88, 4294901760
    %v10002 = vsub.f32 %v88, %v10001
    %v10003 = vand.u32 %v10002, 4294901760
    %10004 = vmatpush1.msra.mxu0 %v10003
    %10005 = vmatprep.subr.mxu0 0.0
    %v10006 = vand.u32 %v89, 4294901760
    %v10007 = vsub.f32 %v89, %v10006
    %v10008 = vand.u32 %v10007, 4294901760
    %10009 = vmatpush1.msra.mxu0 %v10008
    %10010 = vmatprep.subr.mxu0 0.0
    %10011 = vmatpush1.msra.mxu0 0.0
    %10012 = vmatprep.subr.mxu0 0.0
    %10013 = vmatpush1.msra.mxu0 0.0
    %10014 = vmatprep.subr.mxu0 0.0
    %10015 = vmatpush1.msra.mxu0 0.0
    %10016 = vmatprep.subr.mxu0 0.0
    %10017 = vmatpush1.msra.mxu0 0.0
    %10018 = vmatprep.subr.mxu0 0.0
    %10019 = vmatpush1.msra.mxu0 0.0
    %10020 = vmatprep.subr.mxu0 0.0
    %10021 = vmatpush1.msra.mxu0 0.0
    %10022 = vmatprep.subr.mxu0 0.0
    %10023 = vmatpush1.msra.mxu0 0.0
    %10024 = vmatprep.subr.mxu0 0.0
    %10025 = vmatpush1.msra.mxu0 0.0
    %10026 = vmatprep.subr.mxu0 0.0
    %10027 = vmatpush1.msra.mxu0 0.0
    %10028 = vmatprep.subr.mxu0 0.0
    %10029 = vmatpush1.msra.mxu0 0.0
    %10030 = vmatprep.subr.mxu0 0.0
    %10031 = vmatpush1.msra.mxu0 0.0
    %10032 = vmatprep.subr.mxu0 0.0
    %10033 = vmatpush1.msra.mxu0 0.0
    %10034 = vmatprep.subr.mxu0 0.0
    %10035 = vmatpush1.msra.mxu0 0.0
    %10036 = vmatprep.subr.mxu0 0.0
    %10037 = vmatpush1.msra.mxu0 0.0
    %10038 = vmatprep.subr.mxu0 0.0
    %10039 = vmatpush1.msra.mxu0 0.0
    %10040 = vmatprep.subr.mxu0 0.0
    %10041 = vmatpush1.msra.mxu0 0.0
    %10042 = vmatprep.subr.mxu0 0.0
    %10043 = vmatpush1.msra.mxu0 0.0
    %10044 = vmatprep.subr.mxu0 0.0
    %10045 = vmatpush1.msra.mxu0 0.0
    %10046 = vmatprep.subr.mxu0 0.0
    %10047 = vmatpush1.msra.mxu0 0.0
    %10048 = vmatprep.subr.mxu0 0.0
    %10049 = vmatpush1.msra.mxu0 0.0
    %10050 = vmatprep.subr.mxu0 0.0
    %10051 = vmatpush1.msra.mxu0 0.0
    %10052 = vmatprep.subr.mxu0 0.0
    %10053 = vmatpush1.msra.mxu0 0.0
    %10054 = vmatprep.subr.mxu0 0.0
    %10055 = vmatpush1.msra.mxu0 0.0
    %10056 = vmatprep.subr.mxu0 0.0
    %10057 = vmatpush1.msra.mxu0 0.0
    %10058 = vmatprep.subr.mxu0 0.0
    %10059 = vmatpush1.msra.mxu0 0.0
    %10060 = vmatprep.subr.mxu0 0.0
    %10061 = vmatpush1.msra.mxu0 0.0
    %10062 = vmatprep.subr.mxu0 0.0
    %10063 = vmatpush1.msra.mxu0 0.0
    %10064 = vmatprep.subr.mxu0 0.0
    %10065 = vmatpush1.msra.mxu0 0.0
    %10066 = vmatprep.mubr.f32.mxu0 0.0
    %v10067 = vand.u32 %v8652, 4294901760
    %10068 = vmatmul.mubr.f32.gmra.mrb[0].mxu0 %v10067
    %v10069 = vpop.f32.mrb[0].mxu0
    %v10070 = vadd.f32 %v9987, %v10069
    %v10071 = vpop.f32.mrb[0].mxu0
    %10072 = vdwg.mxu0
    %10073 = vmatprep.subr.mxu0 0.0
    %v10074 = vand.u32 %v86, 4294901760
    %10075 = vmatpush1.msra.mxu0 %v10074
    %10076 = vmatprep.subr.mxu0 0.0
    %v10077 = vand.u32 %v87, 4294901760
    %10078 = vmatpush1.msra.mxu0 %v10077
    %10079 = vmatprep.subr.mxu0 0.0
    %v10080 = vand.u32 %v88, 4294901760
    %10081 = vmatpush1.msra.mxu0 %v10080
    %10082 = vmatprep.subr.mxu0 0.0
    %v10083 = vand.u32 %v89, 4294901760
    %10084 = vmatpush1.msra.mxu0 %v10083
    %10085 = vmatprep.subr.mxu0 0.0
    %10086 = vmatpush1.msra.mxu0 0.0
    %10087 = vmatprep.subr.mxu0 0.0
    %10088 = vmatpush1.msra.mxu0 0.0
    %10089 = vmatprep.subr.mxu0 0.0
    %10090 = vmatpush1.msra.mxu0 0.0
    %10091 = vmatprep.subr.mxu0 0.0
    %10092 = vmatpush1.msra.mxu0 0.0
    %10093 = vmatprep.subr.mxu0 0.0
    %10094 = vmatpush1.msra.mxu0 0.0
    %10095 = vmatprep.subr.mxu0 0.0
    %10096 = vmatpush1.msra.mxu0 0.0
    %10097 = vmatprep.subr.mxu0 0.0
    %10098 = vmatpush1.msra.mxu0 0.0
    %10099 = vmatprep.subr.mxu0 0.0
    %10100 = vmatpush1.msra.mxu0 0.0
    %10101 = vmatprep.subr.mxu0 0.0
    %10102 = vmatpush1.msra.mxu0 0.0
    %10103 = vmatprep.subr.mxu0 0.0
    %10104 = vmatpush1.msra.mxu0 0.0
    %10105 = vmatprep.subr.mxu0 0.0
    %10106 = vmatpush1.msra.mxu0 0.0
    %10107 = vmatprep.subr.mxu0 0.0
    %10108 = vmatpush1.msra.mxu0 0.0
    %10109 = vmatprep.subr.mxu0 0.0
    %10110 = vmatpush1.msra.mxu0 0.0
    %10111 = vmatprep.subr.mxu0 0.0
    %10112 = vmatpush1.msra.mxu0 0.0
    %10113 = vmatprep.subr.mxu0 0.0
    %10114 = vmatpush1.msra.mxu0 0.0
    %10115 = vmatprep.subr.mxu0 0.0
    %10116 = vmatpush1.msra.mxu0 0.0
    %10117 = vmatprep.subr.mxu0 0.0
    %10118 = vmatpush1.msra.mxu0 0.0
    %10119 = vmatprep.subr.mxu0 0.0
    %10120 = vmatpush1.msra.mxu0 0.0
    %10121 = vmatprep.subr.mxu0 0.0
    %10122 = vmatpush1.msra.mxu0 0.0
    %10123 = vmatprep.subr.mxu0 0.0
    %10124 = vmatpush1.msra.mxu0 0.0
    %10125 = vmatprep.subr.mxu0 0.0
    %10126 = vmatpush1.msra.mxu0 0.0
    %10127 = vmatprep.subr.mxu0 0.0
    %10128 = vmatpush1.msra.mxu0 0.0
    %10129 = vmatprep.subr.mxu0 0.0
    %10130 = vmatpush1.msra.mxu0 0.0
    %10131 = vmatprep.subr.mxu0 0.0
    %10132 = vmatpush1.msra.mxu0 0.0
    %10133 = vmatprep.subr.mxu0 0.0
    %10134 = vmatpush1.msra.mxu0 0.0
    %10135 = vmatprep.subr.mxu0 0.0
    %10136 = vmatpush1.msra.mxu0 0.0
    %10137 = vmatprep.subr.mxu0 0.0
    %10138 = vmatpush1.msra.mxu0 0.0
    %10139 = vmatprep.subr.mxu0 0.0
    %10140 = vmatpush1.msra.mxu0 0.0
    %10141 = vmatprep.mubr.f32.mxu0 0.0
    %v10142 = vand.u32 %v8652, 4294901760
    %10143 = vmatmul.mubr.f32.gmra.mrb[0].mxu0 %v10142
    %v10144 = vpop.f32.mrb[0].mxu0
    %v10145 = vadd.f32 %v10070, %v10144
    %v10146 = vpop.f32.mrb[0].mxu0
    %10147 = vdwg.mxu0
    %v10149 = vrot.slane %v10145, 1
    %v10152 = vadd.f32 %v9661, %v10145
    %v10153 = vadd.f32 %v9662, %v10149
    %v10154 = vmul.f32 %v8650, 0.25
    %v10155 = vtanh.pop %v10152
    %v10156 = vtanh.pop %v10153
    %v10157 = vmul.f32 %v10155, 0.75
    %v10158 = vmul.f32 %v10156, 0.75
    %v10161 = vrot.slane %v10158, 7
    %v10162 = vsel %vm1070, %v10161, %v10157
    %v10164 = vadd.f32 %v10154, %v10162
    %v10166 = vsel %vm567, %v10164, 0
    %10168 = vmatprep.subr.mxu0 0.0
    %v10169 = vand.u32 %v90, 4294901760
    %10170 = vmatpush1.msra.mxu0 %v10169
    %10171 = vmatprep.subr.mxu0 0.0
    %v10172 = vand.u32 %v91, 4294901760
    %10173 = vmatpush1.msra.mxu0 %v10172
    %10174 = vmatprep.subr.mxu0 0.0
    %v10175 = vand.u32 %v92, 4294901760
    %10176 = vmatpush1.msra.mxu0 %v10175
    %10177 = vmatprep.subr.mxu0 0.0
    %v10178 = vand.u32 %v93, 4294901760
    %10179 = vmatpush1.msra.mxu0 %v10178
    %10180 = vmatprep.subr.mxu0 0.0
    %10181 = vmatpush1.msra.mxu0 0.0
    %10182 = vmatprep.subr.mxu0 0.0
    %10183 = vmatpush1.msra.mxu0 0.0
    %10184 = vmatprep.subr.mxu0 0.0
    %10185 = vmatpush1.msra.mxu0 0.0
    %10186 = vmatprep.subr.mxu0 0.0
    %10187 = vmatpush1.msra.mxu0 0.0
    %10188 = vmatprep.subr.mxu0 0.0
    %10189 = vmatpush1.msra.mxu0 0.0
    %10190 = vmatprep.subr.mxu0 0.0
    %10191 = vmatpush1.msra.mxu0 0.0
    %10192 = vmatprep.subr.mxu0 0.0
    %10193 = vmatpush1.msra.mxu0 0.0
    %10194 = vmatprep.subr.mxu0 0.0
    %10195 = vmatpush1.msra.mxu0 0.0
    %10196 = vmatprep.subr.mxu0 0.0
    %10197 = vmatpush1.msra.mxu0 0.0
    %10198 = vmatprep.subr.mxu0 0.0
    %10199 = vmatpush1.msra.mxu0 0.0
    %10200 = vmatprep.subr.mxu0 0.0
    %10201 = vmatpush1.msra.mxu0 0.0
    %10202 = vmatprep.subr.mxu0 0.0
    %10203 = vmatpush1.msra.mxu0 0.0
    %10204 = vmatprep.subr.mxu0 0.0
    %10205 = vmatpush1.msra.mxu0 0.0
    %10206 = vmatprep.subr.mxu0 0.0
    %10207 = vmatpush1.msra.mxu0 0.0
    %10208 = vmatprep.subr.mxu0 0.0
    %10209 = vmatpush1.msra.mxu0 0.0
    %10210 = vmatprep.subr.mxu0 0.0
    %10211 = vmatpush1.msra.mxu0 0.0
    %10212 = vmatprep.subr.mxu0 0.0
    %10213 = vmatpush1.msra.mxu0 0.0
    %10214 = vmatprep.subr.mxu0 0.0
    %10215 = vmatpush1.msra.mxu0 0.0
    %10216 = vmatprep.subr.mxu0 0.0
    %10217 = vmatpush1.msra.mxu0 0.0
    %10218 = vmatprep.subr.mxu0 0.0
    %10219 = vmatpush1.msra.mxu0 0.0
    %10220 = vmatprep.subr.mxu0 0.0
    %10221 = vmatpush1.msra.mxu0 0.0
    %10222 = vmatprep.subr.mxu0 0.0
    %10223 = vmatpush1.msra.mxu0 0.0
    %10224 = vmatprep.subr.mxu0 0.0
    %10225 = vmatpush1.msra.mxu0 0.0
    %10226 = vmatprep.subr.mxu0 0.0
    %10227 = vmatpush1.msra.mxu0 0.0
    %10228 = vmatprep.subr.mxu0 0.0
    %10229 = vmatpush1.msra.mxu0 0.0
    %10230 = vmatprep.subr.mxu0 0.0
    %10231 = vmatpush1.msra.mxu0 0.0
    %10232 = vmatprep.subr.mxu0 0.0
    %10233 = vmatpush1.msra.mxu0 0.0
    %10234 = vmatprep.subr.mxu0 0.0
    %10235 = vmatpush1.msra.mxu0 0.0
    %10236 = vmatprep.mubr.f32.mxu0 0.0
    %v10237 = vand.u32 %v10166, 4294901760
    %v10238 = vsub.f32 %v10166, %v10237
    %v10239 = vand.u32 %v10238, 4294901760
    %v10240 = vsub.f32 %v10238, %v10239
    %v10241 = vand.u32 %v10240, 4294901760
    %10242 = vmatmul.mubr.f32.gmra.mrb[0].mxu0 %v10241
    %v10243 = vpop.f32.mrb[0].mxu0
    %v10244 = vadd.f32 0.0, %v10243
    %v10245 = vpop.f32.mrb[0].mxu0
    %10246 = vdwg.mxu0
    %10247 = vmatprep.subr.mxu0 0.0
    %v10248 = vand.u32 %v90, 4294901760
    %v10249 = vsub.f32 %v90, %v10248
    %v10250 = vand.u32 %v10249, 4294901760
    %v10251 = vsub.f32 %v10249, %v10250
    %v10252 = vand.u32 %v10251, 4294901760
    %10253 = vmatpush1.msra.mxu0 %v10252
    %10254 = vmatprep.subr.mxu0 0.0
    %v10255 = vand.u32 %v91, 4294901760
    %v10256 = vsub.f32 %v91, %v10255
    %v10257 = vand.u32 %v10256, 4294901760
    %v10258 = vsub.f32 %v10256, %v10257
    %v10259 = vand.u32 %v10258, 4294901760
    %10260 = vmatpush1.msra.mxu0 %v10259
    %10261 = vmatprep.subr.mxu0 0.0
    %v10262 = vand.u32 %v92, 4294901760
    %v10263 = vsub.f32 %v92, %v10262
    %v10264 = vand.u32 %v10263, 4294901760
    %v10265 = vsub.f32 %v10263, %v10264
    %v10266 = vand.u32 %v10265, 4294901760
    %10267 = vmatpush1.msra.mxu0 %v10266
    %10268 = vmatprep.subr.mxu0 0.0
    %v10269 = vand.u32 %v93, 4294901760
    %v10270 = vsub.f32 %v93, %v10269
    %v10271 = vand.u32 %v10270, 4294901760
    %v10272 = vsub.f32 %v10270, %v10271
    %v10273 = vand.u32 %v10272, 4294901760
    %10274 = vmatpush1.msra.mxu0 %v10273
    %10275 = vmatprep.subr.mxu0 0.0
    %10276 = vmatpush1.msra.mxu0 0.0
    %10277 = vmatprep.subr.mxu0 0.0
    %10278 = vmatpush1.msra.mxu0 0.0
    %10279 = vmatprep.subr.mxu0 0.0
    %10280 = vmatpush1.msra.mxu0 0.0
    %10281 = vmatprep.subr.mxu0 0.0
    %10282 = vmatpush1.msra.mxu0 0.0
    %10283 = vmatprep.subr.mxu0 0.0
    %10284 = vmatpush1.msra.mxu0 0.0
    %10285 = vmatprep.subr.mxu0 0.0
    %10286 = vmatpush1.msra.mxu0 0.0
    %10287 = vmatprep.subr.mxu0 0.0
    %10288 = vmatpush1.msra.mxu0 0.0
    %10289 = vmatprep.subr.mxu0 0.0
    %10290 = vmatpush1.msra.mxu0 0.0
    %10291 = vmatprep.subr.mxu0 0.0
    %10292 = vmatpush1.msra.mxu0 0.0
    %10293 = vmatprep.subr.mxu0 0.0
    %10294 = vmatpush1.msra.mxu0 0.0
    %10295 = vmatprep.subr.mxu0 0.0
    %10296 = vmatpush1.msra.mxu0 0.0
    %10297 = vmatprep.subr.mxu0 0.0
    %10298 = vmatpush1.msra.mxu0 0.0
    %10299 = vmatprep.subr.mxu0 0.0
    %10300 = vmatpush1.msra.mxu0 0.0
    %10301 = vmatprep.subr.mxu0 0.0
    %10302 = vmatpush1.msra.mxu0 0.0
    %10303 = vmatprep.subr.mxu0 0.0
    %10304 = vmatpush1.msra.mxu0 0.0
    %10305 = vmatprep.subr.mxu0 0.0
    %10306 = vmatpush1.msra.mxu0 0.0
    %10307 = vmatprep.subr.mxu0 0.0
    %10308 = vmatpush1.msra.mxu0 0.0
    %10309 = vmatprep.subr.mxu0 0.0
    %10310 = vmatpush1.msra.mxu0 0.0
    %10311 = vmatprep.subr.mxu0 0.0
    %10312 = vmatpush1.msra.mxu0 0.0
    %10313 = vmatprep.subr.mxu0 0.0
    %10314 = vmatpush1.msra.mxu0 0.0
    %10315 = vmatprep.subr.mxu0 0.0
    %10316 = vmatpush1.msra.mxu0 0.0
    %10317 = vmatprep.subr.mxu0 0.0
    %10318 = vmatpush1.msra.mxu0 0.0
    %10319 = vmatprep.subr.mxu0 0.0
    %10320 = vmatpush1.msra.mxu0 0.0
    %10321 = vmatprep.subr.mxu0 0.0
    %10322 = vmatpush1.msra.mxu0 0.0
    %10323 = vmatprep.subr.mxu0 0.0
    %10324 = vmatpush1.msra.mxu0 0.0
    %10325 = vmatprep.subr.mxu0 0.0
    %10326 = vmatpush1.msra.mxu0 0.0
    %10327 = vmatprep.subr.mxu0 0.0
    %10328 = vmatpush1.msra.mxu0 0.0
    %10329 = vmatprep.subr.mxu0 0.0
    %10330 = vmatpush1.msra.mxu0 0.0
    %10331 = vmatprep.mubr.f32.mxu0 0.0
    %v10332 = vand.u32 %v10166, 4294901760
    %10333 = vmatmul.mubr.f32.gmra.mrb[0].mxu0 %v10332
    %v10334 = vpop.f32.mrb[0].mxu0
    %v10335 = vadd.f32 %v10244, %v10334
    %v10336 = vpop.f32.mrb[0].mxu0
    %10337 = vdwg.mxu0
    %10338 = vmatprep.subr.mxu0 0.0
    %v10339 = vand.u32 %v90, 4294901760
    %v10340 = vsub.f32 %v90, %v10339
    %10341 = vmatpush1.msra.mxu0 %v10340
    %10342 = vmatprep.subr.mxu0 0.0
    %v10343 = vand.u32 %v91, 4294901760
    %v10344 = vsub.f32 %v91, %v10343
    %10345 = vmatpush1.msra.mxu0 %v10344
    %10346 = vmatprep.subr.mxu0 0.0
    %v10347 = vand.u32 %v92, 4294901760
    %v10348 = vsub.f32 %v92, %v10347
    %10349 = vmatpush1.msra.mxu0 %v10348
    %10350 = vmatprep.subr.mxu0 0.0
    %v10351 = vand.u32 %v93, 4294901760
    %v10352 = vsub.f32 %v93, %v10351
    %10353 = vmatpush1.msra.mxu0 %v10352
    %10354 = vmatprep.subr.mxu0 0.0
    %10355 = vmatpush1.msra.mxu0 0.0
    %10356 = vmatprep.subr.mxu0 0.0
    %10357 = vmatpush1.msra.mxu0 0.0
    %10358 = vmatprep.subr.mxu0 0.0
    %10359 = vmatpush1.msra.mxu0 0.0
    %10360 = vmatprep.subr.mxu0 0.0
    %10361 = vmatpush1.msra.mxu0 0.0
    %10362 = vmatprep.subr.mxu0 0.0
    %10363 = vmatpush1.msra.mxu0 0.0
    %10364 = vmatprep.subr.mxu0 0.0
    %10365 = vmatpush1.msra.mxu0 0.0
    %10366 = vmatprep.subr.mxu0 0.0
    %10367 = vmatpush1.msra.mxu0 0.0
    %10368 = vmatprep.subr.mxu0 0.0
    %10369 = vmatpush1.msra.mxu0 0.0
    %10370 = vmatprep.subr.mxu0 0.0
    %10371 = vmatpush1.msra.mxu0 0.0
    %10372 = vmatprep.subr.mxu0 0.0
    %10373 = vmatpush1.msra.mxu0 0.0
    %10374 = vmatprep.subr.mxu0 0.0
    %10375 = vmatpush1.msra.mxu0 0.0
    %10376 = vmatprep.subr.mxu0 0.0
    %10377 = vmatpush1.msra.mxu0 0.0
    %10378 = vmatprep.subr.mxu0 0.0
    %10379 = vmatpush1.msra.mxu0 0.0
    %10380 = vmatprep.subr.mxu0 0.0
    %10381 = vmatpush1.msra.mxu0 0.0
    %10382 = vmatprep.subr.mxu0 0.0
    %10383 = vmatpush1.msra.mxu0 0.0
    %10384 = vmatprep.subr.mxu0 0.0
    %10385 = vmatpush1.msra.mxu0 0.0
    %10386 = vmatprep.subr.mxu0 0.0
    %10387 = vmatpush1.msra.mxu0 0.0
    %10388 = vmatprep.subr.mxu0 0.0
    %10389 = vmatpush1.msra.mxu0 0.0
    %10390 = vmatprep.subr.mxu0 0.0
    %10391 = vmatpush1.msra.mxu0 0.0
    %10392 = vmatprep.subr.mxu0 0.0
    %10393 = vmatpush1.msra.mxu0 0.0
    %10394 = vmatprep.subr.mxu0 0.0
    %10395 = vmatpush1.msra.mxu0 0.0
    %10396 = vmatprep.subr.mxu0 0.0
    %10397 = vmatpush1.msra.mxu0 0.0
    %10398 = vmatprep.subr.mxu0 0.0
    %10399 = vmatpush1.msra.mxu0 0.0
    %10400 = vmatprep.subr.mxu0 0.0
    %10401 = vmatpush1.msra.mxu0 0.0
    %10402 = vmatprep.subr.mxu0 0.0
    %10403 = vmatpush1.msra.mxu0 0.0
    %10404 = vmatprep.subr.mxu0 0.0
    %10405 = vmatpush1.msra.mxu0 0.0
    %10406 = vmatprep.subr.mxu0 0.0
    %10407 = vmatpush1.msra.mxu0 0.0
    %10408 = vmatprep.subr.mxu0 0.0
    %10409 = vmatpush1.msra.mxu0 0.0
    %10410 = vmatprep.mubr.f32.mxu0 0.0
    %v10411 = vand.u32 %v10166, 4294901760
    %v10412 = vsub.f32 %v10166, %v10411
    %10413 = vmatmul.mubr.f32.gmra.mrb[0].mxu0 %v10412
    %v10414 = vpop.f32.mrb[0].mxu0
    %v10415 = vadd.f32 %v10335, %v10414
    %v10416 = vpop.f32.mrb[0].mxu0
    %10417 = vdwg.mxu0
    %10418 = vmatprep.subr.mxu0 0.0
    %v10419 = vand.u32 %v90, 4294901760
    %10420 = vmatpush1.msra.mxu0 %v10419
    %10421 = vmatprep.subr.mxu0 0.0
    %v10422 = vand.u32 %v91, 4294901760
    %10423 = vmatpush1.msra.mxu0 %v10422
    %10424 = vmatprep.subr.mxu0 0.0
    %v10425 = vand.u32 %v92, 4294901760
    %10426 = vmatpush1.msra.mxu0 %v10425
    %10427 = vmatprep.subr.mxu0 0.0
    %v10428 = vand.u32 %v93, 4294901760
    %10429 = vmatpush1.msra.mxu0 %v10428
    %10430 = vmatprep.subr.mxu0 0.0
    %10431 = vmatpush1.msra.mxu0 0.0
    %10432 = vmatprep.subr.mxu0 0.0
    %10433 = vmatpush1.msra.mxu0 0.0
    %10434 = vmatprep.subr.mxu0 0.0
    %10435 = vmatpush1.msra.mxu0 0.0
    %10436 = vmatprep.subr.mxu0 0.0
    %10437 = vmatpush1.msra.mxu0 0.0
    %10438 = vmatprep.subr.mxu0 0.0
    %10439 = vmatpush1.msra.mxu0 0.0
    %10440 = vmatprep.subr.mxu0 0.0
    %10441 = vmatpush1.msra.mxu0 0.0
    %10442 = vmatprep.subr.mxu0 0.0
    %10443 = vmatpush1.msra.mxu0 0.0
    %10444 = vmatprep.subr.mxu0 0.0
    %10445 = vmatpush1.msra.mxu0 0.0
    %10446 = vmatprep.subr.mxu0 0.0
    %10447 = vmatpush1.msra.mxu0 0.0
    %10448 = vmatprep.subr.mxu0 0.0
    %10449 = vmatpush1.msra.mxu0 0.0
    %10450 = vmatprep.subr.mxu0 0.0
    %10451 = vmatpush1.msra.mxu0 0.0
    %10452 = vmatprep.subr.mxu0 0.0
    %10453 = vmatpush1.msra.mxu0 0.0
    %10454 = vmatprep.subr.mxu0 0.0
    %10455 = vmatpush1.msra.mxu0 0.0
    %10456 = vmatprep.subr.mxu0 0.0
    %10457 = vmatpush1.msra.mxu0 0.0
    %10458 = vmatprep.subr.mxu0 0.0
    %10459 = vmatpush1.msra.mxu0 0.0
    %10460 = vmatprep.subr.mxu0 0.0
    %10461 = vmatpush1.msra.mxu0 0.0
    %10462 = vmatprep.subr.mxu0 0.0
    %10463 = vmatpush1.msra.mxu0 0.0
    %10464 = vmatprep.subr.mxu0 0.0
    %10465 = vmatpush1.msra.mxu0 0.0
    %10466 = vmatprep.subr.mxu0 0.0
    %10467 = vmatpush1.msra.mxu0 0.0
    %10468 = vmatprep.subr.mxu0 0.0
    %10469 = vmatpush1.msra.mxu0 0.0
    %10470 = vmatprep.subr.mxu0 0.0
    %10471 = vmatpush1.msra.mxu0 0.0
    %10472 = vmatprep.subr.mxu0 0.0
    %10473 = vmatpush1.msra.mxu0 0.0
    %10474 = vmatprep.subr.mxu0 0.0
    %10475 = vmatpush1.msra.mxu0 0.0
    %10476 = vmatprep.subr.mxu0 0.0
    %10477 = vmatpush1.msra.mxu0 0.0
    %10478 = vmatprep.subr.mxu0 0.0
    %10479 = vmatpush1.msra.mxu0 0.0
    %10480 = vmatprep.subr.mxu0 0.0
    %10481 = vmatpush1.msra.mxu0 0.0
    %10482 = vmatprep.subr.mxu0 0.0
    %10483 = vmatpush1.msra.mxu0 0.0
    %10484 = vmatprep.subr.mxu0 0.0
    %10485 = vmatpush1.msra.mxu0 0.0
    %10486 = vmatprep.mubr.f32.mxu0 0.0
    %v10487 = vand.u32 %v10166, 4294901760
    %v10488 = vsub.f32 %v10166, %v10487
    %v10489 = vand.u32 %v10488, 4294901760
    %10490 = vmatmul.mubr.f32.gmra.mrb[0].mxu0 %v10489
    %v10491 = vpop.f32.mrb[0].mxu0
    %v10492 = vadd.f32 %v10415, %v10491
    %v10493 = vpop.f32.mrb[0].mxu0
    %10494 = vdwg.mxu0
    %10495 = vmatprep.subr.mxu0 0.0
    %v10496 = vand.u32 %v90, 4294901760
    %v10497 = vsub.f32 %v90, %v10496
    %v10498 = vand.u32 %v10497, 4294901760
    %10499 = vmatpush1.msra.mxu0 %v10498
    %10500 = vmatprep.subr.mxu0 0.0
    %v10501 = vand.u32 %v91, 4294901760
    %v10502 = vsub.f32 %v91, %v10501
    %v10503 = vand.u32 %v10502, 4294901760
    %10504 = vmatpush1.msra.mxu0 %v10503
    %10505 = vmatprep.subr.mxu0 0.0
    %v10506 = vand.u32 %v92, 4294901760
    %v10507 = vsub.f32 %v92, %v10506
    %v10508 = vand.u32 %v10507, 4294901760
    %10509 = vmatpush1.msra.mxu0 %v10508
    %10510 = vmatprep.subr.mxu0 0.0
    %v10511 = vand.u32 %v93, 4294901760
    %v10512 = vsub.f32 %v93, %v10511
    %v10513 = vand.u32 %v10512, 4294901760
    %10514 = vmatpush1.msra.mxu0 %v10513
    %10515 = vmatprep.subr.mxu0 0.0
    %10516 = vmatpush1.msra.mxu0 0.0
    %10517 = vmatprep.subr.mxu0 0.0
    %10518 = vmatpush1.msra.mxu0 0.0
    %10519 = vmatprep.subr.mxu0 0.0
    %10520 = vmatpush1.msra.mxu0 0.0
    %10521 = vmatprep.subr.mxu0 0.0
    %10522 = vmatpush1.msra.mxu0 0.0
    %10523 = vmatprep.subr.mxu0 0.0
    %10524 = vmatpush1.msra.mxu0 0.0
    %10525 = vmatprep.subr.mxu0 0.0
    %10526 = vmatpush1.msra.mxu0 0.0
    %10527 = vmatprep.subr.mxu0 0.0
    %10528 = vmatpush1.msra.mxu0 0.0
    %10529 = vmatprep.subr.mxu0 0.0
    %10530 = vmatpush1.msra.mxu0 0.0
    %10531 = vmatprep.subr.mxu0 0.0
    %10532 = vmatpush1.msra.mxu0 0.0
    %10533 = vmatprep.subr.mxu0 0.0
    %10534 = vmatpush1.msra.mxu0 0.0
    %10535 = vmatprep.subr.mxu0 0.0
    %10536 = vmatpush1.msra.mxu0 0.0
    %10537 = vmatprep.subr.mxu0 0.0
    %10538 = vmatpush1.msra.mxu0 0.0
    %10539 = vmatprep.subr.mxu0 0.0
    %10540 = vmatpush1.msra.mxu0 0.0
    %10541 = vmatprep.subr.mxu0 0.0
    %10542 = vmatpush1.msra.mxu0 0.0
    %10543 = vmatprep.subr.mxu0 0.0
    %10544 = vmatpush1.msra.mxu0 0.0
    %10545 = vmatprep.subr.mxu0 0.0
    %10546 = vmatpush1.msra.mxu0 0.0
    %10547 = vmatprep.subr.mxu0 0.0
    %10548 = vmatpush1.msra.mxu0 0.0
    %10549 = vmatprep.subr.mxu0 0.0
    %10550 = vmatpush1.msra.mxu0 0.0
    %10551 = vmatprep.subr.mxu0 0.0
    %10552 = vmatpush1.msra.mxu0 0.0
    %10553 = vmatprep.subr.mxu0 0.0
    %10554 = vmatpush1.msra.mxu0 0.0
    %10555 = vmatprep.subr.mxu0 0.0
    %10556 = vmatpush1.msra.mxu0 0.0
    %10557 = vmatprep.subr.mxu0 0.0
    %10558 = vmatpush1.msra.mxu0 0.0
    %10559 = vmatprep.subr.mxu0 0.0
    %10560 = vmatpush1.msra.mxu0 0.0
    %10561 = vmatprep.subr.mxu0 0.0
    %10562 = vmatpush1.msra.mxu0 0.0
    %10563 = vmatprep.subr.mxu0 0.0
    %10564 = vmatpush1.msra.mxu0 0.0
    %10565 = vmatprep.subr.mxu0 0.0
    %10566 = vmatpush1.msra.mxu0 0.0
    %10567 = vmatprep.subr.mxu0 0.0
    %10568 = vmatpush1.msra.mxu0 0.0
    %10569 = vmatprep.subr.mxu0 0.0
    %10570 = vmatpush1.msra.mxu0 0.0
    %10571 = vmatprep.mubr.f32.mxu0 0.0
    %v10572 = vand.u32 %v10166, 4294901760
    %10573 = vmatmul.mubr.f32.gmra.mrb[0].mxu0 %v10572
    %v10574 = vpop.f32.mrb[0].mxu0
    %v10575 = vadd.f32 %v10492, %v10574
    %v10576 = vpop.f32.mrb[0].mxu0
    %10577 = vdwg.mxu0
    %10578 = vmatprep.subr.mxu0 0.0
    %v10579 = vand.u32 %v90, 4294901760
    %10580 = vmatpush1.msra.mxu0 %v10579
    %10581 = vmatprep.subr.mxu0 0.0
    %v10582 = vand.u32 %v91, 4294901760
    %10583 = vmatpush1.msra.mxu0 %v10582
    %10584 = vmatprep.subr.mxu0 0.0
    %v10585 = vand.u32 %v92, 4294901760
    %10586 = vmatpush1.msra.mxu0 %v10585
    %10587 = vmatprep.subr.mxu0 0.0
    %v10588 = vand.u32 %v93, 4294901760
    %10589 = vmatpush1.msra.mxu0 %v10588
    %10590 = vmatprep.subr.mxu0 0.0
    %10591 = vmatpush1.msra.mxu0 0.0
    %10592 = vmatprep.subr.mxu0 0.0
    %10593 = vmatpush1.msra.mxu0 0.0
    %10594 = vmatprep.subr.mxu0 0.0
    %10595 = vmatpush1.msra.mxu0 0.0
    %10596 = vmatprep.subr.mxu0 0.0
    %10597 = vmatpush1.msra.mxu0 0.0
    %10598 = vmatprep.subr.mxu0 0.0
    %10599 = vmatpush1.msra.mxu0 0.0
    %10600 = vmatprep.subr.mxu0 0.0
    %10601 = vmatpush1.msra.mxu0 0.0
    %10602 = vmatprep.subr.mxu0 0.0
    %10603 = vmatpush1.msra.mxu0 0.0
    %10604 = vmatprep.subr.mxu0 0.0
    %10605 = vmatpush1.msra.mxu0 0.0
    %10606 = vmatprep.subr.mxu0 0.0
    %10607 = vmatpush1.msra.mxu0 0.0
    %10608 = vmatprep.subr.mxu0 0.0
    %10609 = vmatpush1.msra.mxu0 0.0
    %10610 = vmatprep.subr.mxu0 0.0
    %10611 = vmatpush1.msra.mxu0 0.0
    %10612 = vmatprep.subr.mxu0 0.0
    %10613 = vmatpush1.msra.mxu0 0.0
    %10614 = vmatprep.subr.mxu0 0.0
    %10615 = vmatpush1.msra.mxu0 0.0
    %10616 = vmatprep.subr.mxu0 0.0
    %10617 = vmatpush1.msra.mxu0 0.0
    %10618 = vmatprep.subr.mxu0 0.0
    %10619 = vmatpush1.msra.mxu0 0.0
    %10620 = vmatprep.subr.mxu0 0.0
    %10621 = vmatpush1.msra.mxu0 0.0
    %10622 = vmatprep.subr.mxu0 0.0
    %10623 = vmatpush1.msra.mxu0 0.0
    %10624 = vmatprep.subr.mxu0 0.0
    %10625 = vmatpush1.msra.mxu0 0.0
    %10626 = vmatprep.subr.mxu0 0.0
    %10627 = vmatpush1.msra.mxu0 0.0
    %10628 = vmatprep.subr.mxu0 0.0
    %10629 = vmatpush1.msra.mxu0 0.0
    %10630 = vmatprep.subr.mxu0 0.0
    %10631 = vmatpush1.msra.mxu0 0.0
    %10632 = vmatprep.subr.mxu0 0.0
    %10633 = vmatpush1.msra.mxu0 0.0
    %10634 = vmatprep.subr.mxu0 0.0
    %10635 = vmatpush1.msra.mxu0 0.0
    %10636 = vmatprep.subr.mxu0 0.0
    %10637 = vmatpush1.msra.mxu0 0.0
    %10638 = vmatprep.subr.mxu0 0.0
    %10639 = vmatpush1.msra.mxu0 0.0
    %10640 = vmatprep.subr.mxu0 0.0
    %10641 = vmatpush1.msra.mxu0 0.0
    %10642 = vmatprep.subr.mxu0 0.0
    %10643 = vmatpush1.msra.mxu0 0.0
    %10644 = vmatprep.subr.mxu0 0.0
    %10645 = vmatpush1.msra.mxu0 0.0
    %10646 = vmatprep.mubr.f32.mxu0 0.0
    %v10647 = vand.u32 %v10166, 4294901760
    %10648 = vmatmul.mubr.f32.gmra.mrb[0].mxu0 %v10647
    %v10649 = vpop.f32.mrb[0].mxu0
    %v10650 = vadd.f32 %v10575, %v10649
    %v10651 = vpop.f32.mrb[0].mxu0
    %10652 = vdwg.mxu0
    %10654 = vrot.lane.b32.xlu0 %v9658, 16
    %v10655 = vpop.permute.xlu0 %10654
    %v10657 = vadd.f32 %v10650, %v10655
    %v10658 = vadd.f32 %v10657, %v1568
    %v10659 = vxor.u32 %v10658, 2147483648
    %v10660 = vmul.f32 %v10659, 1.442695
    %v10661 = vpow.pop %v10660
    %v10662 = vadd.f32 %v10661, 1.0
    %v10663 = vrcp.pop %v10662
    %v10664 = vmul.f32 1.0, %v10663
    %v10665 = vsub.f32 1.0, %v10664
    %v10666 = vmul.f32 %v10665, %v9158
    %10668 = vrot.lane.b32.xlu0 %v10650, 16
    %v10669 = vpop.permute.xlu0 %10668
    %v10671 = vmul.f32 %v10664, %v10669
    %v10672 = vadd.f32 %v10666, %v10671
    %v10675 = vunpack.c.l.s4 1966171168
    %v10676 = vunpack.c.0.s8 %v10675
    %v10677 = vlaneseq
    %v10678 = vshrl.u32 %v10677, 7
    %v10679 = vsub.s32 %v10676, %v10678
    %v10680 = vrot.slane %v10672, %v10679
    %v10681 = vcombine.high %v10680, %v10680
    %v10683 = vunpack.c.l.s4 1966171168
    %v10684 = vunpack.c.0.s8 %v10683
    %v10685 = vlaneseq
    %v10686 = vshrl.u32 %v10685, 7
    %v10687 = vsub.s32 %v10684, %v10686
    %v10688 = vrot.slane %v10680, %v10687
    %v10690 = vunpack.c.l.s4 1966171168
    %v10691 = vunpack.c.0.s8 %v10690
    %v10692 = vlaneseq
    %v10693 = vshrl.u32 %v10692, 7
    %v10694 = vsub.s32 %v10691, %v10693
    %v10695 = vrot.slane %v10681, %v10694
    %v10696 = vlaneseq
    %v10697 = vshrl.u32 %v10696, 7
    %v10698 = vsub.s32 0, %v10697
    %v10699 = vrot.slane %v10688, %v10698
    %v10700 = vlaneseq
    %v10701 = vshrl.u32 %v10700, 7
    %v10702 = vsub.s32 0, %v10701
    %v10703 = vrot.slane %v10695, %v10702
    %10704 = vrot.lane.b32.xlu0 %v10699, 112
    %v10705 = vpop.permute.xlu0 %10704
    %10706 = vrot.lane.b32.xlu0 %v10703, 112
    %v10707 = vpop.permute.xlu0 %10706
    %10710 = vst.msk [vmem:[#allocation12 + $0x6] sm:$0x1] %vm1625, %v10705
    %10711 = vst.msk [vmem:[#allocation12 + $0xe] sm:$0x1] %vm1625, %v10707
    %10712 = vrot.lane.b32.xlu0 %v10672, 112
    %v10713 = vpop.permute.xlu0 %10712
    %v10714 = vsel %vm102, %v10713, 0
    %10716 = vmatprep.subr.mxu0 0.0
    %v10717 = vand.u32 %v94, 4294901760
    %10718 = vmatpush1.msra.mxu0 %v10717
    %10719 = vmatprep.subr.mxu0 0.0
    %v10720 = vand.u32 %v95, 4294901760
    %10721 = vmatpush1.msra.mxu0 %v10720
    %10722 = vmatprep.subr.mxu0 0.0
    %10723 = vmatpush1.msra.mxu0 0.0
    %10724 = vmatprep.subr.mxu0 0.0
    %10725 = vmatpush1.msra.mxu0 0.0
    %10726 = vmatprep.subr.mxu0 0.0
    %10727 = vmatpush1.msra.mxu0 0.0
    %10728 = vmatprep.subr.mxu0 0.0
    %10729 = vmatpush1.msra.mxu0 0.0
    %10730 = vmatprep.subr.mxu0 0.0
    %10731 = vmatpush1.msra.mxu0 0.0
    %10732 = vmatprep.subr.mxu0 0.0
    %10733 = vmatpush1.msra.mxu0 0.0
    %10734 = vmatprep.subr.mxu0 0.0
    %10735 = vmatpush1.msra.mxu0 0.0
    %10736 = vmatprep.subr.mxu0 0.0
    %10737 = vmatpush1.msra.mxu0 0.0
    %10738 = vmatprep.subr.mxu0 0.0
    %10739 = vmatpush1.msra.mxu0 0.0
    %10740 = vmatprep.subr.mxu0 0.0
    %10741 = vmatpush1.msra.mxu0 0.0
    %10742 = vmatprep.subr.mxu0 0.0
    %10743 = vmatpush1.msra.mxu0 0.0
    %10744 = vmatprep.subr.mxu0 0.0
    %10745 = vmatpush1.msra.mxu0 0.0
    %10746 = vmatprep.subr.mxu0 0.0
    %10747 = vmatpush1.msra.mxu0 0.0
    %10748 = vmatprep.subr.mxu0 0.0
    %10749 = vmatpush1.msra.mxu0 0.0
    %10750 = vmatprep.subr.mxu0 0.0
    %10751 = vmatpush1.msra.mxu0 0.0
    %10752 = vmatprep.subr.mxu0 0.0
    %10753 = vmatpush1.msra.mxu0 0.0
    %10754 = vmatprep.subr.mxu0 0.0
    %10755 = vmatpush1.msra.mxu0 0.0
    %10756 = vmatprep.subr.mxu0 0.0
    %10757 = vmatpush1.msra.mxu0 0.0
    %10758 = vmatprep.subr.mxu0 0.0
    %10759 = vmatpush1.msra.mxu0 0.0
    %10760 = vmatprep.subr.mxu0 0.0
    %10761 = vmatpush1.msra.mxu0 0.0
    %10762 = vmatprep.subr.mxu0 0.0
    %10763 = vmatpush1.msra.mxu0 0.0
    %10764 = vmatprep.subr.mxu0 0.0
    %10765 = vmatpush1.msra.mxu0 0.0
    %10766 = vmatprep.subr.mxu0 0.0
    %10767 = vmatpush1.msra.mxu0 0.0
    %10768 = vmatprep.subr.mxu0 0.0
    %10769 = vmatpush1.msra.mxu0 0.0
    %10770 = vmatprep.subr.mxu0 0.0
    %10771 = vmatpush1.msra.mxu0 0.0
    %10772 = vmatprep.subr.mxu0 0.0
    %10773 = vmatpush1.msra.mxu0 0.0
    %10774 = vmatprep.subr.mxu0 0.0
    %10775 = vmatpush1.msra.mxu0 0.0
    %10776 = vmatprep.subr.mxu0 0.0
    %10777 = vmatpush1.msra.mxu0 0.0
    %10778 = vmatprep.subr.mxu0 0.0
    %10779 = vmatpush1.msra.mxu0 0.0
    %10780 = vmatprep.subr.mxu0 0.0
    %10781 = vmatpush1.msra.mxu0 0.0
    %10782 = vmatprep.mubr.f32.mxu0 0.0
    %v10783 = vand.u32 %v10714, 4294901760
    %v10784 = vsub.f32 %v10714, %v10783
    %v10785 = vand.u32 %v10784, 4294901760
    %v10786 = vsub.f32 %v10784, %v10785
    %v10787 = vand.u32 %v10786, 4294901760
    %10788 = vmatmul.mubr.f32.gmra.mrb[0].mxu0 %v10787
    %v10789 = vpop.f32.mrb[0].mxu0
    %v10790 = vadd.f32 0.0, %v10789
    %v10791 = vpop.f32.mrb[0].mxu0
    %10792 = vdwg.mxu0
    %10793 = vmatprep.subr.mxu0 0.0
    %v10794 = vand.u32 %v94, 4294901760
    %v10795 = vsub.f32 %v94, %v10794
    %v10796 = vand.u32 %v10795, 4294901760
    %v10797 = vsub.f32 %v10795, %v10796
    %v10798 = vand.u32 %v10797, 4294901760
    %10799 = vmatpush1.msra.mxu0 %v10798
    %10800 = vmatprep.subr.mxu0 0.0
    %v10801 = vand.u32 %v95, 4294901760
    %v10802 = vsub.f32 %v95, %v10801
    %v10803 = vand.u32 %v10802, 4294901760
    %v10804 = vsub.f32 %v10802, %v10803
    %v10805 = vand.u32 %v10804, 4294901760
    %10806 = vmatpush1.msra.mxu0 %v10805
    %10807 = vmatprep.subr.mxu0 0.0
    %10808 = vmatpush1.msra.mxu0 0.0
    %10809 = vmatprep.subr.mxu0 0.0
    %10810 = vmatpush1.msra.mxu0 0.0
    %10811 = vmatprep.subr.mxu0 0.0
    %10812 = vmatpush1.msra.mxu0 0.0
    %10813 = vmatprep.subr.mxu0 0.0
    %10814 = vmatpush1.msra.mxu0 0.0
    %10815 = vmatprep.subr.mxu0 0.0
    %10816 = vmatpush1.msra.mxu0 0.0
    %10817 = vmatprep.subr.mxu0 0.0
    %10818 = vmatpush1.msra.mxu0 0.0
    %10819 = vmatprep.subr.mxu0 0.0
    %10820 = vmatpush1.msra.mxu0 0.0
    %10821 = vmatprep.subr.mxu0 0.0
    %10822 = vmatpush1.msra.mxu0 0.0
    %10823 = vmatprep.subr.mxu0 0.0
    %10824 = vmatpush1.msra.mxu0 0.0
    %10825 = vmatprep.subr.mxu0 0.0
    %10826 = vmatpush1.msra.mxu0 0.0
    %10827 = vmatprep.subr.mxu0 0.0
    %10828 = vmatpush1.msra.mxu0 0.0
    %10829 = vmatprep.subr.mxu0 0.0
    %10830 = vmatpush1.msra.mxu0 0.0
    %10831 = vmatprep.subr.mxu0 0.0
    %10832 = vmatpush1.msra.mxu0 0.0
    %10833 = vmatprep.subr.mxu0 0.0
    %10834 = vmatpush1.msra.mxu0 0.0
    %10835 = vmatprep.subr.mxu0 0.0
    %10836 = vmatpush1.msra.mxu0 0.0
    %10837 = vmatprep.subr.mxu0 0.0
    %10838 = vmatpush1.msra.mxu0 0.0
    %10839 = vmatprep.subr.mxu0 0.0
    %10840 = vmatpush1.msra.mxu0 0.0
    %10841 = vmatprep.subr.mxu0 0.0
    %10842 = vmatpush1.msra.mxu0 0.0
    %10843 = vmatprep.subr.mxu0 0.0
    %10844 = vmatpush1.msra.mxu0 0.0
    %10845 = vmatprep.subr.mxu0 0.0
    %10846 = vmatpush1.msra.mxu0 0.0
    %10847 = vmatprep.subr.mxu0 0.0
    %10848 = vmatpush1.msra.mxu0 0.0
    %10849 = vmatprep.subr.mxu0 0.0
    %10850 = vmatpush1.msra.mxu0 0.0
    %10851 = vmatprep.subr.mxu0 0.0
    %10852 = vmatpush1.msra.mxu0 0.0
    %10853 = vmatprep.subr.mxu0 0.0
    %10854 = vmatpush1.msra.mxu0 0.0
    %10855 = vmatprep.subr.mxu0 0.0
    %10856 = vmatpush1.msra.mxu0 0.0
    %10857 = vmatprep.subr.mxu0 0.0
    %10858 = vmatpush1.msra.mxu0 0.0
    %10859 = vmatprep.subr.mxu0 0.0
    %10860 = vmatpush1.msra.mxu0 0.0
    %10861 = vmatprep.subr.mxu0 0.0
    %10862 = vmatpush1.msra.mxu0 0.0
    %10863 = vmatprep.subr.mxu0 0.0
    %10864 = vmatpush1.msra.mxu0 0.0
    %10865 = vmatprep.subr.mxu0 0.0
    %10866 = vmatpush1.msra.mxu0 0.0
    %10867 = vmatprep.mubr.f32.mxu0 0.0
    %v10868 = vand.u32 %v10714, 4294901760
    %10869 = vmatmul.mubr.f32.gmra.mrb[0].mxu0 %v10868
    %v10870 = vpop.f32.mrb[0].mxu0
    %v10871 = vadd.f32 %v10790, %v10870
    %v10872 = vpop.f32.mrb[0].mxu0
    %10873 = vdwg.mxu0
    %10874 = vmatprep.subr.mxu0 0.0
    %v10875 = vand.u32 %v94, 4294901760
    %v10876 = vsub.f32 %v94, %v10875
    %10877 = vmatpush1.msra.mxu0 %v10876
    %10878 = vmatprep.subr.mxu0 0.0
    %v10879 = vand.u32 %v95, 4294901760
    %v10880 = vsub.f32 %v95, %v10879
    %10881 = vmatpush1.msra.mxu0 %v10880
    %10882 = vmatprep.subr.mxu0 0.0
    %10883 = vmatpush1.msra.mxu0 0.0
    %10884 = vmatprep.subr.mxu0 0.0
    %10885 = vmatpush1.msra.mxu0 0.0
    %10886 = vmatprep.subr.mxu0 0.0
    %10887 = vmatpush1.msra.mxu0 0.0
    %10888 = vmatprep.subr.mxu0 0.0
    %10889 = vmatpush1.msra.mxu0 0.0
    %10890 = vmatprep.subr.mxu0 0.0
    %10891 = vmatpush1.msra.mxu0 0.0
    %10892 = vmatprep.subr.mxu0 0.0
    %10893 = vmatpush1.msra.mxu0 0.0
    %10894 = vmatprep.subr.mxu0 0.0
    %10895 = vmatpush1.msra.mxu0 0.0
    %10896 = vmatprep.subr.mxu0 0.0
    %10897 = vmatpush1.msra.mxu0 0.0
    %10898 = vmatprep.subr.mxu0 0.0
    %10899 = vmatpush1.msra.mxu0 0.0
    %10900 = vmatprep.subr.mxu0 0.0
    %10901 = vmatpush1.msra.mxu0 0.0
    %10902 = vmatprep.subr.mxu0 0.0
    %10903 = vmatpush1.msra.mxu0 0.0
    %10904 = vmatprep.subr.mxu0 0.0
    %10905 = vmatpush1.msra.mxu0 0.0
    %10906 = vmatprep.subr.mxu0 0.0
    %10907 = vmatpush1.msra.mxu0 0.0
    %10908 = vmatprep.subr.mxu0 0.0
    %10909 = vmatpush1.msra.mxu0 0.0
    %10910 = vmatprep.subr.mxu0 0.0
    %10911 = vmatpush1.msra.mxu0 0.0
    %10912 = vmatprep.subr.mxu0 0.0
    %10913 = vmatpush1.msra.mxu0 0.0
    %10914 = vmatprep.subr.mxu0 0.0
    %10915 = vmatpush1.msra.mxu0 0.0
    %10916 = vmatprep.subr.mxu0 0.0
    %10917 = vmatpush1.msra.mxu0 0.0
    %10918 = vmatprep.subr.mxu0 0.0
    %10919 = vmatpush1.msra.mxu0 0.0
    %10920 = vmatprep.subr.mxu0 0.0
    %10921 = vmatpush1.msra.mxu0 0.0
    %10922 = vmatprep.subr.mxu0 0.0
    %10923 = vmatpush1.msra.mxu0 0.0
    %10924 = vmatprep.subr.mxu0 0.0
    %10925 = vmatpush1.msra.mxu0 0.0
    %10926 = vmatprep.subr.mxu0 0.0
    %10927 = vmatpush1.msra.mxu0 0.0
    %10928 = vmatprep.subr.mxu0 0.0
    %10929 = vmatpush1.msra.mxu0 0.0
    %10930 = vmatprep.subr.mxu0 0.0
    %10931 = vmatpush1.msra.mxu0 0.0
    %10932 = vmatprep.subr.mxu0 0.0
    %10933 = vmatpush1.msra.mxu0 0.0
    %10934 = vmatprep.subr.mxu0 0.0
    %10935 = vmatpush1.msra.mxu0 0.0
    %10936 = vmatprep.subr.mxu0 0.0
    %10937 = vmatpush1.msra.mxu0 0.0
    %10938 = vmatprep.subr.mxu0 0.0
    %10939 = vmatpush1.msra.mxu0 0.0
    %10940 = vmatprep.subr.mxu0 0.0
    %10941 = vmatpush1.msra.mxu0 0.0
    %10942 = vmatprep.mubr.f32.mxu0 0.0
    %v10943 = vand.u32 %v10714, 4294901760
    %v10944 = vsub.f32 %v10714, %v10943
    %10945 = vmatmul.mubr.f32.gmra.mrb[0].mxu0 %v10944
    %v10946 = vpop.f32.mrb[0].mxu0
    %v10947 = vadd.f32 %v10871, %v10946
    %v10948 = vpop.f32.mrb[0].mxu0
    %10949 = vdwg.mxu0
    %10950 = vmatprep.subr.mxu0 0.0
    %v10951 = vand.u32 %v94, 4294901760
    %10952 = vmatpush1.msra.mxu0 %v10951
    %10953 = vmatprep.subr.mxu0 0.0
    %v10954 = vand.u32 %v95, 4294901760
    %10955 = vmatpush1.msra.mxu0 %v10954
    %10956 = vmatprep.subr.mxu0 0.0
    %10957 = vmatpush1.msra.mxu0 0.0
    %10958 = vmatprep.subr.mxu0 0.0
    %10959 = vmatpush1.msra.mxu0 0.0
    %10960 = vmatprep.subr.mxu0 0.0
    %10961 = vmatpush1.msra.mxu0 0.0
    %10962 = vmatprep.subr.mxu0 0.0
    %10963 = vmatpush1.msra.mxu0 0.0
    %10964 = vmatprep.subr.mxu0 0.0
    %10965 = vmatpush1.msra.mxu0 0.0
    %10966 = vmatprep.subr.mxu0 0.0
    %10967 = vmatpush1.msra.mxu0 0.0
    %10968 = vmatprep.subr.mxu0 0.0
    %10969 = vmatpush1.msra.mxu0 0.0
    %10970 = vmatprep.subr.mxu0 0.0
    %10971 = vmatpush1.msra.mxu0 0.0
    %10972 = vmatprep.subr.mxu0 0.0
    %10973 = vmatpush1.msra.mxu0 0.0
    %10974 = vmatprep.subr.mxu0 0.0
    %10975 = vmatpush1.msra.mxu0 0.0
    %10976 = vmatprep.subr.mxu0 0.0
    %10977 = vmatpush1.msra.mxu0 0.0
    %10978 = vmatprep.subr.mxu0 0.0
    %10979 = vmatpush1.msra.mxu0 0.0
    %10980 = vmatprep.subr.mxu0 0.0
    %10981 = vmatpush1.msra.mxu0 0.0
    %10982 = vmatprep.subr.mxu0 0.0
    %10983 = vmatpush1.msra.mxu0 0.0
    %10984 = vmatprep.subr.mxu0 0.0
    %10985 = vmatpush1.msra.mxu0 0.0
    %10986 = vmatprep.subr.mxu0 0.0
    %10987 = vmatpush1.msra.mxu0 0.0
    %10988 = vmatprep.subr.mxu0 0.0
    %10989 = vmatpush1.msra.mxu0 0.0
    %10990 = vmatprep.subr.mxu0 0.0
    %10991 = vmatpush1.msra.mxu0 0.0
    %10992 = vmatprep.subr.mxu0 0.0
    %10993 = vmatpush1.msra.mxu0 0.0
    %10994 = vmatprep.subr.mxu0 0.0
    %10995 = vmatpush1.msra.mxu0 0.0
    %10996 = vmatprep.subr.mxu0 0.0
    %10997 = vmatpush1.msra.mxu0 0.0
    %10998 = vmatprep.subr.mxu0 0.0
    %10999 = vmatpush1.msra.mxu0 0.0
    %11000 = vmatprep.subr.mxu0 0.0
    %11001 = vmatpush1.msra.mxu0 0.0
    %11002 = vmatprep.subr.mxu0 0.0
    %11003 = vmatpush1.msra.mxu0 0.0
    %11004 = vmatprep.subr.mxu0 0.0
    %11005 = vmatpush1.msra.mxu0 0.0
    %11006 = vmatprep.subr.mxu0 0.0
    %11007 = vmatpush1.msra.mxu0 0.0
    %11008 = vmatprep.subr.mxu0 0.0
    %11009 = vmatpush1.msra.mxu0 0.0
    %11010 = vmatprep.subr.mxu0 0.0
    %11011 = vmatpush1.msra.mxu0 0.0
    %11012 = vmatprep.subr.mxu0 0.0
    %11013 = vmatpush1.msra.mxu0 0.0
    %11014 = vmatprep.subr.mxu0 0.0
    %11015 = vmatpush1.msra.mxu0 0.0
    %11016 = vmatprep.mubr.f32.mxu0 0.0
    %v11017 = vand.u32 %v10714, 4294901760
    %v11018 = vsub.f32 %v10714, %v11017
    %v11019 = vand.u32 %v11018, 4294901760
    %11020 = vmatmul.mubr.f32.gmra.mrb[0].mxu0 %v11019
    %v11021 = vpop.f32.mrb[0].mxu0
    %v11022 = vadd.f32 %v10947, %v11021
    %v11023 = vpop.f32.mrb[0].mxu0
    %11024 = vdwg.mxu0
    %11025 = vmatprep.subr.mxu0 0.0
    %v11026 = vand.u32 %v94, 4294901760
    %v11027 = vsub.f32 %v94, %v11026
    %v11028 = vand.u32 %v11027, 4294901760
    %11029 = vmatpush1.msra.mxu0 %v11028
    %11030 = vmatprep.subr.mxu0 0.0
    %v11031 = vand.u32 %v95, 4294901760
    %v11032 = vsub.f32 %v95, %v11031
    %v11033 = vand.u32 %v11032, 4294901760
    %11034 = vmatpush1.msra.mxu0 %v11033
    %11035 = vmatprep.subr.mxu0 0.0
    %11036 = vmatpush1.msra.mxu0 0.0
    %11037 = vmatprep.subr.mxu0 0.0
    %11038 = vmatpush1.msra.mxu0 0.0
    %11039 = vmatprep.subr.mxu0 0.0
    %11040 = vmatpush1.msra.mxu0 0.0
    %11041 = vmatprep.subr.mxu0 0.0
    %11042 = vmatpush1.msra.mxu0 0.0
    %11043 = vmatprep.subr.mxu0 0.0
    %11044 = vmatpush1.msra.mxu0 0.0
    %11045 = vmatprep.subr.mxu0 0.0
    %11046 = vmatpush1.msra.mxu0 0.0
    %11047 = vmatprep.subr.mxu0 0.0
    %11048 = vmatpush1.msra.mxu0 0.0
    %11049 = vmatprep.subr.mxu0 0.0
    %11050 = vmatpush1.msra.mxu0 0.0
    %11051 = vmatprep.subr.mxu0 0.0
    %11052 = vmatpush1.msra.mxu0 0.0
    %11053 = vmatprep.subr.mxu0 0.0
    %11054 = vmatpush1.msra.mxu0 0.0
    %11055 = vmatprep.subr.mxu0 0.0
    %11056 = vmatpush1.msra.mxu0 0.0
    %11057 = vmatprep.subr.mxu0 0.0
    %11058 = vmatpush1.msra.mxu0 0.0
    %11059 = vmatprep.subr.mxu0 0.0
    %11060 = vmatpush1.msra.mxu0 0.0
    %11061 = vmatprep.subr.mxu0 0.0
    %11062 = vmatpush1.msra.mxu0 0.0
    %11063 = vmatprep.subr.mxu0 0.0
    %11064 = vmatpush1.msra.mxu0 0.0
    %11065 = vmatprep.subr.mxu0 0.0
    %11066 = vmatpush1.msra.mxu0 0.0
    %11067 = vmatprep.subr.mxu0 0.0
    %11068 = vmatpush1.msra.mxu0 0.0
    %11069 = vmatprep.subr.mxu0 0.0
    %11070 = vmatpush1.msra.mxu0 0.0
    %11071 = vmatprep.subr.mxu0 0.0
    %11072 = vmatpush1.msra.mxu0 0.0
    %11073 = vmatprep.subr.mxu0 0.0
    %11074 = vmatpush1.msra.mxu0 0.0
    %11075 = vmatprep.subr.mxu0 0.0
    %11076 = vmatpush1.msra.mxu0 0.0
    %11077 = vmatprep.subr.mxu0 0.0
    %11078 = vmatpush1.msra.mxu0 0.0
    %11079 = vmatprep.subr.mxu0 0.0
    %11080 = vmatpush1.msra.mxu0 0.0
    %11081 = vmatprep.subr.mxu0 0.0
    %11082 = vmatpush1.msra.mxu0 0.0
    %11083 = vmatprep.subr.mxu0 0.0
    %11084 = vmatpush1.msra.mxu0 0.0
    %11085 = vmatprep.subr.mxu0 0.0
    %11086 = vmatpush1.msra.mxu0 0.0
    %11087 = vmatprep.subr.mxu0 0.0
    %11088 = vmatpush1.msra.mxu0 0.0
    %11089 = vmatprep.subr.mxu0 0.0
    %11090 = vmatpush1.msra.mxu0 0.0
    %11091 = vmatprep.subr.mxu0 0.0
    %11092 = vmatpush1.msra.mxu0 0.0
    %11093 = vmatprep.subr.mxu0 0.0
    %11094 = vmatpush1.msra.mxu0 0.0
    %11095 = vmatprep.mubr.f32.mxu0 0.0
    %v11096 = vand.u32 %v10714, 4294901760
    %11097 = vmatmul.mubr.f32.gmra.mrb[0].mxu0 %v11096
    %v11098 = vpop.f32.mrb[0].mxu0
    %v11099 = vadd.f32 %v11022, %v11098
    %v11100 = vpop.f32.mrb[0].mxu0
    %11101 = vdwg.mxu0
    %11102 = vmatprep.subr.mxu0 0.0
    %v11103 = vand.u32 %v94, 4294901760
    %11104 = vmatpush1.msra.mxu0 %v11103
    %11105 = vmatprep.subr.mxu0 0.0
    %v11106 = vand.u32 %v95, 4294901760
    %11107 = vmatpush1.msra.mxu0 %v11106
    %11108 = vmatprep.subr.mxu0 0.0
    %11109 = vmatpush1.msra.mxu0 0.0
    %11110 = vmatprep.subr.mxu0 0.0
    %11111 = vmatpush1.msra.mxu0 0.0
    %11112 = vmatprep.subr.mxu0 0.0
    %11113 = vmatpush1.msra.mxu0 0.0
    %11114 = vmatprep.subr.mxu0 0.0
    %11115 = vmatpush1.msra.mxu0 0.0
    %11116 = vmatprep.subr.mxu0 0.0
    %11117 = vmatpush1.msra.mxu0 0.0
    %11118 = vmatprep.subr.mxu0 0.0
    %11119 = vmatpush1.msra.mxu0 0.0
    %11120 = vmatprep.subr.mxu0 0.0
    %11121 = vmatpush1.msra.mxu0 0.0
    %11122 = vmatprep.subr.mxu0 0.0
    %11123 = vmatpush1.msra.mxu0 0.0
    %11124 = vmatprep.subr.mxu0 0.0
    %11125 = vmatpush1.msra.mxu0 0.0
    %11126 = vmatprep.subr.mxu0 0.0
    %11127 = vmatpush1.msra.mxu0 0.0
    %11128 = vmatprep.subr.mxu0 0.0
    %11129 = vmatpush1.msra.mxu0 0.0
    %11130 = vmatprep.subr.mxu0 0.0
    %11131 = vmatpush1.msra.mxu0 0.0
    %11132 = vmatprep.subr.mxu0 0.0
    %11133 = vmatpush1.msra.mxu0 0.0
    %11134 = vmatprep.subr.mxu0 0.0
    %11135 = vmatpush1.msra.mxu0 0.0
    %11136 = vmatprep.subr.mxu0 0.0
    %11137 = vmatpush1.msra.mxu0 0.0
    %11138 = vmatprep.subr.mxu0 0.0
    %11139 = vmatpush1.msra.mxu0 0.0
    %11140 = vmatprep.subr.mxu0 0.0
    %11141 = vmatpush1.msra.mxu0 0.0
    %11142 = vmatprep.subr.mxu0 0.0
    %11143 = vmatpush1.msra.mxu0 0.0
    %11144 = vmatprep.subr.mxu0 0.0
    %11145 = vmatpush1.msra.mxu0 0.0
    %11146 = vmatprep.subr.mxu0 0.0
    %11147 = vmatpush1.msra.mxu0 0.0
    %11148 = vmatprep.subr.mxu0 0.0
    %11149 = vmatpush1.msra.mxu0 0.0
    %11150 = vmatprep.subr.mxu0 0.0
    %11151 = vmatpush1.msra.mxu0 0.0
    %11152 = vmatprep.subr.mxu0 0.0
    %11153 = vmatpush1.msra.mxu0 0.0
    %11154 = vmatprep.subr.mxu0 0.0
    %11155 = vmatpush1.msra.mxu0 0.0
    %11156 = vmatprep.subr.mxu0 0.0
    %11157 = vmatpush1.msra.mxu0 0.0
    %11158 = vmatprep.subr.mxu0 0.0
    %11159 = vmatpush1.msra.mxu0 0.0
    %11160 = vmatprep.subr.mxu0 0.0
    %11161 = vmatpush1.msra.mxu0 0.0
    %11162 = vmatprep.subr.mxu0 0.0
    %11163 = vmatpush1.msra.mxu0 0.0
    %11164 = vmatprep.subr.mxu0 0.0
    %11165 = vmatpush1.msra.mxu0 0.0
    %11166 = vmatprep.subr.mxu0 0.0
    %11167 = vmatpush1.msra.mxu0 0.0
    %11168 = vmatprep.mubr.f32.mxu0 0.0
    %v11169 = vand.u32 %v10714, 4294901760
    %11170 = vmatmul.mubr.f32.gmra.mrb[0].mxu0 %v11169
    %v11171 = vpop.f32.mrb[0].mxu0
    %v11172 = vadd.f32 %v11099, %v11171
    %v11173 = vpop.f32.mrb[0].mxu0
    %11174 = vdwg.mxu0
    %v11175 = vld [vmem:[#allocation4 + $0x7] sm:$0x1]
    %v11176 = vld [vmem:[#allocation4 + $0xf] sm:$0x1]
    %11177 = vmatprep.subr.mxu0 0.0
    %v11178 = vand.u32 %v86, 4294901760
    %11179 = vmatpush1.msra.mxu0 %v11178
    %11180 = vmatprep.subr.mxu0 0.0
    %v11181 = vand.u32 %v87, 4294901760
    %11182 = vmatpush1.msra.mxu0 %v11181
    %11183 = vmatprep.subr.mxu0 0.0
    %v11184 = vand.u32 %v88, 4294901760
    %11185 = vmatpush1.msra.mxu0 %v11184
    %11186 = vmatprep.subr.mxu0 0.0
    %v11187 = vand.u32 %v89, 4294901760
    %11188 = vmatpush1.msra.mxu0 %v11187
    %11189 = vmatprep.subr.mxu0 0.0
    %11190 = vmatpush1.msra.mxu0 0.0
    %11191 = vmatprep.subr.mxu0 0.0
    %11192 = vmatpush1.msra.mxu0 0.0
    %11193 = vmatprep.subr.mxu0 0.0
    %11194 = vmatpush1.msra.mxu0 0.0
    %11195 = vmatprep.subr.mxu0 0.0
    %11196 = vmatpush1.msra.mxu0 0.0
    %11197 = vmatprep.subr.mxu0 0.0
    %11198 = vmatpush1.msra.mxu0 0.0
    %11199 = vmatprep.subr.mxu0 0.0
    %11200 = vmatpush1.msra.mxu0 0.0
    %11201 = vmatprep.subr.mxu0 0.0
    %11202 = vmatpush1.msra.mxu0 0.0
    %11203 = vmatprep.subr.mxu0 0.0
    %11204 = vmatpush1.msra.mxu0 0.0
    %11205 = vmatprep.subr.mxu0 0.0
    %11206 = vmatpush1.msra.mxu0 0.0
    %11207 = vmatprep.subr.mxu0 0.0
    %11208 = vmatpush1.msra.mxu0 0.0
    %11209 = vmatprep.subr.mxu0 0.0
    %11210 = vmatpush1.msra.mxu0 0.0
    %11211 = vmatprep.subr.mxu0 0.0
    %11212 = vmatpush1.msra.mxu0 0.0
    %11213 = vmatprep.subr.mxu0 0.0
    %11214 = vmatpush1.msra.mxu0 0.0
    %11215 = vmatprep.subr.mxu0 0.0
    %11216 = vmatpush1.msra.mxu0 0.0
    %11217 = vmatprep.subr.mxu0 0.0
    %11218 = vmatpush1.msra.mxu0 0.0
    %11219 = vmatprep.subr.mxu0 0.0
    %11220 = vmatpush1.msra.mxu0 0.0
    %11221 = vmatprep.subr.mxu0 0.0
    %11222 = vmatpush1.msra.mxu0 0.0
    %11223 = vmatprep.subr.mxu0 0.0
    %11224 = vmatpush1.msra.mxu0 0.0
    %11225 = vmatprep.subr.mxu0 0.0
    %11226 = vmatpush1.msra.mxu0 0.0
    %11227 = vmatprep.subr.mxu0 0.0
    %11228 = vmatpush1.msra.mxu0 0.0
    %11229 = vmatprep.subr.mxu0 0.0
    %11230 = vmatpush1.msra.mxu0 0.0
    %11231 = vmatprep.subr.mxu0 0.0
    %11232 = vmatpush1.msra.mxu0 0.0
    %11233 = vmatprep.subr.mxu0 0.0
    %11234 = vmatpush1.msra.mxu0 0.0
    %11235 = vmatprep.subr.mxu0 0.0
    %11236 = vmatpush1.msra.mxu0 0.0
    %11237 = vmatprep.subr.mxu0 0.0
    %11238 = vmatpush1.msra.mxu0 0.0
    %11239 = vmatprep.subr.mxu0 0.0
    %11240 = vmatpush1.msra.mxu0 0.0
    %11241 = vmatprep.subr.mxu0 0.0
    %11242 = vmatpush1.msra.mxu0 0.0
    %11243 = vmatprep.subr.mxu0 0.0
    %11244 = vmatpush1.msra.mxu0 0.0
    %11245 = vmatprep.mubr.f32.mxu0 0.0
    %v11246 = vand.u32 %v10166, 4294901760
    %v11247 = vsub.f32 %v10166, %v11246
    %v11248 = vand.u32 %v11247, 4294901760
    %v11249 = vsub.f32 %v11247, %v11248
    %v11250 = vand.u32 %v11249, 4294901760
    %11251 = vmatmul.mubr.f32.gmra.mrb[0].mxu0 %v11250
    %v11252 = vpop.f32.mrb[0].mxu0
    %v11253 = vadd.f32 0.0, %v11252
    %v11254 = vpop.f32.mrb[0].mxu0
    %11255 = vdwg.mxu0
    %11256 = vmatprep.subr.mxu0 0.0
    %v11257 = vand.u32 %v86, 4294901760
    %v11258 = vsub.f32 %v86, %v11257
    %v11259 = vand.u32 %v11258, 4294901760
    %v11260 = vsub.f32 %v11258, %v11259
    %v11261 = vand.u32 %v11260, 4294901760
    %11262 = vmatpush1.msra.mxu0 %v11261
    %11263 = vmatprep.subr.mxu0 0.0
    %v11264 = vand.u32 %v87, 4294901760
    %v11265 = vsub.f32 %v87, %v11264
    %v11266 = vand.u32 %v11265, 4294901760
    %v11267 = vsub.f32 %v11265, %v11266
    %v11268 = vand.u32 %v11267, 4294901760
    %11269 = vmatpush1.msra.mxu0 %v11268
    %11270 = vmatprep.subr.mxu0 0.0
    %v11271 = vand.u32 %v88, 4294901760
    %v11272 = vsub.f32 %v88, %v11271
    %v11273 = vand.u32 %v11272, 4294901760
    %v11274 = vsub.f32 %v11272, %v11273
    %v11275 = vand.u32 %v11274, 4294901760
    %11276 = vmatpush1.msra.mxu0 %v11275
    %11277 = vmatprep.subr.mxu0 0.0
    %v11278 = vand.u32 %v89, 4294901760
    %v11279 = vsub.f32 %v89, %v11278
    %v11280 = vand.u32 %v11279, 4294901760
    %v11281 = vsub.f32 %v11279, %v11280
    %v11282 = vand.u32 %v11281, 4294901760
    %11283 = vmatpush1.msra.mxu0 %v11282
    %11284 = vmatprep.subr.mxu0 0.0
    %11285 = vmatpush1.msra.mxu0 0.0
    %11286 = vmatprep.subr.mxu0 0.0
    %11287 = vmatpush1.msra.mxu0 0.0
    %11288 = vmatprep.subr.mxu0 0.0
    %11289 = vmatpush1.msra.mxu0 0.0
    %11290 = vmatprep.subr.mxu0 0.0
    %11291 = vmatpush1.msra.mxu0 0.0
    %11292 = vmatprep.subr.mxu0 0.0
    %11293 = vmatpush1.msra.mxu0 0.0
    %11294 = vmatprep.subr.mxu0 0.0
    %11295 = vmatpush1.msra.mxu0 0.0
    %11296 = vmatprep.subr.mxu0 0.0
    %11297 = vmatpush1.msra.mxu0 0.0
    %11298 = vmatprep.subr.mxu0 0.0
    %11299 = vmatpush1.msra.mxu0 0.0
    %11300 = vmatprep.subr.mxu0 0.0
    %11301 = vmatpush1.msra.mxu0 0.0
    %11302 = vmatprep.subr.mxu0 0.0
    %11303 = vmatpush1.msra.mxu0 0.0
    %11304 = vmatprep.subr.mxu0 0.0
    %11305 = vmatpush1.msra.mxu0 0.0
    %11306 = vmatprep.subr.mxu0 0.0
    %11307 = vmatpush1.msra.mxu0 0.0
    %11308 = vmatprep.subr.mxu0 0.0
    %11309 = vmatpush1.msra.mxu0 0.0
    %11310 = vmatprep.subr.mxu0 0.0
    %11311 = vmatpush1.msra.mxu0 0.0
    %11312 = vmatprep.subr.mxu0 0.0
    %11313 = vmatpush1.msra.mxu0 0.0
    %11314 = vmatprep.subr.mxu0 0.0
    %11315 = vmatpush1.msra.mxu0 0.0
    %11316 = vmatprep.subr.mxu0 0.0
    %11317 = vmatpush1.msra.mxu0 0.0
    %11318 = vmatprep.subr.mxu0 0.0
    %11319 = vmatpush1.msra.mxu0 0.0
    %11320 = vmatprep.subr.mxu0 0.0
    %11321 = vmatpush1.msra.mxu0 0.0
    %11322 = vmatprep.subr.mxu0 0.0
    %11323 = vmatpush1.msra.mxu0 0.0
    %11324 = vmatprep.subr.mxu0 0.0
    %11325 = vmatpush1.msra.mxu0 0.0
    %11326 = vmatprep.subr.mxu0 0.0
    %11327 = vmatpush1.msra.mxu0 0.0
    %11328 = vmatprep.subr.mxu0 0.0
    %11329 = vmatpush1.msra.mxu0 0.0
    %11330 = vmatprep.subr.mxu0 0.0
    %11331 = vmatpush1.msra.mxu0 0.0
    %11332 = vmatprep.subr.mxu0 0.0
    %11333 = vmatpush1.msra.mxu0 0.0
    %11334 = vmatprep.subr.mxu0 0.0
    %11335 = vmatpush1.msra.mxu0 0.0
    %11336 = vmatprep.subr.mxu0 0.0
    %11337 = vmatpush1.msra.mxu0 0.0
    %11338 = vmatprep.subr.mxu0 0.0
    %11339 = vmatpush1.msra.mxu0 0.0
    %11340 = vmatprep.mubr.f32.mxu0 0.0
    %v11341 = vand.u32 %v10166, 4294901760
    %11342 = vmatmul.mubr.f32.gmra.mrb[0].mxu0 %v11341
    %v11343 = vpop.f32.mrb[0].mxu0
    %v11344 = vadd.f32 %v11253, %v11343
    %v11345 = vpop.f32.mrb[0].mxu0
    %11346 = vdwg.mxu0
    %11347 = vmatprep.subr.mxu0 0.0
    %v11348 = vand.u32 %v86, 4294901760
    %v11349 = vsub.f32 %v86, %v11348
    %11350 = vmatpush1.msra.mxu0 %v11349
    %11351 = vmatprep.subr.mxu0 0.0
    %v11352 = vand.u32 %v87, 4294901760
    %v11353 = vsub.f32 %v87, %v11352
    %11354 = vmatpush1.msra.mxu0 %v11353
    %11355 = vmatprep.subr.mxu0 0.0
    %v11356 = vand.u32 %v88, 4294901760
    %v11357 = vsub.f32 %v88, %v11356
    %11358 = vmatpush1.msra.mxu0 %v11357
    %11359 = vmatprep.subr.mxu0 0.0
    %v11360 = vand.u32 %v89, 4294901760
    %v11361 = vsub.f32 %v89, %v11360
    %11362 = vmatpush1.msra.mxu0 %v11361
    %11363 = vmatprep.subr.mxu0 0.0
    %11364 = vmatpush1.msra.mxu0 0.0
    %11365 = vmatprep.subr.mxu0 0.0
    %11366 = vmatpush1.msra.mxu0 0.0
    %11367 = vmatprep.subr.mxu0 0.0
    %11368 = vmatpush1.msra.mxu0 0.0
    %11369 = vmatprep.subr.mxu0 0.0
    %11370 = vmatpush1.msra.mxu0 0.0
    %11371 = vmatprep.subr.mxu0 0.0
    %11372 = vmatpush1.msra.mxu0 0.0
    %11373 = vmatprep.subr.mxu0 0.0
    %11374 = vmatpush1.msra.mxu0 0.0
    %11375 = vmatprep.subr.mxu0 0.0
    %11376 = vmatpush1.msra.mxu0 0.0
    %11377 = vmatprep.subr.mxu0 0.0
    %11378 = vmatpush1.msra.mxu0 0.0
    %11379 = vmatprep.subr.mxu0 0.0
    %11380 = vmatpush1.msra.mxu0 0.0
    %11381 = vmatprep.subr.mxu0 0.0
    %11382 = vmatpush1.msra.mxu0 0.0
    %11383 = vmatprep.subr.mxu0 0.0
    %11384 = vmatpush1.msra.mxu0 0.0
    %11385 = vmatprep.subr.mxu0 0.0
    %11386 = vmatpush1.msra.mxu0 0.0
    %11387 = vmatprep.subr.mxu0 0.0
    %11388 = vmatpush1.msra.mxu0 0.0
    %11389 = vmatprep.subr.mxu0 0.0
    %11390 = vmatpush1.msra.mxu0 0.0
    %11391 = vmatprep.subr.mxu0 0.0
    %11392 = vmatpush1.msra.mxu0 0.0
    %11393 = vmatprep.subr.mxu0 0.0
    %11394 = vmatpush1.msra.mxu0 0.0
    %11395 = vmatprep.subr.mxu0 0.0
    %11396 = vmatpush1.msra.mxu0 0.0
    %11397 = vmatprep.subr.mxu0 0.0
    %11398 = vmatpush1.msra.mxu0 0.0
    %11399 = vmatprep.subr.mxu0 0.0
    %11400 = vmatpush1.msra.mxu0 0.0
    %11401 = vmatprep.subr.mxu0 0.0
    %11402 = vmatpush1.msra.mxu0 0.0
    %11403 = vmatprep.subr.mxu0 0.0
    %11404 = vmatpush1.msra.mxu0 0.0
    %11405 = vmatprep.subr.mxu0 0.0
    %11406 = vmatpush1.msra.mxu0 0.0
    %11407 = vmatprep.subr.mxu0 0.0
    %11408 = vmatpush1.msra.mxu0 0.0
    %11409 = vmatprep.subr.mxu0 0.0
    %11410 = vmatpush1.msra.mxu0 0.0
    %11411 = vmatprep.subr.mxu0 0.0
    %11412 = vmatpush1.msra.mxu0 0.0
    %11413 = vmatprep.subr.mxu0 0.0
    %11414 = vmatpush1.msra.mxu0 0.0
    %11415 = vmatprep.subr.mxu0 0.0
    %11416 = vmatpush1.msra.mxu0 0.0
    %11417 = vmatprep.subr.mxu0 0.0
    %11418 = vmatpush1.msra.mxu0 0.0
    %11419 = vmatprep.mubr.f32.mxu0 0.0
    %v11420 = vand.u32 %v10166, 4294901760
    %v11421 = vsub.f32 %v10166, %v11420
    %11422 = vmatmul.mubr.f32.gmra.mrb[0].mxu0 %v11421
    %v11423 = vpop.f32.mrb[0].mxu0
    %v11424 = vadd.f32 %v11344, %v11423
    %v11425 = vpop.f32.mrb[0].mxu0
    %11426 = vdwg.mxu0
    %11427 = vmatprep.subr.mxu0 0.0
    %v11428 = vand.u32 %v86, 4294901760
    %11429 = vmatpush1.msra.mxu0 %v11428
    %11430 = vmatprep.subr.mxu0 0.0
    %v11431 = vand.u32 %v87, 4294901760
    %11432 = vmatpush1.msra.mxu0 %v11431
    %11433 = vmatprep.subr.mxu0 0.0
    %v11434 = vand.u32 %v88, 4294901760
    %11435 = vmatpush1.msra.mxu0 %v11434
    %11436 = vmatprep.subr.mxu0 0.0
    %v11437 = vand.u32 %v89, 4294901760
    %11438 = vmatpush1.msra.mxu0 %v11437
    %11439 = vmatprep.subr.mxu0 0.0
    %11440 = vmatpush1.msra.mxu0 0.0
    %11441 = vmatprep.subr.mxu0 0.0
    %11442 = vmatpush1.msra.mxu0 0.0
    %11443 = vmatprep.subr.mxu0 0.0
    %11444 = vmatpush1.msra.mxu0 0.0
    %11445 = vmatprep.subr.mxu0 0.0
    %11446 = vmatpush1.msra.mxu0 0.0
    %11447 = vmatprep.subr.mxu0 0.0
    %11448 = vmatpush1.msra.mxu0 0.0
    %11449 = vmatprep.subr.mxu0 0.0
    %11450 = vmatpush1.msra.mxu0 0.0
    %11451 = vmatprep.subr.mxu0 0.0
    %11452 = vmatpush1.msra.mxu0 0.0
    %11453 = vmatprep.subr.mxu0 0.0
    %11454 = vmatpush1.msra.mxu0 0.0
    %11455 = vmatprep.subr.mxu0 0.0
    %11456 = vmatpush1.msra.mxu0 0.0
    %11457 = vmatprep.subr.mxu0 0.0
    %11458 = vmatpush1.msra.mxu0 0.0
    %11459 = vmatprep.subr.mxu0 0.0
    %11460 = vmatpush1.msra.mxu0 0.0
    %11461 = vmatprep.subr.mxu0 0.0
    %11462 = vmatpush1.msra.mxu0 0.0
    %11463 = vmatprep.subr.mxu0 0.0
    %11464 = vmatpush1.msra.mxu0 0.0
    %11465 = vmatprep.subr.mxu0 0.0
    %11466 = vmatpush1.msra.mxu0 0.0
    %11467 = vmatprep.subr.mxu0 0.0
    %11468 = vmatpush1.msra.mxu0 0.0
    %11469 = vmatprep.subr.mxu0 0.0
    %11470 = vmatpush1.msra.mxu0 0.0
    %11471 = vmatprep.subr.mxu0 0.0
    %11472 = vmatpush1.msra.mxu0 0.0
    %11473 = vmatprep.subr.mxu0 0.0
    %11474 = vmatpush1.msra.mxu0 0.0
    %11475 = vmatprep.subr.mxu0 0.0
    %11476 = vmatpush1.msra.mxu0 0.0
    %11477 = vmatprep.subr.mxu0 0.0
    %11478 = vmatpush1.msra.mxu0 0.0
    %11479 = vmatprep.subr.mxu0 0.0
    %11480 = vmatpush1.msra.mxu0 0.0
    %11481 = vmatprep.subr.mxu0 0.0
    %11482 = vmatpush1.msra.mxu0 0.0
    %11483 = vmatprep.subr.mxu0 0.0
    %11484 = vmatpush1.msra.mxu0 0.0
    %11485 = vmatprep.subr.mxu0 0.0
    %11486 = vmatpush1.msra.mxu0 0.0
    %11487 = vmatprep.subr.mxu0 0.0
    %11488 = vmatpush1.msra.mxu0 0.0
    %11489 = vmatprep.subr.mxu0 0.0
    %11490 = vmatpush1.msra.mxu0 0.0
    %11491 = vmatprep.subr.mxu0 0.0
    %11492 = vmatpush1.msra.mxu0 0.0
    %11493 = vmatprep.subr.mxu0 0.0
    %11494 = vmatpush1.msra.mxu0 0.0
    %11495 = vmatprep.mubr.f32.mxu0 0.0
    %v11496 = vand.u32 %v10166, 4294901760
    %v11497 = vsub.f32 %v10166, %v11496
    %v11498 = vand.u32 %v11497, 4294901760
    %11499 = vmatmul.mubr.f32.gmra.mrb[0].mxu0 %v11498
    %v11500 = vpop.f32.mrb[0].mxu0
    %v11501 = vadd.f32 %v11424, %v11500
    %v11502 = vpop.f32.mrb[0].mxu0
    %11503 = vdwg.mxu0
    %11504 = vmatprep.subr.mxu0 0.0
    %v11505 = vand.u32 %v86, 4294901760
    %v11506 = vsub.f32 %v86, %v11505
    %v11507 = vand.u32 %v11506, 4294901760
    %11508 = vmatpush1.msra.mxu0 %v11507
    %11509 = vmatprep.subr.mxu0 0.0
    %v11510 = vand.u32 %v87, 4294901760
    %v11511 = vsub.f32 %v87, %v11510
    %v11512 = vand.u32 %v11511, 4294901760
    %11513 = vmatpush1.msra.mxu0 %v11512
    %11514 = vmatprep.subr.mxu0 0.0
    %v11515 = vand.u32 %v88, 4294901760
    %v11516 = vsub.f32 %v88, %v11515
    %v11517 = vand.u32 %v11516, 4294901760
    %11518 = vmatpush1.msra.mxu0 %v11517
    %11519 = vmatprep.subr.mxu0 0.0
    %v11520 = vand.u32 %v89, 4294901760
    %v11521 = vsub.f32 %v89, %v11520
    %v11522 = vand.u32 %v11521, 4294901760
    %11523 = vmatpush1.msra.mxu0 %v11522
    %11524 = vmatprep.subr.mxu0 0.0
    %11525 = vmatpush1.msra.mxu0 0.0
    %11526 = vmatprep.subr.mxu0 0.0
    %11527 = vmatpush1.msra.mxu0 0.0
    %11528 = vmatprep.subr.mxu0 0.0
    %11529 = vmatpush1.msra.mxu0 0.0
    %11530 = vmatprep.subr.mxu0 0.0
    %11531 = vmatpush1.msra.mxu0 0.0
    %11532 = vmatprep.subr.mxu0 0.0
    %11533 = vmatpush1.msra.mxu0 0.0
    %11534 = vmatprep.subr.mxu0 0.0
    %11535 = vmatpush1.msra.mxu0 0.0
    %11536 = vmatprep.subr.mxu0 0.0
    %11537 = vmatpush1.msra.mxu0 0.0
    %11538 = vmatprep.subr.mxu0 0.0
    %11539 = vmatpush1.msra.mxu0 0.0
    %11540 = vmatprep.subr.mxu0 0.0
    %11541 = vmatpush1.msra.mxu0 0.0
    %11542 = vmatprep.subr.mxu0 0.0
    %11543 = vmatpush1.msra.mxu0 0.0
    %11544 = vmatprep.subr.mxu0 0.0
    %11545 = vmatpush1.msra.mxu0 0.0
    %11546 = vmatprep.subr.mxu0 0.0
    %11547 = vmatpush1.msra.mxu0 0.0
    %11548 = vmatprep.subr.mxu0 0.0
    %11549 = vmatpush1.msra.mxu0 0.0
    %11550 = vmatprep.subr.mxu0 0.0
    %11551 = vmatpush1.msra.mxu0 0.0
    %11552 = vmatprep.subr.mxu0 0.0
    %11553 = vmatpush1.msra.mxu0 0.0
    %11554 = vmatprep.subr.mxu0 0.0
    %11555 = vmatpush1.msra.mxu0 0.0
    %11556 = vmatprep.subr.mxu0 0.0
    %11557 = vmatpush1.msra.mxu0 0.0
    %11558 = vmatprep.subr.mxu0 0.0
    %11559 = vmatpush1.msra.mxu0 0.0
    %11560 = vmatprep.subr.mxu0 0.0
    %11561 = vmatpush1.msra.mxu0 0.0
    %11562 = vmatprep.subr.mxu0 0.0
    %11563 = vmatpush1.msra.mxu0 0.0
    %11564 = vmatprep.subr.mxu0 0.0
    %11565 = vmatpush1.msra.mxu0 0.0
    %11566 = vmatprep.subr.mxu0 0.0
    %11567 = vmatpush1.msra.mxu0 0.0
    %11568 = vmatprep.subr.mxu0 0.0
    %11569 = vmatpush1.msra.mxu0 0.0
    %11570 = vmatprep.subr.mxu0 0.0
    %11571 = vmatpush1.msra.mxu0 0.0
    %11572 = vmatprep.subr.mxu0 0.0
    %11573 = vmatpush1.msra.mxu0 0.0
    %11574 = vmatprep.subr.mxu0 0.0
    %11575 = vmatpush1.msra.mxu0 0.0
    %11576 = vmatprep.subr.mxu0 0.0
    %11577 = vmatpush1.msra.mxu0 0.0
    %11578 = vmatprep.subr.mxu0 0.0
    %11579 = vmatpush1.msra.mxu0 0.0
    %11580 = vmatprep.mubr.f32.mxu0 0.0
    %v11581 = vand.u32 %v10166, 4294901760
    %11582 = vmatmul.mubr.f32.gmra.mrb[0].mxu0 %v11581
    %v11583 = vpop.f32.mrb[0].mxu0
    %v11584 = vadd.f32 %v11501, %v11583
    %v11585 = vpop.f32.mrb[0].mxu0
    %11586 = vdwg.mxu0
    %11587 = vmatprep.subr.mxu0 0.0
    %v11588 = vand.u32 %v86, 4294901760
    %11589 = vmatpush1.msra.mxu0 %v11588
    %11590 = vmatprep.subr.mxu0 0.0
    %v11591 = vand.u32 %v87, 4294901760
    %11592 = vmatpush1.msra.mxu0 %v11591
    %11593 = vmatprep.subr.mxu0 0.0
    %v11594 = vand.u32 %v88, 4294901760
    %11595 = vmatpush1.msra.mxu0 %v11594
    %11596 = vmatprep.subr.mxu0 0.0
    %v11597 = vand.u32 %v89, 4294901760
    %11598 = vmatpush1.msra.mxu0 %v11597
    %11599 = vmatprep.subr.mxu0 0.0
    %11600 = vmatpush1.msra.mxu0 0.0
    %11601 = vmatprep.subr.mxu0 0.0
    %11602 = vmatpush1.msra.mxu0 0.0
    %11603 = vmatprep.subr.mxu0 0.0
    %11604 = vmatpush1.msra.mxu0 0.0
    %11605 = vmatprep.subr.mxu0 0.0
    %11606 = vmatpush1.msra.mxu0 0.0
    %11607 = vmatprep.subr.mxu0 0.0
    %11608 = vmatpush1.msra.mxu0 0.0
    %11609 = vmatprep.subr.mxu0 0.0
    %11610 = vmatpush1.msra.mxu0 0.0
    %11611 = vmatprep.subr.mxu0 0.0
    %11612 = vmatpush1.msra.mxu0 0.0
    %11613 = vmatprep.subr.mxu0 0.0
    %11614 = vmatpush1.msra.mxu0 0.0
    %11615 = vmatprep.subr.mxu0 0.0
    %11616 = vmatpush1.msra.mxu0 0.0
    %11617 = vmatprep.subr.mxu0 0.0
    %11618 = vmatpush1.msra.mxu0 0.0
    %11619 = vmatprep.subr.mxu0 0.0
    %11620 = vmatpush1.msra.mxu0 0.0
    %11621 = vmatprep.subr.mxu0 0.0
    %11622 = vmatpush1.msra.mxu0 0.0
    %11623 = vmatprep.subr.mxu0 0.0
    %11624 = vmatpush1.msra.mxu0 0.0
    %11625 = vmatprep.subr.mxu0 0.0
    %11626 = vmatpush1.msra.mxu0 0.0
    %11627 = vmatprep.subr.mxu0 0.0
    %11628 = vmatpush1.msra.mxu0 0.0
    %11629 = vmatprep.subr.mxu0 0.0
    %11630 = vmatpush1.msra.mxu0 0.0
    %11631 = vmatprep.subr.mxu0 0.0
    %11632 = vmatpush1.msra.mxu0 0.0
    %11633 = vmatprep.subr.mxu0 0.0
    %11634 = vmatpush1.msra.mxu0 0.0
    %11635 = vmatprep.subr.mxu0 0.0
    %11636 = vmatpush1.msra.mxu0 0.0
    %11637 = vmatprep.subr.mxu0 0.0
    %11638 = vmatpush1.msra.mxu0 0.0
    %11639 = vmatprep.subr.mxu0 0.0
    %11640 = vmatpush1.msra.mxu0 0.0
    %11641 = vmatprep.subr.mxu0 0.0
    %11642 = vmatpush1.msra.mxu0 0.0
    %11643 = vmatprep.subr.mxu0 0.0
    %11644 = vmatpush1.msra.mxu0 0.0
    %11645 = vmatprep.subr.mxu0 0.0
    %11646 = vmatpush1.msra.mxu0 0.0
    %11647 = vmatprep.subr.mxu0 0.0
    %11648 = vmatpush1.msra.mxu0 0.0
    %11649 = vmatprep.subr.mxu0 0.0
    %11650 = vmatpush1.msra.mxu0 0.0
    %11651 = vmatprep.subr.mxu0 0.0
    %11652 = vmatpush1.msra.mxu0 0.0
    %11653 = vmatprep.subr.mxu0 0.0
    %11654 = vmatpush1.msra.mxu0 0.0
    %11655 = vmatprep.mubr.f32.mxu0 0.0
    %v11656 = vand.u32 %v10166, 4294901760
    %11657 = vmatmul.mubr.f32.gmra.mrb[0].mxu0 %v11656
    %v11658 = vpop.f32.mrb[0].mxu0
    %v11659 = vadd.f32 %v11584, %v11658
    %v11660 = vpop.f32.mrb[0].mxu0
    %11661 = vdwg.mxu0
    %v11663 = vrot.slane %v11659, 1
    %v11666 = vadd.f32 %v11175, %v11659
    %v11667 = vadd.f32 %v11176, %v11663
    %v11668 = vmul.f32 %v10164, 0.25
    %v11669 = vtanh.pop %v11666
    %v11670 = vtanh.pop %v11667
    %v11671 = vmul.f32 %v11669, 0.75
    %v11672 = vmul.f32 %v11670, 0.75
    %v11675 = vrot.slane %v11672, 7
    %v11676 = vsel %vm1070, %v11675, %v11671
    %v11678 = vadd.f32 %v11668, %v11676
    %v11680 = vsel %vm567, %v11678, 0
    %11682 = vmatprep.subr.mxu0 0.0
    %v11683 = vand.u32 %v90, 4294901760
    %11684 = vmatpush1.msra.mxu0 %v11683
    %11685 = vmatprep.subr.mxu0 0.0
    %v11686 = vand.u32 %v91, 4294901760
    %11687 = vmatpush1.msra.mxu0 %v11686
    %11688 = vmatprep.subr.mxu0 0.0
    %v11689 = vand.u32 %v92, 4294901760
    %11690 = vmatpush1.msra.mxu0 %v11689
    %11691 = vmatprep.subr.mxu0 0.0
    %v11692 = vand.u32 %v93, 4294901760
    %11693 = vmatpush1.msra.mxu0 %v11692
    %11694 = vmatprep.subr.mxu0 0.0
    %11695 = vmatpush1.msra.mxu0 0.0
    %11696 = vmatprep.subr.mxu0 0.0
    %11697 = vmatpush1.msra.mxu0 0.0
    %11698 = vmatprep.subr.mxu0 0.0
    %11699 = vmatpush1.msra.mxu0 0.0
    %11700 = vmatprep.subr.mxu0 0.0
    %11701 = vmatpush1.msra.mxu0 0.0
    %11702 = vmatprep.subr.mxu0 0.0
    %11703 = vmatpush1.msra.mxu0 0.0
    %11704 = vmatprep.subr.mxu0 0.0
    %11705 = vmatpush1.msra.mxu0 0.0
    %11706 = vmatprep.subr.mxu0 0.0
    %11707 = vmatpush1.msra.mxu0 0.0
    %11708 = vmatprep.subr.mxu0 0.0
    %11709 = vmatpush1.msra.mxu0 0.0
    %11710 = vmatprep.subr.mxu0 0.0
    %11711 = vmatpush1.msra.mxu0 0.0
    %11712 = vmatprep.subr.mxu0 0.0
    %11713 = vmatpush1.msra.mxu0 0.0
    %11714 = vmatprep.subr.mxu0 0.0
    %11715 = vmatpush1.msra.mxu0 0.0
    %11716 = vmatprep.subr.mxu0 0.0
    %11717 = vmatpush1.msra.mxu0 0.0
    %11718 = vmatprep.subr.mxu0 0.0
    %11719 = vmatpush1.msra.mxu0 0.0
    %11720 = vmatprep.subr.mxu0 0.0
    %11721 = vmatpush1.msra.mxu0 0.0
    %11722 = vmatprep.subr.mxu0 0.0
    %11723 = vmatpush1.msra.mxu0 0.0
    %11724 = vmatprep.subr.mxu0 0.0
    %11725 = vmatpush1.msra.mxu0 0.0
    %11726 = vmatprep.subr.mxu0 0.0
    %11727 = vmatpush1.msra.mxu0 0.0
    %11728 = vmatprep.subr.mxu0 0.0
    %11729 = vmatpush1.msra.mxu0 0.0
    %11730 = vmatprep.subr.mxu0 0.0
    %11731 = vmatpush1.msra.mxu0 0.0
    %11732 = vmatprep.subr.mxu0 0.0
    %11733 = vmatpush1.msra.mxu0 0.0
    %11734 = vmatprep.subr.mxu0 0.0
    %11735 = vmatpush1.msra.mxu0 0.0
    %11736 = vmatprep.subr.mxu0 0.0
    %11737 = vmatpush1.msra.mxu0 0.0
    %11738 = vmatprep.subr.mxu0 0.0
    %11739 = vmatpush1.msra.mxu0 0.0
    %11740 = vmatprep.subr.mxu0 0.0
    %11741 = vmatpush1.msra.mxu0 0.0
    %11742 = vmatprep.subr.mxu0 0.0
    %11743 = vmatpush1.msra.mxu0 0.0
    %11744 = vmatprep.subr.mxu0 0.0
    %11745 = vmatpush1.msra.mxu0 0.0
    %11746 = vmatprep.subr.mxu0 0.0
    %11747 = vmatpush1.msra.mxu0 0.0
    %11748 = vmatprep.subr.mxu0 0.0
    %11749 = vmatpush1.msra.mxu0 0.0
    %11750 = vmatprep.mubr.f32.mxu0 0.0
    %v11751 = vand.u32 %v11680, 4294901760
    %v11752 = vsub.f32 %v11680, %v11751
    %v11753 = vand.u32 %v11752, 4294901760
    %v11754 = vsub.f32 %v11752, %v11753
    %v11755 = vand.u32 %v11754, 4294901760
    %11756 = vmatmul.mubr.f32.gmra.mrb[0].mxu0 %v11755
    %v11757 = vpop.f32.mrb[0].mxu0
    %v11758 = vadd.f32 0.0, %v11757
    %v11759 = vpop.f32.mrb[0].mxu0
    %11760 = vdwg.mxu0
    %11761 = vmatprep.subr.mxu0 0.0
    %v11762 = vand.u32 %v90, 4294901760
    %v11763 = vsub.f32 %v90, %v11762
    %v11764 = vand.u32 %v11763, 4294901760
    %v11765 = vsub.f32 %v11763, %v11764
    %v11766 = vand.u32 %v11765, 4294901760
    %11767 = vmatpush1.msra.mxu0 %v11766
    %11768 = vmatprep.subr.mxu0 0.0
    %v11769 = vand.u32 %v91, 4294901760
    %v11770 = vsub.f32 %v91, %v11769
    %v11771 = vand.u32 %v11770, 4294901760
    %v11772 = vsub.f32 %v11770, %v11771
    %v11773 = vand.u32 %v11772, 4294901760
    %11774 = vmatpush1.msra.mxu0 %v11773
    %11775 = vmatprep.subr.mxu0 0.0
    %v11776 = vand.u32 %v92, 4294901760
    %v11777 = vsub.f32 %v92, %v11776
    %v11778 = vand.u32 %v11777, 4294901760
    %v11779 = vsub.f32 %v11777, %v11778
    %v11780 = vand.u32 %v11779, 4294901760
    %11781 = vmatpush1.msra.mxu0 %v11780
    %11782 = vmatprep.subr.mxu0 0.0
    %v11783 = vand.u32 %v93, 4294901760
    %v11784 = vsub.f32 %v93, %v11783
    %v11785 = vand.u32 %v11784, 4294901760
    %v11786 = vsub.f32 %v11784, %v11785
    %v11787 = vand.u32 %v11786, 4294901760
    %11788 = vmatpush1.msra.mxu0 %v11787
    %11789 = vmatprep.subr.mxu0 0.0
    %11790 = vmatpush1.msra.mxu0 0.0
    %11791 = vmatprep.subr.mxu0 0.0
    %11792 = vmatpush1.msra.mxu0 0.0
    %11793 = vmatprep.subr.mxu0 0.0
    %11794 = vmatpush1.msra.mxu0 0.0
    %11795 = vmatprep.subr.mxu0 0.0
    %11796 = vmatpush1.msra.mxu0 0.0
    %11797 = vmatprep.subr.mxu0 0.0
    %11798 = vmatpush1.msra.mxu0 0.0
    %11799 = vmatprep.subr.mxu0 0.0
    %11800 = vmatpush1.msra.mxu0 0.0
    %11801 = vmatprep.subr.mxu0 0.0
    %11802 = vmatpush1.msra.mxu0 0.0
    %11803 = vmatprep.subr.mxu0 0.0
    %11804 = vmatpush1.msra.mxu0 0.0
    %11805 = vmatprep.subr.mxu0 0.0
    %11806 = vmatpush1.msra.mxu0 0.0
    %11807 = vmatprep.subr.mxu0 0.0
    %11808 = vmatpush1.msra.mxu0 0.0
    %11809 = vmatprep.subr.mxu0 0.0
    %11810 = vmatpush1.msra.mxu0 0.0
    %11811 = vmatprep.subr.mxu0 0.0
    %11812 = vmatpush1.msra.mxu0 0.0
    %11813 = vmatprep.subr.mxu0 0.0
    %11814 = vmatpush1.msra.mxu0 0.0
    %11815 = vmatprep.subr.mxu0 0.0
    %11816 = vmatpush1.msra.mxu0 0.0
    %11817 = vmatprep.subr.mxu0 0.0
    %11818 = vmatpush1.msra.mxu0 0.0
    %11819 = vmatprep.subr.mxu0 0.0
    %11820 = vmatpush1.msra.mxu0 0.0
    %11821 = vmatprep.subr.mxu0 0.0
    %11822 = vmatpush1.msra.mxu0 0.0
    %11823 = vmatprep.subr.mxu0 0.0
    %11824 = vmatpush1.msra.mxu0 0.0
    %11825 = vmatprep.subr.mxu0 0.0
    %11826 = vmatpush1.msra.mxu0 0.0
    %11827 = vmatprep.subr.mxu0 0.0
    %11828 = vmatpush1.msra.mxu0 0.0
    %11829 = vmatprep.subr.mxu0 0.0
    %11830 = vmatpush1.msra.mxu0 0.0
    %11831 = vmatprep.subr.mxu0 0.0
    %11832 = vmatpush1.msra.mxu0 0.0
    %11833 = vmatprep.subr.mxu0 0.0
    %11834 = vmatpush1.msra.mxu0 0.0
    %11835 = vmatprep.subr.mxu0 0.0
    %11836 = vmatpush1.msra.mxu0 0.0
    %11837 = vmatprep.subr.mxu0 0.0
    %11838 = vmatpush1.msra.mxu0 0.0
    %11839 = vmatprep.subr.mxu0 0.0
    %11840 = vmatpush1.msra.mxu0 0.0
    %11841 = vmatprep.subr.mxu0 0.0
    %11842 = vmatpush1.msra.mxu0 0.0
    %11843 = vmatprep.subr.mxu0 0.0
    %11844 = vmatpush1.msra.mxu0 0.0
    %11845 = vmatprep.mubr.f32.mxu0 0.0
    %v11846 = vand.u32 %v11680, 4294901760
    %11847 = vmatmul.mubr.f32.gmra.mrb[0].mxu0 %v11846
    %v11848 = vpop.f32.mrb[0].mxu0
    %v11849 = vadd.f32 %v11758, %v11848
    %v11850 = vpop.f32.mrb[0].mxu0
    %11851 = vdwg.mxu0
    %11852 = vmatprep.subr.mxu0 0.0
    %v11853 = vand.u32 %v90, 4294901760
    %v11854 = vsub.f32 %v90, %v11853
    %11855 = vmatpush1.msra.mxu0 %v11854
    %11856 = vmatprep.subr.mxu0 0.0
    %v11857 = vand.u32 %v91, 4294901760
    %v11858 = vsub.f32 %v91, %v11857
    %11859 = vmatpush1.msra.mxu0 %v11858
    %11860 = vmatprep.subr.mxu0 0.0
    %v11861 = vand.u32 %v92, 4294901760
    %v11862 = vsub.f32 %v92, %v11861
    %11863 = vmatpush1.msra.mxu0 %v11862
    %11864 = vmatprep.subr.mxu0 0.0
    %v11865 = vand.u32 %v93, 4294901760
    %v11866 = vsub.f32 %v93, %v11865
    %11867 = vmatpush1.msra.mxu0 %v11866
    %11868 = vmatprep.subr.mxu0 0.0
    %11869 = vmatpush1.msra.mxu0 0.0
    %11870 = vmatprep.subr.mxu0 0.0
    %11871 = vmatpush1.msra.mxu0 0.0
    %11872 = vmatprep.subr.mxu0 0.0
    %11873 = vmatpush1.msra.mxu0 0.0
    %11874 = vmatprep.subr.mxu0 0.0
    %11875 = vmatpush1.msra.mxu0 0.0
    %11876 = vmatprep.subr.mxu0 0.0
    %11877 = vmatpush1.msra.mxu0 0.0
    %11878 = vmatprep.subr.mxu0 0.0
    %11879 = vmatpush1.msra.mxu0 0.0
    %11880 = vmatprep.subr.mxu0 0.0
    %11881 = vmatpush1.msra.mxu0 0.0
    %11882 = vmatprep.subr.mxu0 0.0
    %11883 = vmatpush1.msra.mxu0 0.0
    %11884 = vmatprep.subr.mxu0 0.0
    %11885 = vmatpush1.msra.mxu0 0.0
    %11886 = vmatprep.subr.mxu0 0.0
    %11887 = vmatpush1.msra.mxu0 0.0
    %11888 = vmatprep.subr.mxu0 0.0
    %11889 = vmatpush1.msra.mxu0 0.0
    %11890 = vmatprep.subr.mxu0 0.0
    %11891 = vmatpush1.msra.mxu0 0.0
    %11892 = vmatprep.subr.mxu0 0.0
    %11893 = vmatpush1.msra.mxu0 0.0
    %11894 = vmatprep.subr.mxu0 0.0
    %11895 = vmatpush1.msra.mxu0 0.0
    %11896 = vmatprep.subr.mxu0 0.0
    %11897 = vmatpush1.msra.mxu0 0.0
    %11898 = vmatprep.subr.mxu0 0.0
    %11899 = vmatpush1.msra.mxu0 0.0
    %11900 = vmatprep.subr.mxu0 0.0
    %11901 = vmatpush1.msra.mxu0 0.0
    %11902 = vmatprep.subr.mxu0 0.0
    %11903 = vmatpush1.msra.mxu0 0.0
    %11904 = vmatprep.subr.mxu0 0.0
    %11905 = vmatpush1.msra.mxu0 0.0
    %11906 = vmatprep.subr.mxu0 0.0
    %11907 = vmatpush1.msra.mxu0 0.0
    %11908 = vmatprep.subr.mxu0 0.0
    %11909 = vmatpush1.msra.mxu0 0.0
    %11910 = vmatprep.subr.mxu0 0.0
    %11911 = vmatpush1.msra.mxu0 0.0
    %11912 = vmatprep.subr.mxu0 0.0
    %11913 = vmatpush1.msra.mxu0 0.0
    %11914 = vmatprep.subr.mxu0 0.0
    %11915 = vmatpush1.msra.mxu0 0.0
    %11916 = vmatprep.subr.mxu0 0.0
    %11917 = vmatpush1.msra.mxu0 0.0
    %11918 = vmatprep.subr.mxu0 0.0
    %11919 = vmatpush1.msra.mxu0 0.0
    %11920 = vmatprep.subr.mxu0 0.0
    %11921 = vmatpush1.msra.mxu0 0.0
    %11922 = vmatprep.subr.mxu0 0.0
    %11923 = vmatpush1.msra.mxu0 0.0
    %11924 = vmatprep.mubr.f32.mxu0 0.0
    %v11925 = vand.u32 %v11680, 4294901760
    %v11926 = vsub.f32 %v11680, %v11925
    %11927 = vmatmul.mubr.f32.gmra.mrb[0].mxu0 %v11926
    %v11928 = vpop.f32.mrb[0].mxu0
    %v11929 = vadd.f32 %v11849, %v11928
    %v11930 = vpop.f32.mrb[0].mxu0
    %11931 = vdwg.mxu0
    %11932 = vmatprep.subr.mxu0 0.0
    %v11933 = vand.u32 %v90, 4294901760
    %11934 = vmatpush1.msra.mxu0 %v11933
    %11935 = vmatprep.subr.mxu0 0.0
    %v11936 = vand.u32 %v91, 4294901760
    %11937 = vmatpush1.msra.mxu0 %v11936
    %11938 = vmatprep.subr.mxu0 0.0
    %v11939 = vand.u32 %v92, 4294901760
    %11940 = vmatpush1.msra.mxu0 %v11939
    %11941 = vmatprep.subr.mxu0 0.0
    %v11942 = vand.u32 %v93, 4294901760
    %11943 = vmatpush1.msra.mxu0 %v11942
    %11944 = vmatprep.subr.mxu0 0.0
    %11945 = vmatpush1.msra.mxu0 0.0
    %11946 = vmatprep.subr.mxu0 0.0
    %11947 = vmatpush1.msra.mxu0 0.0
    %11948 = vmatprep.subr.mxu0 0.0
    %11949 = vmatpush1.msra.mxu0 0.0
    %11950 = vmatprep.subr.mxu0 0.0
    %11951 = vmatpush1.msra.mxu0 0.0
    %11952 = vmatprep.subr.mxu0 0.0
    %11953 = vmatpush1.msra.mxu0 0.0
    %11954 = vmatprep.subr.mxu0 0.0
    %11955 = vmatpush1.msra.mxu0 0.0
    %11956 = vmatprep.subr.mxu0 0.0
    %11957 = vmatpush1.msra.mxu0 0.0
    %11958 = vmatprep.subr.mxu0 0.0
    %11959 = vmatpush1.msra.mxu0 0.0
    %11960 = vmatprep.subr.mxu0 0.0
    %11961 = vmatpush1.msra.mxu0 0.0
    %11962 = vmatprep.subr.mxu0 0.0
    %11963 = vmatpush1.msra.mxu0 0.0
    %11964 = vmatprep.subr.mxu0 0.0
    %11965 = vmatpush1.msra.mxu0 0.0
    %11966 = vmatprep.subr.mxu0 0.0
    %11967 = vmatpush1.msra.mxu0 0.0
    %11968 = vmatprep.subr.mxu0 0.0
    %11969 = vmatpush1.msra.mxu0 0.0
    %11970 = vmatprep.subr.mxu0 0.0
    %11971 = vmatpush1.msra.mxu0 0.0
    %11972 = vmatprep.subr.mxu0 0.0
    %11973 = vmatpush1.msra.mxu0 0.0
    %11974 = vmatprep.subr.mxu0 0.0
    %11975 = vmatpush1.msra.mxu0 0.0
    %11976 = vmatprep.subr.mxu0 0.0
    %11977 = vmatpush1.msra.mxu0 0.0
    %11978 = vmatprep.subr.mxu0 0.0
    %11979 = vmatpush1.msra.mxu0 0.0
    %11980 = vmatprep.subr.mxu0 0.0
    %11981 = vmatpush1.msra.mxu0 0.0
    %11982 = vmatprep.subr.mxu0 0.0
    %11983 = vmatpush1.msra.mxu0 0.0
    %11984 = vmatprep.subr.mxu0 0.0
    %11985 = vmatpush1.msra.mxu0 0.0
    %11986 = vmatprep.subr.mxu0 0.0
    %11987 = vmatpush1.msra.mxu0 0.0
    %11988 = vmatprep.subr.mxu0 0.0
    %11989 = vmatpush1.msra.mxu0 0.0
    %11990 = vmatprep.subr.mxu0 0.0
    %11991 = vmatpush1.msra.mxu0 0.0
    %11992 = vmatprep.subr.mxu0 0.0
    %11993 = vmatpush1.msra.mxu0 0.0
    %11994 = vmatprep.subr.mxu0 0.0
    %11995 = vmatpush1.msra.mxu0 0.0
    %11996 = vmatprep.subr.mxu0 0.0
    %11997 = vmatpush1.msra.mxu0 0.0
    %11998 = vmatprep.subr.mxu0 0.0
    %11999 = vmatpush1.msra.mxu0 0.0
    %12000 = vmatprep.mubr.f32.mxu0 0.0
    %v12001 = vand.u32 %v11680, 4294901760
    %v12002 = vsub.f32 %v11680, %v12001
    %v12003 = vand.u32 %v12002, 4294901760
    %12004 = vmatmul.mubr.f32.gmra.mrb[0].mxu0 %v12003
    %v12005 = vpop.f32.mrb[0].mxu0
    %v12006 = vadd.f32 %v11929, %v12005
    %v12007 = vpop.f32.mrb[0].mxu0
    %12008 = vdwg.mxu0
    %12009 = vmatprep.subr.mxu0 0.0
    %v12010 = vand.u32 %v90, 4294901760
    %v12011 = vsub.f32 %v90, %v12010
    %v12012 = vand.u32 %v12011, 4294901760
    %12013 = vmatpush1.msra.mxu0 %v12012
    %12014 = vmatprep.subr.mxu0 0.0
    %v12015 = vand.u32 %v91, 4294901760
    %v12016 = vsub.f32 %v91, %v12015
    %v12017 = vand.u32 %v12016, 4294901760
    %12018 = vmatpush1.msra.mxu0 %v12017
    %12019 = vmatprep.subr.mxu0 0.0
    %v12020 = vand.u32 %v92, 4294901760
    %v12021 = vsub.f32 %v92, %v12020
    %v12022 = vand.u32 %v12021, 4294901760
    %12023 = vmatpush1.msra.mxu0 %v12022
    %12024 = vmatprep.subr.mxu0 0.0
    %v12025 = vand.u32 %v93, 4294901760
    %v12026 = vsub.f32 %v93, %v12025
    %v12027 = vand.u32 %v12026, 4294901760
    %12028 = vmatpush1.msra.mxu0 %v12027
    %12029 = vmatprep.subr.mxu0 0.0
    %12030 = vmatpush1.msra.mxu0 0.0
    %12031 = vmatprep.subr.mxu0 0.0
    %12032 = vmatpush1.msra.mxu0 0.0
    %12033 = vmatprep.subr.mxu0 0.0
    %12034 = vmatpush1.msra.mxu0 0.0
    %12035 = vmatprep.subr.mxu0 0.0
    %12036 = vmatpush1.msra.mxu0 0.0
    %12037 = vmatprep.subr.mxu0 0.0
    %12038 = vmatpush1.msra.mxu0 0.0
    %12039 = vmatprep.subr.mxu0 0.0
    %12040 = vmatpush1.msra.mxu0 0.0
    %12041 = vmatprep.subr.mxu0 0.0
    %12042 = vmatpush1.msra.mxu0 0.0
    %12043 = vmatprep.subr.mxu0 0.0
    %12044 = vmatpush1.msra.mxu0 0.0
    %12045 = vmatprep.subr.mxu0 0.0
    %12046 = vmatpush1.msra.mxu0 0.0
    %12047 = vmatprep.subr.mxu0 0.0
    %12048 = vmatpush1.msra.mxu0 0.0
    %12049 = vmatprep.subr.mxu0 0.0
    %12050 = vmatpush1.msra.mxu0 0.0
    %12051 = vmatprep.subr.mxu0 0.0
    %12052 = vmatpush1.msra.mxu0 0.0
    %12053 = vmatprep.subr.mxu0 0.0
    %12054 = vmatpush1.msra.mxu0 0.0
    %12055 = vmatprep.subr.mxu0 0.0
    %12056 = vmatpush1.msra.mxu0 0.0
    %12057 = vmatprep.subr.mxu0 0.0
    %12058 = vmatpush1.msra.mxu0 0.0
    %12059 = vmatprep.subr.mxu0 0.0
    %12060 = vmatpush1.msra.mxu0 0.0
    %12061 = vmatprep.subr.mxu0 0.0
    %12062 = vmatpush1.msra.mxu0 0.0
    %12063 = vmatprep.subr.mxu0 0.0
    %12064 = vmatpush1.msra.mxu0 0.0
    %12065 = vmatprep.subr.mxu0 0.0
    %12066 = vmatpush1.msra.mxu0 0.0
    %12067 = vmatprep.subr.mxu0 0.0
    %12068 = vmatpush1.msra.mxu0 0.0
    %12069 = vmatprep.subr.mxu0 0.0
    %12070 = vmatpush1.msra.mxu0 0.0
    %12071 = vmatprep.subr.mxu0 0.0
    %12072 = vmatpush1.msra.mxu0 0.0
    %12073 = vmatprep.subr.mxu0 0.0
    %12074 = vmatpush1.msra.mxu0 0.0
    %12075 = vmatprep.subr.mxu0 0.0
    %12076 = vmatpush1.msra.mxu0 0.0
    %12077 = vmatprep.subr.mxu0 0.0
    %12078 = vmatpush1.msra.mxu0 0.0
    %12079 = vmatprep.subr.mxu0 0.0
    %12080 = vmatpush1.msra.mxu0 0.0
    %12081 = vmatprep.subr.mxu0 0.0
    %12082 = vmatpush1.msra.mxu0 0.0
    %12083 = vmatprep.subr.mxu0 0.0
    %12084 = vmatpush1.msra.mxu0 0.0
    %12085 = vmatprep.mubr.f32.mxu0 0.0
    %v12086 = vand.u32 %v11680, 4294901760
    %12087 = vmatmul.mubr.f32.gmra.mrb[0].mxu0 %v12086
    %v12088 = vpop.f32.mrb[0].mxu0
    %v12089 = vadd.f32 %v12006, %v12088
    %v12090 = vpop.f32.mrb[0].mxu0
    %12091 = vdwg.mxu0
    %12092 = vmatprep.subr.mxu0 0.0
    %v12093 = vand.u32 %v90, 4294901760
    %12094 = vmatpush1.msra.mxu0 %v12093
    %12095 = vmatprep.subr.mxu0 0.0
    %v12096 = vand.u32 %v91, 4294901760
    %12097 = vmatpush1.msra.mxu0 %v12096
    %12098 = vmatprep.subr.mxu0 0.0
    %v12099 = vand.u32 %v92, 4294901760
    %12100 = vmatpush1.msra.mxu0 %v12099
    %12101 = vmatprep.subr.mxu0 0.0
    %v12102 = vand.u32 %v93, 4294901760
    %12103 = vmatpush1.msra.mxu0 %v12102
    %12104 = vmatprep.subr.mxu0 0.0
    %12105 = vmatpush1.msra.mxu0 0.0
    %12106 = vmatprep.subr.mxu0 0.0
    %12107 = vmatpush1.msra.mxu0 0.0
    %12108 = vmatprep.subr.mxu0 0.0
    %12109 = vmatpush1.msra.mxu0 0.0
    %12110 = vmatprep.subr.mxu0 0.0
    %12111 = vmatpush1.msra.mxu0 0.0
    %12112 = vmatprep.subr.mxu0 0.0
    %12113 = vmatpush1.msra.mxu0 0.0
    %12114 = vmatprep.subr.mxu0 0.0
    %12115 = vmatpush1.msra.mxu0 0.0
    %12116 = vmatprep.subr.mxu0 0.0
    %12117 = vmatpush1.msra.mxu0 0.0
    %12118 = vmatprep.subr.mxu0 0.0
    %12119 = vmatpush1.msra.mxu0 0.0
    %12120 = vmatprep.subr.mxu0 0.0
    %12121 = vmatpush1.msra.mxu0 0.0
    %12122 = vmatprep.subr.mxu0 0.0
    %12123 = vmatpush1.msra.mxu0 0.0
    %12124 = vmatprep.subr.mxu0 0.0
    %12125 = vmatpush1.msra.mxu0 0.0
    %12126 = vmatprep.subr.mxu0 0.0
    %12127 = vmatpush1.msra.mxu0 0.0
    %12128 = vmatprep.subr.mxu0 0.0
    %12129 = vmatpush1.msra.mxu0 0.0
    %12130 = vmatprep.subr.mxu0 0.0
    %12131 = vmatpush1.msra.mxu0 0.0
    %12132 = vmatprep.subr.mxu0 0.0
    %12133 = vmatpush1.msra.mxu0 0.0
    %12134 = vmatprep.subr.mxu0 0.0
    %12135 = vmatpush1.msra.mxu0 0.0
    %12136 = vmatprep.subr.mxu0 0.0
    %12137 = vmatpush1.msra.mxu0 0.0
    %12138 = vmatprep.subr.mxu0 0.0
    %12139 = vmatpush1.msra.mxu0 0.0
    %12140 = vmatprep.subr.mxu0 0.0
    %12141 = vmatpush1.msra.mxu0 0.0
    %12142 = vmatprep.subr.mxu0 0.0
    %12143 = vmatpush1.msra.mxu0 0.0
    %12144 = vmatprep.subr.mxu0 0.0
    %12145 = vmatpush1.msra.mxu0 0.0
    %12146 = vmatprep.subr.mxu0 0.0
    %12147 = vmatpush1.msra.mxu0 0.0
    %12148 = vmatprep.subr.mxu0 0.0
    %12149 = vmatpush1.msra.mxu0 0.0
    %12150 = vmatprep.subr.mxu0 0.0
    %12151 = vmatpush1.msra.mxu0 0.0
    %12152 = vmatprep.subr.mxu0 0.0
    %12153 = vmatpush1.msra.mxu0 0.0
    %12154 = vmatprep.subr.mxu0 0.0
    %12155 = vmatpush1.msra.mxu0 0.0
    %12156 = vmatprep.subr.mxu0 0.0
    %12157 = vmatpush1.msra.mxu0 0.0
    %12158 = vmatprep.subr.mxu0 0.0
    %12159 = vmatpush1.msra.mxu0 0.0
    %12160 = vmatprep.mubr.f32.mxu0 0.0
    %v12161 = vand.u32 %v11680, 4294901760
    %12162 = vmatmul.mubr.f32.gmra.mrb[0].mxu0 %v12161
    %v12163 = vpop.f32.mrb[0].mxu0
    %v12164 = vadd.f32 %v12089, %v12163
    %v12165 = vpop.f32.mrb[0].mxu0
    %12166 = vdwg.mxu0
    %12168 = vrot.lane.b32.xlu0 %v11172, 16
    %v12169 = vpop.permute.xlu0 %12168
    %v12171 = vadd.f32 %v12164, %v12169
    %v12172 = vadd.f32 %v12171, %v1568
    %v12173 = vxor.u32 %v12172, 2147483648
    %v12174 = vmul.f32 %v12173, 1.442695
    %v12175 = vpow.pop %v12174
    %v12176 = vadd.f32 %v12175, 1.0
    %v12177 = vrcp.pop %v12176
    %v12178 = vmul.f32 1.0, %v12177
    %v12179 = vsub.f32 1.0, %v12178
    %v12180 = vmul.f32 %v12179, %v10672
    %12182 = vrot.lane.b32.xlu0 %v12164, 16
    %v12183 = vpop.permute.xlu0 %12182
    %v12185 = vmul.f32 %v12178, %v12183
    %v12186 = vadd.f32 %v12180, %v12185
    %v12189 = vunpack.c.l.s4 1966171168
    %v12190 = vunpack.c.0.s8 %v12189
    %v12191 = vlaneseq
    %v12192 = vshrl.u32 %v12191, 7
    %v12193 = vsub.s32 %v12190, %v12192
    %v12194 = vrot.slane %v12186, %v12193
    %v12195 = vcombine.high %v12194, %v12194
    %v12197 = vunpack.c.l.s4 1966171168
    %v12198 = vunpack.c.0.s8 %v12197
    %v12199 = vlaneseq
    %v12200 = vshrl.u32 %v12199, 7
    %v12201 = vsub.s32 %v12198, %v12200
    %v12202 = vrot.slane %v12194, %v12201
    %v12204 = vunpack.c.l.s4 1966171168
    %v12205 = vunpack.c.0.s8 %v12204
    %v12206 = vlaneseq
    %v12207 = vshrl.u32 %v12206, 7
    %v12208 = vsub.s32 %v12205, %v12207
    %v12209 = vrot.slane %v12195, %v12208
    %v12210 = vlaneseq
    %v12211 = vshrl.u32 %v12210, 7
    %v12212 = vsub.s32 0, %v12211
    %v12213 = vrot.slane %v12202, %v12212
    %v12214 = vlaneseq
    %v12215 = vshrl.u32 %v12214, 7
    %v12216 = vsub.s32 0, %v12215
    %v12217 = vrot.slane %v12209, %v12216
    %12218 = vrot.lane.b32.xlu0 %v12213, 112
    %v12219 = vpop.permute.xlu0 %12218
    %12220 = vrot.lane.b32.xlu0 %v12217, 112
    %v12221 = vpop.permute.xlu0 %12220
    %12224 = vst.msk [vmem:[#allocation12 + $0x7] sm:$0x1] %vm1625, %v12219
    %12225 = vst.msk [vmem:[#allocation12 + $0xf] sm:$0x1] %vm1625, %v12221
    %vm12226 = vcmask 254976
    %12227 = vst.msk [vmem:[#allocation2] sm:$0x3] %vm12226, %v11678
    %12228 = vrot.lane.b32.xlu0 %v12186, 112
    %v12229 = vpop.permute.xlu0 %12228
    %vm12231 = vcmask 123904
    %12232 = vst.msk [vmem:[#allocation3] sm:$0x3] %vm12231, %v12229
    // Predicated region
    $region42: #{tpu_custom_call.1} parent=1 // pred_check
      _
    $region43: #{tpu_custom_call.1} parent=1 // pred_check_branch
      %12234 = sbr.rel (0) target = $region45
    $region44: #{tpu_custom_call.1} parent=1 // pred_region
      %s12236 = ssub.s32 256, 256
      %12237 = vsyncadd [#allocation6], %s12236
      %s12238 = sshll.u32 [#allocation12], 4
      %s12239 = int_to_ptr.vmem [resolvable:$true] %s12238
      %12244 = dma.vmem_to_hbm [thread:$0]  %s12239, 256, %s5, [#allocation6], 128, 128, 8
    $region45: #{tpu_custom_call.1} parent=1 // pred_fallthru
      _
    // Predicated region
    $region46: #{tpu_custom_call.1} parent=1 // pred_check
      _
    $region47: #{tpu_custom_call.1} parent=1 // pred_check_branch
      %12246 = sbr.rel (0) target = $region49
    $region48: #{tpu_custom_call.1} parent=1 // pred_region
      %12247 = dma.done [#allocation6], 256
    $region49: #{tpu_custom_call.1} parent=1 // pred_fallthru
      _
    %12248 = vsyncpa [#allocation5], 1
    %12249 = vsyncpa [#allocation8], 1
    %12250 = vsyncpa [#allocation11], 1
    %12251 = vsyncpa [#allocation6], 1

</llo_original>
